<compile_context>
chip_gen: v7x
topology: tpu7x:2x2x1
jax: 0.10.0
libtpu: 0.0.40
codegen_flags: <defaults>
</compile_context>

<pallas_src>
import math
import functools

import jax
import jax.numpy as jnp
from jax.experimental import pallas as pl
from jax.experimental.pallas import tpu as pltpu


# ---------------------------------------------------------------------------
# Fused kernel: [multi-head multi-layer LSTM] -> [graph convs] -> [FC heads].
# Runs once (grid=(1,)), every operand resident in VMEM (2 input DMAs total).
# ---------------------------------------------------------------------------
def _gclstm_kernel(x_ref, slab_ref, o_ref, *scratch,
                   seq, batch, lstm_meta, gc_meta, fc_meta):
    f32 = jnp.float32
    cur = x_ref[...]                                      # (S*Bp, Din)

    si = 0
    for (din, nhh, aligned, wih_off, whh_off, b_off) in lstm_meta:
        gx_sc = scratch[si]
        h_all = scratch[si + 1]
        si += 2

        # Hoisted, gate-fused input projection for all timesteps & heads:
        # a single (S*Bp, din) @ (din, 4*nhh) matmul + bias.
        wih = slab_ref[wih_off:wih_off + din, :4 * nhh]
        bias = slab_ref[b_off:b_off + 1, :4 * nhh]
        gx = jnp.dot(cur, wih, preferred_element_type=f32) + bias   # (S*Bp, 4*nhh)

        whh = slab_ref[whh_off:whh_off + nhh, :4 * nhh]             # (nhh, 4*nhh)

        if aligned:
            # Gate blocks are 128-lane aligned: keep gx fused; one recurrent
            # matmul per step; one sigmoid over the [i|f|o] slab + one tanh.
            gx_sc[...] = gx
        else:
            # nhh not a multiple of 128: split per gate once here (one-time
            # lane slicing) so the serial recurrence never slices sub-128 lanes.
            for k in range(4):
                gx_sc[k] = gx[:, k * nhh:(k + 1) * nhh]
            whh_k = [whh[:, k * nhh:(k + 1) * nhh] for k in range(4)]
            # TODO(synk): optionally pad nhh up to 128 lanes so this layer can
            # also use the fused single-matmul recurrence.

        # TODO(synk): on v5e, whh could be kept weight-stationary on the MXU via
        # pltpu.matmul_push_rhs/acc_lhs/pop (and MRB-accumulated on v7x);
        # skipped here in favour of the portable fused jnp.dot form.
        h = jnp.zeros((batch, nhh), f32)
        c = jnp.zeros((batch, nhh), f32)
        for t in range(seq):                              # seq is small: unroll
            lo = t * batch
            if aligned:
                gp = gx_sc[lo:lo + batch, :] + jnp.dot(
                    h, whh, preferred_element_type=f32)   # (batch, 4*nhh)
                s = jax.nn.sigmoid(gp[:, :3 * nhh])       # [i | f | o] slab
                g = jnp.tanh(gp[:, 3 * nhh:])
                i_g = s[:, :nhh]
                f_g = s[:, nhh:2 * nhh]
                o_g = s[:, 2 * nhh:3 * nhh]
            else:
                i_g = jax.nn.sigmoid(gx_sc[0, lo:lo + batch, :] + jnp.dot(
                    h, whh_k[0], preferred_element_type=f32))
                f_g = jax.nn.sigmoid(gx_sc[1, lo:lo + batch, :] + jnp.dot(
                    h, whh_k[1], preferred_element_type=f32))
                o_g = jax.nn.sigmoid(gx_sc[2, lo:lo + batch, :] + jnp.dot(
                    h, whh_k[2], preferred_element_type=f32))
                g = jnp.tanh(gx_sc[3, lo:lo + batch, :] + jnp.dot(
                    h, whh_k[3], preferred_element_type=f32))
            c = f_g * c + i_g * g
            h = o_g * jnp.tanh(c)
            h_all[lo:lo + batch, :] = h
        cur = h_all[...]                                  # (S*Bp, NH*h_l)

    # Graph conv: relu(adj @ (feat @ W)) == relu(feat_flat @ kron(adj.T, W)) --
    # a single host-fused matmul per GC layer.
    for (cin_t, cout_t, w_off) in gc_meta:
        w = slab_ref[w_off:w_off + cin_t, :cout_t]
        cur = jnp.maximum(jnp.dot(cur, w, preferred_element_type=f32), 0.0)

    # Per-head FC stacks (block-diagonal weights); ReLU on all but the last.
    nfc = len(fc_meta)
    for j, (din_t, dout_t, w_off, b_off) in enumerate(fc_meta):
        w = slab_ref[w_off:w_off + din_t, :dout_t]
        b = slab_ref[b_off:b_off + 1, :dout_t]
        cur = jnp.dot(cur, w, preferred_element_type=f32) + b
        if j < nfc - 1:
            cur = jnp.maximum(cur, 0.0)

    # TODO(synk): output last dim (n_output) < 128 -> masked stores; negligible
    # at this size, pad to a lane-dense block only if shapes ever scale up.
    o_ref[...] = cur.astype(o_ref.dtype)


# ---------------------------------------------------------------------------
# Host-side wrapper: pad batch to a sublane multiple, call the fused kernel.
# ---------------------------------------------------------------------------
def gclstm_forward(slab, meta, x, n_output):
    S, B, Din = x.shape
    Bp = ((B + 7) // 8) * 8                 # pad batch to a multiple of 8 sublanes
    if Bp != B:
        x = jnp.pad(x, ((0, 0), (0, Bp - B), (0, 0)))
    x_flat = x.reshape(S * Bp, Din)
    sb = S * Bp

    scratch = []
    for (din, nhh, aligned, _wo, _ho, _bo) in meta["lstm"]:
        if aligned:
            scratch.append(pltpu.VMEM((sb, 4 * nhh), jnp.float32))   # fused gx
        else:
            scratch.append(pltpu.VMEM((4, sb, nhh), jnp.float32))    # per-gate gx
        scratch.append(pltpu.VMEM((sb, nhh), jnp.float32))           # h over time

    kernel = functools.partial(
        _gclstm_kernel, seq=S, batch=Bp,
        lstm_meta=meta["lstm"], gc_meta=meta["gc"], fc_meta=meta["fc"])

    # TODO(synk): at larger seq*batch, shard the independent heads / batch
    # across the 2 TensorCores on v7x; not worth it at this tiny size.
    out = pl.pallas_call(
        kernel,
        out_shape=jax.ShapeDtypeStruct((sb, n_output), jnp.float32),
        grid_spec=pltpu.PrefetchScalarGridSpec(
            num_scalar_prefetch=0,
            grid=(1,),
            in_specs=[pl.BlockSpec(x_flat.shape, lambda i: (0, 0)),
                      pl.BlockSpec(slab.shape, lambda i: (0, 0))],
            out_specs=pl.BlockSpec((sb, n_output), lambda i: (0, 0)),
            scratch_shapes=scratch,
        ),
        compiler_params=pltpu.CompilerParams(
            dimension_semantics=("arbitrary",)),
    )(x_flat, slab)

    return out.reshape(S, Bp, n_output)[:, :B, :]       # (S, B, n_output)


# ---------------------------------------------------------------------------
# Parameter init (same layout/semantics as the PyTorch module).
# Per head / per layer: w_ih (Din, 4H), w_hh (H, 4H), b = b_ih + b_hh (1, 4H),
# gate order [i, f, g, o].
# ---------------------------------------------------------------------------
def init_params(key, n_input, n_lstm, n_gc, n_fc, n_output):
    n_lstm_dims = [n_input] + list(n_lstm)
    n_gc_dims = [n_lstm[-1]] + list(n_gc)
    n_fc_dims = [n_gc[-1]] + list(n_fc) + [1]

    def uni(k, shape, bound):
        return jax.random.uniform(k, shape, jnp.float32, -bound, bound)

    params = {"lstm": [], "gc": [], "fc": []}
    for _ in range(n_output):
        layers = []
        for j in range(len(n_lstm)):
            din, h = n_lstm_dims[j], n_lstm_dims[j + 1]
            bound = 1.0 / math.sqrt(h)
            key, k1, k2, k3, k4 = jax.random.split(key, 5)
            w_ih = uni(k1, (din, 4 * h), bound)
            w_hh = uni(k2, (h, 4 * h), bound)
            b = uni(k3, (1, 4 * h), bound) + uni(k4, (1, 4 * h), bound)
            layers.append((w_ih, w_hh, b))
        params["lstm"].append(layers)
    for i in range(len(n_gc)):
        cin = n_gc_dims[i]
        key, k1 = jax.random.split(key)
        params["gc"].append(uni(k1, (cin, n_gc_dims[i + 1]), 1.0 / math.sqrt(cin)))
    for _ in range(n_output):
        layers = []
        for j in range(len(n_fc_dims) - 1):
            din, dout = n_fc_dims[j], n_fc_dims[j + 1]
            bound = 1.0 / math.sqrt(din)
            key, k1, k2 = jax.random.split(key, 3)
            w = uni(k1, (din, dout), bound)
            b = uni(k2, (1, dout), bound)
            relu = j < len(n_fc_dims) - 2
            layers.append((w, b, relu))
        params["fc"].append(layers)
    return params


# ---------------------------------------------------------------------------
# Pack per-head parameters into fused (head-concatenated / block-diagonal /
# kron-fused) matrices, then into ONE contiguous f32 slab + static metadata.
# ---------------------------------------------------------------------------
def pack_params(params, adj, n_input, n_lstm, n_gc, n_fc, n_output):
    NH = n_output
    GATE_SRC = (0, 1, 3, 2)   # packed gate order [i, f, o, g]; stored [i, f, g, o]

    def block_diag(bs):
        rows = sum(b.shape[0] for b in bs)
        cols = sum(b.shape[1] for b in bs)
        out = jnp.zeros((rows, cols), jnp.float32)
        r = c = 0
        for b in bs:
            out = out.at[r:r + b.shape[0], c:c + b.shape[1]].set(b)
            r += b.shape[0]
            c += b.shape[1]
        return out

    blocks = []

    def add(b):
        blocks.append(b.astype(jnp.float32))
        return len(blocks) - 1

    # --- LSTM: gate-fused, head-packed weights -------------------------------
    n_lstm_dims = [n_input] + list(n_lstm)
    lstm_info = []
    for l in range(len(n_lstm)):
        h = n_lstm[l]
        nhh = NH * h
        din = n_lstm_dims[l] if l == 0 else NH * n_lstm_dims[l]
        wih_g, whh_g, b_g = [], [], []
        for k in GATE_SRC:
            ih = [params["lstm"][i][l][0][:, k * h:(k + 1) * h] for i in range(NH)]
            hh = [params["lstm"][i][l][1][:, k * h:(k + 1) * h] for i in range(NH)]
            bb = [params["lstm"][i][l][2][:, k * h:(k + 1) * h] for i in range(NH)]
            # layer 0: shared input x -> head-concat; deeper: per-head -> blockdiag
            wih_g.append(jnp.concatenate(ih, axis=1) if l == 0 else block_diag(ih))
            whh_g.append(block_diag(hh))
            b_g.append(jnp.concatenate(bb, axis=1))
        lstm_info.append((din, nhh,
                          add(jnp.concatenate(wih_g, axis=1)),   # (din, 4*nhh)
                          add(jnp.concatenate(whh_g, axis=1)),   # (nhh, 4*nhh)
                          add(jnp.concatenate(b_g, axis=1))))    # (1, 4*nhh)

    # --- Graph conv: host-fuse both matmuls into kron(adj.T, W) --------------
    n_gc_dims = [n_lstm[-1]] + list(n_gc)
    gc_info = []
    for g, w in enumerate(params["gc"]):
        cin, cout = n_gc_dims[g], n_gc_dims[g + 1]
        gc_info.append((NH * cin, NH * cout, add(jnp.kron(adj.T, w))))

    # --- FC: per-head stacks as block-diag weights + concatenated biases -----
    fc_info = []
    num_fc = len(params["fc"][0])
    for j in range(num_fc):
        ws = [params["fc"][i][j][0] for i in range(NH)]
        bs = [params["fc"][i][j][1] for i in range(NH)]
        din_t = sum(int(w.shape[0]) for w in ws)
        dout_t = sum(int(w.shape[1]) for w in ws)
        fc_info.append((din_t, dout_t, add(block_diag(ws)),
                        add(jnp.concatenate(bs, axis=1))))

    # --- Pack everything into ONE slab (single prologue DMA) -----------------
    width = max(int(b.shape[1]) for b in blocks)
    width = ((width + 127) // 128) * 128
    row_off, offs, padded = 0, [], []
    for b in blocks:
        rp = ((int(b.shape[0]) + 7) // 8) * 8     # 8-sublane-aligned row offsets
        padded.append(jnp.zeros((rp, width), jnp.float32)
                      .at[:b.shape[0], :b.shape[1]].set(b))
        offs.append(row_off)
        row_off += rp
    slab = jnp.concatenate(padded, axis=0)

    meta = {
        "lstm": tuple((din, nhh, nhh % 128 == 0, offs[a], offs[b_], offs[c_])
                      for (din, nhh, a, b_, c_) in lstm_info),
        "gc": tuple((cin_t, cout_t, offs[a]) for (cin_t, cout_t, a) in gc_info),
        "fc": tuple((din_t, dout_t, offs[a], offs[b_])
                    for (din_t, dout_t, a, b_) in fc_info),
    }
    # TODO(synk): bf16 weights for the MXU would cut matmul passes ~3x but
    # breaks the 1e-4 match against the f32 reference; kept f32.
    return slab, meta


# ---------------------------------------------------------------------------
# Pure-JAX reference (for correctness check of the Pallas implementation).
# ---------------------------------------------------------------------------
def _lstm_layer_ref(x, w_ih, w_hh, b):
    S, B, _ = x.shape
    H = w_hh.shape[0]

    def step(carry, x_t):
        h, c = carry
        g = x_t @ w_ih + h @ w_hh + b
        i = jax.nn.sigmoid(g[:, :H]); f = jax.nn.sigmoid(g[:, H:2 * H])
        gg = jnp.tanh(g[:, 2 * H:3 * H]); o = jax.nn.sigmoid(g[:, 3 * H:])
        c = f * c + i * gg
        h = o * jnp.tanh(c)
        return (h, c), h

    init = (jnp.zeros((B, H), jnp.float32), jnp.zeros((B, H), jnp.float32))
    _, ys = jax.lax.scan(step, init, x)
    return ys


def gclstm_ref(params, x, adj, n_output):
    feats = []
    for i in range(n_output):
        feat = x
        for (w_ih, w_hh, b) in params["lstm"][i]:
            feat = _lstm_layer_ref(feat, w_ih, w_hh, b)
        feats.append(feat)
    feat = jnp.stack(feats, axis=2)
    for w in params["gc"]:
        feat = jnp.maximum(jnp.einsum("nm,sbmc->sbnc", adj, feat @ w), 0.0)
    res_list = []
    for i in range(n_output):
        res = feat[:, :, i, :]
        for (w, b, relu) in params["fc"][i]:
            res = res @ w + b
            if relu:
                res = jnp.maximum(res, 0.0)
        res_list.append(res)
    return jnp.squeeze(jnp.stack(res_list, axis=3), axis=2)


if __name__ == "__main__":
    # GCLSTM(n_input, n_lstm, n_gc, n_fc, n_output)
    n_input = 8
    n_lstm = (16, 32)
    n_gc = (32, 16)
    n_fc = (8,)
    n_output = 4
    seq, batch = 8, 4

    key = jax.random.PRNGKey(0)
    kx, kadj, kp = jax.random.split(key, 3)
    x = jax.random.normal(kx, (seq, batch, n_input), jnp.float32)
    adj = jax.random.uniform(kadj, (n_output, n_output), jnp.float32)
    adj = adj / jnp.sum(adj, axis=1, keepdims=True)   # row-normalized adjacency

    params = init_params(kp, n_input, n_lstm, n_gc, n_fc, n_output)
    slab, meta = pack_params(params, adj, n_input, n_lstm, n_gc, n_fc, n_output)

    out = gclstm_forward(slab, meta, x, n_output)
    out = jax.block_until_ready(out)

    ref = jax.block_until_ready(gclstm_ref(params, x, adj, n_output))
    assert out.shape == (seq, batch, n_output), out.shape
    err = float(jnp.max(jnp.abs(out - ref)))
    assert jnp.allclose(out, ref, rtol=1e-4, atol=1e-4), err

    print("KERNEL_OK")
</pallas_src>

<mosaic_0001>
module attributes {stable_mosaic.version = 11 : i64} {
  func.func @_gclstm_kernel(%arg0: i32, %arg1: memref<64x8xf32, #tpu.memory_space<vmem>>, %arg2: memref<648x512xf32, #tpu.memory_space<vmem>>, %arg3: memref<64x4xf32, #tpu.memory_space<vmem>>, %arg4: memref<4x64x64xf32, #tpu.memory_space<vmem>>, %arg5: memref<64x64xf32, #tpu.memory_space<vmem>>, %arg6: memref<64x512xf32, #tpu.memory_space<vmem>>, %arg7: memref<64x128xf32, #tpu.memory_space<vmem>>) attributes {dimension_semantics = [#tpu.dimension_semantics<arbitrary>], iteration_bounds = array<i64: 1>, scalar_prefetch = 0 : i64, scratch_operands = 4 : i64, tpu.core_type = #tpu.core_type<tc>, window_params = [{pipeline_mode = #tpu.pipeline_mode<synchronous>, transform_indices = @transform_0, window_bounds = array<i64: 64, 8>}, {pipeline_mode = #tpu.pipeline_mode<synchronous>, transform_indices = @transform_1, window_bounds = array<i64: 648, 512>}, {pipeline_mode = #tpu.pipeline_mode<synchronous>, transform_indices = @transform_2, window_bounds = array<i64: 64, 4>}]} {
    %c0 = arith.constant 0 : index
    %c0_0 = arith.constant 0 : index
    %0 = vector.load %arg1[%c0, %c0_0] : memref<64x8xf32, #tpu.memory_space<vmem>>, vector<64x8xf32>
    %c0_1 = arith.constant 0 : index
    %c0_2 = arith.constant 0 : index
    %1 = vector.load %arg2[%c0_1, %c0_2] : memref<648x512xf32, #tpu.memory_space<vmem>>, vector<8x256xf32>
    %c72 = arith.constant 72 : index
    %c0_3 = arith.constant 0 : index
    %2 = vector.load %arg2[%c72, %c0_3] : memref<648x512xf32, #tpu.memory_space<vmem>>, vector<1x256xf32>
    %cst = arith.constant dense<0.000000e+00> : vector<64x256xf32>
    %3 = tpu.matmul %0, %1, %cst {dimension_numbers = #tpu.dot_dimension_numbers<[1], [0], [0], [1], [0, 0, 1, 1], [], []>} : vector<64x8xf32>, vector<8x256xf32>, vector<64x256xf32> -> vector<64x256xf32>
    %4 = vector.broadcast %2 : vector<1x256xf32> to vector<64x256xf32>
    %5 = arith.addf %3, %4 : vector<64x256xf32>
    %c8 = arith.constant 8 : index
    %c0_4 = arith.constant 0 : index
    %6 = vector.load %arg2[%c8, %c0_4] : memref<648x512xf32, #tpu.memory_space<vmem>>, vector<64x256xf32>
    %7 = vector.extract_strided_slice %5 {offsets = [0, 0], sizes = [64, 64], strides = [1, 1]} : vector<64x256xf32> to vector<64x64xf32>
    %c0_5 = arith.constant 0 : index
    %c0_6 = arith.constant 0 : index
    %c0_7 = arith.constant 0 : index
    %8 = vector.load %arg4[%c0_5, %c0_6, %c0_7] : memref<4x64x64xf32, #tpu.memory_space<vmem>>, vector<1x64x64xf32>
    %9 = vector.shape_cast %8 : vector<1x64x64xf32> to vector<64x64xf32>
    %10 = vector.shape_cast %7 : vector<64x64xf32> to vector<1x64x64xf32>
    tpu.vector_store %arg4[%c0_5, %c0_6, %c0_7], %10 {strides = array<i32>} : memref<4x64x64xf32, #tpu.memory_space<vmem>>, vector<1x64x64xf32>,
    %11 = vector.extract_strided_slice %5 {offsets = [0, 64], sizes = [64, 64], strides = [1, 1]} : vector<64x256xf32> to vector<64x64xf32>
    %c1 = arith.constant 1 : index
    %c0_8 = arith.constant 0 : index
    %c0_9 = arith.constant 0 : index
    %12 = vector.load %arg4[%c1, %c0_8, %c0_9] : memref<4x64x64xf32, #tpu.memory_space<vmem>>, vector<1x64x64xf32>
    %13 = vector.shape_cast %12 : vector<1x64x64xf32> to vector<64x64xf32>
    %14 = vector.shape_cast %11 : vector<64x64xf32> to vector<1x64x64xf32>
    tpu.vector_store %arg4[%c1, %c0_8, %c0_9], %14 {strides = array<i32>} : memref<4x64x64xf32, #tpu.memory_space<vmem>>, vector<1x64x64xf32>,
    %15 = vector.extract_strided_slice %5 {offsets = [0, 128], sizes = [64, 64], strides = [1, 1]} : vector<64x256xf32> to vector<64x64xf32>
    %c2 = arith.constant 2 : index
    %c0_10 = arith.constant 0 : index
    %c0_11 = arith.constant 0 : index
    %16 = vector.load %arg4[%c2, %c0_10, %c0_11] : memref<4x64x64xf32, #tpu.memory_space<vmem>>, vector<1x64x64xf32>
    %17 = vector.shape_cast %16 : vector<1x64x64xf32> to vector<64x64xf32>
    %18 = vector.shape_cast %15 : vector<64x64xf32> to vector<1x64x64xf32>
    tpu.vector_store %arg4[%c2, %c0_10, %c0_11], %18 {strides = array<i32>} : memref<4x64x64xf32, #tpu.memory_space<vmem>>, vector<1x64x64xf32>,
    %19 = vector.extract_strided_slice %5 {offsets = [0, 192], sizes = [64, 64], strides = [1, 1]} : vector<64x256xf32> to vector<64x64xf32>
    %c3 = arith.constant 3 : index
    %c0_12 = arith.constant 0 : index
    %c0_13 = arith.constant 0 : index
    %20 = vector.load %arg4[%c3, %c0_12, %c0_13] : memref<4x64x64xf32, #tpu.memory_space<vmem>>, vector<1x64x64xf32>
    %21 = vector.shape_cast %20 : vector<1x64x64xf32> to vector<64x64xf32>
    %22 = vector.shape_cast %19 : vector<64x64xf32> to vector<1x64x64xf32>
    tpu.vector_store %arg4[%c3, %c0_12, %c0_13], %22 {strides = array<i32>} : memref<4x64x64xf32, #tpu.memory_space<vmem>>, vector<1x64x64xf32>,
    %23 = vector.extract_strided_slice %6 {offsets = [0, 0], sizes = [64, 64], strides = [1, 1]} : vector<64x256xf32> to vector<64x64xf32>
    %24 = vector.extract_strided_slice %6 {offsets = [0, 64], sizes = [64, 64], strides = [1, 1]} : vector<64x256xf32> to vector<64x64xf32>
    %25 = vector.extract_strided_slice %6 {offsets = [0, 128], sizes = [64, 64], strides = [1, 1]} : vector<64x256xf32> to vector<64x64xf32>
    %26 = vector.extract_strided_slice %6 {offsets = [0, 192], sizes = [64, 64], strides = [1, 1]} : vector<64x256xf32> to vector<64x64xf32>
    %cst_14 = arith.constant 0.000000e+00 : f32
    %27 = vector.broadcast %cst_14 : f32 to vector<8x64xf32>
    %cst_15 = arith.constant 0.000000e+00 : f32
    %28 = vector.broadcast %cst_15 : f32 to vector<8x64xf32>
    %c0_16 = arith.constant 0 : index
    %c0_17 = arith.constant 0 : index
    %c0_18 = arith.constant 0 : index
    %29 = vector.load %arg4[%c0_16, %c0_17, %c0_18] : memref<4x64x64xf32, #tpu.memory_space<vmem>>, vector<1x8x64xf32>
    %30 = vector.shape_cast %29 : vector<1x8x64xf32> to vector<8x64xf32>
    %cst_19 = arith.constant dense<0.000000e+00> : vector<8x64xf32>
    %31 = tpu.matmul %27, %23, %cst_19 {dimension_numbers = #tpu.dot_dimension_numbers<[1], [0], [0], [1], [0, 0, 1, 1], [], []>} : vector<8x64xf32>, vector<64x64xf32>, vector<8x64xf32> -> vector<8x64xf32>
    %32 = arith.addf %30, %31 : vector<8x64xf32>
    %33 = arith.negf %32 : vector<8x64xf32>
    %34 = math.exp %33 : vector<8x64xf32>
    %cst_20 = arith.constant 1.000000e+00 : f32
    %35 = vector.broadcast %cst_20 : f32 to vector<8x64xf32>
    %36 = arith.addf %35, %34 : vector<8x64xf32>
    %37 = arith.divf %35, %36 : vector<8x64xf32>
    %c1_21 = arith.constant 1 : index
    %c0_22 = arith.constant 0 : index
    %c0_23 = arith.constant 0 : index
    %38 = vector.load %arg4[%c1_21, %c0_22, %c0_23] : memref<4x64x64xf32, #tpu.memory_space<vmem>>, vector<1x8x64xf32>
    %39 = vector.shape_cast %38 : vector<1x8x64xf32> to vector<8x64xf32>
    %cst_24 = arith.constant dense<0.000000e+00> : vector<8x64xf32>
    %40 = tpu.matmul %27, %24, %cst_24 {dimension_numbers = #tpu.dot_dimension_numbers<[1], [0], [0], [1], [0, 0, 1, 1], [], []>} : vector<8x64xf32>, vector<64x64xf32>, vector<8x64xf32> -> vector<8x64xf32>
    %41 = arith.addf %39, %40 : vector<8x64xf32>
    %42 = arith.negf %41 : vector<8x64xf32>
    %43 = math.exp %42 : vector<8x64xf32>
    %cst_25 = arith.constant 1.000000e+00 : f32
    %44 = vector.broadcast %cst_25 : f32 to vector<8x64xf32>
    %45 = arith.addf %44, %43 : vector<8x64xf32>
    %46 = arith.divf %44, %45 : vector<8x64xf32>
    %c2_26 = arith.constant 2 : index
    %c0_27 = arith.constant 0 : index
    %c0_28 = arith.constant 0 : index
    %47 = vector.load %arg4[%c2_26, %c0_27, %c0_28] : memref<4x64x64xf32, #tpu.memory_space<vmem>>, vector<1x8x64xf32>
    %48 = vector.shape_cast %47 : vector<1x8x64xf32> to vector<8x64xf32>
    %cst_29 = arith.constant dense<0.000000e+00> : vector<8x64xf32>
    %49 = tpu.matmul %27, %25, %cst_29 {dimension_numbers = #tpu.dot_dimension_numbers<[1], [0], [0], [1], [0, 0, 1, 1], [], []>} : vector<8x64xf32>, vector<64x64xf32>, vector<8x64xf32> -> vector<8x64xf32>
    %50 = arith.addf %48, %49 : vector<8x64xf32>
    %51 = arith.negf %50 : vector<8x64xf32>
    %52 = math.exp %51 : vector<8x64xf32>
    %cst_30 = arith.constant 1.000000e+00 : f32
    %53 = vector.broadcast %cst_30 : f32 to vector<8x64xf32>
    %54 = arith.addf %53, %52 : vector<8x64xf32>
    %55 = arith.divf %53, %54 : vector<8x64xf32>
    %c3_31 = arith.constant 3 : index
    %c0_32 = arith.constant 0 : index
    %c0_33 = arith.constant 0 : index
    %56 = vector.load %arg4[%c3_31, %c0_32, %c0_33] : memref<4x64x64xf32, #tpu.memory_space<vmem>>, vector<1x8x64xf32>
    %57 = vector.shape_cast %56 : vector<1x8x64xf32> to vector<8x64xf32>
    %cst_34 = arith.constant dense<0.000000e+00> : vector<8x64xf32>
    %58 = tpu.matmul %27, %26, %cst_34 {dimension_numbers = #tpu.dot_dimension_numbers<[1], [0], [0], [1], [0, 0, 1, 1], [], []>} : vector<8x64xf32>, vector<64x64xf32>, vector<8x64xf32> -> vector<8x64xf32>
    %59 = arith.addf %57, %58 : vector<8x64xf32>
    %60 = math.tanh %59 : vector<8x64xf32>
    %61 = arith.mulf %46, %28 : vector<8x64xf32>
    %62 = arith.mulf %37, %60 : vector<8x64xf32>
    %63 = arith.addf %61, %62 : vector<8x64xf32>
    %64 = math.tanh %63 : vector<8x64xf32>
    %65 = arith.mulf %55, %64 : vector<8x64xf32>
    %c0_35 = arith.constant 0 : index
    %c0_36 = arith.constant 0 : index
    %66 = vector.load %arg5[%c0_35, %c0_36] : memref<64x64xf32, #tpu.memory_space<vmem>>, vector<8x64xf32>
    tpu.vector_store %arg5[%c0_35, %c0_36], %65 {strides = array<i32>} : memref<64x64xf32, #tpu.memory_space<vmem>>, vector<8x64xf32>,
    %c0_37 = arith.constant 0 : index
    %c8_38 = arith.constant 8 : index
    %c0_39 = arith.constant 0 : index
    %67 = vector.load %arg4[%c0_37, %c8_38, %c0_39] : memref<4x64x64xf32, #tpu.memory_space<vmem>>, vector<1x8x64xf32>
    %68 = vector.shape_cast %67 : vector<1x8x64xf32> to vector<8x64xf32>
    %cst_40 = arith.constant dense<0.000000e+00> : vector<8x64xf32>
    %69 = tpu.matmul %65, %23, %cst_40 {dimension_numbers = #tpu.dot_dimension_numbers<[1], [0], [0], [1], [0, 0, 1, 1], [], []>} : vector<8x64xf32>, vector<64x64xf32>, vector<8x64xf32> -> vector<8x64xf32>
    %70 = arith.addf %68, %69 : vector<8x64xf32>
    %71 = arith.negf %70 : vector<8x64xf32>
    %72 = math.exp %71 : vector<8x64xf32>
    %cst_41 = arith.constant 1.000000e+00 : f32
    %73 = vector.broadcast %cst_41 : f32 to vector<8x64xf32>
    %74 = arith.addf %73, %72 : vector<8x64xf32>
    %75 = arith.divf %73, %74 : vector<8x64xf32>
    %c1_42 = arith.constant 1 : index
    %c8_43 = arith.constant 8 : index
    %c0_44 = arith.constant 0 : index
    %76 = vector.load %arg4[%c1_42, %c8_43, %c0_44] : memref<4x64x64xf32, #tpu.memory_space<vmem>>, vector<1x8x64xf32>
    %77 = vector.shape_cast %76 : vector<1x8x64xf32> to vector<8x64xf32>
    %cst_45 = arith.constant dense<0.000000e+00> : vector<8x64xf32>
    %78 = tpu.matmul %65, %24, %cst_45 {dimension_numbers = #tpu.dot_dimension_numbers<[1], [0], [0], [1], [0, 0, 1, 1], [], []>} : vector<8x64xf32>, vector<64x64xf32>, vector<8x64xf32> -> vector<8x64xf32>
    %79 = arith.addf %77, %78 : vector<8x64xf32>
    %80 = arith.negf %79 : vector<8x64xf32>
    %81 = math.exp %80 : vector<8x64xf32>
    %cst_46 = arith.constant 1.000000e+00 : f32
    %82 = vector.broadcast %cst_46 : f32 to vector<8x64xf32>
    %83 = arith.addf %82, %81 : vector<8x64xf32>
    %84 = arith.divf %82, %83 : vector<8x64xf32>
    %c2_47 = arith.constant 2 : index
    %c8_48 = arith.constant 8 : index
    %c0_49 = arith.constant 0 : index
    %85 = vector.load %arg4[%c2_47, %c8_48, %c0_49] : memref<4x64x64xf32, #tpu.memory_space<vmem>>, vector<1x8x64xf32>
    %86 = vector.shape_cast %85 : vector<1x8x64xf32> to vector<8x64xf32>
    %cst_50 = arith.constant dense<0.000000e+00> : vector<8x64xf32>
    %87 = tpu.matmul %65, %25, %cst_50 {dimension_numbers = #tpu.dot_dimension_numbers<[1], [0], [0], [1], [0, 0, 1, 1], [], []>} : vector<8x64xf32>, vector<64x64xf32>, vector<8x64xf32> -> vector<8x64xf32>
    %88 = arith.addf %86, %87 : vector<8x64xf32>
    %89 = arith.negf %88 : vector<8x64xf32>
    %90 = math.exp %89 : vector<8x64xf32>
    %cst_51 = arith.constant 1.000000e+00 : f32
    %91 = vector.broadcast %cst_51 : f32 to vector<8x64xf32>
    %92 = arith.addf %91, %90 : vector<8x64xf32>
    %93 = arith.divf %91, %92 : vector<8x64xf32>
    %c3_52 = arith.constant 3 : index
    %c8_53 = arith.constant 8 : index
    %c0_54 = arith.constant 0 : index
    %94 = vector.load %arg4[%c3_52, %c8_53, %c0_54] : memref<4x64x64xf32, #tpu.memory_space<vmem>>, vector<1x8x64xf32>
    %95 = vector.shape_cast %94 : vector<1x8x64xf32> to vector<8x64xf32>
    %cst_55 = arith.constant dense<0.000000e+00> : vector<8x64xf32>
    %96 = tpu.matmul %65, %26, %cst_55 {dimension_numbers = #tpu.dot_dimension_numbers<[1], [0], [0], [1], [0, 0, 1, 1], [], []>} : vector<8x64xf32>, vector<64x64xf32>, vector<8x64xf32> -> vector<8x64xf32>
    %97 = arith.addf %95, %96 : vector<8x64xf32>
    %98 = math.tanh %97 : vector<8x64xf32>
    %99 = arith.mulf %84, %63 : vector<8x64xf32>
    %100 = arith.mulf %75, %98 : vector<8x64xf32>
    %101 = arith.addf %99, %100 : vector<8x64xf32>
    %102 = math.tanh %101 : vector<8x64xf32>
    %103 = arith.mulf %93, %102 : vector<8x64xf32>
    %c8_56 = arith.constant 8 : index
    %c0_57 = arith.constant 0 : index
    %104 = vector.load %arg5[%c8_56, %c0_57] : memref<64x64xf32, #tpu.memory_space<vmem>>, vector<8x64xf32>
    tpu.vector_store %arg5[%c8_56, %c0_57], %103 {strides = array<i32>} : memref<64x64xf32, #tpu.memory_space<vmem>>, vector<8x64xf32>,
    %c0_58 = arith.constant 0 : index
    %c16 = arith.constant 16 : index
    %c0_59 = arith.constant 0 : index
    %105 = vector.load %arg4[%c0_58, %c16, %c0_59] : memref<4x64x64xf32, #tpu.memory_space<vmem>>, vector<1x8x64xf32>
    %106 = vector.shape_cast %105 : vector<1x8x64xf32> to vector<8x64xf32>
    %cst_60 = arith.constant dense<0.000000e+00> : vector<8x64xf32>
    %107 = tpu.matmul %103, %23, %cst_60 {dimension_numbers = #tpu.dot_dimension_numbers<[1], [0], [0], [1], [0, 0, 1, 1], [], []>} : vector<8x64xf32>, vector<64x64xf32>, vector<8x64xf32> -> vector<8x64xf32>
    %108 = arith.addf %106, %107 : vector<8x64xf32>
    %109 = arith.negf %108 : vector<8x64xf32>
    %110 = math.exp %109 : vector<8x64xf32>
    %cst_61 = arith.constant 1.000000e+00 : f32
    %111 = vector.broadcast %cst_61 : f32 to vector<8x64xf32>
    %112 = arith.addf %111, %110 : vector<8x64xf32>
    %113 = arith.divf %111, %112 : vector<8x64xf32>
    %c1_62 = arith.constant 1 : index
    %c16_63 = arith.constant 16 : index
    %c0_64 = arith.constant 0 : index
    %114 = vector.load %arg4[%c1_62, %c16_63, %c0_64] : memref<4x64x64xf32, #tpu.memory_space<vmem>>, vector<1x8x64xf32>
    %115 = vector.shape_cast %114 : vector<1x8x64xf32> to vector<8x64xf32>
    %cst_65 = arith.constant dense<0.000000e+00> : vector<8x64xf32>
    %116 = tpu.matmul %103, %24, %cst_65 {dimension_numbers = #tpu.dot_dimension_numbers<[1], [0], [0], [1], [0, 0, 1, 1], [], []>} : vector<8x64xf32>, vector<64x64xf32>, vector<8x64xf32> -> vector<8x64xf32>
    %117 = arith.addf %115, %116 : vector<8x64xf32>
    %118 = arith.negf %117 : vector<8x64xf32>
    %119 = math.exp %118 : vector<8x64xf32>
    %cst_66 = arith.constant 1.000000e+00 : f32
    %120 = vector.broadcast %cst_66 : f32 to vector<8x64xf32>
    %121 = arith.addf %120, %119 : vector<8x64xf32>
    %122 = arith.divf %120, %121 : vector<8x64xf32>
    %c2_67 = arith.constant 2 : index
    %c16_68 = arith.constant 16 : index
    %c0_69 = arith.constant 0 : index
    %123 = vector.load %arg4[%c2_67, %c16_68, %c0_69] : memref<4x64x64xf32, #tpu.memory_space<vmem>>, vector<1x8x64xf32>
    %124 = vector.shape_cast %123 : vector<1x8x64xf32> to vector<8x64xf32>
    %cst_70 = arith.constant dense<0.000000e+00> : vector<8x64xf32>
    %125 = tpu.matmul %103, %25, %cst_70 {dimension_numbers = #tpu.dot_dimension_numbers<[1], [0], [0], [1], [0, 0, 1, 1], [], []>} : vector<8x64xf32>, vector<64x64xf32>, vector<8x64xf32> -> vector<8x64xf32>
    %126 = arith.addf %124, %125 : vector<8x64xf32>
    %127 = arith.negf %126 : vector<8x64xf32>
    %128 = math.exp %127 : vector<8x64xf32>
    %cst_71 = arith.constant 1.000000e+00 : f32
    %129 = vector.broadcast %cst_71 : f32 to vector<8x64xf32>
    %130 = arith.addf %129, %128 : vector<8x64xf32>
    %131 = arith.divf %129, %130 : vector<8x64xf32>
    %c3_72 = arith.constant 3 : index
    %c16_73 = arith.constant 16 : index
    %c0_74 = arith.constant 0 : index
    %132 = vector.load %arg4[%c3_72, %c16_73, %c0_74] : memref<4x64x64xf32, #tpu.memory_space<vmem>>, vector<1x8x64xf32>
    %133 = vector.shape_cast %132 : vector<1x8x64xf32> to vector<8x64xf32>
    %cst_75 = arith.constant dense<0.000000e+00> : vector<8x64xf32>
    %134 = tpu.matmul %103, %26, %cst_75 {dimension_numbers = #tpu.dot_dimension_numbers<[1], [0], [0], [1], [0, 0, 1, 1], [], []>} : vector<8x64xf32>, vector<64x64xf32>, vector<8x64xf32> -> vector<8x64xf32>
    %135 = arith.addf %133, %134 : vector<8x64xf32>
    %136 = math.tanh %135 : vector<8x64xf32>
    %137 = arith.mulf %122, %101 : vector<8x64xf32>
    %138 = arith.mulf %113, %136 : vector<8x64xf32>
    %139 = arith.addf %137, %138 : vector<8x64xf32>
    %140 = math.tanh %139 : vector<8x64xf32>
    %141 = arith.mulf %131, %140 : vector<8x64xf32>
    %c16_76 = arith.constant 16 : index
    %c0_77 = arith.constant 0 : index
    %142 = vector.load %arg5[%c16_76, %c0_77] : memref<64x64xf32, #tpu.memory_space<vmem>>, vector<8x64xf32>
    tpu.vector_store %arg5[%c16_76, %c0_77], %141 {strides = array<i32>} : memref<64x64xf32, #tpu.memory_space<vmem>>, vector<8x64xf32>,
    %c0_78 = arith.constant 0 : index
    %c24 = arith.constant 24 : index
    %c0_79 = arith.constant 0 : index
    %143 = vector.load %arg4[%c0_78, %c24, %c0_79] : memref<4x64x64xf32, #tpu.memory_space<vmem>>, vector<1x8x64xf32>
    %144 = vector.shape_cast %143 : vector<1x8x64xf32> to vector<8x64xf32>
    %cst_80 = arith.constant dense<0.000000e+00> : vector<8x64xf32>
    %145 = tpu.matmul %141, %23, %cst_80 {dimension_numbers = #tpu.dot_dimension_numbers<[1], [0], [0], [1], [0, 0, 1, 1], [], []>} : vector<8x64xf32>, vector<64x64xf32>, vector<8x64xf32> -> vector<8x64xf32>
    %146 = arith.addf %144, %145 : vector<8x64xf32>
    %147 = arith.negf %146 : vector<8x64xf32>
    %148 = math.exp %147 : vector<8x64xf32>
    %cst_81 = arith.constant 1.000000e+00 : f32
    %149 = vector.broadcast %cst_81 : f32 to vector<8x64xf32>
    %150 = arith.addf %149, %148 : vector<8x64xf32>
    %151 = arith.divf %149, %150 : vector<8x64xf32>
    %c1_82 = arith.constant 1 : index
    %c24_83 = arith.constant 24 : index
    %c0_84 = arith.constant 0 : index
    %152 = vector.load %arg4[%c1_82, %c24_83, %c0_84] : memref<4x64x64xf32, #tpu.memory_space<vmem>>, vector<1x8x64xf32>
    %153 = vector.shape_cast %152 : vector<1x8x64xf32> to vector<8x64xf32>
    %cst_85 = arith.constant dense<0.000000e+00> : vector<8x64xf32>
    %154 = tpu.matmul %141, %24, %cst_85 {dimension_numbers = #tpu.dot_dimension_numbers<[1], [0], [0], [1], [0, 0, 1, 1], [], []>} : vector<8x64xf32>, vector<64x64xf32>, vector<8x64xf32> -> vector<8x64xf32>
    %155 = arith.addf %153, %154 : vector<8x64xf32>
    %156 = arith.negf %155 : vector<8x64xf32>
    %157 = math.exp %156 : vector<8x64xf32>
    %cst_86 = arith.constant 1.000000e+00 : f32
    %158 = vector.broadcast %cst_86 : f32 to vector<8x64xf32>
    %159 = arith.addf %158, %157 : vector<8x64xf32>
    %160 = arith.divf %158, %159 : vector<8x64xf32>
    %c2_87 = arith.constant 2 : index
    %c24_88 = arith.constant 24 : index
    %c0_89 = arith.constant 0 : index
    %161 = vector.load %arg4[%c2_87, %c24_88, %c0_89] : memref<4x64x64xf32, #tpu.memory_space<vmem>>, vector<1x8x64xf32>
    %162 = vector.shape_cast %161 : vector<1x8x64xf32> to vector<8x64xf32>
    %cst_90 = arith.constant dense<0.000000e+00> : vector<8x64xf32>
    %163 = tpu.matmul %141, %25, %cst_90 {dimension_numbers = #tpu.dot_dimension_numbers<[1], [0], [0], [1], [0, 0, 1, 1], [], []>} : vector<8x64xf32>, vector<64x64xf32>, vector<8x64xf32> -> vector<8x64xf32>
    %164 = arith.addf %162, %163 : vector<8x64xf32>
    %165 = arith.negf %164 : vector<8x64xf32>
    %166 = math.exp %165 : vector<8x64xf32>
    %cst_91 = arith.constant 1.000000e+00 : f32
    %167 = vector.broadcast %cst_91 : f32 to vector<8x64xf32>
    %168 = arith.addf %167, %166 : vector<8x64xf32>
    %169 = arith.divf %167, %168 : vector<8x64xf32>
    %c3_92 = arith.constant 3 : index
    %c24_93 = arith.constant 24 : index
    %c0_94 = arith.constant 0 : index
    %170 = vector.load %arg4[%c3_92, %c24_93, %c0_94] : memref<4x64x64xf32, #tpu.memory_space<vmem>>, vector<1x8x64xf32>
    %171 = vector.shape_cast %170 : vector<1x8x64xf32> to vector<8x64xf32>
    %cst_95 = arith.constant dense<0.000000e+00> : vector<8x64xf32>
    %172 = tpu.matmul %141, %26, %cst_95 {dimension_numbers = #tpu.dot_dimension_numbers<[1], [0], [0], [1], [0, 0, 1, 1], [], []>} : vector<8x64xf32>, vector<64x64xf32>, vector<8x64xf32> -> vector<8x64xf32>
    %173 = arith.addf %171, %172 : vector<8x64xf32>
    %174 = math.tanh %173 : vector<8x64xf32>
    %175 = arith.mulf %160, %139 : vector<8x64xf32>
    %176 = arith.mulf %151, %174 : vector<8x64xf32>
    %177 = arith.addf %175, %176 : vector<8x64xf32>
    %178 = math.tanh %177 : vector<8x64xf32>
    %179 = arith.mulf %169, %178 : vector<8x64xf32>
    %c24_96 = arith.constant 24 : index
    %c0_97 = arith.constant 0 : index
    %180 = vector.load %arg5[%c24_96, %c0_97] : memref<64x64xf32, #tpu.memory_space<vmem>>, vector<8x64xf32>
    tpu.vector_store %arg5[%c24_96, %c0_97], %179 {strides = array<i32>} : memref<64x64xf32, #tpu.memory_space<vmem>>, vector<8x64xf32>,
    %c0_98 = arith.constant 0 : index
    %c32 = arith.constant 32 : index
    %c0_99 = arith.constant 0 : index
    %181 = vector.load %arg4[%c0_98, %c32, %c0_99] : memref<4x64x64xf32, #tpu.memory_space<vmem>>, vector<1x8x64xf32>
    %182 = vector.shape_cast %181 : vector<1x8x64xf32> to vector<8x64xf32>
    %cst_100 = arith.constant dense<0.000000e+00> : vector<8x64xf32>
    %183 = tpu.matmul %179, %23, %cst_100 {dimension_numbers = #tpu.dot_dimension_numbers<[1], [0], [0], [1], [0, 0, 1, 1], [], []>} : vector<8x64xf32>, vector<64x64xf32>, vector<8x64xf32> -> vector<8x64xf32>
    %184 = arith.addf %182, %183 : vector<8x64xf32>
    %185 = arith.negf %184 : vector<8x64xf32>
    %186 = math.exp %185 : vector<8x64xf32>
    %cst_101 = arith.constant 1.000000e+00 : f32
    %187 = vector.broadcast %cst_101 : f32 to vector<8x64xf32>
    %188 = arith.addf %187, %186 : vector<8x64xf32>
    %189 = arith.divf %187, %188 : vector<8x64xf32>
    %c1_102 = arith.constant 1 : index
    %c32_103 = arith.constant 32 : index
    %c0_104 = arith.constant 0 : index
    %190 = vector.load %arg4[%c1_102, %c32_103, %c0_104] : memref<4x64x64xf32, #tpu.memory_space<vmem>>, vector<1x8x64xf32>
    %191 = vector.shape_cast %190 : vector<1x8x64xf32> to vector<8x64xf32>
    %cst_105 = arith.constant dense<0.000000e+00> : vector<8x64xf32>
    %192 = tpu.matmul %179, %24, %cst_105 {dimension_numbers = #tpu.dot_dimension_numbers<[1], [0], [0], [1], [0, 0, 1, 1], [], []>} : vector<8x64xf32>, vector<64x64xf32>, vector<8x64xf32> -> vector<8x64xf32>
    %193 = arith.addf %191, %192 : vector<8x64xf32>
    %194 = arith.negf %193 : vector<8x64xf32>
    %195 = math.exp %194 : vector<8x64xf32>
    %cst_106 = arith.constant 1.000000e+00 : f32
    %196 = vector.broadcast %cst_106 : f32 to vector<8x64xf32>
    %197 = arith.addf %196, %195 : vector<8x64xf32>
    %198 = arith.divf %196, %197 : vector<8x64xf32>
    %c2_107 = arith.constant 2 : index
    %c32_108 = arith.constant 32 : index
    %c0_109 = arith.constant 0 : index
    %199 = vector.load %arg4[%c2_107, %c32_108, %c0_109] : memref<4x64x64xf32, #tpu.memory_space<vmem>>, vector<1x8x64xf32>
    %200 = vector.shape_cast %199 : vector<1x8x64xf32> to vector<8x64xf32>
    %cst_110 = arith.constant dense<0.000000e+00> : vector<8x64xf32>
    %201 = tpu.matmul %179, %25, %cst_110 {dimension_numbers = #tpu.dot_dimension_numbers<[1], [0], [0], [1], [0, 0, 1, 1], [], []>} : vector<8x64xf32>, vector<64x64xf32>, vector<8x64xf32> -> vector<8x64xf32>
    %202 = arith.addf %200, %201 : vector<8x64xf32>
    %203 = arith.negf %202 : vector<8x64xf32>
    %204 = math.exp %203 : vector<8x64xf32>
    %cst_111 = arith.constant 1.000000e+00 : f32
    %205 = vector.broadcast %cst_111 : f32 to vector<8x64xf32>
    %206 = arith.addf %205, %204 : vector<8x64xf32>
    %207 = arith.divf %205, %206 : vector<8x64xf32>
    %c3_112 = arith.constant 3 : index
    %c32_113 = arith.constant 32 : index
    %c0_114 = arith.constant 0 : index
    %208 = vector.load %arg4[%c3_112, %c32_113, %c0_114] : memref<4x64x64xf32, #tpu.memory_space<vmem>>, vector<1x8x64xf32>
    %209 = vector.shape_cast %208 : vector<1x8x64xf32> to vector<8x64xf32>
    %cst_115 = arith.constant dense<0.000000e+00> : vector<8x64xf32>
    %210 = tpu.matmul %179, %26, %cst_115 {dimension_numbers = #tpu.dot_dimension_numbers<[1], [0], [0], [1], [0, 0, 1, 1], [], []>} : vector<8x64xf32>, vector<64x64xf32>, vector<8x64xf32> -> vector<8x64xf32>
    %211 = arith.addf %209, %210 : vector<8x64xf32>
    %212 = math.tanh %211 : vector<8x64xf32>
    %213 = arith.mulf %198, %177 : vector<8x64xf32>
    %214 = arith.mulf %189, %212 : vector<8x64xf32>
    %215 = arith.addf %213, %214 : vector<8x64xf32>
    %216 = math.tanh %215 : vector<8x64xf32>
    %217 = arith.mulf %207, %216 : vector<8x64xf32>
    %c32_116 = arith.constant 32 : index
    %c0_117 = arith.constant 0 : index
    %218 = vector.load %arg5[%c32_116, %c0_117] : memref<64x64xf32, #tpu.memory_space<vmem>>, vector<8x64xf32>
    tpu.vector_store %arg5[%c32_116, %c0_117], %217 {strides = array<i32>} : memref<64x64xf32, #tpu.memory_space<vmem>>, vector<8x64xf32>,
    %c0_118 = arith.constant 0 : index
    %c40 = arith.constant 40 : index
    %c0_119 = arith.constant 0 : index
    %219 = vector.load %arg4[%c0_118, %c40, %c0_119] : memref<4x64x64xf32, #tpu.memory_space<vmem>>, vector<1x8x64xf32>
    %220 = vector.shape_cast %219 : vector<1x8x64xf32> to vector<8x64xf32>
    %cst_120 = arith.constant dense<0.000000e+00> : vector<8x64xf32>
    %221 = tpu.matmul %217, %23, %cst_120 {dimension_numbers = #tpu.dot_dimension_numbers<[1], [0], [0], [1], [0, 0, 1, 1], [], []>} : vector<8x64xf32>, vector<64x64xf32>, vector<8x64xf32> -> vector<8x64xf32>
    %222 = arith.addf %220, %221 : vector<8x64xf32>
    %223 = arith.negf %222 : vector<8x64xf32>
    %224 = math.exp %223 : vector<8x64xf32>
    %cst_121 = arith.constant 1.000000e+00 : f32
    %225 = vector.broadcast %cst_121 : f32 to vector<8x64xf32>
    %226 = arith.addf %225, %224 : vector<8x64xf32>
    %227 = arith.divf %225, %226 : vector<8x64xf32>
    %c1_122 = arith.constant 1 : index
    %c40_123 = arith.constant 40 : index
    %c0_124 = arith.constant 0 : index
    %228 = vector.load %arg4[%c1_122, %c40_123, %c0_124] : memref<4x64x64xf32, #tpu.memory_space<vmem>>, vector<1x8x64xf32>
    %229 = vector.shape_cast %228 : vector<1x8x64xf32> to vector<8x64xf32>
    %cst_125 = arith.constant dense<0.000000e+00> : vector<8x64xf32>
    %230 = tpu.matmul %217, %24, %cst_125 {dimension_numbers = #tpu.dot_dimension_numbers<[1], [0], [0], [1], [0, 0, 1, 1], [], []>} : vector<8x64xf32>, vector<64x64xf32>, vector<8x64xf32> -> vector<8x64xf32>
    %231 = arith.addf %229, %230 : vector<8x64xf32>
    %232 = arith.negf %231 : vector<8x64xf32>
    %233 = math.exp %232 : vector<8x64xf32>
    %cst_126 = arith.constant 1.000000e+00 : f32
    %234 = vector.broadcast %cst_126 : f32 to vector<8x64xf32>
    %235 = arith.addf %234, %233 : vector<8x64xf32>
    %236 = arith.divf %234, %235 : vector<8x64xf32>
    %c2_127 = arith.constant 2 : index
    %c40_128 = arith.constant 40 : index
    %c0_129 = arith.constant 0 : index
    %237 = vector.load %arg4[%c2_127, %c40_128, %c0_129] : memref<4x64x64xf32, #tpu.memory_space<vmem>>, vector<1x8x64xf32>
    %238 = vector.shape_cast %237 : vector<1x8x64xf32> to vector<8x64xf32>
    %cst_130 = arith.constant dense<0.000000e+00> : vector<8x64xf32>
    %239 = tpu.matmul %217, %25, %cst_130 {dimension_numbers = #tpu.dot_dimension_numbers<[1], [0], [0], [1], [0, 0, 1, 1], [], []>} : vector<8x64xf32>, vector<64x64xf32>, vector<8x64xf32> -> vector<8x64xf32>
    %240 = arith.addf %238, %239 : vector<8x64xf32>
    %241 = arith.negf %240 : vector<8x64xf32>
    %242 = math.exp %241 : vector<8x64xf32>
    %cst_131 = arith.constant 1.000000e+00 : f32
    %243 = vector.broadcast %cst_131 : f32 to vector<8x64xf32>
    %244 = arith.addf %243, %242 : vector<8x64xf32>
    %245 = arith.divf %243, %244 : vector<8x64xf32>
    %c3_132 = arith.constant 3 : index
    %c40_133 = arith.constant 40 : index
    %c0_134 = arith.constant 0 : index
    %246 = vector.load %arg4[%c3_132, %c40_133, %c0_134] : memref<4x64x64xf32, #tpu.memory_space<vmem>>, vector<1x8x64xf32>
    %247 = vector.shape_cast %246 : vector<1x8x64xf32> to vector<8x64xf32>
    %cst_135 = arith.constant dense<0.000000e+00> : vector<8x64xf32>
    %248 = tpu.matmul %217, %26, %cst_135 {dimension_numbers = #tpu.dot_dimension_numbers<[1], [0], [0], [1], [0, 0, 1, 1], [], []>} : vector<8x64xf32>, vector<64x64xf32>, vector<8x64xf32> -> vector<8x64xf32>
    %249 = arith.addf %247, %248 : vector<8x64xf32>
    %250 = math.tanh %249 : vector<8x64xf32>
    %251 = arith.mulf %236, %215 : vector<8x64xf32>
    %252 = arith.mulf %227, %250 : vector<8x64xf32>
    %253 = arith.addf %251, %252 : vector<8x64xf32>
    %254 = math.tanh %253 : vector<8x64xf32>
    %255 = arith.mulf %245, %254 : vector<8x64xf32>
    %c40_136 = arith.constant 40 : index
    %c0_137 = arith.constant 0 : index
    %256 = vector.load %arg5[%c40_136, %c0_137] : memref<64x64xf32, #tpu.memory_space<vmem>>, vector<8x64xf32>
    tpu.vector_store %arg5[%c40_136, %c0_137], %255 {strides = array<i32>} : memref<64x64xf32, #tpu.memory_space<vmem>>, vector<8x64xf32>,
    %c0_138 = arith.constant 0 : index
    %c48 = arith.constant 48 : index
    %c0_139 = arith.constant 0 : index
    %257 = vector.load %arg4[%c0_138, %c48, %c0_139] : memref<4x64x64xf32, #tpu.memory_space<vmem>>, vector<1x8x64xf32>
    %258 = vector.shape_cast %257 : vector<1x8x64xf32> to vector<8x64xf32>
    %cst_140 = arith.constant dense<0.000000e+00> : vector<8x64xf32>
    %259 = tpu.matmul %255, %23, %cst_140 {dimension_numbers = #tpu.dot_dimension_numbers<[1], [0], [0], [1], [0, 0, 1, 1], [], []>} : vector<8x64xf32>, vector<64x64xf32>, vector<8x64xf32> -> vector<8x64xf32>
    %260 = arith.addf %258, %259 : vector<8x64xf32>
    %261 = arith.negf %260 : vector<8x64xf32>
    %262 = math.exp %261 : vector<8x64xf32>
    %cst_141 = arith.constant 1.000000e+00 : f32
    %263 = vector.broadcast %cst_141 : f32 to vector<8x64xf32>
    %264 = arith.addf %263, %262 : vector<8x64xf32>
    %265 = arith.divf %263, %264 : vector<8x64xf32>
    %c1_142 = arith.constant 1 : index
    %c48_143 = arith.constant 48 : index
    %c0_144 = arith.constant 0 : index
    %266 = vector.load %arg4[%c1_142, %c48_143, %c0_144] : memref<4x64x64xf32, #tpu.memory_space<vmem>>, vector<1x8x64xf32>
    %267 = vector.shape_cast %266 : vector<1x8x64xf32> to vector<8x64xf32>
    %cst_145 = arith.constant dense<0.000000e+00> : vector<8x64xf32>
    %268 = tpu.matmul %255, %24, %cst_145 {dimension_numbers = #tpu.dot_dimension_numbers<[1], [0], [0], [1], [0, 0, 1, 1], [], []>} : vector<8x64xf32>, vector<64x64xf32>, vector<8x64xf32> -> vector<8x64xf32>
    %269 = arith.addf %267, %268 : vector<8x64xf32>
    %270 = arith.negf %269 : vector<8x64xf32>
    %271 = math.exp %270 : vector<8x64xf32>
    %cst_146 = arith.constant 1.000000e+00 : f32
    %272 = vector.broadcast %cst_146 : f32 to vector<8x64xf32>
    %273 = arith.addf %272, %271 : vector<8x64xf32>
    %274 = arith.divf %272, %273 : vector<8x64xf32>
    %c2_147 = arith.constant 2 : index
    %c48_148 = arith.constant 48 : index
    %c0_149 = arith.constant 0 : index
    %275 = vector.load %arg4[%c2_147, %c48_148, %c0_149] : memref<4x64x64xf32, #tpu.memory_space<vmem>>, vector<1x8x64xf32>
    %276 = vector.shape_cast %275 : vector<1x8x64xf32> to vector<8x64xf32>
    %cst_150 = arith.constant dense<0.000000e+00> : vector<8x64xf32>
    %277 = tpu.matmul %255, %25, %cst_150 {dimension_numbers = #tpu.dot_dimension_numbers<[1], [0], [0], [1], [0, 0, 1, 1], [], []>} : vector<8x64xf32>, vector<64x64xf32>, vector<8x64xf32> -> vector<8x64xf32>
    %278 = arith.addf %276, %277 : vector<8x64xf32>
    %279 = arith.negf %278 : vector<8x64xf32>
    %280 = math.exp %279 : vector<8x64xf32>
    %cst_151 = arith.constant 1.000000e+00 : f32
    %281 = vector.broadcast %cst_151 : f32 to vector<8x64xf32>
    %282 = arith.addf %281, %280 : vector<8x64xf32>
    %283 = arith.divf %281, %282 : vector<8x64xf32>
    %c3_152 = arith.constant 3 : index
    %c48_153 = arith.constant 48 : index
    %c0_154 = arith.constant 0 : index
    %284 = vector.load %arg4[%c3_152, %c48_153, %c0_154] : memref<4x64x64xf32, #tpu.memory_space<vmem>>, vector<1x8x64xf32>
    %285 = vector.shape_cast %284 : vector<1x8x64xf32> to vector<8x64xf32>
    %cst_155 = arith.constant dense<0.000000e+00> : vector<8x64xf32>
    %286 = tpu.matmul %255, %26, %cst_155 {dimension_numbers = #tpu.dot_dimension_numbers<[1], [0], [0], [1], [0, 0, 1, 1], [], []>} : vector<8x64xf32>, vector<64x64xf32>, vector<8x64xf32> -> vector<8x64xf32>
    %287 = arith.addf %285, %286 : vector<8x64xf32>
    %288 = math.tanh %287 : vector<8x64xf32>
    %289 = arith.mulf %274, %253 : vector<8x64xf32>
    %290 = arith.mulf %265, %288 : vector<8x64xf32>
    %291 = arith.addf %289, %290 : vector<8x64xf32>
    %292 = math.tanh %291 : vector<8x64xf32>
    %293 = arith.mulf %283, %292 : vector<8x64xf32>
    %c48_156 = arith.constant 48 : index
    %c0_157 = arith.constant 0 : index
    %294 = vector.load %arg5[%c48_156, %c0_157] : memref<64x64xf32, #tpu.memory_space<vmem>>, vector<8x64xf32>
    tpu.vector_store %arg5[%c48_156, %c0_157], %293 {strides = array<i32>} : memref<64x64xf32, #tpu.memory_space<vmem>>, vector<8x64xf32>,
    %c0_158 = arith.constant 0 : index
    %c56 = arith.constant 56 : index
    %c0_159 = arith.constant 0 : index
    %295 = vector.load %arg4[%c0_158, %c56, %c0_159] : memref<4x64x64xf32, #tpu.memory_space<vmem>>, vector<1x8x64xf32>
    %296 = vector.shape_cast %295 : vector<1x8x64xf32> to vector<8x64xf32>
    %cst_160 = arith.constant dense<0.000000e+00> : vector<8x64xf32>
    %297 = tpu.matmul %293, %23, %cst_160 {dimension_numbers = #tpu.dot_dimension_numbers<[1], [0], [0], [1], [0, 0, 1, 1], [], []>} : vector<8x64xf32>, vector<64x64xf32>, vector<8x64xf32> -> vector<8x64xf32>
    %298 = arith.addf %296, %297 : vector<8x64xf32>
    %299 = arith.negf %298 : vector<8x64xf32>
    %300 = math.exp %299 : vector<8x64xf32>
    %cst_161 = arith.constant 1.000000e+00 : f32
    %301 = vector.broadcast %cst_161 : f32 to vector<8x64xf32>
    %302 = arith.addf %301, %300 : vector<8x64xf32>
    %303 = arith.divf %301, %302 : vector<8x64xf32>
    %c1_162 = arith.constant 1 : index
    %c56_163 = arith.constant 56 : index
    %c0_164 = arith.constant 0 : index
    %304 = vector.load %arg4[%c1_162, %c56_163, %c0_164] : memref<4x64x64xf32, #tpu.memory_space<vmem>>, vector<1x8x64xf32>
    %305 = vector.shape_cast %304 : vector<1x8x64xf32> to vector<8x64xf32>
    %cst_165 = arith.constant dense<0.000000e+00> : vector<8x64xf32>
    %306 = tpu.matmul %293, %24, %cst_165 {dimension_numbers = #tpu.dot_dimension_numbers<[1], [0], [0], [1], [0, 0, 1, 1], [], []>} : vector<8x64xf32>, vector<64x64xf32>, vector<8x64xf32> -> vector<8x64xf32>
    %307 = arith.addf %305, %306 : vector<8x64xf32>
    %308 = arith.negf %307 : vector<8x64xf32>
    %309 = math.exp %308 : vector<8x64xf32>
    %cst_166 = arith.constant 1.000000e+00 : f32
    %310 = vector.broadcast %cst_166 : f32 to vector<8x64xf32>
    %311 = arith.addf %310, %309 : vector<8x64xf32>
    %312 = arith.divf %310, %311 : vector<8x64xf32>
    %c2_167 = arith.constant 2 : index
    %c56_168 = arith.constant 56 : index
    %c0_169 = arith.constant 0 : index
    %313 = vector.load %arg4[%c2_167, %c56_168, %c0_169] : memref<4x64x64xf32, #tpu.memory_space<vmem>>, vector<1x8x64xf32>
    %314 = vector.shape_cast %313 : vector<1x8x64xf32> to vector<8x64xf32>
    %cst_170 = arith.constant dense<0.000000e+00> : vector<8x64xf32>
    %315 = tpu.matmul %293, %25, %cst_170 {dimension_numbers = #tpu.dot_dimension_numbers<[1], [0], [0], [1], [0, 0, 1, 1], [], []>} : vector<8x64xf32>, vector<64x64xf32>, vector<8x64xf32> -> vector<8x64xf32>
    %316 = arith.addf %314, %315 : vector<8x64xf32>
    %317 = arith.negf %316 : vector<8x64xf32>
    %318 = math.exp %317 : vector<8x64xf32>
    %cst_171 = arith.constant 1.000000e+00 : f32
    %319 = vector.broadcast %cst_171 : f32 to vector<8x64xf32>
    %320 = arith.addf %319, %318 : vector<8x64xf32>
    %321 = arith.divf %319, %320 : vector<8x64xf32>
    %c3_172 = arith.constant 3 : index
    %c56_173 = arith.constant 56 : index
    %c0_174 = arith.constant 0 : index
    %322 = vector.load %arg4[%c3_172, %c56_173, %c0_174] : memref<4x64x64xf32, #tpu.memory_space<vmem>>, vector<1x8x64xf32>
    %323 = vector.shape_cast %322 : vector<1x8x64xf32> to vector<8x64xf32>
    %cst_175 = arith.constant dense<0.000000e+00> : vector<8x64xf32>
    %324 = tpu.matmul %293, %26, %cst_175 {dimension_numbers = #tpu.dot_dimension_numbers<[1], [0], [0], [1], [0, 0, 1, 1], [], []>} : vector<8x64xf32>, vector<64x64xf32>, vector<8x64xf32> -> vector<8x64xf32>
    %325 = arith.addf %323, %324 : vector<8x64xf32>
    %326 = math.tanh %325 : vector<8x64xf32>
    %327 = arith.mulf %312, %291 : vector<8x64xf32>
    %328 = arith.mulf %303, %326 : vector<8x64xf32>
    %329 = arith.addf %327, %328 : vector<8x64xf32>
    %330 = math.tanh %329 : vector<8x64xf32>
    %331 = arith.mulf %321, %330 : vector<8x64xf32>
    %c56_176 = arith.constant 56 : index
    %c0_177 = arith.constant 0 : index
    %332 = vector.load %arg5[%c56_176, %c0_177] : memref<64x64xf32, #tpu.memory_space<vmem>>, vector<8x64xf32>
    tpu.vector_store %arg5[%c56_176, %c0_177], %331 {strides = array<i32>} : memref<64x64xf32, #tpu.memory_space<vmem>>, vector<8x64xf32>,
    %c0_178 = arith.constant 0 : index
    %c0_179 = arith.constant 0 : index
    %333 = vector.load %arg5[%c0_178, %c0_179] : memref<64x64xf32, #tpu.memory_space<vmem>>, vector<64x64xf32>
    %c80 = arith.constant 80 : index
    %c0_180 = arith.constant 0 : index
    %334 = vector.load %arg2[%c80, %c0_180] : memref<648x512xf32, #tpu.memory_space<vmem>>, vector<64x512xf32>
    %c272 = arith.constant 272 : index
    %c0_181 = arith.constant 0 : index
    %335 = vector.load %arg2[%c272, %c0_181] : memref<648x512xf32, #tpu.memory_space<vmem>>, vector<1x512xf32>
    %cst_182 = arith.constant dense<0.000000e+00> : vector<64x512xf32>
    %336 = tpu.matmul %333, %334, %cst_182 {dimension_numbers = #tpu.dot_dimension_numbers<[1], [0], [0], [1], [0, 0, 1, 1], [], []>} : vector<64x64xf32>, vector<64x512xf32>, vector<64x512xf32> -> vector<64x512xf32>
    %337 = vector.broadcast %335 : vector<1x512xf32> to vector<64x512xf32>
    %338 = arith.addf %336, %337 : vector<64x512xf32>
    %c144 = arith.constant 144 : index
    %c0_183 = arith.constant 0 : index
    %339 = vector.load %arg2[%c144, %c0_183] : memref<648x512xf32, #tpu.memory_space<vmem>>, vector<128x512xf32>
    %c0_184 = arith.constant 0 : index
    %c0_185 = arith.constant 0 : index
    %340 = vector.load %arg6[%c0_184, %c0_185] : memref<64x512xf32, #tpu.memory_space<vmem>>, vector<64x512xf32>
    tpu.vector_store %arg6[%c0_184, %c0_185], %338 {strides = array<i32>} : memref<64x512xf32, #tpu.memory_space<vmem>>, vector<64x512xf32>,
    %cst_186 = arith.constant 0.000000e+00 : f32
    %341 = vector.broadcast %cst_186 : f32 to vector<8x128xf32>
    %cst_187 = arith.constant 0.000000e+00 : f32
    %342 = vector.broadcast %cst_187 : f32 to vector<8x128xf32>
    %c0_188 = arith.constant 0 : index
    %c0_189 = arith.constant 0 : index
    %343 = vector.load %arg6[%c0_188, %c0_189] : memref<64x512xf32, #tpu.memory_space<vmem>>, vector<8x512xf32>
    %cst_190 = arith.constant dense<0.000000e+00> : vector<8x512xf32>
    %344 = tpu.matmul %341, %339, %cst_190 {dimension_numbers = #tpu.dot_dimension_numbers<[1], [0], [0], [1], [0, 0, 1, 1], [], []>} : vector<8x128xf32>, vector<128x512xf32>, vector<8x512xf32> -> vector<8x512xf32>
    %345 = arith.addf %343, %344 : vector<8x512xf32>
    %346 = vector.extract_strided_slice %345 {offsets = [0, 0], sizes = [8, 384], strides = [1, 1]} : vector<8x512xf32> to vector<8x384xf32>
    %347 = arith.negf %346 : vector<8x384xf32>
    %348 = math.exp %347 : vector<8x384xf32>
    %cst_191 = arith.constant 1.000000e+00 : f32
    %349 = vector.broadcast %cst_191 : f32 to vector<8x384xf32>
    %350 = arith.addf %349, %348 : vector<8x384xf32>
    %351 = arith.divf %349, %350 : vector<8x384xf32>
    %352 = vector.extract_strided_slice %345 {offsets = [0, 384], sizes = [8, 128], strides = [1, 1]} : vector<8x512xf32> to vector<8x128xf32>
    %353 = math.tanh %352 : vector<8x128xf32>
    %354 = vector.extract_strided_slice %351 {offsets = [0, 0], sizes = [8, 128], strides = [1, 1]} : vector<8x384xf32> to vector<8x128xf32>
    %355 = vector.extract_strided_slice %351 {offsets = [0, 128], sizes = [8, 128], strides = [1, 1]} : vector<8x384xf32> to vector<8x128xf32>
    %356 = vector.extract_strided_slice %351 {offsets = [0, 256], sizes = [8, 128], strides = [1, 1]} : vector<8x384xf32> to vector<8x128xf32>
    %357 = arith.mulf %355, %342 : vector<8x128xf32>
    %358 = arith.mulf %354, %353 : vector<8x128xf32>
    %359 = arith.addf %357, %358 : vector<8x128xf32>
    %360 = math.tanh %359 : vector<8x128xf32>
    %361 = arith.mulf %356, %360 : vector<8x128xf32>
    %c0_192 = arith.constant 0 : index
    %c0_193 = arith.constant 0 : index
    %362 = vector.load %arg7[%c0_192, %c0_193] : memref<64x128xf32, #tpu.memory_space<vmem>>, vector<8x128xf32>
    tpu.vector_store %arg7[%c0_192, %c0_193], %361 {strides = array<i32>} : memref<64x128xf32, #tpu.memory_space<vmem>>, vector<8x128xf32>,
    %c8_194 = arith.constant 8 : index
    %c0_195 = arith.constant 0 : index
    %363 = vector.load %arg6[%c8_194, %c0_195] : memref<64x512xf32, #tpu.memory_space<vmem>>, vector<8x512xf32>
    %cst_196 = arith.constant dense<0.000000e+00> : vector<8x512xf32>
    %364 = tpu.matmul %361, %339, %cst_196 {dimension_numbers = #tpu.dot_dimension_numbers<[1], [0], [0], [1], [0, 0, 1, 1], [], []>} : vector<8x128xf32>, vector<128x512xf32>, vector<8x512xf32> -> vector<8x512xf32>
    %365 = arith.addf %363, %364 : vector<8x512xf32>
    %366 = vector.extract_strided_slice %365 {offsets = [0, 0], sizes = [8, 384], strides = [1, 1]} : vector<8x512xf32> to vector<8x384xf32>
    %367 = arith.negf %366 : vector<8x384xf32>
    %368 = math.exp %367 : vector<8x384xf32>
    %cst_197 = arith.constant 1.000000e+00 : f32
    %369 = vector.broadcast %cst_197 : f32 to vector<8x384xf32>
    %370 = arith.addf %369, %368 : vector<8x384xf32>
    %371 = arith.divf %369, %370 : vector<8x384xf32>
    %372 = vector.extract_strided_slice %365 {offsets = [0, 384], sizes = [8, 128], strides = [1, 1]} : vector<8x512xf32> to vector<8x128xf32>
    %373 = math.tanh %372 : vector<8x128xf32>
    %374 = vector.extract_strided_slice %371 {offsets = [0, 0], sizes = [8, 128], strides = [1, 1]} : vector<8x384xf32> to vector<8x128xf32>
    %375 = vector.extract_strided_slice %371 {offsets = [0, 128], sizes = [8, 128], strides = [1, 1]} : vector<8x384xf32> to vector<8x128xf32>
    %376 = vector.extract_strided_slice %371 {offsets = [0, 256], sizes = [8, 128], strides = [1, 1]} : vector<8x384xf32> to vector<8x128xf32>
    %377 = arith.mulf %375, %359 : vector<8x128xf32>
    %378 = arith.mulf %374, %373 : vector<8x128xf32>
    %379 = arith.addf %377, %378 : vector<8x128xf32>
    %380 = math.tanh %379 : vector<8x128xf32>
    %381 = arith.mulf %376, %380 : vector<8x128xf32>
    %c8_198 = arith.constant 8 : index
    %c0_199 = arith.constant 0 : index
    %382 = vector.load %arg7[%c8_198, %c0_199] : memref<64x128xf32, #tpu.memory_space<vmem>>, vector<8x128xf32>
    tpu.vector_store %arg7[%c8_198, %c0_199], %381 {strides = array<i32>} : memref<64x128xf32, #tpu.memory_space<vmem>>, vector<8x128xf32>,
    %c16_200 = arith.constant 16 : index
    %c0_201 = arith.constant 0 : index
    %383 = vector.load %arg6[%c16_200, %c0_201] : memref<64x512xf32, #tpu.memory_space<vmem>>, vector<8x512xf32>
    %cst_202 = arith.constant dense<0.000000e+00> : vector<8x512xf32>
    %384 = tpu.matmul %381, %339, %cst_202 {dimension_numbers = #tpu.dot_dimension_numbers<[1], [0], [0], [1], [0, 0, 1, 1], [], []>} : vector<8x128xf32>, vector<128x512xf32>, vector<8x512xf32> -> vector<8x512xf32>
    %385 = arith.addf %383, %384 : vector<8x512xf32>
    %386 = vector.extract_strided_slice %385 {offsets = [0, 0], sizes = [8, 384], strides = [1, 1]} : vector<8x512xf32> to vector<8x384xf32>
    %387 = arith.negf %386 : vector<8x384xf32>
    %388 = math.exp %387 : vector<8x384xf32>
    %cst_203 = arith.constant 1.000000e+00 : f32
    %389 = vector.broadcast %cst_203 : f32 to vector<8x384xf32>
    %390 = arith.addf %389, %388 : vector<8x384xf32>
    %391 = arith.divf %389, %390 : vector<8x384xf32>
    %392 = vector.extract_strided_slice %385 {offsets = [0, 384], sizes = [8, 128], strides = [1, 1]} : vector<8x512xf32> to vector<8x128xf32>
    %393 = math.tanh %392 : vector<8x128xf32>
    %394 = vector.extract_strided_slice %391 {offsets = [0, 0], sizes = [8, 128], strides = [1, 1]} : vector<8x384xf32> to vector<8x128xf32>
    %395 = vector.extract_strided_slice %391 {offsets = [0, 128], sizes = [8, 128], strides = [1, 1]} : vector<8x384xf32> to vector<8x128xf32>
    %396 = vector.extract_strided_slice %391 {offsets = [0, 256], sizes = [8, 128], strides = [1, 1]} : vector<8x384xf32> to vector<8x128xf32>
    %397 = arith.mulf %395, %379 : vector<8x128xf32>
    %398 = arith.mulf %394, %393 : vector<8x128xf32>
    %399 = arith.addf %397, %398 : vector<8x128xf32>
    %400 = math.tanh %399 : vector<8x128xf32>
    %401 = arith.mulf %396, %400 : vector<8x128xf32>
    %c16_204 = arith.constant 16 : index
    %c0_205 = arith.constant 0 : index
    %402 = vector.load %arg7[%c16_204, %c0_205] : memref<64x128xf32, #tpu.memory_space<vmem>>, vector<8x128xf32>
    tpu.vector_store %arg7[%c16_204, %c0_205], %401 {strides = array<i32>} : memref<64x128xf32, #tpu.memory_space<vmem>>, vector<8x128xf32>,
    %c24_206 = arith.constant 24 : index
    %c0_207 = arith.constant 0 : index
    %403 = vector.load %arg6[%c24_206, %c0_207] : memref<64x512xf32, #tpu.memory_space<vmem>>, vector<8x512xf32>
    %cst_208 = arith.constant dense<0.000000e+00> : vector<8x512xf32>
    %404 = tpu.matmul %401, %339, %cst_208 {dimension_numbers = #tpu.dot_dimension_numbers<[1], [0], [0], [1], [0, 0, 1, 1], [], []>} : vector<8x128xf32>, vector<128x512xf32>, vector<8x512xf32> -> vector<8x512xf32>
    %405 = arith.addf %403, %404 : vector<8x512xf32>
    %406 = vector.extract_strided_slice %405 {offsets = [0, 0], sizes = [8, 384], strides = [1, 1]} : vector<8x512xf32> to vector<8x384xf32>
    %407 = arith.negf %406 : vector<8x384xf32>
    %408 = math.exp %407 : vector<8x384xf32>
    %cst_209 = arith.constant 1.000000e+00 : f32
    %409 = vector.broadcast %cst_209 : f32 to vector<8x384xf32>
    %410 = arith.addf %409, %408 : vector<8x384xf32>
    %411 = arith.divf %409, %410 : vector<8x384xf32>
    %412 = vector.extract_strided_slice %405 {offsets = [0, 384], sizes = [8, 128], strides = [1, 1]} : vector<8x512xf32> to vector<8x128xf32>
    %413 = math.tanh %412 : vector<8x128xf32>
    %414 = vector.extract_strided_slice %411 {offsets = [0, 0], sizes = [8, 128], strides = [1, 1]} : vector<8x384xf32> to vector<8x128xf32>
    %415 = vector.extract_strided_slice %411 {offsets = [0, 128], sizes = [8, 128], strides = [1, 1]} : vector<8x384xf32> to vector<8x128xf32>
    %416 = vector.extract_strided_slice %411 {offsets = [0, 256], sizes = [8, 128], strides = [1, 1]} : vector<8x384xf32> to vector<8x128xf32>
    %417 = arith.mulf %415, %399 : vector<8x128xf32>
    %418 = arith.mulf %414, %413 : vector<8x128xf32>
    %419 = arith.addf %417, %418 : vector<8x128xf32>
    %420 = math.tanh %419 : vector<8x128xf32>
    %421 = arith.mulf %416, %420 : vector<8x128xf32>
    %c24_210 = arith.constant 24 : index
    %c0_211 = arith.constant 0 : index
    %422 = vector.load %arg7[%c24_210, %c0_211] : memref<64x128xf32, #tpu.memory_space<vmem>>, vector<8x128xf32>
    tpu.vector_store %arg7[%c24_210, %c0_211], %421 {strides = array<i32>} : memref<64x128xf32, #tpu.memory_space<vmem>>, vector<8x128xf32>,
    %c32_212 = arith.constant 32 : index
    %c0_213 = arith.constant 0 : index
    %423 = vector.load %arg6[%c32_212, %c0_213] : memref<64x512xf32, #tpu.memory_space<vmem>>, vector<8x512xf32>
    %cst_214 = arith.constant dense<0.000000e+00> : vector<8x512xf32>
    %424 = tpu.matmul %421, %339, %cst_214 {dimension_numbers = #tpu.dot_dimension_numbers<[1], [0], [0], [1], [0, 0, 1, 1], [], []>} : vector<8x128xf32>, vector<128x512xf32>, vector<8x512xf32> -> vector<8x512xf32>
    %425 = arith.addf %423, %424 : vector<8x512xf32>
    %426 = vector.extract_strided_slice %425 {offsets = [0, 0], sizes = [8, 384], strides = [1, 1]} : vector<8x512xf32> to vector<8x384xf32>
    %427 = arith.negf %426 : vector<8x384xf32>
    %428 = math.exp %427 : vector<8x384xf32>
    %cst_215 = arith.constant 1.000000e+00 : f32
    %429 = vector.broadcast %cst_215 : f32 to vector<8x384xf32>
    %430 = arith.addf %429, %428 : vector<8x384xf32>
    %431 = arith.divf %429, %430 : vector<8x384xf32>
    %432 = vector.extract_strided_slice %425 {offsets = [0, 384], sizes = [8, 128], strides = [1, 1]} : vector<8x512xf32> to vector<8x128xf32>
    %433 = math.tanh %432 : vector<8x128xf32>
    %434 = vector.extract_strided_slice %431 {offsets = [0, 0], sizes = [8, 128], strides = [1, 1]} : vector<8x384xf32> to vector<8x128xf32>
    %435 = vector.extract_strided_slice %431 {offsets = [0, 128], sizes = [8, 128], strides = [1, 1]} : vector<8x384xf32> to vector<8x128xf32>
    %436 = vector.extract_strided_slice %431 {offsets = [0, 256], sizes = [8, 128], strides = [1, 1]} : vector<8x384xf32> to vector<8x128xf32>
    %437 = arith.mulf %435, %419 : vector<8x128xf32>
    %438 = arith.mulf %434, %433 : vector<8x128xf32>
    %439 = arith.addf %437, %438 : vector<8x128xf32>
    %440 = math.tanh %439 : vector<8x128xf32>
    %441 = arith.mulf %436, %440 : vector<8x128xf32>
    %c32_216 = arith.constant 32 : index
    %c0_217 = arith.constant 0 : index
    %442 = vector.load %arg7[%c32_216, %c0_217] : memref<64x128xf32, #tpu.memory_space<vmem>>, vector<8x128xf32>
    tpu.vector_store %arg7[%c32_216, %c0_217], %441 {strides = array<i32>} : memref<64x128xf32, #tpu.memory_space<vmem>>, vector<8x128xf32>,
    %c40_218 = arith.constant 40 : index
    %c0_219 = arith.constant 0 : index
    %443 = vector.load %arg6[%c40_218, %c0_219] : memref<64x512xf32, #tpu.memory_space<vmem>>, vector<8x512xf32>
    %cst_220 = arith.constant dense<0.000000e+00> : vector<8x512xf32>
    %444 = tpu.matmul %441, %339, %cst_220 {dimension_numbers = #tpu.dot_dimension_numbers<[1], [0], [0], [1], [0, 0, 1, 1], [], []>} : vector<8x128xf32>, vector<128x512xf32>, vector<8x512xf32> -> vector<8x512xf32>
    %445 = arith.addf %443, %444 : vector<8x512xf32>
    %446 = vector.extract_strided_slice %445 {offsets = [0, 0], sizes = [8, 384], strides = [1, 1]} : vector<8x512xf32> to vector<8x384xf32>
    %447 = arith.negf %446 : vector<8x384xf32>
    %448 = math.exp %447 : vector<8x384xf32>
    %cst_221 = arith.constant 1.000000e+00 : f32
    %449 = vector.broadcast %cst_221 : f32 to vector<8x384xf32>
    %450 = arith.addf %449, %448 : vector<8x384xf32>
    %451 = arith.divf %449, %450 : vector<8x384xf32>
    %452 = vector.extract_strided_slice %445 {offsets = [0, 384], sizes = [8, 128], strides = [1, 1]} : vector<8x512xf32> to vector<8x128xf32>
    %453 = math.tanh %452 : vector<8x128xf32>
    %454 = vector.extract_strided_slice %451 {offsets = [0, 0], sizes = [8, 128], strides = [1, 1]} : vector<8x384xf32> to vector<8x128xf32>
    %455 = vector.extract_strided_slice %451 {offsets = [0, 128], sizes = [8, 128], strides = [1, 1]} : vector<8x384xf32> to vector<8x128xf32>
    %456 = vector.extract_strided_slice %451 {offsets = [0, 256], sizes = [8, 128], strides = [1, 1]} : vector<8x384xf32> to vector<8x128xf32>
    %457 = arith.mulf %455, %439 : vector<8x128xf32>
    %458 = arith.mulf %454, %453 : vector<8x128xf32>
    %459 = arith.addf %457, %458 : vector<8x128xf32>
    %460 = math.tanh %459 : vector<8x128xf32>
    %461 = arith.mulf %456, %460 : vector<8x128xf32>
    %c40_222 = arith.constant 40 : index
    %c0_223 = arith.constant 0 : index
    %462 = vector.load %arg7[%c40_222, %c0_223] : memref<64x128xf32, #tpu.memory_space<vmem>>, vector<8x128xf32>
    tpu.vector_store %arg7[%c40_222, %c0_223], %461 {strides = array<i32>} : memref<64x128xf32, #tpu.memory_space<vmem>>, vector<8x128xf32>,
    %c48_224 = arith.constant 48 : index
    %c0_225 = arith.constant 0 : index
    %463 = vector.load %arg6[%c48_224, %c0_225] : memref<64x512xf32, #tpu.memory_space<vmem>>, vector<8x512xf32>
    %cst_226 = arith.constant dense<0.000000e+00> : vector<8x512xf32>
    %464 = tpu.matmul %461, %339, %cst_226 {dimension_numbers = #tpu.dot_dimension_numbers<[1], [0], [0], [1], [0, 0, 1, 1], [], []>} : vector<8x128xf32>, vector<128x512xf32>, vector<8x512xf32> -> vector<8x512xf32>
    %465 = arith.addf %463, %464 : vector<8x512xf32>
    %466 = vector.extract_strided_slice %465 {offsets = [0, 0], sizes = [8, 384], strides = [1, 1]} : vector<8x512xf32> to vector<8x384xf32>
    %467 = arith.negf %466 : vector<8x384xf32>
    %468 = math.exp %467 : vector<8x384xf32>
    %cst_227 = arith.constant 1.000000e+00 : f32
    %469 = vector.broadcast %cst_227 : f32 to vector<8x384xf32>
    %470 = arith.addf %469, %468 : vector<8x384xf32>
    %471 = arith.divf %469, %470 : vector<8x384xf32>
    %472 = vector.extract_strided_slice %465 {offsets = [0, 384], sizes = [8, 128], strides = [1, 1]} : vector<8x512xf32> to vector<8x128xf32>
    %473 = math.tanh %472 : vector<8x128xf32>
    %474 = vector.extract_strided_slice %471 {offsets = [0, 0], sizes = [8, 128], strides = [1, 1]} : vector<8x384xf32> to vector<8x128xf32>
    %475 = vector.extract_strided_slice %471 {offsets = [0, 128], sizes = [8, 128], strides = [1, 1]} : vector<8x384xf32> to vector<8x128xf32>
    %476 = vector.extract_strided_slice %471 {offsets = [0, 256], sizes = [8, 128], strides = [1, 1]} : vector<8x384xf32> to vector<8x128xf32>
    %477 = arith.mulf %475, %459 : vector<8x128xf32>
    %478 = arith.mulf %474, %473 : vector<8x128xf32>
    %479 = arith.addf %477, %478 : vector<8x128xf32>
    %480 = math.tanh %479 : vector<8x128xf32>
    %481 = arith.mulf %476, %480 : vector<8x128xf32>
    %c48_228 = arith.constant 48 : index
    %c0_229 = arith.constant 0 : index
    %482 = vector.load %arg7[%c48_228, %c0_229] : memref<64x128xf32, #tpu.memory_space<vmem>>, vector<8x128xf32>
    tpu.vector_store %arg7[%c48_228, %c0_229], %481 {strides = array<i32>} : memref<64x128xf32, #tpu.memory_space<vmem>>, vector<8x128xf32>,
    %c56_230 = arith.constant 56 : index
    %c0_231 = arith.constant 0 : index
    %483 = vector.load %arg6[%c56_230, %c0_231] : memref<64x512xf32, #tpu.memory_space<vmem>>, vector<8x512xf32>
    %cst_232 = arith.constant dense<0.000000e+00> : vector<8x512xf32>
    %484 = tpu.matmul %481, %339, %cst_232 {dimension_numbers = #tpu.dot_dimension_numbers<[1], [0], [0], [1], [0, 0, 1, 1], [], []>} : vector<8x128xf32>, vector<128x512xf32>, vector<8x512xf32> -> vector<8x512xf32>
    %485 = arith.addf %483, %484 : vector<8x512xf32>
    %486 = vector.extract_strided_slice %485 {offsets = [0, 0], sizes = [8, 384], strides = [1, 1]} : vector<8x512xf32> to vector<8x384xf32>
    %487 = arith.negf %486 : vector<8x384xf32>
    %488 = math.exp %487 : vector<8x384xf32>
    %cst_233 = arith.constant 1.000000e+00 : f32
    %489 = vector.broadcast %cst_233 : f32 to vector<8x384xf32>
    %490 = arith.addf %489, %488 : vector<8x384xf32>
    %491 = arith.divf %489, %490 : vector<8x384xf32>
    %492 = vector.extract_strided_slice %485 {offsets = [0, 384], sizes = [8, 128], strides = [1, 1]} : vector<8x512xf32> to vector<8x128xf32>
    %493 = math.tanh %492 : vector<8x128xf32>
    %494 = vector.extract_strided_slice %491 {offsets = [0, 0], sizes = [8, 128], strides = [1, 1]} : vector<8x384xf32> to vector<8x128xf32>
    %495 = vector.extract_strided_slice %491 {offsets = [0, 128], sizes = [8, 128], strides = [1, 1]} : vector<8x384xf32> to vector<8x128xf32>
    %496 = vector.extract_strided_slice %491 {offsets = [0, 256], sizes = [8, 128], strides = [1, 1]} : vector<8x384xf32> to vector<8x128xf32>
    %497 = arith.mulf %495, %479 : vector<8x128xf32>
    %498 = arith.mulf %494, %493 : vector<8x128xf32>
    %499 = arith.addf %497, %498 : vector<8x128xf32>
    %500 = math.tanh %499 : vector<8x128xf32>
    %501 = arith.mulf %496, %500 : vector<8x128xf32>
    %c56_234 = arith.constant 56 : index
    %c0_235 = arith.constant 0 : index
    %502 = vector.load %arg7[%c56_234, %c0_235] : memref<64x128xf32, #tpu.memory_space<vmem>>, vector<8x128xf32>
    tpu.vector_store %arg7[%c56_234, %c0_235], %501 {strides = array<i32>} : memref<64x128xf32, #tpu.memory_space<vmem>>, vector<8x128xf32>,
    %c0_236 = arith.constant 0 : index
    %c0_237 = arith.constant 0 : index
    %503 = vector.load %arg7[%c0_236, %c0_237] : memref<64x128xf32, #tpu.memory_space<vmem>>, vector<64x128xf32>
    %c280 = arith.constant 280 : index
    %c0_238 = arith.constant 0 : index
    %504 = vector.load %arg2[%c280, %c0_238] : memref<648x512xf32, #tpu.memory_space<vmem>>, vector<128x128xf32>
    %cst_239 = arith.constant dense<0.000000e+00> : vector<64x128xf32>
    %505 = tpu.matmul %503, %504, %cst_239 {dimension_numbers = #tpu.dot_dimension_numbers<[1], [0], [0], [1], [0, 0, 1, 1], [], []>} : vector<64x128xf32>, vector<128x128xf32>, vector<64x128xf32> -> vector<64x128xf32>
    %cst_240 = arith.constant 0.000000e+00 : f32
    %506 = vector.broadcast %cst_240 : f32 to vector<64x128xf32>
    %507 = arith.maximumf %505, %506 : vector<64x128xf32>
    %c408 = arith.constant 408 : index
    %c0_241 = arith.constant 0 : index
    %508 = vector.load %arg2[%c408, %c0_241] : memref<648x512xf32, #tpu.memory_space<vmem>>, vector<128x64xf32>
    %cst_242 = arith.constant dense<0.000000e+00> : vector<64x64xf32>
    %509 = tpu.matmul %507, %508, %cst_242 {dimension_numbers = #tpu.dot_dimension_numbers<[1], [0], [0], [1], [0, 0, 1, 1], [], []>} : vector<64x128xf32>, vector<128x64xf32>, vector<64x64xf32> -> vector<64x64xf32>
    %cst_243 = arith.constant 0.000000e+00 : f32
    %510 = vector.broadcast %cst_243 : f32 to vector<64x64xf32>
    %511 = arith.maximumf %509, %510 : vector<64x64xf32>
    %c536 = arith.constant 536 : index
    %c0_244 = arith.constant 0 : index
    %512 = vector.load %arg2[%c536, %c0_244] : memref<648x512xf32, #tpu.memory_space<vmem>>, vector<64x32xf32>
    %c600 = arith.constant 600 : index
    %c0_245 = arith.constant 0 : index
    %513 = vector.load %arg2[%c600, %c0_245] : memref<648x512xf32, #tpu.memory_space<vmem>>, vector<1x32xf32>
    %cst_246 = arith.constant dense<0.000000e+00> : vector<64x32xf32>
    %514 = tpu.matmul %511, %512, %cst_246 {dimension_numbers = #tpu.dot_dimension_numbers<[1], [0], [0], [1], [0, 0, 1, 1], [], []>} : vector<64x64xf32>, vector<64x32xf32>, vector<64x32xf32> -> vector<64x32xf32>
    %515 = vector.broadcast %513 : vector<1x32xf32> to vector<64x32xf32>
    %516 = arith.addf %514, %515 : vector<64x32xf32>
    %cst_247 = arith.constant 0.000000e+00 : f32
    %517 = vector.broadcast %cst_247 : f32 to vector<64x32xf32>
    %518 = arith.maximumf %516, %517 : vector<64x32xf32>
    %c608 = arith.constant 608 : index
    %c0_248 = arith.constant 0 : index
    %519 = vector.load %arg2[%c608, %c0_248] : memref<648x512xf32, #tpu.memory_space<vmem>>, vector<32x4xf32>
    %c640 = arith.constant 640 : index
    %c0_249 = arith.constant 0 : index
    %520 = vector.load %arg2[%c640, %c0_249] : memref<648x512xf32, #tpu.memory_space<vmem>>, vector<1x4xf32>
    %cst_250 = arith.constant dense<0.000000e+00> : vector<64x4xf32>
    %521 = tpu.matmul %518, %519, %cst_250 {dimension_numbers = #tpu.dot_dimension_numbers<[1], [0], [0], [1], [0, 0, 1, 1], [], []>} : vector<64x32xf32>, vector<32x4xf32>, vector<64x4xf32> -> vector<64x4xf32>
    %522 = vector.broadcast %520 : vector<1x4xf32> to vector<64x4xf32>
    %523 = arith.addf %521, %522 : vector<64x4xf32>
    %c0_251 = arith.constant 0 : index
    %c0_252 = arith.constant 0 : index
    %524 = vector.load %arg3[%c0_251, %c0_252] : memref<64x4xf32, #tpu.memory_space<vmem>>, vector<64x4xf32>
    tpu.vector_store %arg3[%c0_251, %c0_252], %523 {strides = array<i32>} : memref<64x4xf32, #tpu.memory_space<vmem>>, vector<64x4xf32>,
    return
  }
  func.func @transform_0(%arg0: i32) -> (i32, i32) {
    %c0_i32 = arith.constant 0 : i32
    %c0_i32_0 = arith.constant 0 : i32
    %c0_i32_1 = arith.constant 0 : i32
    return %c0_i32, %c0_i32_0 : i32, i32
  }
  func.func @transform_1(%arg0: i32) -> (i32, i32) {
    %c0_i32 = arith.constant 0 : i32
    %c0_i32_0 = arith.constant 0 : i32
    %c0_i32_1 = arith.constant 0 : i32
    return %c0_i32, %c0_i32_0 : i32, i32
  }
  func.func @transform_2(%arg0: i32) -> (i32, i32) {
    %c0_i32 = arith.constant 0 : i32
    %c0_i32_0 = arith.constant 0 : i32
    %c0_i32_1 = arith.constant 0 : i32
    return %c0_i32, %c0_i32_0 : i32, i32
  }
}

</mosaic_0001>

<llo_original>
// kernel: tpu_custom_call.1
$region0: #{tpu_custom_call.1}
  #allocation0 [shape = 'u32[]', space=smem, size = 0x4, offset = 0x4, fixed_abs, tag = 'smem constant byte address 0x4 - core index']
  #allocation1 [shape = 'u32[144,128]{1,0:T(1,128)}', space=vmem, size = 0x12000, scoped, tag = 'internal scratch']
  #allocation2 [shape = 'f32[4,64,64]{2,1,0:T(8,128)}', space=vmem, size = 0x20000, scoped, tag = 'scratch operand']
  #allocation3 [shape = 'f32[64,64]{1,0:T(8,128)}', space=vmem, size = 0x8000, scoped, tag = 'scratch operand']
  #allocation4 [shape = 'f32[64,512]{1,0:T(8,128)}', space=vmem, size = 0x20000, scoped, tag = 'scratch operand']
  #allocation5 [shape = 'f32[64,128]{1,0:T(8,128)}', space=vmem, size = 0x8000, scoped, tag = 'scratch operand']
  %s0 = inlined_call_operand.vmem [shape: f32[64,8], index: 0, kind: input, shape index: {}]
  %s1 = inlined_call_operand.hbm [shape: f32[648,512], index: 1, kind: input, shape index: {}]
  %s2 = inlined_call_operand.vmem [shape: f32[64,4], index: 2, kind: output, shape index: {}]
  %s3 = sld [smem:[#allocation0]]
  $region22: #{tpu_custom_call.1} parent=0
    _
  %s5 = ssub.s32 1, %s3
  %s6 = scalar_select 0, %s5, %s3
  $region1: #{tpu_custom_call.1} parent=0
    #allocation6 [shape = 'u8[1327104]{0}', space=vmem, size = 0x144000, scoped, tag = 'input window, operand 1, single buffered']
    #allocation7 [shape = 's32[1]{0}', space=sflag, size = 0x4, scoped, tag = 'scoped memory for tpu_custom_call.1']
    %7 = vsyncpa [#allocation7], 0
    // Predicated region
    $region2: #{tpu_custom_call.1} parent=1 // pred_check
      _
    $region3: #{tpu_custom_call.1} parent=1 // pred_check_branch
      %9 = sbr.rel (0) target = $region5
    $region4: #{tpu_custom_call.1} parent=1 // pred_region
      _
    $region5: #{tpu_custom_call.1} parent=1 // pred_fallthru
      _
    // Predicated region
    $region6: #{tpu_custom_call.1} parent=1 // pred_check
      _
    $region7: #{tpu_custom_call.1} parent=1 // pred_check_branch
      %11 = sbr.rel (0) target = $region9
    $region8: #{tpu_custom_call.1} parent=1 // pred_region
      %s13 = ssub.s32 41472, 41472
      %14 = vsyncadd [#allocation7], %s13
      %s15 = sshll.u32 [#allocation6], 4
      %s16 = int_to_ptr.vmem [resolvable:$true] %s15
      %21 = dma.hbm_to_vmem [thread:$0]  %s1, 41472, %s16, [#allocation7], 512, 512, 32
    $region9: #{tpu_custom_call.1} parent=1 // pred_fallthru
      _
    // Predicated region
    $region10: #{tpu_custom_call.1} parent=1 // pred_check
      _
    $region11: #{tpu_custom_call.1} parent=1 // pred_check_branch
      %23 = sbr.rel (0) target = $region13
    $region12: #{tpu_custom_call.1} parent=1 // pred_region
      %24 = dma.done [#allocation7], 41472
    $region13: #{tpu_custom_call.1} parent=1 // pred_fallthru
      _
    %v25 = vld [vmem:[%s0] sm:$0xff]
    %v26 = vld [vmem:[%s0 + $0x8] sm:$0xff]
    %v27 = vld [vmem:[%s0 + $0x10] sm:$0xff]
    %v28 = vld [vmem:[%s0 + $0x18] sm:$0xff]
    %v29 = vld [vmem:[%s0 + $0x20] sm:$0xff]
    %v30 = vld [vmem:[%s0 + $0x28] sm:$0xff]
    %v31 = vld [vmem:[%s0 + $0x30] sm:$0xff]
    %v32 = vld [vmem:[%s0 + $0x38] sm:$0xff]
    %v33 = vld [vmem:[#allocation6] sm:$0xff]
    %v34 = vld [vmem:[#allocation6 + $0x8] sm:$0xff]
    %s35 = scalar_lea.vmem [#allocation6], 288
    %v36 = vld [vmem:[%s35] ss:$8 sm:$0x3]
    %v38 = vlaneseq
    %v39 = vshrl.u32 %v38, 7
    %v40 = vsub.s32 0, %v39
    %v41 = vrot.slane %v36, %v40
    %v42 = vlaneseq
    %v43 = vshrl.u32 %v42, 7
    %v44 = vsub.s32 1, %v43
    %v45 = vrot.slane %v36, %v44
    %vm48 = vcmask 64512
    %v50 = vsel %vm48, %v25, 0
    %v53 = vsel %vm48, %v26, 0
    %v56 = vsel %vm48, %v27, 0
    %v59 = vsel %vm48, %v28, 0
    %v62 = vsel %vm48, %v29, 0
    %v65 = vsel %vm48, %v30, 0
    %v68 = vsel %vm48, %v31, 0
    %v71 = vsel %vm48, %v32, 0
    %73 = vmatprep.subr.mxu0 %v34
    %74 = vmatpush1.msra.mxu0 %v33
    %75 = vmatprep.subr.mxu0 0.0
    %76 = vmatpush1.msra.mxu0 0.0
    %77 = vmatprep.subr.mxu0 0.0
    %78 = vmatpush1.msra.mxu0 0.0
    %79 = vmatprep.subr.mxu0 0.0
    %80 = vmatpush1.msra.mxu0 0.0
    %81 = vmatprep.subr.mxu0 0.0
    %82 = vmatpush1.msra.mxu0 0.0
    %83 = vmatprep.subr.mxu0 0.0
    %84 = vmatpush1.msra.mxu0 0.0
    %85 = vmatprep.subr.mxu0 0.0
    %86 = vmatpush1.msra.mxu0 0.0
    %87 = vmatprep.subr.mxu0 0.0
    %88 = vmatpush1.msra.mxu0 0.0
    %89 = vmatprep.subr.mxu0 0.0
    %90 = vmatpush1.msra.mxu0 0.0
    %91 = vmatprep.subr.mxu0 0.0
    %92 = vmatpush1.msra.mxu0 0.0
    %93 = vmatprep.subr.mxu0 0.0
    %94 = vmatpush1.msra.mxu0 0.0
    %95 = vmatprep.subr.mxu0 0.0
    %96 = vmatpush1.msra.mxu0 0.0
    %97 = vmatprep.subr.mxu0 0.0
    %98 = vmatpush1.msra.mxu0 0.0
    %99 = vmatprep.subr.mxu0 0.0
    %100 = vmatpush1.msra.mxu0 0.0
    %101 = vmatprep.subr.mxu0 0.0
    %102 = vmatpush1.msra.mxu0 0.0
    %103 = vmatprep.subr.mxu0 0.0
    %104 = vmatpush1.msra.mxu0 0.0
    %105 = vmatprep.subr.mxu0 0.0
    %106 = vmatpush1.msra.mxu0 0.0
    %107 = vmatprep.subr.mxu0 0.0
    %108 = vmatpush1.msra.mxu0 0.0
    %109 = vmatprep.subr.mxu0 0.0
    %110 = vmatpush1.msra.mxu0 0.0
    %111 = vmatprep.subr.mxu0 0.0
    %112 = vmatpush1.msra.mxu0 0.0
    %113 = vmatprep.subr.mxu0 0.0
    %114 = vmatpush1.msra.mxu0 0.0
    %115 = vmatprep.subr.mxu0 0.0
    %116 = vmatpush1.msra.mxu0 0.0
    %117 = vmatprep.subr.mxu0 0.0
    %118 = vmatpush1.msra.mxu0 0.0
    %119 = vmatprep.subr.mxu0 0.0
    %120 = vmatpush1.msra.mxu0 0.0
    %121 = vmatprep.subr.mxu0 0.0
    %122 = vmatpush1.msra.mxu0 0.0
    %123 = vmatprep.subr.mxu0 0.0
    %124 = vmatpush1.msra.mxu0 0.0
    %125 = vmatprep.subr.mxu0 0.0
    %126 = vmatpush1.msra.mxu0 0.0
    %127 = vmatprep.subr.mxu0 0.0
    %128 = vmatpush1.msra.mxu0 0.0
    %129 = vmatprep.subr.mxu0 0.0
    %130 = vmatpush1.msra.mxu0 0.0
    %131 = vmatprep.subr.mxu0 0.0
    %132 = vmatpush1.msra.mxu0 0.0
    %133 = vmatprep.subr.mxu0 0.0
    %134 = vmatpush1.msra.mxu0 0.0
    %135 = vmatprep.subr.mxu0 0.0
    %136 = vmatpush1.msra.mxu0 0.0
    %137 = vmatprep.mubr.f32.mxu0 0.0
    %138 = vmatmul.mubr.f32.gmra.mrb[0].mxu0 %v50
    %v139 = vpop.f32.mrb[0].mxu0
    %v140 = vadd.f32 %v41, %v139
    %v141 = vpop.f32.mrb[0].mxu0
    %v142 = vadd.f32 %v45, %v141
    %143 = vmatprep.mubr.f32.mxu0 0.0
    %144 = vmatmul.mubr.f32.gmra.mrb[0].mxu0 %v53
    %v145 = vpop.f32.mrb[0].mxu0
    %v146 = vadd.f32 %v41, %v145
    %v147 = vpop.f32.mrb[0].mxu0
    %v148 = vadd.f32 %v45, %v147
    %149 = vmatprep.mubr.f32.mxu0 0.0
    %150 = vmatmul.mubr.f32.gmra.mrb[0].mxu0 %v56
    %v151 = vpop.f32.mrb[0].mxu0
    %v152 = vadd.f32 %v41, %v151
    %v153 = vpop.f32.mrb[0].mxu0
    %v154 = vadd.f32 %v45, %v153
    %155 = vmatprep.mubr.f32.mxu0 0.0
    %156 = vmatmul.mubr.f32.gmra.mrb[0].mxu0 %v59
    %v157 = vpop.f32.mrb[0].mxu0
    %v158 = vadd.f32 %v41, %v157
    %v159 = vpop.f32.mrb[0].mxu0
    %v160 = vadd.f32 %v45, %v159
    %161 = vmatprep.mubr.f32.mxu0 0.0
    %162 = vmatmul.mubr.f32.gmra.mrb[0].mxu0 %v62
    %v163 = vpop.f32.mrb[0].mxu0
    %v164 = vadd.f32 %v41, %v163
    %v165 = vpop.f32.mrb[0].mxu0
    %v166 = vadd.f32 %v45, %v165
    %167 = vmatprep.mubr.f32.mxu0 0.0
    %168 = vmatmul.mubr.f32.gmra.mrb[0].mxu0 %v65
    %v169 = vpop.f32.mrb[0].mxu0
    %v170 = vadd.f32 %v41, %v169
    %v171 = vpop.f32.mrb[0].mxu0
    %v172 = vadd.f32 %v45, %v171
    %173 = vmatprep.mubr.f32.mxu0 0.0
    %174 = vmatmul.mubr.f32.gmra.mrb[0].mxu0 %v68
    %v175 = vpop.f32.mrb[0].mxu0
    %v176 = vadd.f32 %v41, %v175
    %v177 = vpop.f32.mrb[0].mxu0
    %v178 = vadd.f32 %v45, %v177
    %179 = vmatprep.mubr.f32.mxu0 0.0
    %180 = vmatmul.mubr.f32.gmra.mrb[0].mxu0 %v71
    %v181 = vpop.f32.mrb[0].mxu0
    %v182 = vadd.f32 %v41, %v181
    %v183 = vpop.f32.mrb[0].mxu0
    %v184 = vadd.f32 %v45, %v183
    %185 = vdwg.mxu0
    %v186 = vld [vmem:[#allocation6 + $0x20] sm:$0xff]
    %v187 = vld [vmem:[#allocation6 + $0x28] sm:$0xff]
    %v188 = vld [vmem:[#allocation6 + $0x40] sm:$0xff]
    %v189 = vld [vmem:[#allocation6 + $0x48] sm:$0xff]
    %v190 = vld [vmem:[#allocation6 + $0x60] sm:$0xff]
    %v191 = vld [vmem:[#allocation6 + $0x68] sm:$0xff]
    %v192 = vld [vmem:[#allocation6 + $0x80] sm:$0xff]
    %v193 = vld [vmem:[#allocation6 + $0x88] sm:$0xff]
    %v194 = vld [vmem:[#allocation6 + $0xa0] sm:$0xff]
    %v195 = vld [vmem:[#allocation6 + $0xa8] sm:$0xff]
    %v196 = vld [vmem:[#allocation6 + $0xc0] sm:$0xff]
    %v197 = vld [vmem:[#allocation6 + $0xc8] sm:$0xff]
    %v198 = vld [vmem:[#allocation6 + $0xe0] sm:$0xff]
    %v199 = vld [vmem:[#allocation6 + $0xe8] sm:$0xff]
    %v200 = vld [vmem:[#allocation6 + $0x100] sm:$0xff]
    %v201 = vld [vmem:[#allocation6 + $0x108] sm:$0xff]
    %vm202 = vcmask 523264
    %203 = vst.msk [vmem:[#allocation2] sm:$0xff] %vm202, %v140
    %204 = vst.msk [vmem:[#allocation2 + $0x8] sm:$0xff] %vm202, %v146
    %205 = vst.msk [vmem:[#allocation2 + $0x10] sm:$0xff] %vm202, %v152
    %206 = vst.msk [vmem:[#allocation2 + $0x18] sm:$0xff] %vm202, %v158
    %207 = vst.msk [vmem:[#allocation2 + $0x20] sm:$0xff] %vm202, %v164
    %208 = vst.msk [vmem:[#allocation2 + $0x28] sm:$0xff] %vm202, %v170
    %209 = vst.msk [vmem:[#allocation2 + $0x30] sm:$0xff] %vm202, %v176
    %210 = vst.msk [vmem:[#allocation2 + $0x38] sm:$0xff] %vm202, %v182
    %219 = vrot.lane.b32.xlu0 %v140, 64
    %v220 = vpop.permute.xlu0 %219
    %221 = vrot.lane.b32.xlu0 %v146, 64
    %v222 = vpop.permute.xlu0 %221
    %223 = vrot.lane.b32.xlu0 %v152, 64
    %v224 = vpop.permute.xlu0 %223
    %225 = vrot.lane.b32.xlu0 %v158, 64
    %v226 = vpop.permute.xlu0 %225
    %227 = vrot.lane.b32.xlu0 %v164, 64
    %v228 = vpop.permute.xlu0 %227
    %229 = vrot.lane.b32.xlu0 %v170, 64
    %v230 = vpop.permute.xlu0 %229
    %231 = vrot.lane.b32.xlu0 %v176, 64
    %v232 = vpop.permute.xlu0 %231
    %233 = vrot.lane.b32.xlu0 %v182, 64
    %v234 = vpop.permute.xlu0 %233
    %s243 = scalar_lea.vmem [#allocation2], 64
    %244 = vst.msk [vmem:[%s243] sm:$0xff] %vm202, %v220
    %245 = vst.msk [vmem:[%s243 + $0x8] sm:$0xff] %vm202, %v222
    %246 = vst.msk [vmem:[%s243 + $0x10] sm:$0xff] %vm202, %v224
    %247 = vst.msk [vmem:[%s243 + $0x18] sm:$0xff] %vm202, %v226
    %248 = vst.msk [vmem:[%s243 + $0x20] sm:$0xff] %vm202, %v228
    %249 = vst.msk [vmem:[%s243 + $0x28] sm:$0xff] %vm202, %v230
    %250 = vst.msk [vmem:[%s243 + $0x30] sm:$0xff] %vm202, %v232
    %251 = vst.msk [vmem:[%s243 + $0x38] sm:$0xff] %vm202, %v234
    %s252 = scalar_lea.vmem [#allocation2], 128
    %253 = vst.msk [vmem:[%s252] sm:$0xff] %vm202, %v142
    %254 = vst.msk [vmem:[%s252 + $0x8] sm:$0xff] %vm202, %v148
    %255 = vst.msk [vmem:[%s252 + $0x10] sm:$0xff] %vm202, %v154
    %256 = vst.msk [vmem:[%s252 + $0x18] sm:$0xff] %vm202, %v160
    %257 = vst.msk [vmem:[%s252 + $0x20] sm:$0xff] %vm202, %v166
    %258 = vst.msk [vmem:[%s252 + $0x28] sm:$0xff] %vm202, %v172
    %259 = vst.msk [vmem:[%s252 + $0x30] sm:$0xff] %vm202, %v178
    %260 = vst.msk [vmem:[%s252 + $0x38] sm:$0xff] %vm202, %v184
    %269 = vrot.lane.b32.xlu0 %v142, 64
    %v270 = vpop.permute.xlu0 %269
    %271 = vrot.lane.b32.xlu0 %v148, 64
    %v272 = vpop.permute.xlu0 %271
    %273 = vrot.lane.b32.xlu0 %v154, 64
    %v274 = vpop.permute.xlu0 %273
    %275 = vrot.lane.b32.xlu0 %v160, 64
    %v276 = vpop.permute.xlu0 %275
    %277 = vrot.lane.b32.xlu0 %v166, 64
    %v278 = vpop.permute.xlu0 %277
    %279 = vrot.lane.b32.xlu0 %v172, 64
    %v280 = vpop.permute.xlu0 %279
    %281 = vrot.lane.b32.xlu0 %v178, 64
    %v282 = vpop.permute.xlu0 %281
    %283 = vrot.lane.b32.xlu0 %v184, 64
    %v284 = vpop.permute.xlu0 %283
    %s293 = scalar_lea.vmem [#allocation2], 192
    %294 = vst.msk [vmem:[%s293] sm:$0xff] %vm202, %v270
    %295 = vst.msk [vmem:[%s293 + $0x8] sm:$0xff] %vm202, %v272
    %296 = vst.msk [vmem:[%s293 + $0x10] sm:$0xff] %vm202, %v274
    %297 = vst.msk [vmem:[%s293 + $0x18] sm:$0xff] %vm202, %v276
    %298 = vst.msk [vmem:[%s293 + $0x20] sm:$0xff] %vm202, %v278
    %299 = vst.msk [vmem:[%s293 + $0x28] sm:$0xff] %vm202, %v280
    %300 = vst.msk [vmem:[%s293 + $0x30] sm:$0xff] %vm202, %v282
    %301 = vst.msk [vmem:[%s293 + $0x38] sm:$0xff] %vm202, %v284
    %v302 = vld [vmem:[#allocation2] sm:$0xff]
    %v304 = vsel %vm202, 0.0, 0
    %306 = vmatprep.subr.mxu0 0.0
    %307 = vmatpush1.msra.mxu0 %v186
    %308 = vmatprep.subr.mxu0 0.0
    %309 = vmatpush1.msra.mxu0 %v188
    %310 = vmatprep.subr.mxu0 0.0
    %311 = vmatpush1.msra.mxu0 %v190
    %312 = vmatprep.subr.mxu0 0.0
    %313 = vmatpush1.msra.mxu0 %v192
    %314 = vmatprep.subr.mxu0 0.0
    %315 = vmatpush1.msra.mxu0 %v194
    %316 = vmatprep.subr.mxu0 0.0
    %317 = vmatpush1.msra.mxu0 %v196
    %318 = vmatprep.subr.mxu0 0.0
    %319 = vmatpush1.msra.mxu0 %v198
    %320 = vmatprep.subr.mxu0 0.0
    %321 = vmatpush1.msra.mxu0 %v200
    %322 = vmatprep.subr.mxu0 0.0
    %323 = vmatpush1.msra.mxu0 0.0
    %324 = vmatprep.subr.mxu0 0.0
    %325 = vmatpush1.msra.mxu0 0.0
    %326 = vmatprep.subr.mxu0 0.0
    %327 = vmatpush1.msra.mxu0 0.0
    %328 = vmatprep.subr.mxu0 0.0
    %329 = vmatpush1.msra.mxu0 0.0
    %330 = vmatprep.subr.mxu0 0.0
    %331 = vmatpush1.msra.mxu0 0.0
    %332 = vmatprep.subr.mxu0 0.0
    %333 = vmatpush1.msra.mxu0 0.0
    %334 = vmatprep.subr.mxu0 0.0
    %335 = vmatpush1.msra.mxu0 0.0
    %336 = vmatprep.subr.mxu0 0.0
    %337 = vmatpush1.msra.mxu0 0.0
    %338 = vmatprep.subr.mxu0 0.0
    %339 = vmatpush1.msra.mxu0 0.0
    %340 = vmatprep.subr.mxu0 0.0
    %341 = vmatpush1.msra.mxu0 0.0
    %342 = vmatprep.subr.mxu0 0.0
    %343 = vmatpush1.msra.mxu0 0.0
    %344 = vmatprep.subr.mxu0 0.0
    %345 = vmatpush1.msra.mxu0 0.0
    %346 = vmatprep.subr.mxu0 0.0
    %347 = vmatpush1.msra.mxu0 0.0
    %348 = vmatprep.subr.mxu0 0.0
    %349 = vmatpush1.msra.mxu0 0.0
    %350 = vmatprep.subr.mxu0 0.0
    %351 = vmatpush1.msra.mxu0 0.0
    %352 = vmatprep.subr.mxu0 0.0
    %353 = vmatpush1.msra.mxu0 0.0
    %354 = vmatprep.subr.mxu0 0.0
    %355 = vmatpush1.msra.mxu0 0.0
    %356 = vmatprep.subr.mxu0 0.0
    %357 = vmatpush1.msra.mxu0 0.0
    %358 = vmatprep.subr.mxu0 0.0
    %359 = vmatpush1.msra.mxu0 0.0
    %360 = vmatprep.subr.mxu0 0.0
    %361 = vmatpush1.msra.mxu0 0.0
    %362 = vmatprep.subr.mxu0 0.0
    %363 = vmatpush1.msra.mxu0 0.0
    %364 = vmatprep.subr.mxu0 0.0
    %365 = vmatpush1.msra.mxu0 0.0
    %366 = vmatprep.subr.mxu0 0.0
    %367 = vmatpush1.msra.mxu0 0.0
    %368 = vmatprep.subr.mxu0 0.0
    %369 = vmatpush1.msra.mxu0 0.0
    %370 = vmatprep.mubr.f32.mxu0 0.0
    %371 = vmatmul.mubr.f32.gmra.mrb[0].mxu0 %v304
    %v372 = vpop.f32.mrb[0].mxu0
    %v373 = vadd.f32 0.0, %v372
    %v374 = vpop.f32.mrb[0].mxu0
    %375 = vdwg.mxu0
    %v376 = vadd.f32 %v302, %v373
    %v377 = vxor.u32 %v376, 2147483648
    %v378 = vmul.f32 %v377, 1.442695
    %v379 = vpow.pop %v378
    %v380 = vadd.f32 %v379, 1.0
    %v381 = vrcp.pop %v380
    %v382 = vmul.f32 1.0, %v381
    %v383 = vld [vmem:[%s243] sm:$0xff]
    %392 = vrot.lane.b32.xlu0 %v186, 64
    %v393 = vpop.permute.xlu0 %392
    %394 = vrot.lane.b32.xlu0 %v188, 64
    %v395 = vpop.permute.xlu0 %394
    %396 = vrot.lane.b32.xlu0 %v190, 64
    %v397 = vpop.permute.xlu0 %396
    %398 = vrot.lane.b32.xlu0 %v192, 64
    %v399 = vpop.permute.xlu0 %398
    %400 = vrot.lane.b32.xlu0 %v194, 64
    %v401 = vpop.permute.xlu0 %400
    %402 = vrot.lane.b32.xlu0 %v196, 64
    %v403 = vpop.permute.xlu0 %402
    %404 = vrot.lane.b32.xlu0 %v198, 64
    %v405 = vpop.permute.xlu0 %404
    %406 = vrot.lane.b32.xlu0 %v200, 64
    %v407 = vpop.permute.xlu0 %406
    %416 = vmatprep.subr.mxu0 0.0
    %417 = vmatpush1.msra.mxu0 %v393
    %418 = vmatprep.subr.mxu0 0.0
    %419 = vmatpush1.msra.mxu0 %v395
    %420 = vmatprep.subr.mxu0 0.0
    %421 = vmatpush1.msra.mxu0 %v397
    %422 = vmatprep.subr.mxu0 0.0
    %423 = vmatpush1.msra.mxu0 %v399
    %424 = vmatprep.subr.mxu0 0.0
    %425 = vmatpush1.msra.mxu0 %v401
    %426 = vmatprep.subr.mxu0 0.0
    %427 = vmatpush1.msra.mxu0 %v403
    %428 = vmatprep.subr.mxu0 0.0
    %429 = vmatpush1.msra.mxu0 %v405
    %430 = vmatprep.subr.mxu0 0.0
    %431 = vmatpush1.msra.mxu0 %v407
    %432 = vmatprep.subr.mxu0 0.0
    %433 = vmatpush1.msra.mxu0 0.0
    %434 = vmatprep.subr.mxu0 0.0
    %435 = vmatpush1.msra.mxu0 0.0
    %436 = vmatprep.subr.mxu0 0.0
    %437 = vmatpush1.msra.mxu0 0.0
    %438 = vmatprep.subr.mxu0 0.0
    %439 = vmatpush1.msra.mxu0 0.0
    %440 = vmatprep.subr.mxu0 0.0
    %441 = vmatpush1.msra.mxu0 0.0
    %442 = vmatprep.subr.mxu0 0.0
    %443 = vmatpush1.msra.mxu0 0.0
    %444 = vmatprep.subr.mxu0 0.0
    %445 = vmatpush1.msra.mxu0 0.0
    %446 = vmatprep.subr.mxu0 0.0
    %447 = vmatpush1.msra.mxu0 0.0
    %448 = vmatprep.subr.mxu0 0.0
    %449 = vmatpush1.msra.mxu0 0.0
    %450 = vmatprep.subr.mxu0 0.0
    %451 = vmatpush1.msra.mxu0 0.0
    %452 = vmatprep.subr.mxu0 0.0
    %453 = vmatpush1.msra.mxu0 0.0
    %454 = vmatprep.subr.mxu0 0.0
    %455 = vmatpush1.msra.mxu0 0.0
    %456 = vmatprep.subr.mxu0 0.0
    %457 = vmatpush1.msra.mxu0 0.0
    %458 = vmatprep.subr.mxu0 0.0
    %459 = vmatpush1.msra.mxu0 0.0
    %460 = vmatprep.subr.mxu0 0.0
    %461 = vmatpush1.msra.mxu0 0.0
    %462 = vmatprep.subr.mxu0 0.0
    %463 = vmatpush1.msra.mxu0 0.0
    %464 = vmatprep.subr.mxu0 0.0
    %465 = vmatpush1.msra.mxu0 0.0
    %466 = vmatprep.subr.mxu0 0.0
    %467 = vmatpush1.msra.mxu0 0.0
    %468 = vmatprep.subr.mxu0 0.0
    %469 = vmatpush1.msra.mxu0 0.0
    %470 = vmatprep.subr.mxu0 0.0
    %471 = vmatpush1.msra.mxu0 0.0
    %472 = vmatprep.subr.mxu0 0.0
    %473 = vmatpush1.msra.mxu0 0.0
    %474 = vmatprep.subr.mxu0 0.0
    %475 = vmatpush1.msra.mxu0 0.0
    %476 = vmatprep.subr.mxu0 0.0
    %477 = vmatpush1.msra.mxu0 0.0
    %478 = vmatprep.subr.mxu0 0.0
    %479 = vmatpush1.msra.mxu0 0.0
    %480 = vmatprep.mubr.f32.mxu0 0.0
    %481 = vmatmul.mubr.f32.gmra.mrb[0].mxu0 %v304
    %v482 = vpop.f32.mrb[0].mxu0
    %v483 = vadd.f32 0.0, %v482
    %v484 = vpop.f32.mrb[0].mxu0
    %485 = vdwg.mxu0
    %v486 = vadd.f32 %v383, %v483
    %v487 = vxor.u32 %v486, 2147483648
    %v488 = vmul.f32 %v487, 1.442695
    %v489 = vpow.pop %v488
    %v490 = vadd.f32 %v489, 1.0
    %v491 = vrcp.pop %v490
    %v492 = vmul.f32 1.0, %v491
    %v493 = vld [vmem:[%s252] sm:$0xff]
    %494 = vmatprep.subr.mxu0 0.0
    %495 = vmatpush1.msra.mxu0 %v187
    %496 = vmatprep.subr.mxu0 0.0
    %497 = vmatpush1.msra.mxu0 %v189
    %498 = vmatprep.subr.mxu0 0.0
    %499 = vmatpush1.msra.mxu0 %v191
    %500 = vmatprep.subr.mxu0 0.0
    %501 = vmatpush1.msra.mxu0 %v193
    %502 = vmatprep.subr.mxu0 0.0
    %503 = vmatpush1.msra.mxu0 %v195
    %504 = vmatprep.subr.mxu0 0.0
    %505 = vmatpush1.msra.mxu0 %v197
    %506 = vmatprep.subr.mxu0 0.0
    %507 = vmatpush1.msra.mxu0 %v199
    %508 = vmatprep.subr.mxu0 0.0
    %509 = vmatpush1.msra.mxu0 %v201
    %510 = vmatprep.subr.mxu0 0.0
    %511 = vmatpush1.msra.mxu0 0.0
    %512 = vmatprep.subr.mxu0 0.0
    %513 = vmatpush1.msra.mxu0 0.0
    %514 = vmatprep.subr.mxu0 0.0
    %515 = vmatpush1.msra.mxu0 0.0
    %516 = vmatprep.subr.mxu0 0.0
    %517 = vmatpush1.msra.mxu0 0.0
    %518 = vmatprep.subr.mxu0 0.0
    %519 = vmatpush1.msra.mxu0 0.0
    %520 = vmatprep.subr.mxu0 0.0
    %521 = vmatpush1.msra.mxu0 0.0
    %522 = vmatprep.subr.mxu0 0.0
    %523 = vmatpush1.msra.mxu0 0.0
    %524 = vmatprep.subr.mxu0 0.0
    %525 = vmatpush1.msra.mxu0 0.0
    %526 = vmatprep.subr.mxu0 0.0
    %527 = vmatpush1.msra.mxu0 0.0
    %528 = vmatprep.subr.mxu0 0.0
    %529 = vmatpush1.msra.mxu0 0.0
    %530 = vmatprep.subr.mxu0 0.0
    %531 = vmatpush1.msra.mxu0 0.0
    %532 = vmatprep.subr.mxu0 0.0
    %533 = vmatpush1.msra.mxu0 0.0
    %534 = vmatprep.subr.mxu0 0.0
    %535 = vmatpush1.msra.mxu0 0.0
    %536 = vmatprep.subr.mxu0 0.0
    %537 = vmatpush1.msra.mxu0 0.0
    %538 = vmatprep.subr.mxu0 0.0
    %539 = vmatpush1.msra.mxu0 0.0
    %540 = vmatprep.subr.mxu0 0.0
    %541 = vmatpush1.msra.mxu0 0.0
    %542 = vmatprep.subr.mxu0 0.0
    %543 = vmatpush1.msra.mxu0 0.0
    %544 = vmatprep.subr.mxu0 0.0
    %545 = vmatpush1.msra.mxu0 0.0
    %546 = vmatprep.subr.mxu0 0.0
    %547 = vmatpush1.msra.mxu0 0.0
    %548 = vmatprep.subr.mxu0 0.0
    %549 = vmatpush1.msra.mxu0 0.0
    %550 = vmatprep.subr.mxu0 0.0
    %551 = vmatpush1.msra.mxu0 0.0
    %552 = vmatprep.subr.mxu0 0.0
    %553 = vmatpush1.msra.mxu0 0.0
    %554 = vmatprep.subr.mxu0 0.0
    %555 = vmatpush1.msra.mxu0 0.0
    %556 = vmatprep.subr.mxu0 0.0
    %557 = vmatpush1.msra.mxu0 0.0
    %558 = vmatprep.mubr.f32.mxu0 0.0
    %559 = vmatmul.mubr.f32.gmra.mrb[0].mxu0 %v304
    %v560 = vpop.f32.mrb[0].mxu0
    %v561 = vadd.f32 0.0, %v560
    %v562 = vpop.f32.mrb[0].mxu0
    %563 = vdwg.mxu0
    %v564 = vadd.f32 %v493, %v561
    %v565 = vxor.u32 %v564, 2147483648
    %v566 = vmul.f32 %v565, 1.442695
    %v567 = vpow.pop %v566
    %v568 = vadd.f32 %v567, 1.0
    %v569 = vrcp.pop %v568
    %v570 = vmul.f32 1.0, %v569
    %v571 = vld [vmem:[%s293] sm:$0xff]
    %580 = vrot.lane.b32.xlu0 %v187, 64
    %v581 = vpop.permute.xlu0 %580
    %582 = vrot.lane.b32.xlu0 %v189, 64
    %v583 = vpop.permute.xlu0 %582
    %584 = vrot.lane.b32.xlu0 %v191, 64
    %v585 = vpop.permute.xlu0 %584
    %586 = vrot.lane.b32.xlu0 %v193, 64
    %v587 = vpop.permute.xlu0 %586
    %588 = vrot.lane.b32.xlu0 %v195, 64
    %v589 = vpop.permute.xlu0 %588
    %590 = vrot.lane.b32.xlu0 %v197, 64
    %v591 = vpop.permute.xlu0 %590
    %592 = vrot.lane.b32.xlu0 %v199, 64
    %v593 = vpop.permute.xlu0 %592
    %594 = vrot.lane.b32.xlu0 %v201, 64
    %v595 = vpop.permute.xlu0 %594
    %604 = vmatprep.subr.mxu0 0.0
    %605 = vmatpush1.msra.mxu0 %v581
    %606 = vmatprep.subr.mxu0 0.0
    %607 = vmatpush1.msra.mxu0 %v583
    %608 = vmatprep.subr.mxu0 0.0
    %609 = vmatpush1.msra.mxu0 %v585
    %610 = vmatprep.subr.mxu0 0.0
    %611 = vmatpush1.msra.mxu0 %v587
    %612 = vmatprep.subr.mxu0 0.0
    %613 = vmatpush1.msra.mxu0 %v589
    %614 = vmatprep.subr.mxu0 0.0
    %615 = vmatpush1.msra.mxu0 %v591
    %616 = vmatprep.subr.mxu0 0.0
    %617 = vmatpush1.msra.mxu0 %v593
    %618 = vmatprep.subr.mxu0 0.0
    %619 = vmatpush1.msra.mxu0 %v595
    %620 = vmatprep.subr.mxu0 0.0
    %621 = vmatpush1.msra.mxu0 0.0
    %622 = vmatprep.subr.mxu0 0.0
    %623 = vmatpush1.msra.mxu0 0.0
    %624 = vmatprep.subr.mxu0 0.0
    %625 = vmatpush1.msra.mxu0 0.0
    %626 = vmatprep.subr.mxu0 0.0
    %627 = vmatpush1.msra.mxu0 0.0
    %628 = vmatprep.subr.mxu0 0.0
    %629 = vmatpush1.msra.mxu0 0.0
    %630 = vmatprep.subr.mxu0 0.0
    %631 = vmatpush1.msra.mxu0 0.0
    %632 = vmatprep.subr.mxu0 0.0
    %633 = vmatpush1.msra.mxu0 0.0
    %634 = vmatprep.subr.mxu0 0.0
    %635 = vmatpush1.msra.mxu0 0.0
    %636 = vmatprep.subr.mxu0 0.0
    %637 = vmatpush1.msra.mxu0 0.0
    %638 = vmatprep.subr.mxu0 0.0
    %639 = vmatpush1.msra.mxu0 0.0
    %640 = vmatprep.subr.mxu0 0.0
    %641 = vmatpush1.msra.mxu0 0.0
    %642 = vmatprep.subr.mxu0 0.0
    %643 = vmatpush1.msra.mxu0 0.0
    %644 = vmatprep.subr.mxu0 0.0
    %645 = vmatpush1.msra.mxu0 0.0
    %646 = vmatprep.subr.mxu0 0.0
    %647 = vmatpush1.msra.mxu0 0.0
    %648 = vmatprep.subr.mxu0 0.0
    %649 = vmatpush1.msra.mxu0 0.0
    %650 = vmatprep.subr.mxu0 0.0
    %651 = vmatpush1.msra.mxu0 0.0
    %652 = vmatprep.subr.mxu0 0.0
    %653 = vmatpush1.msra.mxu0 0.0
    %654 = vmatprep.subr.mxu0 0.0
    %655 = vmatpush1.msra.mxu0 0.0
    %656 = vmatprep.subr.mxu0 0.0
    %657 = vmatpush1.msra.mxu0 0.0
    %658 = vmatprep.subr.mxu0 0.0
    %659 = vmatpush1.msra.mxu0 0.0
    %660 = vmatprep.subr.mxu0 0.0
    %661 = vmatpush1.msra.mxu0 0.0
    %662 = vmatprep.subr.mxu0 0.0
    %663 = vmatpush1.msra.mxu0 0.0
    %664 = vmatprep.subr.mxu0 0.0
    %665 = vmatpush1.msra.mxu0 0.0
    %666 = vmatprep.subr.mxu0 0.0
    %667 = vmatpush1.msra.mxu0 0.0
    %668 = vmatprep.mubr.f32.mxu0 0.0
    %669 = vmatmul.mubr.f32.gmra.mrb[0].mxu0 %v304
    %v670 = vpop.f32.mrb[0].mxu0
    %v671 = vadd.f32 0.0, %v670
    %v672 = vpop.f32.mrb[0].mxu0
    %673 = vdwg.mxu0
    %v674 = vadd.f32 %v571, %v671
    %v675 = vtanh.pop %v674
    %v676 = vmul.f32 %v492, 0.0
    %v677 = vmul.f32 %v382, %v675
    %v678 = vadd.f32 %v676, %v677
    %v679 = vtanh.pop %v678
    %v680 = vmul.f32 %v570, %v679
    %681 = vst.msk [vmem:[#allocation3] sm:$0xff] %vm202, %v680
    %v682 = vld [vmem:[#allocation2 + $0x8] sm:$0xff]
    %v684 = vsel %vm202, %v680, 0
    %686 = vmatprep.subr.mxu0 0.0
    %687 = vmatpush1.msra.mxu0 %v186
    %688 = vmatprep.subr.mxu0 0.0
    %689 = vmatpush1.msra.mxu0 %v188
    %690 = vmatprep.subr.mxu0 0.0
    %691 = vmatpush1.msra.mxu0 %v190
    %692 = vmatprep.subr.mxu0 0.0
    %693 = vmatpush1.msra.mxu0 %v192
    %694 = vmatprep.subr.mxu0 0.0
    %695 = vmatpush1.msra.mxu0 %v194
    %696 = vmatprep.subr.mxu0 0.0
    %697 = vmatpush1.msra.mxu0 %v196
    %698 = vmatprep.subr.mxu0 0.0
    %699 = vmatpush1.msra.mxu0 %v198
    %700 = vmatprep.subr.mxu0 0.0
    %701 = vmatpush1.msra.mxu0 %v200
    %702 = vmatprep.subr.mxu0 0.0
    %703 = vmatpush1.msra.mxu0 0.0
    %704 = vmatprep.subr.mxu0 0.0
    %705 = vmatpush1.msra.mxu0 0.0
    %706 = vmatprep.subr.mxu0 0.0
    %707 = vmatpush1.msra.mxu0 0.0
    %708 = vmatprep.subr.mxu0 0.0
    %709 = vmatpush1.msra.mxu0 0.0
    %710 = vmatprep.subr.mxu0 0.0
    %711 = vmatpush1.msra.mxu0 0.0
    %712 = vmatprep.subr.mxu0 0.0
    %713 = vmatpush1.msra.mxu0 0.0
    %714 = vmatprep.subr.mxu0 0.0
    %715 = vmatpush1.msra.mxu0 0.0
    %716 = vmatprep.subr.mxu0 0.0
    %717 = vmatpush1.msra.mxu0 0.0
    %718 = vmatprep.subr.mxu0 0.0
    %719 = vmatpush1.msra.mxu0 0.0
    %720 = vmatprep.subr.mxu0 0.0
    %721 = vmatpush1.msra.mxu0 0.0
    %722 = vmatprep.subr.mxu0 0.0
    %723 = vmatpush1.msra.mxu0 0.0
    %724 = vmatprep.subr.mxu0 0.0
    %725 = vmatpush1.msra.mxu0 0.0
    %726 = vmatprep.subr.mxu0 0.0
    %727 = vmatpush1.msra.mxu0 0.0
    %728 = vmatprep.subr.mxu0 0.0
    %729 = vmatpush1.msra.mxu0 0.0
    %730 = vmatprep.subr.mxu0 0.0
    %731 = vmatpush1.msra.mxu0 0.0
    %732 = vmatprep.subr.mxu0 0.0
    %733 = vmatpush1.msra.mxu0 0.0
    %734 = vmatprep.subr.mxu0 0.0
    %735 = vmatpush1.msra.mxu0 0.0
    %736 = vmatprep.subr.mxu0 0.0
    %737 = vmatpush1.msra.mxu0 0.0
    %738 = vmatprep.subr.mxu0 0.0
    %739 = vmatpush1.msra.mxu0 0.0
    %740 = vmatprep.subr.mxu0 0.0
    %741 = vmatpush1.msra.mxu0 0.0
    %742 = vmatprep.subr.mxu0 0.0
    %743 = vmatpush1.msra.mxu0 0.0
    %744 = vmatprep.subr.mxu0 0.0
    %745 = vmatpush1.msra.mxu0 0.0
    %746 = vmatprep.subr.mxu0 0.0
    %747 = vmatpush1.msra.mxu0 0.0
    %748 = vmatprep.subr.mxu0 0.0
    %749 = vmatpush1.msra.mxu0 0.0
    %750 = vmatprep.mubr.f32.mxu0 0.0
    %751 = vmatmul.mubr.f32.gmra.mrb[0].mxu0 %v684
    %v752 = vpop.f32.mrb[0].mxu0
    %v753 = vadd.f32 0.0, %v752
    %v754 = vpop.f32.mrb[0].mxu0
    %755 = vdwg.mxu0
    %v756 = vadd.f32 %v682, %v753
    %v757 = vxor.u32 %v756, 2147483648
    %v758 = vmul.f32 %v757, 1.442695
    %v759 = vpow.pop %v758
    %v760 = vadd.f32 %v759, 1.0
    %v761 = vrcp.pop %v760
    %v762 = vmul.f32 1.0, %v761
    %v763 = vld [vmem:[%s243 + $0x8] sm:$0xff]
    %764 = vmatprep.subr.mxu0 0.0
    %765 = vmatpush1.msra.mxu0 %v393
    %766 = vmatprep.subr.mxu0 0.0
    %767 = vmatpush1.msra.mxu0 %v395
    %768 = vmatprep.subr.mxu0 0.0
    %769 = vmatpush1.msra.mxu0 %v397
    %770 = vmatprep.subr.mxu0 0.0
    %771 = vmatpush1.msra.mxu0 %v399
    %772 = vmatprep.subr.mxu0 0.0
    %773 = vmatpush1.msra.mxu0 %v401
    %774 = vmatprep.subr.mxu0 0.0
    %775 = vmatpush1.msra.mxu0 %v403
    %776 = vmatprep.subr.mxu0 0.0
    %777 = vmatpush1.msra.mxu0 %v405
    %778 = vmatprep.subr.mxu0 0.0
    %779 = vmatpush1.msra.mxu0 %v407
    %780 = vmatprep.subr.mxu0 0.0
    %781 = vmatpush1.msra.mxu0 0.0
    %782 = vmatprep.subr.mxu0 0.0
    %783 = vmatpush1.msra.mxu0 0.0
    %784 = vmatprep.subr.mxu0 0.0
    %785 = vmatpush1.msra.mxu0 0.0
    %786 = vmatprep.subr.mxu0 0.0
    %787 = vmatpush1.msra.mxu0 0.0
    %788 = vmatprep.subr.mxu0 0.0
    %789 = vmatpush1.msra.mxu0 0.0
    %790 = vmatprep.subr.mxu0 0.0
    %791 = vmatpush1.msra.mxu0 0.0
    %792 = vmatprep.subr.mxu0 0.0
    %793 = vmatpush1.msra.mxu0 0.0
    %794 = vmatprep.subr.mxu0 0.0
    %795 = vmatpush1.msra.mxu0 0.0
    %796 = vmatprep.subr.mxu0 0.0
    %797 = vmatpush1.msra.mxu0 0.0
    %798 = vmatprep.subr.mxu0 0.0
    %799 = vmatpush1.msra.mxu0 0.0
    %800 = vmatprep.subr.mxu0 0.0
    %801 = vmatpush1.msra.mxu0 0.0
    %802 = vmatprep.subr.mxu0 0.0
    %803 = vmatpush1.msra.mxu0 0.0
    %804 = vmatprep.subr.mxu0 0.0
    %805 = vmatpush1.msra.mxu0 0.0
    %806 = vmatprep.subr.mxu0 0.0
    %807 = vmatpush1.msra.mxu0 0.0
    %808 = vmatprep.subr.mxu0 0.0
    %809 = vmatpush1.msra.mxu0 0.0
    %810 = vmatprep.subr.mxu0 0.0
    %811 = vmatpush1.msra.mxu0 0.0
    %812 = vmatprep.subr.mxu0 0.0
    %813 = vmatpush1.msra.mxu0 0.0
    %814 = vmatprep.subr.mxu0 0.0
    %815 = vmatpush1.msra.mxu0 0.0
    %816 = vmatprep.subr.mxu0 0.0
    %817 = vmatpush1.msra.mxu0 0.0
    %818 = vmatprep.subr.mxu0 0.0
    %819 = vmatpush1.msra.mxu0 0.0
    %820 = vmatprep.subr.mxu0 0.0
    %821 = vmatpush1.msra.mxu0 0.0
    %822 = vmatprep.subr.mxu0 0.0
    %823 = vmatpush1.msra.mxu0 0.0
    %824 = vmatprep.subr.mxu0 0.0
    %825 = vmatpush1.msra.mxu0 0.0
    %826 = vmatprep.subr.mxu0 0.0
    %827 = vmatpush1.msra.mxu0 0.0
    %828 = vmatprep.mubr.f32.mxu0 0.0
    %829 = vmatmul.mubr.f32.gmra.mrb[0].mxu0 %v684
    %v830 = vpop.f32.mrb[0].mxu0
    %v831 = vadd.f32 0.0, %v830
    %v832 = vpop.f32.mrb[0].mxu0
    %833 = vdwg.mxu0
    %v834 = vadd.f32 %v763, %v831
    %v835 = vxor.u32 %v834, 2147483648
    %v836 = vmul.f32 %v835, 1.442695
    %v837 = vpow.pop %v836
    %v838 = vadd.f32 %v837, 1.0
    %v839 = vrcp.pop %v838
    %v840 = vmul.f32 1.0, %v839
    %v841 = vld [vmem:[%s252 + $0x8] sm:$0xff]
    %842 = vmatprep.subr.mxu0 0.0
    %843 = vmatpush1.msra.mxu0 %v187
    %844 = vmatprep.subr.mxu0 0.0
    %845 = vmatpush1.msra.mxu0 %v189
    %846 = vmatprep.subr.mxu0 0.0
    %847 = vmatpush1.msra.mxu0 %v191
    %848 = vmatprep.subr.mxu0 0.0
    %849 = vmatpush1.msra.mxu0 %v193
    %850 = vmatprep.subr.mxu0 0.0
    %851 = vmatpush1.msra.mxu0 %v195
    %852 = vmatprep.subr.mxu0 0.0
    %853 = vmatpush1.msra.mxu0 %v197
    %854 = vmatprep.subr.mxu0 0.0
    %855 = vmatpush1.msra.mxu0 %v199
    %856 = vmatprep.subr.mxu0 0.0
    %857 = vmatpush1.msra.mxu0 %v201
    %858 = vmatprep.subr.mxu0 0.0
    %859 = vmatpush1.msra.mxu0 0.0
    %860 = vmatprep.subr.mxu0 0.0
    %861 = vmatpush1.msra.mxu0 0.0
    %862 = vmatprep.subr.mxu0 0.0
    %863 = vmatpush1.msra.mxu0 0.0
    %864 = vmatprep.subr.mxu0 0.0
    %865 = vmatpush1.msra.mxu0 0.0
    %866 = vmatprep.subr.mxu0 0.0
    %867 = vmatpush1.msra.mxu0 0.0
    %868 = vmatprep.subr.mxu0 0.0
    %869 = vmatpush1.msra.mxu0 0.0
    %870 = vmatprep.subr.mxu0 0.0
    %871 = vmatpush1.msra.mxu0 0.0
    %872 = vmatprep.subr.mxu0 0.0
    %873 = vmatpush1.msra.mxu0 0.0
    %874 = vmatprep.subr.mxu0 0.0
    %875 = vmatpush1.msra.mxu0 0.0
    %876 = vmatprep.subr.mxu0 0.0
    %877 = vmatpush1.msra.mxu0 0.0
    %878 = vmatprep.subr.mxu0 0.0
    %879 = vmatpush1.msra.mxu0 0.0
    %880 = vmatprep.subr.mxu0 0.0
    %881 = vmatpush1.msra.mxu0 0.0
    %882 = vmatprep.subr.mxu0 0.0
    %883 = vmatpush1.msra.mxu0 0.0
    %884 = vmatprep.subr.mxu0 0.0
    %885 = vmatpush1.msra.mxu0 0.0
    %886 = vmatprep.subr.mxu0 0.0
    %887 = vmatpush1.msra.mxu0 0.0
    %888 = vmatprep.subr.mxu0 0.0
    %889 = vmatpush1.msra.mxu0 0.0
    %890 = vmatprep.subr.mxu0 0.0
    %891 = vmatpush1.msra.mxu0 0.0
    %892 = vmatprep.subr.mxu0 0.0
    %893 = vmatpush1.msra.mxu0 0.0
    %894 = vmatprep.subr.mxu0 0.0
    %895 = vmatpush1.msra.mxu0 0.0
    %896 = vmatprep.subr.mxu0 0.0
    %897 = vmatpush1.msra.mxu0 0.0
    %898 = vmatprep.subr.mxu0 0.0
    %899 = vmatpush1.msra.mxu0 0.0
    %900 = vmatprep.subr.mxu0 0.0
    %901 = vmatpush1.msra.mxu0 0.0
    %902 = vmatprep.subr.mxu0 0.0
    %903 = vmatpush1.msra.mxu0 0.0
    %904 = vmatprep.subr.mxu0 0.0
    %905 = vmatpush1.msra.mxu0 0.0
    %906 = vmatprep.mubr.f32.mxu0 0.0
    %907 = vmatmul.mubr.f32.gmra.mrb[0].mxu0 %v684
    %v908 = vpop.f32.mrb[0].mxu0
    %v909 = vadd.f32 0.0, %v908
    %v910 = vpop.f32.mrb[0].mxu0
    %911 = vdwg.mxu0
    %v912 = vadd.f32 %v841, %v909
    %v913 = vxor.u32 %v912, 2147483648
    %v914 = vmul.f32 %v913, 1.442695
    %v915 = vpow.pop %v914
    %v916 = vadd.f32 %v915, 1.0
    %v917 = vrcp.pop %v916
    %v918 = vmul.f32 1.0, %v917
    %v919 = vld [vmem:[%s293 + $0x8] sm:$0xff]
    %920 = vmatprep.subr.mxu0 0.0
    %921 = vmatpush1.msra.mxu0 %v581
    %922 = vmatprep.subr.mxu0 0.0
    %923 = vmatpush1.msra.mxu0 %v583
    %924 = vmatprep.subr.mxu0 0.0
    %925 = vmatpush1.msra.mxu0 %v585
    %926 = vmatprep.subr.mxu0 0.0
    %927 = vmatpush1.msra.mxu0 %v587
    %928 = vmatprep.subr.mxu0 0.0
    %929 = vmatpush1.msra.mxu0 %v589
    %930 = vmatprep.subr.mxu0 0.0
    %931 = vmatpush1.msra.mxu0 %v591
    %932 = vmatprep.subr.mxu0 0.0
    %933 = vmatpush1.msra.mxu0 %v593
    %934 = vmatprep.subr.mxu0 0.0
    %935 = vmatpush1.msra.mxu0 %v595
    %936 = vmatprep.subr.mxu0 0.0
    %937 = vmatpush1.msra.mxu0 0.0
    %938 = vmatprep.subr.mxu0 0.0
    %939 = vmatpush1.msra.mxu0 0.0
    %940 = vmatprep.subr.mxu0 0.0
    %941 = vmatpush1.msra.mxu0 0.0
    %942 = vmatprep.subr.mxu0 0.0
    %943 = vmatpush1.msra.mxu0 0.0
    %944 = vmatprep.subr.mxu0 0.0
    %945 = vmatpush1.msra.mxu0 0.0
    %946 = vmatprep.subr.mxu0 0.0
    %947 = vmatpush1.msra.mxu0 0.0
    %948 = vmatprep.subr.mxu0 0.0
    %949 = vmatpush1.msra.mxu0 0.0
    %950 = vmatprep.subr.mxu0 0.0
    %951 = vmatpush1.msra.mxu0 0.0
    %952 = vmatprep.subr.mxu0 0.0
    %953 = vmatpush1.msra.mxu0 0.0
    %954 = vmatprep.subr.mxu0 0.0
    %955 = vmatpush1.msra.mxu0 0.0
    %956 = vmatprep.subr.mxu0 0.0
    %957 = vmatpush1.msra.mxu0 0.0
    %958 = vmatprep.subr.mxu0 0.0
    %959 = vmatpush1.msra.mxu0 0.0
    %960 = vmatprep.subr.mxu0 0.0
    %961 = vmatpush1.msra.mxu0 0.0
    %962 = vmatprep.subr.mxu0 0.0
    %963 = vmatpush1.msra.mxu0 0.0
    %964 = vmatprep.subr.mxu0 0.0
    %965 = vmatpush1.msra.mxu0 0.0
    %966 = vmatprep.subr.mxu0 0.0
    %967 = vmatpush1.msra.mxu0 0.0
    %968 = vmatprep.subr.mxu0 0.0
    %969 = vmatpush1.msra.mxu0 0.0
    %970 = vmatprep.subr.mxu0 0.0
    %971 = vmatpush1.msra.mxu0 0.0
    %972 = vmatprep.subr.mxu0 0.0
    %973 = vmatpush1.msra.mxu0 0.0
    %974 = vmatprep.subr.mxu0 0.0
    %975 = vmatpush1.msra.mxu0 0.0
    %976 = vmatprep.subr.mxu0 0.0
    %977 = vmatpush1.msra.mxu0 0.0
    %978 = vmatprep.subr.mxu0 0.0
    %979 = vmatpush1.msra.mxu0 0.0
    %980 = vmatprep.subr.mxu0 0.0
    %981 = vmatpush1.msra.mxu0 0.0
    %982 = vmatprep.subr.mxu0 0.0
    %983 = vmatpush1.msra.mxu0 0.0
    %984 = vmatprep.mubr.f32.mxu0 0.0
    %985 = vmatmul.mubr.f32.gmra.mrb[0].mxu0 %v684
    %v986 = vpop.f32.mrb[0].mxu0
    %v987 = vadd.f32 0.0, %v986
    %v988 = vpop.f32.mrb[0].mxu0
    %989 = vdwg.mxu0
    %v990 = vadd.f32 %v919, %v987
    %v991 = vtanh.pop %v990
    %v992 = vmul.f32 %v840, %v678
    %v993 = vmul.f32 %v762, %v991
    %v994 = vadd.f32 %v992, %v993
    %v995 = vtanh.pop %v994
    %v996 = vmul.f32 %v918, %v995
    %997 = vst.msk [vmem:[#allocation3 + $0x8] sm:$0xff] %vm202, %v996
    %v998 = vld [vmem:[#allocation2 + $0x10] sm:$0xff]
    %v1000 = vsel %vm202, %v996, 0
    %1002 = vmatprep.subr.mxu0 0.0
    %1003 = vmatpush1.msra.mxu0 %v186
    %1004 = vmatprep.subr.mxu0 0.0
    %1005 = vmatpush1.msra.mxu0 %v188
    %1006 = vmatprep.subr.mxu0 0.0
    %1007 = vmatpush1.msra.mxu0 %v190
    %1008 = vmatprep.subr.mxu0 0.0
    %1009 = vmatpush1.msra.mxu0 %v192
    %1010 = vmatprep.subr.mxu0 0.0
    %1011 = vmatpush1.msra.mxu0 %v194
    %1012 = vmatprep.subr.mxu0 0.0
    %1013 = vmatpush1.msra.mxu0 %v196
    %1014 = vmatprep.subr.mxu0 0.0
    %1015 = vmatpush1.msra.mxu0 %v198
    %1016 = vmatprep.subr.mxu0 0.0
    %1017 = vmatpush1.msra.mxu0 %v200
    %1018 = vmatprep.subr.mxu0 0.0
    %1019 = vmatpush1.msra.mxu0 0.0
    %1020 = vmatprep.subr.mxu0 0.0
    %1021 = vmatpush1.msra.mxu0 0.0
    %1022 = vmatprep.subr.mxu0 0.0
    %1023 = vmatpush1.msra.mxu0 0.0
    %1024 = vmatprep.subr.mxu0 0.0
    %1025 = vmatpush1.msra.mxu0 0.0
    %1026 = vmatprep.subr.mxu0 0.0
    %1027 = vmatpush1.msra.mxu0 0.0
    %1028 = vmatprep.subr.mxu0 0.0
    %1029 = vmatpush1.msra.mxu0 0.0
    %1030 = vmatprep.subr.mxu0 0.0
    %1031 = vmatpush1.msra.mxu0 0.0
    %1032 = vmatprep.subr.mxu0 0.0
    %1033 = vmatpush1.msra.mxu0 0.0
    %1034 = vmatprep.subr.mxu0 0.0
    %1035 = vmatpush1.msra.mxu0 0.0
    %1036 = vmatprep.subr.mxu0 0.0
    %1037 = vmatpush1.msra.mxu0 0.0
    %1038 = vmatprep.subr.mxu0 0.0
    %1039 = vmatpush1.msra.mxu0 0.0
    %1040 = vmatprep.subr.mxu0 0.0
    %1041 = vmatpush1.msra.mxu0 0.0
    %1042 = vmatprep.subr.mxu0 0.0
    %1043 = vmatpush1.msra.mxu0 0.0
    %1044 = vmatprep.subr.mxu0 0.0
    %1045 = vmatpush1.msra.mxu0 0.0
    %1046 = vmatprep.subr.mxu0 0.0
    %1047 = vmatpush1.msra.mxu0 0.0
    %1048 = vmatprep.subr.mxu0 0.0
    %1049 = vmatpush1.msra.mxu0 0.0
    %1050 = vmatprep.subr.mxu0 0.0
    %1051 = vmatpush1.msra.mxu0 0.0
    %1052 = vmatprep.subr.mxu0 0.0
    %1053 = vmatpush1.msra.mxu0 0.0
    %1054 = vmatprep.subr.mxu0 0.0
    %1055 = vmatpush1.msra.mxu0 0.0
    %1056 = vmatprep.subr.mxu0 0.0
    %1057 = vmatpush1.msra.mxu0 0.0
    %1058 = vmatprep.subr.mxu0 0.0
    %1059 = vmatpush1.msra.mxu0 0.0
    %1060 = vmatprep.subr.mxu0 0.0
    %1061 = vmatpush1.msra.mxu0 0.0
    %1062 = vmatprep.subr.mxu0 0.0
    %1063 = vmatpush1.msra.mxu0 0.0
    %1064 = vmatprep.subr.mxu0 0.0
    %1065 = vmatpush1.msra.mxu0 0.0
    %1066 = vmatprep.mubr.f32.mxu0 0.0
    %1067 = vmatmul.mubr.f32.gmra.mrb[0].mxu0 %v1000
    %v1068 = vpop.f32.mrb[0].mxu0
    %v1069 = vadd.f32 0.0, %v1068
    %v1070 = vpop.f32.mrb[0].mxu0
    %1071 = vdwg.mxu0
    %v1072 = vadd.f32 %v998, %v1069
    %v1073 = vxor.u32 %v1072, 2147483648
    %v1074 = vmul.f32 %v1073, 1.442695
    %v1075 = vpow.pop %v1074
    %v1076 = vadd.f32 %v1075, 1.0
    %v1077 = vrcp.pop %v1076
    %v1078 = vmul.f32 1.0, %v1077
    %v1079 = vld [vmem:[%s243 + $0x10] sm:$0xff]
    %1080 = vmatprep.subr.mxu0 0.0
    %1081 = vmatpush1.msra.mxu0 %v393
    %1082 = vmatprep.subr.mxu0 0.0
    %1083 = vmatpush1.msra.mxu0 %v395
    %1084 = vmatprep.subr.mxu0 0.0
    %1085 = vmatpush1.msra.mxu0 %v397
    %1086 = vmatprep.subr.mxu0 0.0
    %1087 = vmatpush1.msra.mxu0 %v399
    %1088 = vmatprep.subr.mxu0 0.0
    %1089 = vmatpush1.msra.mxu0 %v401
    %1090 = vmatprep.subr.mxu0 0.0
    %1091 = vmatpush1.msra.mxu0 %v403
    %1092 = vmatprep.subr.mxu0 0.0
    %1093 = vmatpush1.msra.mxu0 %v405
    %1094 = vmatprep.subr.mxu0 0.0
    %1095 = vmatpush1.msra.mxu0 %v407
    %1096 = vmatprep.subr.mxu0 0.0
    %1097 = vmatpush1.msra.mxu0 0.0
    %1098 = vmatprep.subr.mxu0 0.0
    %1099 = vmatpush1.msra.mxu0 0.0
    %1100 = vmatprep.subr.mxu0 0.0
    %1101 = vmatpush1.msra.mxu0 0.0
    %1102 = vmatprep.subr.mxu0 0.0
    %1103 = vmatpush1.msra.mxu0 0.0
    %1104 = vmatprep.subr.mxu0 0.0
    %1105 = vmatpush1.msra.mxu0 0.0
    %1106 = vmatprep.subr.mxu0 0.0
    %1107 = vmatpush1.msra.mxu0 0.0
    %1108 = vmatprep.subr.mxu0 0.0
    %1109 = vmatpush1.msra.mxu0 0.0
    %1110 = vmatprep.subr.mxu0 0.0
    %1111 = vmatpush1.msra.mxu0 0.0
    %1112 = vmatprep.subr.mxu0 0.0
    %1113 = vmatpush1.msra.mxu0 0.0
    %1114 = vmatprep.subr.mxu0 0.0
    %1115 = vmatpush1.msra.mxu0 0.0
    %1116 = vmatprep.subr.mxu0 0.0
    %1117 = vmatpush1.msra.mxu0 0.0
    %1118 = vmatprep.subr.mxu0 0.0
    %1119 = vmatpush1.msra.mxu0 0.0
    %1120 = vmatprep.subr.mxu0 0.0
    %1121 = vmatpush1.msra.mxu0 0.0
    %1122 = vmatprep.subr.mxu0 0.0
    %1123 = vmatpush1.msra.mxu0 0.0
    %1124 = vmatprep.subr.mxu0 0.0
    %1125 = vmatpush1.msra.mxu0 0.0
    %1126 = vmatprep.subr.mxu0 0.0
    %1127 = vmatpush1.msra.mxu0 0.0
    %1128 = vmatprep.subr.mxu0 0.0
    %1129 = vmatpush1.msra.mxu0 0.0
    %1130 = vmatprep.subr.mxu0 0.0
    %1131 = vmatpush1.msra.mxu0 0.0
    %1132 = vmatprep.subr.mxu0 0.0
    %1133 = vmatpush1.msra.mxu0 0.0
    %1134 = vmatprep.subr.mxu0 0.0
    %1135 = vmatpush1.msra.mxu0 0.0
    %1136 = vmatprep.subr.mxu0 0.0
    %1137 = vmatpush1.msra.mxu0 0.0
    %1138 = vmatprep.subr.mxu0 0.0
    %1139 = vmatpush1.msra.mxu0 0.0
    %1140 = vmatprep.subr.mxu0 0.0
    %1141 = vmatpush1.msra.mxu0 0.0
    %1142 = vmatprep.subr.mxu0 0.0
    %1143 = vmatpush1.msra.mxu0 0.0
    %1144 = vmatprep.mubr.f32.mxu0 0.0
    %1145 = vmatmul.mubr.f32.gmra.mrb[0].mxu0 %v1000
    %v1146 = vpop.f32.mrb[0].mxu0
    %v1147 = vadd.f32 0.0, %v1146
    %v1148 = vpop.f32.mrb[0].mxu0
    %1149 = vdwg.mxu0
    %v1150 = vadd.f32 %v1079, %v1147
    %v1151 = vxor.u32 %v1150, 2147483648
    %v1152 = vmul.f32 %v1151, 1.442695
    %v1153 = vpow.pop %v1152
    %v1154 = vadd.f32 %v1153, 1.0
    %v1155 = vrcp.pop %v1154
    %v1156 = vmul.f32 1.0, %v1155
    %v1157 = vld [vmem:[%s252 + $0x10] sm:$0xff]
    %1158 = vmatprep.subr.mxu0 0.0
    %1159 = vmatpush1.msra.mxu0 %v187
    %1160 = vmatprep.subr.mxu0 0.0
    %1161 = vmatpush1.msra.mxu0 %v189
    %1162 = vmatprep.subr.mxu0 0.0
    %1163 = vmatpush1.msra.mxu0 %v191
    %1164 = vmatprep.subr.mxu0 0.0
    %1165 = vmatpush1.msra.mxu0 %v193
    %1166 = vmatprep.subr.mxu0 0.0
    %1167 = vmatpush1.msra.mxu0 %v195
    %1168 = vmatprep.subr.mxu0 0.0
    %1169 = vmatpush1.msra.mxu0 %v197
    %1170 = vmatprep.subr.mxu0 0.0
    %1171 = vmatpush1.msra.mxu0 %v199
    %1172 = vmatprep.subr.mxu0 0.0
    %1173 = vmatpush1.msra.mxu0 %v201
    %1174 = vmatprep.subr.mxu0 0.0
    %1175 = vmatpush1.msra.mxu0 0.0
    %1176 = vmatprep.subr.mxu0 0.0
    %1177 = vmatpush1.msra.mxu0 0.0
    %1178 = vmatprep.subr.mxu0 0.0
    %1179 = vmatpush1.msra.mxu0 0.0
    %1180 = vmatprep.subr.mxu0 0.0
    %1181 = vmatpush1.msra.mxu0 0.0
    %1182 = vmatprep.subr.mxu0 0.0
    %1183 = vmatpush1.msra.mxu0 0.0
    %1184 = vmatprep.subr.mxu0 0.0
    %1185 = vmatpush1.msra.mxu0 0.0
    %1186 = vmatprep.subr.mxu0 0.0
    %1187 = vmatpush1.msra.mxu0 0.0
    %1188 = vmatprep.subr.mxu0 0.0
    %1189 = vmatpush1.msra.mxu0 0.0
    %1190 = vmatprep.subr.mxu0 0.0
    %1191 = vmatpush1.msra.mxu0 0.0
    %1192 = vmatprep.subr.mxu0 0.0
    %1193 = vmatpush1.msra.mxu0 0.0
    %1194 = vmatprep.subr.mxu0 0.0
    %1195 = vmatpush1.msra.mxu0 0.0
    %1196 = vmatprep.subr.mxu0 0.0
    %1197 = vmatpush1.msra.mxu0 0.0
    %1198 = vmatprep.subr.mxu0 0.0
    %1199 = vmatpush1.msra.mxu0 0.0
    %1200 = vmatprep.subr.mxu0 0.0
    %1201 = vmatpush1.msra.mxu0 0.0
    %1202 = vmatprep.subr.mxu0 0.0
    %1203 = vmatpush1.msra.mxu0 0.0
    %1204 = vmatprep.subr.mxu0 0.0
    %1205 = vmatpush1.msra.mxu0 0.0
    %1206 = vmatprep.subr.mxu0 0.0
    %1207 = vmatpush1.msra.mxu0 0.0
    %1208 = vmatprep.subr.mxu0 0.0
    %1209 = vmatpush1.msra.mxu0 0.0
    %1210 = vmatprep.subr.mxu0 0.0
    %1211 = vmatpush1.msra.mxu0 0.0
    %1212 = vmatprep.subr.mxu0 0.0
    %1213 = vmatpush1.msra.mxu0 0.0
    %1214 = vmatprep.subr.mxu0 0.0
    %1215 = vmatpush1.msra.mxu0 0.0
    %1216 = vmatprep.subr.mxu0 0.0
    %1217 = vmatpush1.msra.mxu0 0.0
    %1218 = vmatprep.subr.mxu0 0.0
    %1219 = vmatpush1.msra.mxu0 0.0
    %1220 = vmatprep.subr.mxu0 0.0
    %1221 = vmatpush1.msra.mxu0 0.0
    %1222 = vmatprep.mubr.f32.mxu0 0.0
    %1223 = vmatmul.mubr.f32.gmra.mrb[0].mxu0 %v1000
    %v1224 = vpop.f32.mrb[0].mxu0
    %v1225 = vadd.f32 0.0, %v1224
    %v1226 = vpop.f32.mrb[0].mxu0
    %1227 = vdwg.mxu0
    %v1228 = vadd.f32 %v1157, %v1225
    %v1229 = vxor.u32 %v1228, 2147483648
    %v1230 = vmul.f32 %v1229, 1.442695
    %v1231 = vpow.pop %v1230
    %v1232 = vadd.f32 %v1231, 1.0
    %v1233 = vrcp.pop %v1232
    %v1234 = vmul.f32 1.0, %v1233
    %v1235 = vld [vmem:[%s293 + $0x10] sm:$0xff]
    %1236 = vmatprep.subr.mxu0 0.0
    %1237 = vmatpush1.msra.mxu0 %v581
    %1238 = vmatprep.subr.mxu0 0.0
    %1239 = vmatpush1.msra.mxu0 %v583
    %1240 = vmatprep.subr.mxu0 0.0
    %1241 = vmatpush1.msra.mxu0 %v585
    %1242 = vmatprep.subr.mxu0 0.0
    %1243 = vmatpush1.msra.mxu0 %v587
    %1244 = vmatprep.subr.mxu0 0.0
    %1245 = vmatpush1.msra.mxu0 %v589
    %1246 = vmatprep.subr.mxu0 0.0
    %1247 = vmatpush1.msra.mxu0 %v591
    %1248 = vmatprep.subr.mxu0 0.0
    %1249 = vmatpush1.msra.mxu0 %v593
    %1250 = vmatprep.subr.mxu0 0.0
    %1251 = vmatpush1.msra.mxu0 %v595
    %1252 = vmatprep.subr.mxu0 0.0
    %1253 = vmatpush1.msra.mxu0 0.0
    %1254 = vmatprep.subr.mxu0 0.0
    %1255 = vmatpush1.msra.mxu0 0.0
    %1256 = vmatprep.subr.mxu0 0.0
    %1257 = vmatpush1.msra.mxu0 0.0
    %1258 = vmatprep.subr.mxu0 0.0
    %1259 = vmatpush1.msra.mxu0 0.0
    %1260 = vmatprep.subr.mxu0 0.0
    %1261 = vmatpush1.msra.mxu0 0.0
    %1262 = vmatprep.subr.mxu0 0.0
    %1263 = vmatpush1.msra.mxu0 0.0
    %1264 = vmatprep.subr.mxu0 0.0
    %1265 = vmatpush1.msra.mxu0 0.0
    %1266 = vmatprep.subr.mxu0 0.0
    %1267 = vmatpush1.msra.mxu0 0.0
    %1268 = vmatprep.subr.mxu0 0.0
    %1269 = vmatpush1.msra.mxu0 0.0
    %1270 = vmatprep.subr.mxu0 0.0
    %1271 = vmatpush1.msra.mxu0 0.0
    %1272 = vmatprep.subr.mxu0 0.0
    %1273 = vmatpush1.msra.mxu0 0.0
    %1274 = vmatprep.subr.mxu0 0.0
    %1275 = vmatpush1.msra.mxu0 0.0
    %1276 = vmatprep.subr.mxu0 0.0
    %1277 = vmatpush1.msra.mxu0 0.0
    %1278 = vmatprep.subr.mxu0 0.0
    %1279 = vmatpush1.msra.mxu0 0.0
    %1280 = vmatprep.subr.mxu0 0.0
    %1281 = vmatpush1.msra.mxu0 0.0
    %1282 = vmatprep.subr.mxu0 0.0
    %1283 = vmatpush1.msra.mxu0 0.0
    %1284 = vmatprep.subr.mxu0 0.0
    %1285 = vmatpush1.msra.mxu0 0.0
    %1286 = vmatprep.subr.mxu0 0.0
    %1287 = vmatpush1.msra.mxu0 0.0
    %1288 = vmatprep.subr.mxu0 0.0
    %1289 = vmatpush1.msra.mxu0 0.0
    %1290 = vmatprep.subr.mxu0 0.0
    %1291 = vmatpush1.msra.mxu0 0.0
    %1292 = vmatprep.subr.mxu0 0.0
    %1293 = vmatpush1.msra.mxu0 0.0
    %1294 = vmatprep.subr.mxu0 0.0
    %1295 = vmatpush1.msra.mxu0 0.0
    %1296 = vmatprep.subr.mxu0 0.0
    %1297 = vmatpush1.msra.mxu0 0.0
    %1298 = vmatprep.subr.mxu0 0.0
    %1299 = vmatpush1.msra.mxu0 0.0
    %1300 = vmatprep.mubr.f32.mxu0 0.0
    %1301 = vmatmul.mubr.f32.gmra.mrb[0].mxu0 %v1000
    %v1302 = vpop.f32.mrb[0].mxu0
    %v1303 = vadd.f32 0.0, %v1302
    %v1304 = vpop.f32.mrb[0].mxu0
    %1305 = vdwg.mxu0
    %v1306 = vadd.f32 %v1235, %v1303
    %v1307 = vtanh.pop %v1306
    %v1308 = vmul.f32 %v1156, %v994
    %v1309 = vmul.f32 %v1078, %v1307
    %v1310 = vadd.f32 %v1308, %v1309
    %v1311 = vtanh.pop %v1310
    %v1312 = vmul.f32 %v1234, %v1311
    %1313 = vst.msk [vmem:[#allocation3 + $0x10] sm:$0xff] %vm202, %v1312
    %v1314 = vld [vmem:[#allocation2 + $0x18] sm:$0xff]
    %v1316 = vsel %vm202, %v1312, 0
    %1318 = vmatprep.subr.mxu0 0.0
    %1319 = vmatpush1.msra.mxu0 %v186
    %1320 = vmatprep.subr.mxu0 0.0
    %1321 = vmatpush1.msra.mxu0 %v188
    %1322 = vmatprep.subr.mxu0 0.0
    %1323 = vmatpush1.msra.mxu0 %v190
    %1324 = vmatprep.subr.mxu0 0.0
    %1325 = vmatpush1.msra.mxu0 %v192
    %1326 = vmatprep.subr.mxu0 0.0
    %1327 = vmatpush1.msra.mxu0 %v194
    %1328 = vmatprep.subr.mxu0 0.0
    %1329 = vmatpush1.msra.mxu0 %v196
    %1330 = vmatprep.subr.mxu0 0.0
    %1331 = vmatpush1.msra.mxu0 %v198
    %1332 = vmatprep.subr.mxu0 0.0
    %1333 = vmatpush1.msra.mxu0 %v200
    %1334 = vmatprep.subr.mxu0 0.0
    %1335 = vmatpush1.msra.mxu0 0.0
    %1336 = vmatprep.subr.mxu0 0.0
    %1337 = vmatpush1.msra.mxu0 0.0
    %1338 = vmatprep.subr.mxu0 0.0
    %1339 = vmatpush1.msra.mxu0 0.0
    %1340 = vmatprep.subr.mxu0 0.0
    %1341 = vmatpush1.msra.mxu0 0.0
    %1342 = vmatprep.subr.mxu0 0.0
    %1343 = vmatpush1.msra.mxu0 0.0
    %1344 = vmatprep.subr.mxu0 0.0
    %1345 = vmatpush1.msra.mxu0 0.0
    %1346 = vmatprep.subr.mxu0 0.0
    %1347 = vmatpush1.msra.mxu0 0.0
    %1348 = vmatprep.subr.mxu0 0.0
    %1349 = vmatpush1.msra.mxu0 0.0
    %1350 = vmatprep.subr.mxu0 0.0
    %1351 = vmatpush1.msra.mxu0 0.0
    %1352 = vmatprep.subr.mxu0 0.0
    %1353 = vmatpush1.msra.mxu0 0.0
    %1354 = vmatprep.subr.mxu0 0.0
    %1355 = vmatpush1.msra.mxu0 0.0
    %1356 = vmatprep.subr.mxu0 0.0
    %1357 = vmatpush1.msra.mxu0 0.0
    %1358 = vmatprep.subr.mxu0 0.0
    %1359 = vmatpush1.msra.mxu0 0.0
    %1360 = vmatprep.subr.mxu0 0.0
    %1361 = vmatpush1.msra.mxu0 0.0
    %1362 = vmatprep.subr.mxu0 0.0
    %1363 = vmatpush1.msra.mxu0 0.0
    %1364 = vmatprep.subr.mxu0 0.0
    %1365 = vmatpush1.msra.mxu0 0.0
    %1366 = vmatprep.subr.mxu0 0.0
    %1367 = vmatpush1.msra.mxu0 0.0
    %1368 = vmatprep.subr.mxu0 0.0
    %1369 = vmatpush1.msra.mxu0 0.0
    %1370 = vmatprep.subr.mxu0 0.0
    %1371 = vmatpush1.msra.mxu0 0.0
    %1372 = vmatprep.subr.mxu0 0.0
    %1373 = vmatpush1.msra.mxu0 0.0
    %1374 = vmatprep.subr.mxu0 0.0
    %1375 = vmatpush1.msra.mxu0 0.0
    %1376 = vmatprep.subr.mxu0 0.0
    %1377 = vmatpush1.msra.mxu0 0.0
    %1378 = vmatprep.subr.mxu0 0.0
    %1379 = vmatpush1.msra.mxu0 0.0
    %1380 = vmatprep.subr.mxu0 0.0
    %1381 = vmatpush1.msra.mxu0 0.0
    %1382 = vmatprep.mubr.f32.mxu0 0.0
    %1383 = vmatmul.mubr.f32.gmra.mrb[0].mxu0 %v1316
    %v1384 = vpop.f32.mrb[0].mxu0
    %v1385 = vadd.f32 0.0, %v1384
    %v1386 = vpop.f32.mrb[0].mxu0
    %1387 = vdwg.mxu0
    %v1388 = vadd.f32 %v1314, %v1385
    %v1389 = vxor.u32 %v1388, 2147483648
    %v1390 = vmul.f32 %v1389, 1.442695
    %v1391 = vpow.pop %v1390
    %v1392 = vadd.f32 %v1391, 1.0
    %v1393 = vrcp.pop %v1392
    %v1394 = vmul.f32 1.0, %v1393
    %v1395 = vld [vmem:[%s243 + $0x18] sm:$0xff]
    %1396 = vmatprep.subr.mxu0 0.0
    %1397 = vmatpush1.msra.mxu0 %v393
    %1398 = vmatprep.subr.mxu0 0.0
    %1399 = vmatpush1.msra.mxu0 %v395
    %1400 = vmatprep.subr.mxu0 0.0
    %1401 = vmatpush1.msra.mxu0 %v397
    %1402 = vmatprep.subr.mxu0 0.0
    %1403 = vmatpush1.msra.mxu0 %v399
    %1404 = vmatprep.subr.mxu0 0.0
    %1405 = vmatpush1.msra.mxu0 %v401
    %1406 = vmatprep.subr.mxu0 0.0
    %1407 = vmatpush1.msra.mxu0 %v403
    %1408 = vmatprep.subr.mxu0 0.0
    %1409 = vmatpush1.msra.mxu0 %v405
    %1410 = vmatprep.subr.mxu0 0.0
    %1411 = vmatpush1.msra.mxu0 %v407
    %1412 = vmatprep.subr.mxu0 0.0
    %1413 = vmatpush1.msra.mxu0 0.0
    %1414 = vmatprep.subr.mxu0 0.0
    %1415 = vmatpush1.msra.mxu0 0.0
    %1416 = vmatprep.subr.mxu0 0.0
    %1417 = vmatpush1.msra.mxu0 0.0
    %1418 = vmatprep.subr.mxu0 0.0
    %1419 = vmatpush1.msra.mxu0 0.0
    %1420 = vmatprep.subr.mxu0 0.0
    %1421 = vmatpush1.msra.mxu0 0.0
    %1422 = vmatprep.subr.mxu0 0.0
    %1423 = vmatpush1.msra.mxu0 0.0
    %1424 = vmatprep.subr.mxu0 0.0
    %1425 = vmatpush1.msra.mxu0 0.0
    %1426 = vmatprep.subr.mxu0 0.0
    %1427 = vmatpush1.msra.mxu0 0.0
    %1428 = vmatprep.subr.mxu0 0.0
    %1429 = vmatpush1.msra.mxu0 0.0
    %1430 = vmatprep.subr.mxu0 0.0
    %1431 = vmatpush1.msra.mxu0 0.0
    %1432 = vmatprep.subr.mxu0 0.0
    %1433 = vmatpush1.msra.mxu0 0.0
    %1434 = vmatprep.subr.mxu0 0.0
    %1435 = vmatpush1.msra.mxu0 0.0
    %1436 = vmatprep.subr.mxu0 0.0
    %1437 = vmatpush1.msra.mxu0 0.0
    %1438 = vmatprep.subr.mxu0 0.0
    %1439 = vmatpush1.msra.mxu0 0.0
    %1440 = vmatprep.subr.mxu0 0.0
    %1441 = vmatpush1.msra.mxu0 0.0
    %1442 = vmatprep.subr.mxu0 0.0
    %1443 = vmatpush1.msra.mxu0 0.0
    %1444 = vmatprep.subr.mxu0 0.0
    %1445 = vmatpush1.msra.mxu0 0.0
    %1446 = vmatprep.subr.mxu0 0.0
    %1447 = vmatpush1.msra.mxu0 0.0
    %1448 = vmatprep.subr.mxu0 0.0
    %1449 = vmatpush1.msra.mxu0 0.0
    %1450 = vmatprep.subr.mxu0 0.0
    %1451 = vmatpush1.msra.mxu0 0.0
    %1452 = vmatprep.subr.mxu0 0.0
    %1453 = vmatpush1.msra.mxu0 0.0
    %1454 = vmatprep.subr.mxu0 0.0
    %1455 = vmatpush1.msra.mxu0 0.0
    %1456 = vmatprep.subr.mxu0 0.0
    %1457 = vmatpush1.msra.mxu0 0.0
    %1458 = vmatprep.subr.mxu0 0.0
    %1459 = vmatpush1.msra.mxu0 0.0
    %1460 = vmatprep.mubr.f32.mxu0 0.0
    %1461 = vmatmul.mubr.f32.gmra.mrb[0].mxu0 %v1316
    %v1462 = vpop.f32.mrb[0].mxu0
    %v1463 = vadd.f32 0.0, %v1462
    %v1464 = vpop.f32.mrb[0].mxu0
    %1465 = vdwg.mxu0
    %v1466 = vadd.f32 %v1395, %v1463
    %v1467 = vxor.u32 %v1466, 2147483648
    %v1468 = vmul.f32 %v1467, 1.442695
    %v1469 = vpow.pop %v1468
    %v1470 = vadd.f32 %v1469, 1.0
    %v1471 = vrcp.pop %v1470
    %v1472 = vmul.f32 1.0, %v1471
    %v1473 = vld [vmem:[%s252 + $0x18] sm:$0xff]
    %1474 = vmatprep.subr.mxu0 0.0
    %1475 = vmatpush1.msra.mxu0 %v187
    %1476 = vmatprep.subr.mxu0 0.0
    %1477 = vmatpush1.msra.mxu0 %v189
    %1478 = vmatprep.subr.mxu0 0.0
    %1479 = vmatpush1.msra.mxu0 %v191
    %1480 = vmatprep.subr.mxu0 0.0
    %1481 = vmatpush1.msra.mxu0 %v193
    %1482 = vmatprep.subr.mxu0 0.0
    %1483 = vmatpush1.msra.mxu0 %v195
    %1484 = vmatprep.subr.mxu0 0.0
    %1485 = vmatpush1.msra.mxu0 %v197
    %1486 = vmatprep.subr.mxu0 0.0
    %1487 = vmatpush1.msra.mxu0 %v199
    %1488 = vmatprep.subr.mxu0 0.0
    %1489 = vmatpush1.msra.mxu0 %v201
    %1490 = vmatprep.subr.mxu0 0.0
    %1491 = vmatpush1.msra.mxu0 0.0
    %1492 = vmatprep.subr.mxu0 0.0
    %1493 = vmatpush1.msra.mxu0 0.0
    %1494 = vmatprep.subr.mxu0 0.0
    %1495 = vmatpush1.msra.mxu0 0.0
    %1496 = vmatprep.subr.mxu0 0.0
    %1497 = vmatpush1.msra.mxu0 0.0
    %1498 = vmatprep.subr.mxu0 0.0
    %1499 = vmatpush1.msra.mxu0 0.0
    %1500 = vmatprep.subr.mxu0 0.0
    %1501 = vmatpush1.msra.mxu0 0.0
    %1502 = vmatprep.subr.mxu0 0.0
    %1503 = vmatpush1.msra.mxu0 0.0
    %1504 = vmatprep.subr.mxu0 0.0
    %1505 = vmatpush1.msra.mxu0 0.0
    %1506 = vmatprep.subr.mxu0 0.0
    %1507 = vmatpush1.msra.mxu0 0.0
    %1508 = vmatprep.subr.mxu0 0.0
    %1509 = vmatpush1.msra.mxu0 0.0
    %1510 = vmatprep.subr.mxu0 0.0
    %1511 = vmatpush1.msra.mxu0 0.0
    %1512 = vmatprep.subr.mxu0 0.0
    %1513 = vmatpush1.msra.mxu0 0.0
    %1514 = vmatprep.subr.mxu0 0.0
    %1515 = vmatpush1.msra.mxu0 0.0
    %1516 = vmatprep.subr.mxu0 0.0
    %1517 = vmatpush1.msra.mxu0 0.0
    %1518 = vmatprep.subr.mxu0 0.0
    %1519 = vmatpush1.msra.mxu0 0.0
    %1520 = vmatprep.subr.mxu0 0.0
    %1521 = vmatpush1.msra.mxu0 0.0
    %1522 = vmatprep.subr.mxu0 0.0
    %1523 = vmatpush1.msra.mxu0 0.0
    %1524 = vmatprep.subr.mxu0 0.0
    %1525 = vmatpush1.msra.mxu0 0.0
    %1526 = vmatprep.subr.mxu0 0.0
    %1527 = vmatpush1.msra.mxu0 0.0
    %1528 = vmatprep.subr.mxu0 0.0
    %1529 = vmatpush1.msra.mxu0 0.0
    %1530 = vmatprep.subr.mxu0 0.0
    %1531 = vmatpush1.msra.mxu0 0.0
    %1532 = vmatprep.subr.mxu0 0.0
    %1533 = vmatpush1.msra.mxu0 0.0
    %1534 = vmatprep.subr.mxu0 0.0
    %1535 = vmatpush1.msra.mxu0 0.0
    %1536 = vmatprep.subr.mxu0 0.0
    %1537 = vmatpush1.msra.mxu0 0.0
    %1538 = vmatprep.mubr.f32.mxu0 0.0
    %1539 = vmatmul.mubr.f32.gmra.mrb[0].mxu0 %v1316
    %v1540 = vpop.f32.mrb[0].mxu0
    %v1541 = vadd.f32 0.0, %v1540
    %v1542 = vpop.f32.mrb[0].mxu0
    %1543 = vdwg.mxu0
    %v1544 = vadd.f32 %v1473, %v1541
    %v1545 = vxor.u32 %v1544, 2147483648
    %v1546 = vmul.f32 %v1545, 1.442695
    %v1547 = vpow.pop %v1546
    %v1548 = vadd.f32 %v1547, 1.0
    %v1549 = vrcp.pop %v1548
    %v1550 = vmul.f32 1.0, %v1549
    %v1551 = vld [vmem:[%s293 + $0x18] sm:$0xff]
    %1552 = vmatprep.subr.mxu0 0.0
    %1553 = vmatpush1.msra.mxu0 %v581
    %1554 = vmatprep.subr.mxu0 0.0
    %1555 = vmatpush1.msra.mxu0 %v583
    %1556 = vmatprep.subr.mxu0 0.0
    %1557 = vmatpush1.msra.mxu0 %v585
    %1558 = vmatprep.subr.mxu0 0.0
    %1559 = vmatpush1.msra.mxu0 %v587
    %1560 = vmatprep.subr.mxu0 0.0
    %1561 = vmatpush1.msra.mxu0 %v589
    %1562 = vmatprep.subr.mxu0 0.0
    %1563 = vmatpush1.msra.mxu0 %v591
    %1564 = vmatprep.subr.mxu0 0.0
    %1565 = vmatpush1.msra.mxu0 %v593
    %1566 = vmatprep.subr.mxu0 0.0
    %1567 = vmatpush1.msra.mxu0 %v595
    %1568 = vmatprep.subr.mxu0 0.0
    %1569 = vmatpush1.msra.mxu0 0.0
    %1570 = vmatprep.subr.mxu0 0.0
    %1571 = vmatpush1.msra.mxu0 0.0
    %1572 = vmatprep.subr.mxu0 0.0
    %1573 = vmatpush1.msra.mxu0 0.0
    %1574 = vmatprep.subr.mxu0 0.0
    %1575 = vmatpush1.msra.mxu0 0.0
    %1576 = vmatprep.subr.mxu0 0.0
    %1577 = vmatpush1.msra.mxu0 0.0
    %1578 = vmatprep.subr.mxu0 0.0
    %1579 = vmatpush1.msra.mxu0 0.0
    %1580 = vmatprep.subr.mxu0 0.0
    %1581 = vmatpush1.msra.mxu0 0.0
    %1582 = vmatprep.subr.mxu0 0.0
    %1583 = vmatpush1.msra.mxu0 0.0
    %1584 = vmatprep.subr.mxu0 0.0
    %1585 = vmatpush1.msra.mxu0 0.0
    %1586 = vmatprep.subr.mxu0 0.0
    %1587 = vmatpush1.msra.mxu0 0.0
    %1588 = vmatprep.subr.mxu0 0.0
    %1589 = vmatpush1.msra.mxu0 0.0
    %1590 = vmatprep.subr.mxu0 0.0
    %1591 = vmatpush1.msra.mxu0 0.0
    %1592 = vmatprep.subr.mxu0 0.0
    %1593 = vmatpush1.msra.mxu0 0.0
    %1594 = vmatprep.subr.mxu0 0.0
    %1595 = vmatpush1.msra.mxu0 0.0
    %1596 = vmatprep.subr.mxu0 0.0
    %1597 = vmatpush1.msra.mxu0 0.0
    %1598 = vmatprep.subr.mxu0 0.0
    %1599 = vmatpush1.msra.mxu0 0.0
    %1600 = vmatprep.subr.mxu0 0.0
    %1601 = vmatpush1.msra.mxu0 0.0
    %1602 = vmatprep.subr.mxu0 0.0
    %1603 = vmatpush1.msra.mxu0 0.0
    %1604 = vmatprep.subr.mxu0 0.0
    %1605 = vmatpush1.msra.mxu0 0.0
    %1606 = vmatprep.subr.mxu0 0.0
    %1607 = vmatpush1.msra.mxu0 0.0
    %1608 = vmatprep.subr.mxu0 0.0
    %1609 = vmatpush1.msra.mxu0 0.0
    %1610 = vmatprep.subr.mxu0 0.0
    %1611 = vmatpush1.msra.mxu0 0.0
    %1612 = vmatprep.subr.mxu0 0.0
    %1613 = vmatpush1.msra.mxu0 0.0
    %1614 = vmatprep.subr.mxu0 0.0
    %1615 = vmatpush1.msra.mxu0 0.0
    %1616 = vmatprep.mubr.f32.mxu0 0.0
    %1617 = vmatmul.mubr.f32.gmra.mrb[0].mxu0 %v1316
    %v1618 = vpop.f32.mrb[0].mxu0
    %v1619 = vadd.f32 0.0, %v1618
    %v1620 = vpop.f32.mrb[0].mxu0
    %1621 = vdwg.mxu0
    %v1622 = vadd.f32 %v1551, %v1619
    %v1623 = vtanh.pop %v1622
    %v1624 = vmul.f32 %v1472, %v1310
    %v1625 = vmul.f32 %v1394, %v1623
    %v1626 = vadd.f32 %v1624, %v1625
    %v1627 = vtanh.pop %v1626
    %v1628 = vmul.f32 %v1550, %v1627
    %1629 = vst.msk [vmem:[#allocation3 + $0x18] sm:$0xff] %vm202, %v1628
    %v1630 = vld [vmem:[#allocation2 + $0x20] sm:$0xff]
    %v1632 = vsel %vm202, %v1628, 0
    %1634 = vmatprep.subr.mxu0 0.0
    %1635 = vmatpush1.msra.mxu0 %v186
    %1636 = vmatprep.subr.mxu0 0.0
    %1637 = vmatpush1.msra.mxu0 %v188
    %1638 = vmatprep.subr.mxu0 0.0
    %1639 = vmatpush1.msra.mxu0 %v190
    %1640 = vmatprep.subr.mxu0 0.0
    %1641 = vmatpush1.msra.mxu0 %v192
    %1642 = vmatprep.subr.mxu0 0.0
    %1643 = vmatpush1.msra.mxu0 %v194
    %1644 = vmatprep.subr.mxu0 0.0
    %1645 = vmatpush1.msra.mxu0 %v196
    %1646 = vmatprep.subr.mxu0 0.0
    %1647 = vmatpush1.msra.mxu0 %v198
    %1648 = vmatprep.subr.mxu0 0.0
    %1649 = vmatpush1.msra.mxu0 %v200
    %1650 = vmatprep.subr.mxu0 0.0
    %1651 = vmatpush1.msra.mxu0 0.0
    %1652 = vmatprep.subr.mxu0 0.0
    %1653 = vmatpush1.msra.mxu0 0.0
    %1654 = vmatprep.subr.mxu0 0.0
    %1655 = vmatpush1.msra.mxu0 0.0
    %1656 = vmatprep.subr.mxu0 0.0
    %1657 = vmatpush1.msra.mxu0 0.0
    %1658 = vmatprep.subr.mxu0 0.0
    %1659 = vmatpush1.msra.mxu0 0.0
    %1660 = vmatprep.subr.mxu0 0.0
    %1661 = vmatpush1.msra.mxu0 0.0
    %1662 = vmatprep.subr.mxu0 0.0
    %1663 = vmatpush1.msra.mxu0 0.0
    %1664 = vmatprep.subr.mxu0 0.0
    %1665 = vmatpush1.msra.mxu0 0.0
    %1666 = vmatprep.subr.mxu0 0.0
    %1667 = vmatpush1.msra.mxu0 0.0
    %1668 = vmatprep.subr.mxu0 0.0
    %1669 = vmatpush1.msra.mxu0 0.0
    %1670 = vmatprep.subr.mxu0 0.0
    %1671 = vmatpush1.msra.mxu0 0.0
    %1672 = vmatprep.subr.mxu0 0.0
    %1673 = vmatpush1.msra.mxu0 0.0
    %1674 = vmatprep.subr.mxu0 0.0
    %1675 = vmatpush1.msra.mxu0 0.0
    %1676 = vmatprep.subr.mxu0 0.0
    %1677 = vmatpush1.msra.mxu0 0.0
    %1678 = vmatprep.subr.mxu0 0.0
    %1679 = vmatpush1.msra.mxu0 0.0
    %1680 = vmatprep.subr.mxu0 0.0
    %1681 = vmatpush1.msra.mxu0 0.0
    %1682 = vmatprep.subr.mxu0 0.0
    %1683 = vmatpush1.msra.mxu0 0.0
    %1684 = vmatprep.subr.mxu0 0.0
    %1685 = vmatpush1.msra.mxu0 0.0
    %1686 = vmatprep.subr.mxu0 0.0
    %1687 = vmatpush1.msra.mxu0 0.0
    %1688 = vmatprep.subr.mxu0 0.0
    %1689 = vmatpush1.msra.mxu0 0.0
    %1690 = vmatprep.subr.mxu0 0.0
    %1691 = vmatpush1.msra.mxu0 0.0
    %1692 = vmatprep.subr.mxu0 0.0
    %1693 = vmatpush1.msra.mxu0 0.0
    %1694 = vmatprep.subr.mxu0 0.0
    %1695 = vmatpush1.msra.mxu0 0.0
    %1696 = vmatprep.subr.mxu0 0.0
    %1697 = vmatpush1.msra.mxu0 0.0
    %1698 = vmatprep.mubr.f32.mxu0 0.0
    %1699 = vmatmul.mubr.f32.gmra.mrb[0].mxu0 %v1632
    %v1700 = vpop.f32.mrb[0].mxu0
    %v1701 = vadd.f32 0.0, %v1700
    %v1702 = vpop.f32.mrb[0].mxu0
    %1703 = vdwg.mxu0
    %v1704 = vadd.f32 %v1630, %v1701
    %v1705 = vxor.u32 %v1704, 2147483648
    %v1706 = vmul.f32 %v1705, 1.442695
    %v1707 = vpow.pop %v1706
    %v1708 = vadd.f32 %v1707, 1.0
    %v1709 = vrcp.pop %v1708
    %v1710 = vmul.f32 1.0, %v1709
    %v1711 = vld [vmem:[%s243 + $0x20] sm:$0xff]
    %1712 = vmatprep.subr.mxu0 0.0
    %1713 = vmatpush1.msra.mxu0 %v393
    %1714 = vmatprep.subr.mxu0 0.0
    %1715 = vmatpush1.msra.mxu0 %v395
    %1716 = vmatprep.subr.mxu0 0.0
    %1717 = vmatpush1.msra.mxu0 %v397
    %1718 = vmatprep.subr.mxu0 0.0
    %1719 = vmatpush1.msra.mxu0 %v399
    %1720 = vmatprep.subr.mxu0 0.0
    %1721 = vmatpush1.msra.mxu0 %v401
    %1722 = vmatprep.subr.mxu0 0.0
    %1723 = vmatpush1.msra.mxu0 %v403
    %1724 = vmatprep.subr.mxu0 0.0
    %1725 = vmatpush1.msra.mxu0 %v405
    %1726 = vmatprep.subr.mxu0 0.0
    %1727 = vmatpush1.msra.mxu0 %v407
    %1728 = vmatprep.subr.mxu0 0.0
    %1729 = vmatpush1.msra.mxu0 0.0
    %1730 = vmatprep.subr.mxu0 0.0
    %1731 = vmatpush1.msra.mxu0 0.0
    %1732 = vmatprep.subr.mxu0 0.0
    %1733 = vmatpush1.msra.mxu0 0.0
    %1734 = vmatprep.subr.mxu0 0.0
    %1735 = vmatpush1.msra.mxu0 0.0
    %1736 = vmatprep.subr.mxu0 0.0
    %1737 = vmatpush1.msra.mxu0 0.0
    %1738 = vmatprep.subr.mxu0 0.0
    %1739 = vmatpush1.msra.mxu0 0.0
    %1740 = vmatprep.subr.mxu0 0.0
    %1741 = vmatpush1.msra.mxu0 0.0
    %1742 = vmatprep.subr.mxu0 0.0
    %1743 = vmatpush1.msra.mxu0 0.0
    %1744 = vmatprep.subr.mxu0 0.0
    %1745 = vmatpush1.msra.mxu0 0.0
    %1746 = vmatprep.subr.mxu0 0.0
    %1747 = vmatpush1.msra.mxu0 0.0
    %1748 = vmatprep.subr.mxu0 0.0
    %1749 = vmatpush1.msra.mxu0 0.0
    %1750 = vmatprep.subr.mxu0 0.0
    %1751 = vmatpush1.msra.mxu0 0.0
    %1752 = vmatprep.subr.mxu0 0.0
    %1753 = vmatpush1.msra.mxu0 0.0
    %1754 = vmatprep.subr.mxu0 0.0
    %1755 = vmatpush1.msra.mxu0 0.0
    %1756 = vmatprep.subr.mxu0 0.0
    %1757 = vmatpush1.msra.mxu0 0.0
    %1758 = vmatprep.subr.mxu0 0.0
    %1759 = vmatpush1.msra.mxu0 0.0
    %1760 = vmatprep.subr.mxu0 0.0
    %1761 = vmatpush1.msra.mxu0 0.0
    %1762 = vmatprep.subr.mxu0 0.0
    %1763 = vmatpush1.msra.mxu0 0.0
    %1764 = vmatprep.subr.mxu0 0.0
    %1765 = vmatpush1.msra.mxu0 0.0
    %1766 = vmatprep.subr.mxu0 0.0
    %1767 = vmatpush1.msra.mxu0 0.0
    %1768 = vmatprep.subr.mxu0 0.0
    %1769 = vmatpush1.msra.mxu0 0.0
    %1770 = vmatprep.subr.mxu0 0.0
    %1771 = vmatpush1.msra.mxu0 0.0
    %1772 = vmatprep.subr.mxu0 0.0
    %1773 = vmatpush1.msra.mxu0 0.0
    %1774 = vmatprep.subr.mxu0 0.0
    %1775 = vmatpush1.msra.mxu0 0.0
    %1776 = vmatprep.mubr.f32.mxu0 0.0
    %1777 = vmatmul.mubr.f32.gmra.mrb[0].mxu0 %v1632
    %v1778 = vpop.f32.mrb[0].mxu0
    %v1779 = vadd.f32 0.0, %v1778
    %v1780 = vpop.f32.mrb[0].mxu0
    %1781 = vdwg.mxu0
    %v1782 = vadd.f32 %v1711, %v1779
    %v1783 = vxor.u32 %v1782, 2147483648
    %v1784 = vmul.f32 %v1783, 1.442695
    %v1785 = vpow.pop %v1784
    %v1786 = vadd.f32 %v1785, 1.0
    %v1787 = vrcp.pop %v1786
    %v1788 = vmul.f32 1.0, %v1787
    %v1789 = vld [vmem:[%s252 + $0x20] sm:$0xff]
    %1790 = vmatprep.subr.mxu0 0.0
    %1791 = vmatpush1.msra.mxu0 %v187
    %1792 = vmatprep.subr.mxu0 0.0
    %1793 = vmatpush1.msra.mxu0 %v189
    %1794 = vmatprep.subr.mxu0 0.0
    %1795 = vmatpush1.msra.mxu0 %v191
    %1796 = vmatprep.subr.mxu0 0.0
    %1797 = vmatpush1.msra.mxu0 %v193
    %1798 = vmatprep.subr.mxu0 0.0
    %1799 = vmatpush1.msra.mxu0 %v195
    %1800 = vmatprep.subr.mxu0 0.0
    %1801 = vmatpush1.msra.mxu0 %v197
    %1802 = vmatprep.subr.mxu0 0.0
    %1803 = vmatpush1.msra.mxu0 %v199
    %1804 = vmatprep.subr.mxu0 0.0
    %1805 = vmatpush1.msra.mxu0 %v201
    %1806 = vmatprep.subr.mxu0 0.0
    %1807 = vmatpush1.msra.mxu0 0.0
    %1808 = vmatprep.subr.mxu0 0.0
    %1809 = vmatpush1.msra.mxu0 0.0
    %1810 = vmatprep.subr.mxu0 0.0
    %1811 = vmatpush1.msra.mxu0 0.0
    %1812 = vmatprep.subr.mxu0 0.0
    %1813 = vmatpush1.msra.mxu0 0.0
    %1814 = vmatprep.subr.mxu0 0.0
    %1815 = vmatpush1.msra.mxu0 0.0
    %1816 = vmatprep.subr.mxu0 0.0
    %1817 = vmatpush1.msra.mxu0 0.0
    %1818 = vmatprep.subr.mxu0 0.0
    %1819 = vmatpush1.msra.mxu0 0.0
    %1820 = vmatprep.subr.mxu0 0.0
    %1821 = vmatpush1.msra.mxu0 0.0
    %1822 = vmatprep.subr.mxu0 0.0
    %1823 = vmatpush1.msra.mxu0 0.0
    %1824 = vmatprep.subr.mxu0 0.0
    %1825 = vmatpush1.msra.mxu0 0.0
    %1826 = vmatprep.subr.mxu0 0.0
    %1827 = vmatpush1.msra.mxu0 0.0
    %1828 = vmatprep.subr.mxu0 0.0
    %1829 = vmatpush1.msra.mxu0 0.0
    %1830 = vmatprep.subr.mxu0 0.0
    %1831 = vmatpush1.msra.mxu0 0.0
    %1832 = vmatprep.subr.mxu0 0.0
    %1833 = vmatpush1.msra.mxu0 0.0
    %1834 = vmatprep.subr.mxu0 0.0
    %1835 = vmatpush1.msra.mxu0 0.0
    %1836 = vmatprep.subr.mxu0 0.0
    %1837 = vmatpush1.msra.mxu0 0.0
    %1838 = vmatprep.subr.mxu0 0.0
    %1839 = vmatpush1.msra.mxu0 0.0
    %1840 = vmatprep.subr.mxu0 0.0
    %1841 = vmatpush1.msra.mxu0 0.0
    %1842 = vmatprep.subr.mxu0 0.0
    %1843 = vmatpush1.msra.mxu0 0.0
    %1844 = vmatprep.subr.mxu0 0.0
    %1845 = vmatpush1.msra.mxu0 0.0
    %1846 = vmatprep.subr.mxu0 0.0
    %1847 = vmatpush1.msra.mxu0 0.0
    %1848 = vmatprep.subr.mxu0 0.0
    %1849 = vmatpush1.msra.mxu0 0.0
    %1850 = vmatprep.subr.mxu0 0.0
    %1851 = vmatpush1.msra.mxu0 0.0
    %1852 = vmatprep.subr.mxu0 0.0
    %1853 = vmatpush1.msra.mxu0 0.0
    %1854 = vmatprep.mubr.f32.mxu0 0.0
    %1855 = vmatmul.mubr.f32.gmra.mrb[0].mxu0 %v1632
    %v1856 = vpop.f32.mrb[0].mxu0
    %v1857 = vadd.f32 0.0, %v1856
    %v1858 = vpop.f32.mrb[0].mxu0
    %1859 = vdwg.mxu0
    %v1860 = vadd.f32 %v1789, %v1857
    %v1861 = vxor.u32 %v1860, 2147483648
    %v1862 = vmul.f32 %v1861, 1.442695
    %v1863 = vpow.pop %v1862
    %v1864 = vadd.f32 %v1863, 1.0
    %v1865 = vrcp.pop %v1864
    %v1866 = vmul.f32 1.0, %v1865
    %v1867 = vld [vmem:[%s293 + $0x20] sm:$0xff]
    %1868 = vmatprep.subr.mxu0 0.0
    %1869 = vmatpush1.msra.mxu0 %v581
    %1870 = vmatprep.subr.mxu0 0.0
    %1871 = vmatpush1.msra.mxu0 %v583
    %1872 = vmatprep.subr.mxu0 0.0
    %1873 = vmatpush1.msra.mxu0 %v585
    %1874 = vmatprep.subr.mxu0 0.0
    %1875 = vmatpush1.msra.mxu0 %v587
    %1876 = vmatprep.subr.mxu0 0.0
    %1877 = vmatpush1.msra.mxu0 %v589
    %1878 = vmatprep.subr.mxu0 0.0
    %1879 = vmatpush1.msra.mxu0 %v591
    %1880 = vmatprep.subr.mxu0 0.0
    %1881 = vmatpush1.msra.mxu0 %v593
    %1882 = vmatprep.subr.mxu0 0.0
    %1883 = vmatpush1.msra.mxu0 %v595
    %1884 = vmatprep.subr.mxu0 0.0
    %1885 = vmatpush1.msra.mxu0 0.0
    %1886 = vmatprep.subr.mxu0 0.0
    %1887 = vmatpush1.msra.mxu0 0.0
    %1888 = vmatprep.subr.mxu0 0.0
    %1889 = vmatpush1.msra.mxu0 0.0
    %1890 = vmatprep.subr.mxu0 0.0
    %1891 = vmatpush1.msra.mxu0 0.0
    %1892 = vmatprep.subr.mxu0 0.0
    %1893 = vmatpush1.msra.mxu0 0.0
    %1894 = vmatprep.subr.mxu0 0.0
    %1895 = vmatpush1.msra.mxu0 0.0
    %1896 = vmatprep.subr.mxu0 0.0
    %1897 = vmatpush1.msra.mxu0 0.0
    %1898 = vmatprep.subr.mxu0 0.0
    %1899 = vmatpush1.msra.mxu0 0.0
    %1900 = vmatprep.subr.mxu0 0.0
    %1901 = vmatpush1.msra.mxu0 0.0
    %1902 = vmatprep.subr.mxu0 0.0
    %1903 = vmatpush1.msra.mxu0 0.0
    %1904 = vmatprep.subr.mxu0 0.0
    %1905 = vmatpush1.msra.mxu0 0.0
    %1906 = vmatprep.subr.mxu0 0.0
    %1907 = vmatpush1.msra.mxu0 0.0
    %1908 = vmatprep.subr.mxu0 0.0
    %1909 = vmatpush1.msra.mxu0 0.0
    %1910 = vmatprep.subr.mxu0 0.0
    %1911 = vmatpush1.msra.mxu0 0.0
    %1912 = vmatprep.subr.mxu0 0.0
    %1913 = vmatpush1.msra.mxu0 0.0
    %1914 = vmatprep.subr.mxu0 0.0
    %1915 = vmatpush1.msra.mxu0 0.0
    %1916 = vmatprep.subr.mxu0 0.0
    %1917 = vmatpush1.msra.mxu0 0.0
    %1918 = vmatprep.subr.mxu0 0.0
    %1919 = vmatpush1.msra.mxu0 0.0
    %1920 = vmatprep.subr.mxu0 0.0
    %1921 = vmatpush1.msra.mxu0 0.0
    %1922 = vmatprep.subr.mxu0 0.0
    %1923 = vmatpush1.msra.mxu0 0.0
    %1924 = vmatprep.subr.mxu0 0.0
    %1925 = vmatpush1.msra.mxu0 0.0
    %1926 = vmatprep.subr.mxu0 0.0
    %1927 = vmatpush1.msra.mxu0 0.0
    %1928 = vmatprep.subr.mxu0 0.0
    %1929 = vmatpush1.msra.mxu0 0.0
    %1930 = vmatprep.subr.mxu0 0.0
    %1931 = vmatpush1.msra.mxu0 0.0
    %1932 = vmatprep.mubr.f32.mxu0 0.0
    %1933 = vmatmul.mubr.f32.gmra.mrb[0].mxu0 %v1632
    %v1934 = vpop.f32.mrb[0].mxu0
    %v1935 = vadd.f32 0.0, %v1934
    %v1936 = vpop.f32.mrb[0].mxu0
    %1937 = vdwg.mxu0
    %v1938 = vadd.f32 %v1867, %v1935
    %v1939 = vtanh.pop %v1938
    %v1940 = vmul.f32 %v1788, %v1626
    %v1941 = vmul.f32 %v1710, %v1939
    %v1942 = vadd.f32 %v1940, %v1941
    %v1943 = vtanh.pop %v1942
    %v1944 = vmul.f32 %v1866, %v1943
    %1945 = vst.msk [vmem:[#allocation3 + $0x20] sm:$0xff] %vm202, %v1944
    %v1946 = vld [vmem:[#allocation2 + $0x28] sm:$0xff]
    %v1948 = vsel %vm202, %v1944, 0
    %1950 = vmatprep.subr.mxu0 0.0
    %1951 = vmatpush1.msra.mxu0 %v186
    %1952 = vmatprep.subr.mxu0 0.0
    %1953 = vmatpush1.msra.mxu0 %v188
    %1954 = vmatprep.subr.mxu0 0.0
    %1955 = vmatpush1.msra.mxu0 %v190
    %1956 = vmatprep.subr.mxu0 0.0
    %1957 = vmatpush1.msra.mxu0 %v192
    %1958 = vmatprep.subr.mxu0 0.0
    %1959 = vmatpush1.msra.mxu0 %v194
    %1960 = vmatprep.subr.mxu0 0.0
    %1961 = vmatpush1.msra.mxu0 %v196
    %1962 = vmatprep.subr.mxu0 0.0
    %1963 = vmatpush1.msra.mxu0 %v198
    %1964 = vmatprep.subr.mxu0 0.0
    %1965 = vmatpush1.msra.mxu0 %v200
    %1966 = vmatprep.subr.mxu0 0.0
    %1967 = vmatpush1.msra.mxu0 0.0
    %1968 = vmatprep.subr.mxu0 0.0
    %1969 = vmatpush1.msra.mxu0 0.0
    %1970 = vmatprep.subr.mxu0 0.0
    %1971 = vmatpush1.msra.mxu0 0.0
    %1972 = vmatprep.subr.mxu0 0.0
    %1973 = vmatpush1.msra.mxu0 0.0
    %1974 = vmatprep.subr.mxu0 0.0
    %1975 = vmatpush1.msra.mxu0 0.0
    %1976 = vmatprep.subr.mxu0 0.0
    %1977 = vmatpush1.msra.mxu0 0.0
    %1978 = vmatprep.subr.mxu0 0.0
    %1979 = vmatpush1.msra.mxu0 0.0
    %1980 = vmatprep.subr.mxu0 0.0
    %1981 = vmatpush1.msra.mxu0 0.0
    %1982 = vmatprep.subr.mxu0 0.0
    %1983 = vmatpush1.msra.mxu0 0.0
    %1984 = vmatprep.subr.mxu0 0.0
    %1985 = vmatpush1.msra.mxu0 0.0
    %1986 = vmatprep.subr.mxu0 0.0
    %1987 = vmatpush1.msra.mxu0 0.0
    %1988 = vmatprep.subr.mxu0 0.0
    %1989 = vmatpush1.msra.mxu0 0.0
    %1990 = vmatprep.subr.mxu0 0.0
    %1991 = vmatpush1.msra.mxu0 0.0
    %1992 = vmatprep.subr.mxu0 0.0
    %1993 = vmatpush1.msra.mxu0 0.0
    %1994 = vmatprep.subr.mxu0 0.0
    %1995 = vmatpush1.msra.mxu0 0.0
    %1996 = vmatprep.subr.mxu0 0.0
    %1997 = vmatpush1.msra.mxu0 0.0
    %1998 = vmatprep.subr.mxu0 0.0
    %1999 = vmatpush1.msra.mxu0 0.0
    %2000 = vmatprep.subr.mxu0 0.0
    %2001 = vmatpush1.msra.mxu0 0.0
    %2002 = vmatprep.subr.mxu0 0.0
    %2003 = vmatpush1.msra.mxu0 0.0
    %2004 = vmatprep.subr.mxu0 0.0
    %2005 = vmatpush1.msra.mxu0 0.0
    %2006 = vmatprep.subr.mxu0 0.0
    %2007 = vmatpush1.msra.mxu0 0.0
    %2008 = vmatprep.subr.mxu0 0.0
    %2009 = vmatpush1.msra.mxu0 0.0
    %2010 = vmatprep.subr.mxu0 0.0
    %2011 = vmatpush1.msra.mxu0 0.0
    %2012 = vmatprep.subr.mxu0 0.0
    %2013 = vmatpush1.msra.mxu0 0.0
    %2014 = vmatprep.mubr.f32.mxu0 0.0
    %2015 = vmatmul.mubr.f32.gmra.mrb[0].mxu0 %v1948
    %v2016 = vpop.f32.mrb[0].mxu0
    %v2017 = vadd.f32 0.0, %v2016
    %v2018 = vpop.f32.mrb[0].mxu0
    %2019 = vdwg.mxu0
    %v2020 = vadd.f32 %v1946, %v2017
    %v2021 = vxor.u32 %v2020, 2147483648
    %v2022 = vmul.f32 %v2021, 1.442695
    %v2023 = vpow.pop %v2022
    %v2024 = vadd.f32 %v2023, 1.0
    %v2025 = vrcp.pop %v2024
    %v2026 = vmul.f32 1.0, %v2025
    %v2027 = vld [vmem:[%s243 + $0x28] sm:$0xff]
    %2028 = vmatprep.subr.mxu0 0.0
    %2029 = vmatpush1.msra.mxu0 %v393
    %2030 = vmatprep.subr.mxu0 0.0
    %2031 = vmatpush1.msra.mxu0 %v395
    %2032 = vmatprep.subr.mxu0 0.0
    %2033 = vmatpush1.msra.mxu0 %v397
    %2034 = vmatprep.subr.mxu0 0.0
    %2035 = vmatpush1.msra.mxu0 %v399
    %2036 = vmatprep.subr.mxu0 0.0
    %2037 = vmatpush1.msra.mxu0 %v401
    %2038 = vmatprep.subr.mxu0 0.0
    %2039 = vmatpush1.msra.mxu0 %v403
    %2040 = vmatprep.subr.mxu0 0.0
    %2041 = vmatpush1.msra.mxu0 %v405
    %2042 = vmatprep.subr.mxu0 0.0
    %2043 = vmatpush1.msra.mxu0 %v407
    %2044 = vmatprep.subr.mxu0 0.0
    %2045 = vmatpush1.msra.mxu0 0.0
    %2046 = vmatprep.subr.mxu0 0.0
    %2047 = vmatpush1.msra.mxu0 0.0
    %2048 = vmatprep.subr.mxu0 0.0
    %2049 = vmatpush1.msra.mxu0 0.0
    %2050 = vmatprep.subr.mxu0 0.0
    %2051 = vmatpush1.msra.mxu0 0.0
    %2052 = vmatprep.subr.mxu0 0.0
    %2053 = vmatpush1.msra.mxu0 0.0
    %2054 = vmatprep.subr.mxu0 0.0
    %2055 = vmatpush1.msra.mxu0 0.0
    %2056 = vmatprep.subr.mxu0 0.0
    %2057 = vmatpush1.msra.mxu0 0.0
    %2058 = vmatprep.subr.mxu0 0.0
    %2059 = vmatpush1.msra.mxu0 0.0
    %2060 = vmatprep.subr.mxu0 0.0
    %2061 = vmatpush1.msra.mxu0 0.0
    %2062 = vmatprep.subr.mxu0 0.0
    %2063 = vmatpush1.msra.mxu0 0.0
    %2064 = vmatprep.subr.mxu0 0.0
    %2065 = vmatpush1.msra.mxu0 0.0
    %2066 = vmatprep.subr.mxu0 0.0
    %2067 = vmatpush1.msra.mxu0 0.0
    %2068 = vmatprep.subr.mxu0 0.0
    %2069 = vmatpush1.msra.mxu0 0.0
    %2070 = vmatprep.subr.mxu0 0.0
    %2071 = vmatpush1.msra.mxu0 0.0
    %2072 = vmatprep.subr.mxu0 0.0
    %2073 = vmatpush1.msra.mxu0 0.0
    %2074 = vmatprep.subr.mxu0 0.0
    %2075 = vmatpush1.msra.mxu0 0.0
    %2076 = vmatprep.subr.mxu0 0.0
    %2077 = vmatpush1.msra.mxu0 0.0
    %2078 = vmatprep.subr.mxu0 0.0
    %2079 = vmatpush1.msra.mxu0 0.0
    %2080 = vmatprep.subr.mxu0 0.0
    %2081 = vmatpush1.msra.mxu0 0.0
    %2082 = vmatprep.subr.mxu0 0.0
    %2083 = vmatpush1.msra.mxu0 0.0
    %2084 = vmatprep.subr.mxu0 0.0
    %2085 = vmatpush1.msra.mxu0 0.0
    %2086 = vmatprep.subr.mxu0 0.0
    %2087 = vmatpush1.msra.mxu0 0.0
    %2088 = vmatprep.subr.mxu0 0.0
    %2089 = vmatpush1.msra.mxu0 0.0
    %2090 = vmatprep.subr.mxu0 0.0
    %2091 = vmatpush1.msra.mxu0 0.0
    %2092 = vmatprep.mubr.f32.mxu0 0.0
    %2093 = vmatmul.mubr.f32.gmra.mrb[0].mxu0 %v1948
    %v2094 = vpop.f32.mrb[0].mxu0
    %v2095 = vadd.f32 0.0, %v2094
    %v2096 = vpop.f32.mrb[0].mxu0
    %2097 = vdwg.mxu0
    %v2098 = vadd.f32 %v2027, %v2095
    %v2099 = vxor.u32 %v2098, 2147483648
    %v2100 = vmul.f32 %v2099, 1.442695
    %v2101 = vpow.pop %v2100
    %v2102 = vadd.f32 %v2101, 1.0
    %v2103 = vrcp.pop %v2102
    %v2104 = vmul.f32 1.0, %v2103
    %v2105 = vld [vmem:[%s252 + $0x28] sm:$0xff]
    %2106 = vmatprep.subr.mxu0 0.0
    %2107 = vmatpush1.msra.mxu0 %v187
    %2108 = vmatprep.subr.mxu0 0.0
    %2109 = vmatpush1.msra.mxu0 %v189
    %2110 = vmatprep.subr.mxu0 0.0
    %2111 = vmatpush1.msra.mxu0 %v191
    %2112 = vmatprep.subr.mxu0 0.0
    %2113 = vmatpush1.msra.mxu0 %v193
    %2114 = vmatprep.subr.mxu0 0.0
    %2115 = vmatpush1.msra.mxu0 %v195
    %2116 = vmatprep.subr.mxu0 0.0
    %2117 = vmatpush1.msra.mxu0 %v197
    %2118 = vmatprep.subr.mxu0 0.0
    %2119 = vmatpush1.msra.mxu0 %v199
    %2120 = vmatprep.subr.mxu0 0.0
    %2121 = vmatpush1.msra.mxu0 %v201
    %2122 = vmatprep.subr.mxu0 0.0
    %2123 = vmatpush1.msra.mxu0 0.0
    %2124 = vmatprep.subr.mxu0 0.0
    %2125 = vmatpush1.msra.mxu0 0.0
    %2126 = vmatprep.subr.mxu0 0.0
    %2127 = vmatpush1.msra.mxu0 0.0
    %2128 = vmatprep.subr.mxu0 0.0
    %2129 = vmatpush1.msra.mxu0 0.0
    %2130 = vmatprep.subr.mxu0 0.0
    %2131 = vmatpush1.msra.mxu0 0.0
    %2132 = vmatprep.subr.mxu0 0.0
    %2133 = vmatpush1.msra.mxu0 0.0
    %2134 = vmatprep.subr.mxu0 0.0
    %2135 = vmatpush1.msra.mxu0 0.0
    %2136 = vmatprep.subr.mxu0 0.0
    %2137 = vmatpush1.msra.mxu0 0.0
    %2138 = vmatprep.subr.mxu0 0.0
    %2139 = vmatpush1.msra.mxu0 0.0
    %2140 = vmatprep.subr.mxu0 0.0
    %2141 = vmatpush1.msra.mxu0 0.0
    %2142 = vmatprep.subr.mxu0 0.0
    %2143 = vmatpush1.msra.mxu0 0.0
    %2144 = vmatprep.subr.mxu0 0.0
    %2145 = vmatpush1.msra.mxu0 0.0
    %2146 = vmatprep.subr.mxu0 0.0
    %2147 = vmatpush1.msra.mxu0 0.0
    %2148 = vmatprep.subr.mxu0 0.0
    %2149 = vmatpush1.msra.mxu0 0.0
    %2150 = vmatprep.subr.mxu0 0.0
    %2151 = vmatpush1.msra.mxu0 0.0
    %2152 = vmatprep.subr.mxu0 0.0
    %2153 = vmatpush1.msra.mxu0 0.0
    %2154 = vmatprep.subr.mxu0 0.0
    %2155 = vmatpush1.msra.mxu0 0.0
    %2156 = vmatprep.subr.mxu0 0.0
    %2157 = vmatpush1.msra.mxu0 0.0
    %2158 = vmatprep.subr.mxu0 0.0
    %2159 = vmatpush1.msra.mxu0 0.0
    %2160 = vmatprep.subr.mxu0 0.0
    %2161 = vmatpush1.msra.mxu0 0.0
    %2162 = vmatprep.subr.mxu0 0.0
    %2163 = vmatpush1.msra.mxu0 0.0
    %2164 = vmatprep.subr.mxu0 0.0
    %2165 = vmatpush1.msra.mxu0 0.0
    %2166 = vmatprep.subr.mxu0 0.0
    %2167 = vmatpush1.msra.mxu0 0.0
    %2168 = vmatprep.subr.mxu0 0.0
    %2169 = vmatpush1.msra.mxu0 0.0
    %2170 = vmatprep.mubr.f32.mxu0 0.0
    %2171 = vmatmul.mubr.f32.gmra.mrb[0].mxu0 %v1948
    %v2172 = vpop.f32.mrb[0].mxu0
    %v2173 = vadd.f32 0.0, %v2172
    %v2174 = vpop.f32.mrb[0].mxu0
    %2175 = vdwg.mxu0
    %v2176 = vadd.f32 %v2105, %v2173
    %v2177 = vxor.u32 %v2176, 2147483648
    %v2178 = vmul.f32 %v2177, 1.442695
    %v2179 = vpow.pop %v2178
    %v2180 = vadd.f32 %v2179, 1.0
    %v2181 = vrcp.pop %v2180
    %v2182 = vmul.f32 1.0, %v2181
    %v2183 = vld [vmem:[%s293 + $0x28] sm:$0xff]
    %2184 = vmatprep.subr.mxu0 0.0
    %2185 = vmatpush1.msra.mxu0 %v581
    %2186 = vmatprep.subr.mxu0 0.0
    %2187 = vmatpush1.msra.mxu0 %v583
    %2188 = vmatprep.subr.mxu0 0.0
    %2189 = vmatpush1.msra.mxu0 %v585
    %2190 = vmatprep.subr.mxu0 0.0
    %2191 = vmatpush1.msra.mxu0 %v587
    %2192 = vmatprep.subr.mxu0 0.0
    %2193 = vmatpush1.msra.mxu0 %v589
    %2194 = vmatprep.subr.mxu0 0.0
    %2195 = vmatpush1.msra.mxu0 %v591
    %2196 = vmatprep.subr.mxu0 0.0
    %2197 = vmatpush1.msra.mxu0 %v593
    %2198 = vmatprep.subr.mxu0 0.0
    %2199 = vmatpush1.msra.mxu0 %v595
    %2200 = vmatprep.subr.mxu0 0.0
    %2201 = vmatpush1.msra.mxu0 0.0
    %2202 = vmatprep.subr.mxu0 0.0
    %2203 = vmatpush1.msra.mxu0 0.0
    %2204 = vmatprep.subr.mxu0 0.0
    %2205 = vmatpush1.msra.mxu0 0.0
    %2206 = vmatprep.subr.mxu0 0.0
    %2207 = vmatpush1.msra.mxu0 0.0
    %2208 = vmatprep.subr.mxu0 0.0
    %2209 = vmatpush1.msra.mxu0 0.0
    %2210 = vmatprep.subr.mxu0 0.0
    %2211 = vmatpush1.msra.mxu0 0.0
    %2212 = vmatprep.subr.mxu0 0.0
    %2213 = vmatpush1.msra.mxu0 0.0
    %2214 = vmatprep.subr.mxu0 0.0
    %2215 = vmatpush1.msra.mxu0 0.0
    %2216 = vmatprep.subr.mxu0 0.0
    %2217 = vmatpush1.msra.mxu0 0.0
    %2218 = vmatprep.subr.mxu0 0.0
    %2219 = vmatpush1.msra.mxu0 0.0
    %2220 = vmatprep.subr.mxu0 0.0
    %2221 = vmatpush1.msra.mxu0 0.0
    %2222 = vmatprep.subr.mxu0 0.0
    %2223 = vmatpush1.msra.mxu0 0.0
    %2224 = vmatprep.subr.mxu0 0.0
    %2225 = vmatpush1.msra.mxu0 0.0
    %2226 = vmatprep.subr.mxu0 0.0
    %2227 = vmatpush1.msra.mxu0 0.0
    %2228 = vmatprep.subr.mxu0 0.0
    %2229 = vmatpush1.msra.mxu0 0.0
    %2230 = vmatprep.subr.mxu0 0.0
    %2231 = vmatpush1.msra.mxu0 0.0
    %2232 = vmatprep.subr.mxu0 0.0
    %2233 = vmatpush1.msra.mxu0 0.0
    %2234 = vmatprep.subr.mxu0 0.0
    %2235 = vmatpush1.msra.mxu0 0.0
    %2236 = vmatprep.subr.mxu0 0.0
    %2237 = vmatpush1.msra.mxu0 0.0
    %2238 = vmatprep.subr.mxu0 0.0
    %2239 = vmatpush1.msra.mxu0 0.0
    %2240 = vmatprep.subr.mxu0 0.0
    %2241 = vmatpush1.msra.mxu0 0.0
    %2242 = vmatprep.subr.mxu0 0.0
    %2243 = vmatpush1.msra.mxu0 0.0
    %2244 = vmatprep.subr.mxu0 0.0
    %2245 = vmatpush1.msra.mxu0 0.0
    %2246 = vmatprep.subr.mxu0 0.0
    %2247 = vmatpush1.msra.mxu0 0.0
    %2248 = vmatprep.mubr.f32.mxu0 0.0
    %2249 = vmatmul.mubr.f32.gmra.mrb[0].mxu0 %v1948
    %v2250 = vpop.f32.mrb[0].mxu0
    %v2251 = vadd.f32 0.0, %v2250
    %v2252 = vpop.f32.mrb[0].mxu0
    %2253 = vdwg.mxu0
    %v2254 = vadd.f32 %v2183, %v2251
    %v2255 = vtanh.pop %v2254
    %v2256 = vmul.f32 %v2104, %v1942
    %v2257 = vmul.f32 %v2026, %v2255
    %v2258 = vadd.f32 %v2256, %v2257
    %v2259 = vtanh.pop %v2258
    %v2260 = vmul.f32 %v2182, %v2259
    %2261 = vst.msk [vmem:[#allocation3 + $0x28] sm:$0xff] %vm202, %v2260
    %v2262 = vld [vmem:[#allocation2 + $0x30] sm:$0xff]
    %v2264 = vsel %vm202, %v2260, 0
    %2266 = vmatprep.subr.mxu0 0.0
    %2267 = vmatpush1.msra.mxu0 %v186
    %2268 = vmatprep.subr.mxu0 0.0
    %2269 = vmatpush1.msra.mxu0 %v188
    %2270 = vmatprep.subr.mxu0 0.0
    %2271 = vmatpush1.msra.mxu0 %v190
    %2272 = vmatprep.subr.mxu0 0.0
    %2273 = vmatpush1.msra.mxu0 %v192
    %2274 = vmatprep.subr.mxu0 0.0
    %2275 = vmatpush1.msra.mxu0 %v194
    %2276 = vmatprep.subr.mxu0 0.0
    %2277 = vmatpush1.msra.mxu0 %v196
    %2278 = vmatprep.subr.mxu0 0.0
    %2279 = vmatpush1.msra.mxu0 %v198
    %2280 = vmatprep.subr.mxu0 0.0
    %2281 = vmatpush1.msra.mxu0 %v200
    %2282 = vmatprep.subr.mxu0 0.0
    %2283 = vmatpush1.msra.mxu0 0.0
    %2284 = vmatprep.subr.mxu0 0.0
    %2285 = vmatpush1.msra.mxu0 0.0
    %2286 = vmatprep.subr.mxu0 0.0
    %2287 = vmatpush1.msra.mxu0 0.0
    %2288 = vmatprep.subr.mxu0 0.0
    %2289 = vmatpush1.msra.mxu0 0.0
    %2290 = vmatprep.subr.mxu0 0.0
    %2291 = vmatpush1.msra.mxu0 0.0
    %2292 = vmatprep.subr.mxu0 0.0
    %2293 = vmatpush1.msra.mxu0 0.0
    %2294 = vmatprep.subr.mxu0 0.0
    %2295 = vmatpush1.msra.mxu0 0.0
    %2296 = vmatprep.subr.mxu0 0.0
    %2297 = vmatpush1.msra.mxu0 0.0
    %2298 = vmatprep.subr.mxu0 0.0
    %2299 = vmatpush1.msra.mxu0 0.0
    %2300 = vmatprep.subr.mxu0 0.0
    %2301 = vmatpush1.msra.mxu0 0.0
    %2302 = vmatprep.subr.mxu0 0.0
    %2303 = vmatpush1.msra.mxu0 0.0
    %2304 = vmatprep.subr.mxu0 0.0
    %2305 = vmatpush1.msra.mxu0 0.0
    %2306 = vmatprep.subr.mxu0 0.0
    %2307 = vmatpush1.msra.mxu0 0.0
    %2308 = vmatprep.subr.mxu0 0.0
    %2309 = vmatpush1.msra.mxu0 0.0
    %2310 = vmatprep.subr.mxu0 0.0
    %2311 = vmatpush1.msra.mxu0 0.0
    %2312 = vmatprep.subr.mxu0 0.0
    %2313 = vmatpush1.msra.mxu0 0.0
    %2314 = vmatprep.subr.mxu0 0.0
    %2315 = vmatpush1.msra.mxu0 0.0
    %2316 = vmatprep.subr.mxu0 0.0
    %2317 = vmatpush1.msra.mxu0 0.0
    %2318 = vmatprep.subr.mxu0 0.0
    %2319 = vmatpush1.msra.mxu0 0.0
    %2320 = vmatprep.subr.mxu0 0.0
    %2321 = vmatpush1.msra.mxu0 0.0
    %2322 = vmatprep.subr.mxu0 0.0
    %2323 = vmatpush1.msra.mxu0 0.0
    %2324 = vmatprep.subr.mxu0 0.0
    %2325 = vmatpush1.msra.mxu0 0.0
    %2326 = vmatprep.subr.mxu0 0.0
    %2327 = vmatpush1.msra.mxu0 0.0
    %2328 = vmatprep.subr.mxu0 0.0
    %2329 = vmatpush1.msra.mxu0 0.0
    %2330 = vmatprep.mubr.f32.mxu0 0.0
    %2331 = vmatmul.mubr.f32.gmra.mrb[0].mxu0 %v2264
    %v2332 = vpop.f32.mrb[0].mxu0
    %v2333 = vadd.f32 0.0, %v2332
    %v2334 = vpop.f32.mrb[0].mxu0
    %2335 = vdwg.mxu0
    %v2336 = vadd.f32 %v2262, %v2333
    %v2337 = vxor.u32 %v2336, 2147483648
    %v2338 = vmul.f32 %v2337, 1.442695
    %v2339 = vpow.pop %v2338
    %v2340 = vadd.f32 %v2339, 1.0
    %v2341 = vrcp.pop %v2340
    %v2342 = vmul.f32 1.0, %v2341
    %v2343 = vld [vmem:[%s243 + $0x30] sm:$0xff]
    %2344 = vmatprep.subr.mxu0 0.0
    %2345 = vmatpush1.msra.mxu0 %v393
    %2346 = vmatprep.subr.mxu0 0.0
    %2347 = vmatpush1.msra.mxu0 %v395
    %2348 = vmatprep.subr.mxu0 0.0
    %2349 = vmatpush1.msra.mxu0 %v397
    %2350 = vmatprep.subr.mxu0 0.0
    %2351 = vmatpush1.msra.mxu0 %v399
    %2352 = vmatprep.subr.mxu0 0.0
    %2353 = vmatpush1.msra.mxu0 %v401
    %2354 = vmatprep.subr.mxu0 0.0
    %2355 = vmatpush1.msra.mxu0 %v403
    %2356 = vmatprep.subr.mxu0 0.0
    %2357 = vmatpush1.msra.mxu0 %v405
    %2358 = vmatprep.subr.mxu0 0.0
    %2359 = vmatpush1.msra.mxu0 %v407
    %2360 = vmatprep.subr.mxu0 0.0
    %2361 = vmatpush1.msra.mxu0 0.0
    %2362 = vmatprep.subr.mxu0 0.0
    %2363 = vmatpush1.msra.mxu0 0.0
    %2364 = vmatprep.subr.mxu0 0.0
    %2365 = vmatpush1.msra.mxu0 0.0
    %2366 = vmatprep.subr.mxu0 0.0
    %2367 = vmatpush1.msra.mxu0 0.0
    %2368 = vmatprep.subr.mxu0 0.0
    %2369 = vmatpush1.msra.mxu0 0.0
    %2370 = vmatprep.subr.mxu0 0.0
    %2371 = vmatpush1.msra.mxu0 0.0
    %2372 = vmatprep.subr.mxu0 0.0
    %2373 = vmatpush1.msra.mxu0 0.0
    %2374 = vmatprep.subr.mxu0 0.0
    %2375 = vmatpush1.msra.mxu0 0.0
    %2376 = vmatprep.subr.mxu0 0.0
    %2377 = vmatpush1.msra.mxu0 0.0
    %2378 = vmatprep.subr.mxu0 0.0
    %2379 = vmatpush1.msra.mxu0 0.0
    %2380 = vmatprep.subr.mxu0 0.0
    %2381 = vmatpush1.msra.mxu0 0.0
    %2382 = vmatprep.subr.mxu0 0.0
    %2383 = vmatpush1.msra.mxu0 0.0
    %2384 = vmatprep.subr.mxu0 0.0
    %2385 = vmatpush1.msra.mxu0 0.0
    %2386 = vmatprep.subr.mxu0 0.0
    %2387 = vmatpush1.msra.mxu0 0.0
    %2388 = vmatprep.subr.mxu0 0.0
    %2389 = vmatpush1.msra.mxu0 0.0
    %2390 = vmatprep.subr.mxu0 0.0
    %2391 = vmatpush1.msra.mxu0 0.0
    %2392 = vmatprep.subr.mxu0 0.0
    %2393 = vmatpush1.msra.mxu0 0.0
    %2394 = vmatprep.subr.mxu0 0.0
    %2395 = vmatpush1.msra.mxu0 0.0
    %2396 = vmatprep.subr.mxu0 0.0
    %2397 = vmatpush1.msra.mxu0 0.0
    %2398 = vmatprep.subr.mxu0 0.0
    %2399 = vmatpush1.msra.mxu0 0.0
    %2400 = vmatprep.subr.mxu0 0.0
    %2401 = vmatpush1.msra.mxu0 0.0
    %2402 = vmatprep.subr.mxu0 0.0
    %2403 = vmatpush1.msra.mxu0 0.0
    %2404 = vmatprep.subr.mxu0 0.0
    %2405 = vmatpush1.msra.mxu0 0.0
    %2406 = vmatprep.subr.mxu0 0.0
    %2407 = vmatpush1.msra.mxu0 0.0
    %2408 = vmatprep.mubr.f32.mxu0 0.0
    %2409 = vmatmul.mubr.f32.gmra.mrb[0].mxu0 %v2264
    %v2410 = vpop.f32.mrb[0].mxu0
    %v2411 = vadd.f32 0.0, %v2410
    %v2412 = vpop.f32.mrb[0].mxu0
    %2413 = vdwg.mxu0
    %v2414 = vadd.f32 %v2343, %v2411
    %v2415 = vxor.u32 %v2414, 2147483648
    %v2416 = vmul.f32 %v2415, 1.442695
    %v2417 = vpow.pop %v2416
    %v2418 = vadd.f32 %v2417, 1.0
    %v2419 = vrcp.pop %v2418
    %v2420 = vmul.f32 1.0, %v2419
    %v2421 = vld [vmem:[%s252 + $0x30] sm:$0xff]
    %2422 = vmatprep.subr.mxu0 0.0
    %2423 = vmatpush1.msra.mxu0 %v187
    %2424 = vmatprep.subr.mxu0 0.0
    %2425 = vmatpush1.msra.mxu0 %v189
    %2426 = vmatprep.subr.mxu0 0.0
    %2427 = vmatpush1.msra.mxu0 %v191
    %2428 = vmatprep.subr.mxu0 0.0
    %2429 = vmatpush1.msra.mxu0 %v193
    %2430 = vmatprep.subr.mxu0 0.0
    %2431 = vmatpush1.msra.mxu0 %v195
    %2432 = vmatprep.subr.mxu0 0.0
    %2433 = vmatpush1.msra.mxu0 %v197
    %2434 = vmatprep.subr.mxu0 0.0
    %2435 = vmatpush1.msra.mxu0 %v199
    %2436 = vmatprep.subr.mxu0 0.0
    %2437 = vmatpush1.msra.mxu0 %v201
    %2438 = vmatprep.subr.mxu0 0.0
    %2439 = vmatpush1.msra.mxu0 0.0
    %2440 = vmatprep.subr.mxu0 0.0
    %2441 = vmatpush1.msra.mxu0 0.0
    %2442 = vmatprep.subr.mxu0 0.0
    %2443 = vmatpush1.msra.mxu0 0.0
    %2444 = vmatprep.subr.mxu0 0.0
    %2445 = vmatpush1.msra.mxu0 0.0
    %2446 = vmatprep.subr.mxu0 0.0
    %2447 = vmatpush1.msra.mxu0 0.0
    %2448 = vmatprep.subr.mxu0 0.0
    %2449 = vmatpush1.msra.mxu0 0.0
    %2450 = vmatprep.subr.mxu0 0.0
    %2451 = vmatpush1.msra.mxu0 0.0
    %2452 = vmatprep.subr.mxu0 0.0
    %2453 = vmatpush1.msra.mxu0 0.0
    %2454 = vmatprep.subr.mxu0 0.0
    %2455 = vmatpush1.msra.mxu0 0.0
    %2456 = vmatprep.subr.mxu0 0.0
    %2457 = vmatpush1.msra.mxu0 0.0
    %2458 = vmatprep.subr.mxu0 0.0
    %2459 = vmatpush1.msra.mxu0 0.0
    %2460 = vmatprep.subr.mxu0 0.0
    %2461 = vmatpush1.msra.mxu0 0.0
    %2462 = vmatprep.subr.mxu0 0.0
    %2463 = vmatpush1.msra.mxu0 0.0
    %2464 = vmatprep.subr.mxu0 0.0
    %2465 = vmatpush1.msra.mxu0 0.0
    %2466 = vmatprep.subr.mxu0 0.0
    %2467 = vmatpush1.msra.mxu0 0.0
    %2468 = vmatprep.subr.mxu0 0.0
    %2469 = vmatpush1.msra.mxu0 0.0
    %2470 = vmatprep.subr.mxu0 0.0
    %2471 = vmatpush1.msra.mxu0 0.0
    %2472 = vmatprep.subr.mxu0 0.0
    %2473 = vmatpush1.msra.mxu0 0.0
    %2474 = vmatprep.subr.mxu0 0.0
    %2475 = vmatpush1.msra.mxu0 0.0
    %2476 = vmatprep.subr.mxu0 0.0
    %2477 = vmatpush1.msra.mxu0 0.0
    %2478 = vmatprep.subr.mxu0 0.0
    %2479 = vmatpush1.msra.mxu0 0.0
    %2480 = vmatprep.subr.mxu0 0.0
    %2481 = vmatpush1.msra.mxu0 0.0
    %2482 = vmatprep.subr.mxu0 0.0
    %2483 = vmatpush1.msra.mxu0 0.0
    %2484 = vmatprep.subr.mxu0 0.0
    %2485 = vmatpush1.msra.mxu0 0.0
    %2486 = vmatprep.mubr.f32.mxu0 0.0
    %2487 = vmatmul.mubr.f32.gmra.mrb[0].mxu0 %v2264
    %v2488 = vpop.f32.mrb[0].mxu0
    %v2489 = vadd.f32 0.0, %v2488
    %v2490 = vpop.f32.mrb[0].mxu0
    %2491 = vdwg.mxu0
    %v2492 = vadd.f32 %v2421, %v2489
    %v2493 = vxor.u32 %v2492, 2147483648
    %v2494 = vmul.f32 %v2493, 1.442695
    %v2495 = vpow.pop %v2494
    %v2496 = vadd.f32 %v2495, 1.0
    %v2497 = vrcp.pop %v2496
    %v2498 = vmul.f32 1.0, %v2497
    %v2499 = vld [vmem:[%s293 + $0x30] sm:$0xff]
    %2500 = vmatprep.subr.mxu0 0.0
    %2501 = vmatpush1.msra.mxu0 %v581
    %2502 = vmatprep.subr.mxu0 0.0
    %2503 = vmatpush1.msra.mxu0 %v583
    %2504 = vmatprep.subr.mxu0 0.0
    %2505 = vmatpush1.msra.mxu0 %v585
    %2506 = vmatprep.subr.mxu0 0.0
    %2507 = vmatpush1.msra.mxu0 %v587
    %2508 = vmatprep.subr.mxu0 0.0
    %2509 = vmatpush1.msra.mxu0 %v589
    %2510 = vmatprep.subr.mxu0 0.0
    %2511 = vmatpush1.msra.mxu0 %v591
    %2512 = vmatprep.subr.mxu0 0.0
    %2513 = vmatpush1.msra.mxu0 %v593
    %2514 = vmatprep.subr.mxu0 0.0
    %2515 = vmatpush1.msra.mxu0 %v595
    %2516 = vmatprep.subr.mxu0 0.0
    %2517 = vmatpush1.msra.mxu0 0.0
    %2518 = vmatprep.subr.mxu0 0.0
    %2519 = vmatpush1.msra.mxu0 0.0
    %2520 = vmatprep.subr.mxu0 0.0
    %2521 = vmatpush1.msra.mxu0 0.0
    %2522 = vmatprep.subr.mxu0 0.0
    %2523 = vmatpush1.msra.mxu0 0.0
    %2524 = vmatprep.subr.mxu0 0.0
    %2525 = vmatpush1.msra.mxu0 0.0
    %2526 = vmatprep.subr.mxu0 0.0
    %2527 = vmatpush1.msra.mxu0 0.0
    %2528 = vmatprep.subr.mxu0 0.0
    %2529 = vmatpush1.msra.mxu0 0.0
    %2530 = vmatprep.subr.mxu0 0.0
    %2531 = vmatpush1.msra.mxu0 0.0
    %2532 = vmatprep.subr.mxu0 0.0
    %2533 = vmatpush1.msra.mxu0 0.0
    %2534 = vmatprep.subr.mxu0 0.0
    %2535 = vmatpush1.msra.mxu0 0.0
    %2536 = vmatprep.subr.mxu0 0.0
    %2537 = vmatpush1.msra.mxu0 0.0
    %2538 = vmatprep.subr.mxu0 0.0
    %2539 = vmatpush1.msra.mxu0 0.0
    %2540 = vmatprep.subr.mxu0 0.0
    %2541 = vmatpush1.msra.mxu0 0.0
    %2542 = vmatprep.subr.mxu0 0.0
    %2543 = vmatpush1.msra.mxu0 0.0
    %2544 = vmatprep.subr.mxu0 0.0
    %2545 = vmatpush1.msra.mxu0 0.0
    %2546 = vmatprep.subr.mxu0 0.0
    %2547 = vmatpush1.msra.mxu0 0.0
    %2548 = vmatprep.subr.mxu0 0.0
    %2549 = vmatpush1.msra.mxu0 0.0
    %2550 = vmatprep.subr.mxu0 0.0
    %2551 = vmatpush1.msra.mxu0 0.0
    %2552 = vmatprep.subr.mxu0 0.0
    %2553 = vmatpush1.msra.mxu0 0.0
    %2554 = vmatprep.subr.mxu0 0.0
    %2555 = vmatpush1.msra.mxu0 0.0
    %2556 = vmatprep.subr.mxu0 0.0
    %2557 = vmatpush1.msra.mxu0 0.0
    %2558 = vmatprep.subr.mxu0 0.0
    %2559 = vmatpush1.msra.mxu0 0.0
    %2560 = vmatprep.subr.mxu0 0.0
    %2561 = vmatpush1.msra.mxu0 0.0
    %2562 = vmatprep.subr.mxu0 0.0
    %2563 = vmatpush1.msra.mxu0 0.0
    %2564 = vmatprep.mubr.f32.mxu0 0.0
    %2565 = vmatmul.mubr.f32.gmra.mrb[0].mxu0 %v2264
    %v2566 = vpop.f32.mrb[0].mxu0
    %v2567 = vadd.f32 0.0, %v2566
    %v2568 = vpop.f32.mrb[0].mxu0
    %2569 = vdwg.mxu0
    %v2570 = vadd.f32 %v2499, %v2567
    %v2571 = vtanh.pop %v2570
    %v2572 = vmul.f32 %v2420, %v2258
    %v2573 = vmul.f32 %v2342, %v2571
    %v2574 = vadd.f32 %v2572, %v2573
    %v2575 = vtanh.pop %v2574
    %v2576 = vmul.f32 %v2498, %v2575
    %2577 = vst.msk [vmem:[#allocation3 + $0x30] sm:$0xff] %vm202, %v2576
    %v2578 = vld [vmem:[#allocation2 + $0x38] sm:$0xff]
    %v2580 = vsel %vm202, %v2576, 0
    %2582 = vmatprep.subr.mxu0 0.0
    %2583 = vmatpush1.msra.mxu0 %v186
    %2584 = vmatprep.subr.mxu0 0.0
    %2585 = vmatpush1.msra.mxu0 %v188
    %2586 = vmatprep.subr.mxu0 0.0
    %2587 = vmatpush1.msra.mxu0 %v190
    %2588 = vmatprep.subr.mxu0 0.0
    %2589 = vmatpush1.msra.mxu0 %v192
    %2590 = vmatprep.subr.mxu0 0.0
    %2591 = vmatpush1.msra.mxu0 %v194
    %2592 = vmatprep.subr.mxu0 0.0
    %2593 = vmatpush1.msra.mxu0 %v196
    %2594 = vmatprep.subr.mxu0 0.0
    %2595 = vmatpush1.msra.mxu0 %v198
    %2596 = vmatprep.subr.mxu0 0.0
    %2597 = vmatpush1.msra.mxu0 %v200
    %2598 = vmatprep.subr.mxu0 0.0
    %2599 = vmatpush1.msra.mxu0 0.0
    %2600 = vmatprep.subr.mxu0 0.0
    %2601 = vmatpush1.msra.mxu0 0.0
    %2602 = vmatprep.subr.mxu0 0.0
    %2603 = vmatpush1.msra.mxu0 0.0
    %2604 = vmatprep.subr.mxu0 0.0
    %2605 = vmatpush1.msra.mxu0 0.0
    %2606 = vmatprep.subr.mxu0 0.0
    %2607 = vmatpush1.msra.mxu0 0.0
    %2608 = vmatprep.subr.mxu0 0.0
    %2609 = vmatpush1.msra.mxu0 0.0
    %2610 = vmatprep.subr.mxu0 0.0
    %2611 = vmatpush1.msra.mxu0 0.0
    %2612 = vmatprep.subr.mxu0 0.0
    %2613 = vmatpush1.msra.mxu0 0.0
    %2614 = vmatprep.subr.mxu0 0.0
    %2615 = vmatpush1.msra.mxu0 0.0
    %2616 = vmatprep.subr.mxu0 0.0
    %2617 = vmatpush1.msra.mxu0 0.0
    %2618 = vmatprep.subr.mxu0 0.0
    %2619 = vmatpush1.msra.mxu0 0.0
    %2620 = vmatprep.subr.mxu0 0.0
    %2621 = vmatpush1.msra.mxu0 0.0
    %2622 = vmatprep.subr.mxu0 0.0
    %2623 = vmatpush1.msra.mxu0 0.0
    %2624 = vmatprep.subr.mxu0 0.0
    %2625 = vmatpush1.msra.mxu0 0.0
    %2626 = vmatprep.subr.mxu0 0.0
    %2627 = vmatpush1.msra.mxu0 0.0
    %2628 = vmatprep.subr.mxu0 0.0
    %2629 = vmatpush1.msra.mxu0 0.0
    %2630 = vmatprep.subr.mxu0 0.0
    %2631 = vmatpush1.msra.mxu0 0.0
    %2632 = vmatprep.subr.mxu0 0.0
    %2633 = vmatpush1.msra.mxu0 0.0
    %2634 = vmatprep.subr.mxu0 0.0
    %2635 = vmatpush1.msra.mxu0 0.0
    %2636 = vmatprep.subr.mxu0 0.0
    %2637 = vmatpush1.msra.mxu0 0.0
    %2638 = vmatprep.subr.mxu0 0.0
    %2639 = vmatpush1.msra.mxu0 0.0
    %2640 = vmatprep.subr.mxu0 0.0
    %2641 = vmatpush1.msra.mxu0 0.0
    %2642 = vmatprep.subr.mxu0 0.0
    %2643 = vmatpush1.msra.mxu0 0.0
    %2644 = vmatprep.subr.mxu0 0.0
    %2645 = vmatpush1.msra.mxu0 0.0
    %2646 = vmatprep.mubr.f32.mxu0 0.0
    %2647 = vmatmul.mubr.f32.gmra.mrb[0].mxu0 %v2580
    %v2648 = vpop.f32.mrb[0].mxu0
    %v2649 = vadd.f32 0.0, %v2648
    %v2650 = vpop.f32.mrb[0].mxu0
    %2651 = vdwg.mxu0
    %v2652 = vadd.f32 %v2578, %v2649
    %v2653 = vxor.u32 %v2652, 2147483648
    %v2654 = vmul.f32 %v2653, 1.442695
    %v2655 = vpow.pop %v2654
    %v2656 = vadd.f32 %v2655, 1.0
    %v2657 = vrcp.pop %v2656
    %v2658 = vmul.f32 1.0, %v2657
    %v2659 = vld [vmem:[%s243 + $0x38] sm:$0xff]
    %2660 = vmatprep.subr.mxu0 0.0
    %2661 = vmatpush1.msra.mxu0 %v393
    %2662 = vmatprep.subr.mxu0 0.0
    %2663 = vmatpush1.msra.mxu0 %v395
    %2664 = vmatprep.subr.mxu0 0.0
    %2665 = vmatpush1.msra.mxu0 %v397
    %2666 = vmatprep.subr.mxu0 0.0
    %2667 = vmatpush1.msra.mxu0 %v399
    %2668 = vmatprep.subr.mxu0 0.0
    %2669 = vmatpush1.msra.mxu0 %v401
    %2670 = vmatprep.subr.mxu0 0.0
    %2671 = vmatpush1.msra.mxu0 %v403
    %2672 = vmatprep.subr.mxu0 0.0
    %2673 = vmatpush1.msra.mxu0 %v405
    %2674 = vmatprep.subr.mxu0 0.0
    %2675 = vmatpush1.msra.mxu0 %v407
    %2676 = vmatprep.subr.mxu0 0.0
    %2677 = vmatpush1.msra.mxu0 0.0
    %2678 = vmatprep.subr.mxu0 0.0
    %2679 = vmatpush1.msra.mxu0 0.0
    %2680 = vmatprep.subr.mxu0 0.0
    %2681 = vmatpush1.msra.mxu0 0.0
    %2682 = vmatprep.subr.mxu0 0.0
    %2683 = vmatpush1.msra.mxu0 0.0
    %2684 = vmatprep.subr.mxu0 0.0
    %2685 = vmatpush1.msra.mxu0 0.0
    %2686 = vmatprep.subr.mxu0 0.0
    %2687 = vmatpush1.msra.mxu0 0.0
    %2688 = vmatprep.subr.mxu0 0.0
    %2689 = vmatpush1.msra.mxu0 0.0
    %2690 = vmatprep.subr.mxu0 0.0
    %2691 = vmatpush1.msra.mxu0 0.0
    %2692 = vmatprep.subr.mxu0 0.0
    %2693 = vmatpush1.msra.mxu0 0.0
    %2694 = vmatprep.subr.mxu0 0.0
    %2695 = vmatpush1.msra.mxu0 0.0
    %2696 = vmatprep.subr.mxu0 0.0
    %2697 = vmatpush1.msra.mxu0 0.0
    %2698 = vmatprep.subr.mxu0 0.0
    %2699 = vmatpush1.msra.mxu0 0.0
    %2700 = vmatprep.subr.mxu0 0.0
    %2701 = vmatpush1.msra.mxu0 0.0
    %2702 = vmatprep.subr.mxu0 0.0
    %2703 = vmatpush1.msra.mxu0 0.0
    %2704 = vmatprep.subr.mxu0 0.0
    %2705 = vmatpush1.msra.mxu0 0.0
    %2706 = vmatprep.subr.mxu0 0.0
    %2707 = vmatpush1.msra.mxu0 0.0
    %2708 = vmatprep.subr.mxu0 0.0
    %2709 = vmatpush1.msra.mxu0 0.0
    %2710 = vmatprep.subr.mxu0 0.0
    %2711 = vmatpush1.msra.mxu0 0.0
    %2712 = vmatprep.subr.mxu0 0.0
    %2713 = vmatpush1.msra.mxu0 0.0
    %2714 = vmatprep.subr.mxu0 0.0
    %2715 = vmatpush1.msra.mxu0 0.0
    %2716 = vmatprep.subr.mxu0 0.0
    %2717 = vmatpush1.msra.mxu0 0.0
    %2718 = vmatprep.subr.mxu0 0.0
    %2719 = vmatpush1.msra.mxu0 0.0
    %2720 = vmatprep.subr.mxu0 0.0
    %2721 = vmatpush1.msra.mxu0 0.0
    %2722 = vmatprep.subr.mxu0 0.0
    %2723 = vmatpush1.msra.mxu0 0.0
    %2724 = vmatprep.mubr.f32.mxu0 0.0
    %2725 = vmatmul.mubr.f32.gmra.mrb[0].mxu0 %v2580
    %v2726 = vpop.f32.mrb[0].mxu0
    %v2727 = vadd.f32 0.0, %v2726
    %v2728 = vpop.f32.mrb[0].mxu0
    %2729 = vdwg.mxu0
    %v2730 = vadd.f32 %v2659, %v2727
    %v2731 = vxor.u32 %v2730, 2147483648
    %v2732 = vmul.f32 %v2731, 1.442695
    %v2733 = vpow.pop %v2732
    %v2734 = vadd.f32 %v2733, 1.0
    %v2735 = vrcp.pop %v2734
    %v2736 = vmul.f32 1.0, %v2735
    %v2737 = vld [vmem:[%s252 + $0x38] sm:$0xff]
    %2738 = vmatprep.subr.mxu0 0.0
    %2739 = vmatpush1.msra.mxu0 %v187
    %2740 = vmatprep.subr.mxu0 0.0
    %2741 = vmatpush1.msra.mxu0 %v189
    %2742 = vmatprep.subr.mxu0 0.0
    %2743 = vmatpush1.msra.mxu0 %v191
    %2744 = vmatprep.subr.mxu0 0.0
    %2745 = vmatpush1.msra.mxu0 %v193
    %2746 = vmatprep.subr.mxu0 0.0
    %2747 = vmatpush1.msra.mxu0 %v195
    %2748 = vmatprep.subr.mxu0 0.0
    %2749 = vmatpush1.msra.mxu0 %v197
    %2750 = vmatprep.subr.mxu0 0.0
    %2751 = vmatpush1.msra.mxu0 %v199
    %2752 = vmatprep.subr.mxu0 0.0
    %2753 = vmatpush1.msra.mxu0 %v201
    %2754 = vmatprep.subr.mxu0 0.0
    %2755 = vmatpush1.msra.mxu0 0.0
    %2756 = vmatprep.subr.mxu0 0.0
    %2757 = vmatpush1.msra.mxu0 0.0
    %2758 = vmatprep.subr.mxu0 0.0
    %2759 = vmatpush1.msra.mxu0 0.0
    %2760 = vmatprep.subr.mxu0 0.0
    %2761 = vmatpush1.msra.mxu0 0.0
    %2762 = vmatprep.subr.mxu0 0.0
    %2763 = vmatpush1.msra.mxu0 0.0
    %2764 = vmatprep.subr.mxu0 0.0
    %2765 = vmatpush1.msra.mxu0 0.0
    %2766 = vmatprep.subr.mxu0 0.0
    %2767 = vmatpush1.msra.mxu0 0.0
    %2768 = vmatprep.subr.mxu0 0.0
    %2769 = vmatpush1.msra.mxu0 0.0
    %2770 = vmatprep.subr.mxu0 0.0
    %2771 = vmatpush1.msra.mxu0 0.0
    %2772 = vmatprep.subr.mxu0 0.0
    %2773 = vmatpush1.msra.mxu0 0.0
    %2774 = vmatprep.subr.mxu0 0.0
    %2775 = vmatpush1.msra.mxu0 0.0
    %2776 = vmatprep.subr.mxu0 0.0
    %2777 = vmatpush1.msra.mxu0 0.0
    %2778 = vmatprep.subr.mxu0 0.0
    %2779 = vmatpush1.msra.mxu0 0.0
    %2780 = vmatprep.subr.mxu0 0.0
    %2781 = vmatpush1.msra.mxu0 0.0
    %2782 = vmatprep.subr.mxu0 0.0
    %2783 = vmatpush1.msra.mxu0 0.0
    %2784 = vmatprep.subr.mxu0 0.0
    %2785 = vmatpush1.msra.mxu0 0.0
    %2786 = vmatprep.subr.mxu0 0.0
    %2787 = vmatpush1.msra.mxu0 0.0
    %2788 = vmatprep.subr.mxu0 0.0
    %2789 = vmatpush1.msra.mxu0 0.0
    %2790 = vmatprep.subr.mxu0 0.0
    %2791 = vmatpush1.msra.mxu0 0.0
    %2792 = vmatprep.subr.mxu0 0.0
    %2793 = vmatpush1.msra.mxu0 0.0
    %2794 = vmatprep.subr.mxu0 0.0
    %2795 = vmatpush1.msra.mxu0 0.0
    %2796 = vmatprep.subr.mxu0 0.0
    %2797 = vmatpush1.msra.mxu0 0.0
    %2798 = vmatprep.subr.mxu0 0.0
    %2799 = vmatpush1.msra.mxu0 0.0
    %2800 = vmatprep.subr.mxu0 0.0
    %2801 = vmatpush1.msra.mxu0 0.0
    %2802 = vmatprep.mubr.f32.mxu0 0.0
    %2803 = vmatmul.mubr.f32.gmra.mrb[0].mxu0 %v2580
    %v2804 = vpop.f32.mrb[0].mxu0
    %v2805 = vadd.f32 0.0, %v2804
    %v2806 = vpop.f32.mrb[0].mxu0
    %2807 = vdwg.mxu0
    %v2808 = vadd.f32 %v2737, %v2805
    %v2809 = vxor.u32 %v2808, 2147483648
    %v2810 = vmul.f32 %v2809, 1.442695
    %v2811 = vpow.pop %v2810
    %v2812 = vadd.f32 %v2811, 1.0
    %v2813 = vrcp.pop %v2812
    %v2814 = vmul.f32 1.0, %v2813
    %v2815 = vld [vmem:[%s293 + $0x38] sm:$0xff]
    %2816 = vmatprep.subr.mxu0 0.0
    %2817 = vmatpush1.msra.mxu0 %v581
    %2818 = vmatprep.subr.mxu0 0.0
    %2819 = vmatpush1.msra.mxu0 %v583
    %2820 = vmatprep.subr.mxu0 0.0
    %2821 = vmatpush1.msra.mxu0 %v585
    %2822 = vmatprep.subr.mxu0 0.0
    %2823 = vmatpush1.msra.mxu0 %v587
    %2824 = vmatprep.subr.mxu0 0.0
    %2825 = vmatpush1.msra.mxu0 %v589
    %2826 = vmatprep.subr.mxu0 0.0
    %2827 = vmatpush1.msra.mxu0 %v591
    %2828 = vmatprep.subr.mxu0 0.0
    %2829 = vmatpush1.msra.mxu0 %v593
    %2830 = vmatprep.subr.mxu0 0.0
    %2831 = vmatpush1.msra.mxu0 %v595
    %2832 = vmatprep.subr.mxu0 0.0
    %2833 = vmatpush1.msra.mxu0 0.0
    %2834 = vmatprep.subr.mxu0 0.0
    %2835 = vmatpush1.msra.mxu0 0.0
    %2836 = vmatprep.subr.mxu0 0.0
    %2837 = vmatpush1.msra.mxu0 0.0
    %2838 = vmatprep.subr.mxu0 0.0
    %2839 = vmatpush1.msra.mxu0 0.0
    %2840 = vmatprep.subr.mxu0 0.0
    %2841 = vmatpush1.msra.mxu0 0.0
    %2842 = vmatprep.subr.mxu0 0.0
    %2843 = vmatpush1.msra.mxu0 0.0
    %2844 = vmatprep.subr.mxu0 0.0
    %2845 = vmatpush1.msra.mxu0 0.0
    %2846 = vmatprep.subr.mxu0 0.0
    %2847 = vmatpush1.msra.mxu0 0.0
    %2848 = vmatprep.subr.mxu0 0.0
    %2849 = vmatpush1.msra.mxu0 0.0
    %2850 = vmatprep.subr.mxu0 0.0
    %2851 = vmatpush1.msra.mxu0 0.0
    %2852 = vmatprep.subr.mxu0 0.0
    %2853 = vmatpush1.msra.mxu0 0.0
    %2854 = vmatprep.subr.mxu0 0.0
    %2855 = vmatpush1.msra.mxu0 0.0
    %2856 = vmatprep.subr.mxu0 0.0
    %2857 = vmatpush1.msra.mxu0 0.0
    %2858 = vmatprep.subr.mxu0 0.0
    %2859 = vmatpush1.msra.mxu0 0.0
    %2860 = vmatprep.subr.mxu0 0.0
    %2861 = vmatpush1.msra.mxu0 0.0
    %2862 = vmatprep.subr.mxu0 0.0
    %2863 = vmatpush1.msra.mxu0 0.0
    %2864 = vmatprep.subr.mxu0 0.0
    %2865 = vmatpush1.msra.mxu0 0.0
    %2866 = vmatprep.subr.mxu0 0.0
    %2867 = vmatpush1.msra.mxu0 0.0
    %2868 = vmatprep.subr.mxu0 0.0
    %2869 = vmatpush1.msra.mxu0 0.0
    %2870 = vmatprep.subr.mxu0 0.0
    %2871 = vmatpush1.msra.mxu0 0.0
    %2872 = vmatprep.subr.mxu0 0.0
    %2873 = vmatpush1.msra.mxu0 0.0
    %2874 = vmatprep.subr.mxu0 0.0
    %2875 = vmatpush1.msra.mxu0 0.0
    %2876 = vmatprep.subr.mxu0 0.0
    %2877 = vmatpush1.msra.mxu0 0.0
    %2878 = vmatprep.subr.mxu0 0.0
    %2879 = vmatpush1.msra.mxu0 0.0
    %2880 = vmatprep.mubr.f32.mxu0 0.0
    %2881 = vmatmul.mubr.f32.gmra.mrb[0].mxu0 %v2580
    %v2882 = vpop.f32.mrb[0].mxu0
    %v2883 = vadd.f32 0.0, %v2882
    %v2884 = vpop.f32.mrb[0].mxu0
    %2885 = vdwg.mxu0
    %v2886 = vadd.f32 %v2815, %v2883
    %v2887 = vtanh.pop %v2886
    %v2888 = vmul.f32 %v2736, %v2574
    %v2889 = vmul.f32 %v2658, %v2887
    %v2890 = vadd.f32 %v2888, %v2889
    %v2891 = vtanh.pop %v2890
    %v2892 = vmul.f32 %v2814, %v2891
    %2893 = vst.msk [vmem:[#allocation3 + $0x38] sm:$0xff] %vm202, %v2892
    %v2894 = vld [vmem:[#allocation3] sm:$0xff]
    %v2895 = vld [vmem:[#allocation3 + $0x8] sm:$0xff]
    %v2896 = vld [vmem:[#allocation3 + $0x10] sm:$0xff]
    %v2897 = vld [vmem:[#allocation3 + $0x18] sm:$0xff]
    %v2898 = vld [vmem:[#allocation3 + $0x20] sm:$0xff]
    %v2899 = vld [vmem:[#allocation3 + $0x28] sm:$0xff]
    %v2900 = vld [vmem:[#allocation3 + $0x30] sm:$0xff]
    %v2901 = vld [vmem:[#allocation3 + $0x38] sm:$0xff]
    %v2902 = vld [vmem:[#allocation6 + $0x140] sm:$0xff]
    %v2903 = vld [vmem:[#allocation6 + $0x148] sm:$0xff]
    %v2904 = vld [vmem:[#allocation6 + $0x150] sm:$0xff]
    %v2905 = vld [vmem:[#allocation6 + $0x158] sm:$0xff]
    %v2906 = vld [vmem:[#allocation6 + $0x160] sm:$0xff]
    %v2907 = vld [vmem:[#allocation6 + $0x168] sm:$0xff]
    %v2908 = vld [vmem:[#allocation6 + $0x170] sm:$0xff]
    %v2909 = vld [vmem:[#allocation6 + $0x178] sm:$0xff]
    %v2910 = vld [vmem:[#allocation6 + $0x180] sm:$0xff]
    %v2911 = vld [vmem:[#allocation6 + $0x188] sm:$0xff]
    %v2912 = vld [vmem:[#allocation6 + $0x190] sm:$0xff]
    %v2913 = vld [vmem:[#allocation6 + $0x198] sm:$0xff]
    %v2914 = vld [vmem:[#allocation6 + $0x1a0] sm:$0xff]
    %v2915 = vld [vmem:[#allocation6 + $0x1a8] sm:$0xff]
    %v2916 = vld [vmem:[#allocation6 + $0x1b0] sm:$0xff]
    %v2917 = vld [vmem:[#allocation6 + $0x1b8] sm:$0xff]
    %v2918 = vld [vmem:[#allocation6 + $0x1c0] sm:$0xff]
    %v2919 = vld [vmem:[#allocation6 + $0x1c8] sm:$0xff]
    %v2920 = vld [vmem:[#allocation6 + $0x1d0] sm:$0xff]
    %v2921 = vld [vmem:[#allocation6 + $0x1d8] sm:$0xff]
    %v2922 = vld [vmem:[#allocation6 + $0x1e0] sm:$0xff]
    %v2923 = vld [vmem:[#allocation6 + $0x1e8] sm:$0xff]
    %v2924 = vld [vmem:[#allocation6 + $0x1f0] sm:$0xff]
    %v2925 = vld [vmem:[#allocation6 + $0x1f8] sm:$0xff]
    %v2926 = vld [vmem:[#allocation6 + $0x200] sm:$0xff]
    %v2927 = vld [vmem:[#allocation6 + $0x208] sm:$0xff]
    %v2928 = vld [vmem:[#allocation6 + $0x210] sm:$0xff]
    %v2929 = vld [vmem:[#allocation6 + $0x218] sm:$0xff]
    %v2930 = vld [vmem:[#allocation6 + $0x220] sm:$0xff]
    %v2931 = vld [vmem:[#allocation6 + $0x228] sm:$0xff]
    %v2932 = vld [vmem:[#allocation6 + $0x230] sm:$0xff]
    %v2933 = vld [vmem:[#allocation6 + $0x238] sm:$0xff]
    %s2934 = scalar_lea.vmem [#allocation6], 1088
    %v2935 = vld [vmem:[%s2934] ss:$8 sm:$0xf]
    %v2937 = vlaneseq
    %v2938 = vshrl.u32 %v2937, 7
    %v2939 = vsub.s32 0, %v2938
    %v2940 = vrot.slane %v2935, %v2939
    %v2941 = vlaneseq
    %v2942 = vshrl.u32 %v2941, 7
    %v2943 = vsub.s32 1, %v2942
    %v2944 = vrot.slane %v2935, %v2943
    %v2945 = vlaneseq
    %v2946 = vshrl.u32 %v2945, 7
    %v2947 = vsub.s32 2, %v2946
    %v2948 = vrot.slane %v2935, %v2947
    %v2949 = vlaneseq
    %v2950 = vshrl.u32 %v2949, 7
    %v2951 = vsub.s32 3, %v2950
    %v2952 = vrot.slane %v2935, %v2951
    %v2958 = vsel %vm202, %v2894, 0
    %v2961 = vsel %vm202, %v2895, 0
    %v2964 = vsel %vm202, %v2896, 0
    %v2967 = vsel %vm202, %v2897, 0
    %v2970 = vsel %vm202, %v2898, 0
    %v2973 = vsel %vm202, %v2899, 0
    %v2976 = vsel %vm202, %v2900, 0
    %v2979 = vsel %vm202, %v2901, 0
    %2981 = vmatprep.subr.mxu0 %v2903
    %2982 = vmatpush1.msra.mxu0 %v2902
    %2983 = vmatprep.subr.mxu0 %v2907
    %2984 = vmatpush1.msra.mxu0 %v2906
    %2985 = vmatprep.subr.mxu0 %v2911
    %2986 = vmatpush1.msra.mxu0 %v2910
    %2987 = vmatprep.subr.mxu0 %v2915
    %2988 = vmatpush1.msra.mxu0 %v2914
    %2989 = vmatprep.subr.mxu0 %v2919
    %2990 = vmatpush1.msra.mxu0 %v2918
    %2991 = vmatprep.subr.mxu0 %v2923
    %2992 = vmatpush1.msra.mxu0 %v2922
    %2993 = vmatprep.subr.mxu0 %v2927
    %2994 = vmatpush1.msra.mxu0 %v2926
    %2995 = vmatprep.subr.mxu0 %v2931
    %2996 = vmatpush1.msra.mxu0 %v2930
    %2997 = vmatprep.subr.mxu0 0.0
    %2998 = vmatpush1.msra.mxu0 0.0
    %2999 = vmatprep.subr.mxu0 0.0
    %3000 = vmatpush1.msra.mxu0 0.0
    %3001 = vmatprep.subr.mxu0 0.0
    %3002 = vmatpush1.msra.mxu0 0.0
    %3003 = vmatprep.subr.mxu0 0.0
    %3004 = vmatpush1.msra.mxu0 0.0
    %3005 = vmatprep.subr.mxu0 0.0
    %3006 = vmatpush1.msra.mxu0 0.0
    %3007 = vmatprep.subr.mxu0 0.0
    %3008 = vmatpush1.msra.mxu0 0.0
    %3009 = vmatprep.subr.mxu0 0.0
    %3010 = vmatpush1.msra.mxu0 0.0
    %3011 = vmatprep.subr.mxu0 0.0
    %3012 = vmatpush1.msra.mxu0 0.0
    %3013 = vmatprep.subr.mxu0 0.0
    %3014 = vmatpush1.msra.mxu0 0.0
    %3015 = vmatprep.subr.mxu0 0.0
    %3016 = vmatpush1.msra.mxu0 0.0
    %3017 = vmatprep.subr.mxu0 0.0
    %3018 = vmatpush1.msra.mxu0 0.0
    %3019 = vmatprep.subr.mxu0 0.0
    %3020 = vmatpush1.msra.mxu0 0.0
    %3021 = vmatprep.subr.mxu0 0.0
    %3022 = vmatpush1.msra.mxu0 0.0
    %3023 = vmatprep.subr.mxu0 0.0
    %3024 = vmatpush1.msra.mxu0 0.0
    %3025 = vmatprep.subr.mxu0 0.0
    %3026 = vmatpush1.msra.mxu0 0.0
    %3027 = vmatprep.subr.mxu0 0.0
    %3028 = vmatpush1.msra.mxu0 0.0
    %3029 = vmatprep.subr.mxu0 0.0
    %3030 = vmatpush1.msra.mxu0 0.0
    %3031 = vmatprep.subr.mxu0 0.0
    %3032 = vmatpush1.msra.mxu0 0.0
    %3033 = vmatprep.subr.mxu0 0.0
    %3034 = vmatpush1.msra.mxu0 0.0
    %3035 = vmatprep.subr.mxu0 0.0
    %3036 = vmatpush1.msra.mxu0 0.0
    %3037 = vmatprep.subr.mxu0 0.0
    %3038 = vmatpush1.msra.mxu0 0.0
    %3039 = vmatprep.subr.mxu0 0.0
    %3040 = vmatpush1.msra.mxu0 0.0
    %3041 = vmatprep.subr.mxu0 0.0
    %3042 = vmatpush1.msra.mxu0 0.0
    %3043 = vmatprep.subr.mxu0 0.0
    %3044 = vmatpush1.msra.mxu0 0.0
    %3045 = vmatprep.mubr.f32.mxu0 0.0
    %3046 = vmatmul.mubr.f32.gmra.mrb[0].mxu0 %v2958
    %v3047 = vpop.f32.mrb[0].mxu0
    %v3048 = vadd.f32 %v2940, %v3047
    %v3049 = vpop.f32.mrb[0].mxu0
    %v3050 = vadd.f32 %v2944, %v3049
    %3051 = vmatprep.mubr.f32.mxu0 0.0
    %3052 = vmatmul.mubr.f32.gmra.mrb[0].mxu0 %v2961
    %v3053 = vpop.f32.mrb[0].mxu0
    %v3054 = vadd.f32 %v2940, %v3053
    %v3055 = vpop.f32.mrb[0].mxu0
    %v3056 = vadd.f32 %v2944, %v3055
    %3057 = vmatprep.mubr.f32.mxu0 0.0
    %3058 = vmatmul.mubr.f32.gmra.mrb[0].mxu0 %v2964
    %v3059 = vpop.f32.mrb[0].mxu0
    %v3060 = vadd.f32 %v2940, %v3059
    %v3061 = vpop.f32.mrb[0].mxu0
    %v3062 = vadd.f32 %v2944, %v3061
    %3063 = vmatprep.mubr.f32.mxu0 0.0
    %3064 = vmatmul.mubr.f32.gmra.mrb[0].mxu0 %v2967
    %v3065 = vpop.f32.mrb[0].mxu0
    %v3066 = vadd.f32 %v2940, %v3065
    %v3067 = vpop.f32.mrb[0].mxu0
    %v3068 = vadd.f32 %v2944, %v3067
    %3069 = vmatprep.mubr.f32.mxu0 0.0
    %3070 = vmatmul.mubr.f32.gmra.mrb[0].mxu0 %v2970
    %v3071 = vpop.f32.mrb[0].mxu0
    %v3072 = vadd.f32 %v2940, %v3071
    %v3073 = vpop.f32.mrb[0].mxu0
    %v3074 = vadd.f32 %v2944, %v3073
    %3075 = vmatprep.mubr.f32.mxu0 0.0
    %3076 = vmatmul.mubr.f32.gmra.mrb[0].mxu0 %v2973
    %v3077 = vpop.f32.mrb[0].mxu0
    %v3078 = vadd.f32 %v2940, %v3077
    %v3079 = vpop.f32.mrb[0].mxu0
    %v3080 = vadd.f32 %v2944, %v3079
    %3081 = vmatprep.mubr.f32.mxu0 0.0
    %3082 = vmatmul.mubr.f32.gmra.mrb[0].mxu0 %v2976
    %v3083 = vpop.f32.mrb[0].mxu0
    %v3084 = vadd.f32 %v2940, %v3083
    %v3085 = vpop.f32.mrb[0].mxu0
    %v3086 = vadd.f32 %v2944, %v3085
    %3087 = vmatprep.mubr.f32.mxu0 0.0
    %3088 = vmatmul.mubr.f32.gmra.mrb[0].mxu0 %v2979
    %v3089 = vpop.f32.mrb[0].mxu0
    %v3090 = vadd.f32 %v2940, %v3089
    %v3091 = vpop.f32.mrb[0].mxu0
    %v3092 = vadd.f32 %v2944, %v3091
    %3093 = vdwg.mxu0
    %3094 = vmatprep.subr.mxu0 %v2905
    %3095 = vmatpush1.msra.mxu0 %v2904
    %3096 = vmatprep.subr.mxu0 %v2909
    %3097 = vmatpush1.msra.mxu0 %v2908
    %3098 = vmatprep.subr.mxu0 %v2913
    %3099 = vmatpush1.msra.mxu0 %v2912
    %3100 = vmatprep.subr.mxu0 %v2917
    %3101 = vmatpush1.msra.mxu0 %v2916
    %3102 = vmatprep.subr.mxu0 %v2921
    %3103 = vmatpush1.msra.mxu0 %v2920
    %3104 = vmatprep.subr.mxu0 %v2925
    %3105 = vmatpush1.msra.mxu0 %v2924
    %3106 = vmatprep.subr.mxu0 %v2929
    %3107 = vmatpush1.msra.mxu0 %v2928
    %3108 = vmatprep.subr.mxu0 %v2933
    %3109 = vmatpush1.msra.mxu0 %v2932
    %3110 = vmatprep.subr.mxu0 0.0
    %3111 = vmatpush1.msra.mxu0 0.0
    %3112 = vmatprep.subr.mxu0 0.0
    %3113 = vmatpush1.msra.mxu0 0.0
    %3114 = vmatprep.subr.mxu0 0.0
    %3115 = vmatpush1.msra.mxu0 0.0
    %3116 = vmatprep.subr.mxu0 0.0
    %3117 = vmatpush1.msra.mxu0 0.0
    %3118 = vmatprep.subr.mxu0 0.0
    %3119 = vmatpush1.msra.mxu0 0.0
    %3120 = vmatprep.subr.mxu0 0.0
    %3121 = vmatpush1.msra.mxu0 0.0
    %3122 = vmatprep.subr.mxu0 0.0
    %3123 = vmatpush1.msra.mxu0 0.0
    %3124 = vmatprep.subr.mxu0 0.0
    %3125 = vmatpush1.msra.mxu0 0.0
    %3126 = vmatprep.subr.mxu0 0.0
    %3127 = vmatpush1.msra.mxu0 0.0
    %3128 = vmatprep.subr.mxu0 0.0
    %3129 = vmatpush1.msra.mxu0 0.0
    %3130 = vmatprep.subr.mxu0 0.0
    %3131 = vmatpush1.msra.mxu0 0.0
    %3132 = vmatprep.subr.mxu0 0.0
    %3133 = vmatpush1.msra.mxu0 0.0
    %3134 = vmatprep.subr.mxu0 0.0
    %3135 = vmatpush1.msra.mxu0 0.0
    %3136 = vmatprep.subr.mxu0 0.0
    %3137 = vmatpush1.msra.mxu0 0.0
    %3138 = vmatprep.subr.mxu0 0.0
    %3139 = vmatpush1.msra.mxu0 0.0
    %3140 = vmatprep.subr.mxu0 0.0
    %3141 = vmatpush1.msra.mxu0 0.0
    %3142 = vmatprep.subr.mxu0 0.0
    %3143 = vmatpush1.msra.mxu0 0.0
    %3144 = vmatprep.subr.mxu0 0.0
    %3145 = vmatpush1.msra.mxu0 0.0
    %3146 = vmatprep.subr.mxu0 0.0
    %3147 = vmatpush1.msra.mxu0 0.0
    %3148 = vmatprep.subr.mxu0 0.0
    %3149 = vmatpush1.msra.mxu0 0.0
    %3150 = vmatprep.subr.mxu0 0.0
    %3151 = vmatpush1.msra.mxu0 0.0
    %3152 = vmatprep.subr.mxu0 0.0
    %3153 = vmatpush1.msra.mxu0 0.0
    %3154 = vmatprep.subr.mxu0 0.0
    %3155 = vmatpush1.msra.mxu0 0.0
    %3156 = vmatprep.subr.mxu0 0.0
    %3157 = vmatpush1.msra.mxu0 0.0
    %3158 = vmatprep.mubr.f32.mxu0 0.0
    %3159 = vmatmul.mubr.f32.gmra.mrb[0].mxu0 %v2958
    %v3160 = vpop.f32.mrb[0].mxu0
    %v3161 = vadd.f32 %v2948, %v3160
    %v3162 = vpop.f32.mrb[0].mxu0
    %v3163 = vadd.f32 %v2952, %v3162
    %3164 = vmatprep.mubr.f32.mxu0 0.0
    %3165 = vmatmul.mubr.f32.gmra.mrb[0].mxu0 %v2961
    %v3166 = vpop.f32.mrb[0].mxu0
    %v3167 = vadd.f32 %v2948, %v3166
    %v3168 = vpop.f32.mrb[0].mxu0
    %v3169 = vadd.f32 %v2952, %v3168
    %3170 = vmatprep.mubr.f32.mxu0 0.0
    %3171 = vmatmul.mubr.f32.gmra.mrb[0].mxu0 %v2964
    %v3172 = vpop.f32.mrb[0].mxu0
    %v3173 = vadd.f32 %v2948, %v3172
    %v3174 = vpop.f32.mrb[0].mxu0
    %v3175 = vadd.f32 %v2952, %v3174
    %3176 = vmatprep.mubr.f32.mxu0 0.0
    %3177 = vmatmul.mubr.f32.gmra.mrb[0].mxu0 %v2967
    %v3178 = vpop.f32.mrb[0].mxu0
    %v3179 = vadd.f32 %v2948, %v3178
    %v3180 = vpop.f32.mrb[0].mxu0
    %v3181 = vadd.f32 %v2952, %v3180
    %3182 = vmatprep.mubr.f32.mxu0 0.0
    %3183 = vmatmul.mubr.f32.gmra.mrb[0].mxu0 %v2970
    %v3184 = vpop.f32.mrb[0].mxu0
    %v3185 = vadd.f32 %v2948, %v3184
    %v3186 = vpop.f32.mrb[0].mxu0
    %v3187 = vadd.f32 %v2952, %v3186
    %3188 = vmatprep.mubr.f32.mxu0 0.0
    %3189 = vmatmul.mubr.f32.gmra.mrb[0].mxu0 %v2973
    %v3190 = vpop.f32.mrb[0].mxu0
    %v3191 = vadd.f32 %v2948, %v3190
    %v3192 = vpop.f32.mrb[0].mxu0
    %v3193 = vadd.f32 %v2952, %v3192
    %3194 = vmatprep.mubr.f32.mxu0 0.0
    %3195 = vmatmul.mubr.f32.gmra.mrb[0].mxu0 %v2976
    %v3196 = vpop.f32.mrb[0].mxu0
    %v3197 = vadd.f32 %v2948, %v3196
    %v3198 = vpop.f32.mrb[0].mxu0
    %v3199 = vadd.f32 %v2952, %v3198
    %3200 = vmatprep.mubr.f32.mxu0 0.0
    %3201 = vmatmul.mubr.f32.gmra.mrb[0].mxu0 %v2979
    %v3202 = vpop.f32.mrb[0].mxu0
    %v3203 = vadd.f32 %v2948, %v3202
    %v3204 = vpop.f32.mrb[0].mxu0
    %v3205 = vadd.f32 %v2952, %v3204
    %3206 = vdwg.mxu0
    %v3207 = vld [vmem:[#allocation6 + $0x240] sm:$0xff]
    %v3208 = vld [vmem:[#allocation6 + $0x248] sm:$0xff]
    %v3209 = vld [vmem:[#allocation6 + $0x250] sm:$0xff]
    %v3210 = vld [vmem:[#allocation6 + $0x258] sm:$0xff]
    %v3211 = vld [vmem:[#allocation6 + $0x260] sm:$0xff]
    %v3212 = vld [vmem:[#allocation6 + $0x268] sm:$0xff]
    %v3213 = vld [vmem:[#allocation6 + $0x270] sm:$0xff]
    %v3214 = vld [vmem:[#allocation6 + $0x278] sm:$0xff]
    %v3215 = vld [vmem:[#allocation6 + $0x280] sm:$0xff]
    %v3216 = vld [vmem:[#allocation6 + $0x288] sm:$0xff]
    %v3217 = vld [vmem:[#allocation6 + $0x290] sm:$0xff]
    %v3218 = vld [vmem:[#allocation6 + $0x298] sm:$0xff]
    %v3219 = vld [vmem:[#allocation6 + $0x2a0] sm:$0xff]
    %v3220 = vld [vmem:[#allocation6 + $0x2a8] sm:$0xff]
    %v3221 = vld [vmem:[#allocation6 + $0x2b0] sm:$0xff]
    %v3222 = vld [vmem:[#allocation6 + $0x2b8] sm:$0xff]
    %v3223 = vld [vmem:[#allocation6 + $0x2c0] sm:$0xff]
    %v3224 = vld [vmem:[#allocation6 + $0x2c8] sm:$0xff]
    %v3225 = vld [vmem:[#allocation6 + $0x2d0] sm:$0xff]
    %v3226 = vld [vmem:[#allocation6 + $0x2d8] sm:$0xff]
    %v3227 = vld [vmem:[#allocation6 + $0x2e0] sm:$0xff]
    %v3228 = vld [vmem:[#allocation6 + $0x2e8] sm:$0xff]
    %v3229 = vld [vmem:[#allocation6 + $0x2f0] sm:$0xff]
    %v3230 = vld [vmem:[#allocation6 + $0x2f8] sm:$0xff]
    %v3231 = vld [vmem:[#allocation6 + $0x300] sm:$0xff]
    %v3232 = vld [vmem:[#allocation6 + $0x308] sm:$0xff]
    %v3233 = vld [vmem:[#allocation6 + $0x310] sm:$0xff]
    %v3234 = vld [vmem:[#allocation6 + $0x318] sm:$0xff]
    %v3235 = vld [vmem:[#allocation6 + $0x320] sm:$0xff]
    %v3236 = vld [vmem:[#allocation6 + $0x328] sm:$0xff]
    %v3237 = vld [vmem:[#allocation6 + $0x330] sm:$0xff]
    %v3238 = vld [vmem:[#allocation6 + $0x338] sm:$0xff]
    %v3239 = vld [vmem:[#allocation6 + $0x340] sm:$0xff]
    %v3240 = vld [vmem:[#allocation6 + $0x348] sm:$0xff]
    %v3241 = vld [vmem:[#allocation6 + $0x350] sm:$0xff]
    %v3242 = vld [vmem:[#allocation6 + $0x358] sm:$0xff]
    %v3243 = vld [vmem:[#allocation6 + $0x360] sm:$0xff]
    %v3244 = vld [vmem:[#allocation6 + $0x368] sm:$0xff]
    %v3245 = vld [vmem:[#allocation6 + $0x370] sm:$0xff]
    %v3246 = vld [vmem:[#allocation6 + $0x378] sm:$0xff]
    %v3247 = vld [vmem:[#allocation6 + $0x380] sm:$0xff]
    %v3248 = vld [vmem:[#allocation6 + $0x388] sm:$0xff]
    %v3249 = vld [vmem:[#allocation6 + $0x390] sm:$0xff]
    %v3250 = vld [vmem:[#allocation6 + $0x398] sm:$0xff]
    %v3251 = vld [vmem:[#allocation6 + $0x3a0] sm:$0xff]
    %v3252 = vld [vmem:[#allocation6 + $0x3a8] sm:$0xff]
    %v3253 = vld [vmem:[#allocation6 + $0x3b0] sm:$0xff]
    %v3254 = vld [vmem:[#allocation6 + $0x3b8] sm:$0xff]
    %v3255 = vld [vmem:[#allocation6 + $0x3c0] sm:$0xff]
    %v3256 = vld [vmem:[#allocation6 + $0x3c8] sm:$0xff]
    %v3257 = vld [vmem:[#allocation6 + $0x3d0] sm:$0xff]
    %v3258 = vld [vmem:[#allocation6 + $0x3d8] sm:$0xff]
    %v3259 = vld [vmem:[#allocation6 + $0x3e0] sm:$0xff]
    %v3260 = vld [vmem:[#allocation6 + $0x3e8] sm:$0xff]
    %v3261 = vld [vmem:[#allocation6 + $0x3f0] sm:$0xff]
    %v3262 = vld [vmem:[#allocation6 + $0x3f8] sm:$0xff]
    %v3263 = vld [vmem:[#allocation6 + $0x400] sm:$0xff]
    %v3264 = vld [vmem:[#allocation6 + $0x408] sm:$0xff]
    %v3265 = vld [vmem:[#allocation6 + $0x410] sm:$0xff]
    %v3266 = vld [vmem:[#allocation6 + $0x418] sm:$0xff]
    %v3267 = vld [vmem:[#allocation6 + $0x420] sm:$0xff]
    %v3268 = vld [vmem:[#allocation6 + $0x428] sm:$0xff]
    %v3269 = vld [vmem:[#allocation6 + $0x430] sm:$0xff]
    %v3270 = vld [vmem:[#allocation6 + $0x438] sm:$0xff]
    %3271 = vst [vmem:[#allocation4] sm:$0xff] %v3048
    %3272 = vst [vmem:[#allocation4 + $0x8] sm:$0xff] %v3050
    %3273 = vst [vmem:[#allocation4 + $0x10] sm:$0xff] %v3161
    %3274 = vst [vmem:[#allocation4 + $0x18] sm:$0xff] %v3163
    %3275 = vst [vmem:[#allocation4 + $0x20] sm:$0xff] %v3054
    %3276 = vst [vmem:[#allocation4 + $0x28] sm:$0xff] %v3056
    %3277 = vst [vmem:[#allocation4 + $0x30] sm:$0xff] %v3167
    %3278 = vst [vmem:[#allocation4 + $0x38] sm:$0xff] %v3169
    %3279 = vst [vmem:[#allocation4 + $0x40] sm:$0xff] %v3060
    %3280 = vst [vmem:[#allocation4 + $0x48] sm:$0xff] %v3062
    %3281 = vst [vmem:[#allocation4 + $0x50] sm:$0xff] %v3173
    %3282 = vst [vmem:[#allocation4 + $0x58] sm:$0xff] %v3175
    %3283 = vst [vmem:[#allocation4 + $0x60] sm:$0xff] %v3066
    %3284 = vst [vmem:[#allocation4 + $0x68] sm:$0xff] %v3068
    %3285 = vst [vmem:[#allocation4 + $0x70] sm:$0xff] %v3179
    %3286 = vst [vmem:[#allocation4 + $0x78] sm:$0xff] %v3181
    %3287 = vst [vmem:[#allocation4 + $0x80] sm:$0xff] %v3072
    %3288 = vst [vmem:[#allocation4 + $0x88] sm:$0xff] %v3074
    %3289 = vst [vmem:[#allocation4 + $0x90] sm:$0xff] %v3185
    %3290 = vst [vmem:[#allocation4 + $0x98] sm:$0xff] %v3187
    %3291 = vst [vmem:[#allocation4 + $0xa0] sm:$0xff] %v3078
    %3292 = vst [vmem:[#allocation4 + $0xa8] sm:$0xff] %v3080
    %3293 = vst [vmem:[#allocation4 + $0xb0] sm:$0xff] %v3191
    %3294 = vst [vmem:[#allocation4 + $0xb8] sm:$0xff] %v3193
    %3295 = vst [vmem:[#allocation4 + $0xc0] sm:$0xff] %v3084
    %3296 = vst [vmem:[#allocation4 + $0xc8] sm:$0xff] %v3086
    %3297 = vst [vmem:[#allocation4 + $0xd0] sm:$0xff] %v3197
    %3298 = vst [vmem:[#allocation4 + $0xd8] sm:$0xff] %v3199
    %3299 = vst [vmem:[#allocation4 + $0xe0] sm:$0xff] %v3090
    %3300 = vst [vmem:[#allocation4 + $0xe8] sm:$0xff] %v3092
    %3301 = vst [vmem:[#allocation4 + $0xf0] sm:$0xff] %v3203
    %3302 = vst [vmem:[#allocation4 + $0xf8] sm:$0xff] %v3205
    %v3303 = vld [vmem:[#allocation4] sm:$0xff]
    %v3304 = vld [vmem:[#allocation4 + $0x8] sm:$0xff]
    %v3305 = vld [vmem:[#allocation4 + $0x10] sm:$0xff]
    %v3306 = vld [vmem:[#allocation4 + $0x18] sm:$0xff]
    %3307 = vmatprep.subr.mxu0 %v3208
    %3308 = vmatpush1.msra.mxu0 %v3207
    %3309 = vmatprep.subr.mxu0 %v3212
    %3310 = vmatpush1.msra.mxu0 %v3211
    %3311 = vmatprep.subr.mxu0 %v3216
    %3312 = vmatpush1.msra.mxu0 %v3215
    %3313 = vmatprep.subr.mxu0 %v3220
    %3314 = vmatpush1.msra.mxu0 %v3219
    %3315 = vmatprep.subr.mxu0 %v3224
    %3316 = vmatpush1.msra.mxu0 %v3223
    %3317 = vmatprep.subr.mxu0 %v3228
    %3318 = vmatpush1.msra.mxu0 %v3227
    %3319 = vmatprep.subr.mxu0 %v3232
    %3320 = vmatpush1.msra.mxu0 %v3231
    %3321 = vmatprep.subr.mxu0 %v3236
    %3322 = vmatpush1.msra.mxu0 %v3235
    %3323 = vmatprep.subr.mxu0 %v3240
    %3324 = vmatpush1.msra.mxu0 %v3239
    %3325 = vmatprep.subr.mxu0 %v3244
    %3326 = vmatpush1.msra.mxu0 %v3243
    %3327 = vmatprep.subr.mxu0 %v3248
    %3328 = vmatpush1.msra.mxu0 %v3247
    %3329 = vmatprep.subr.mxu0 %v3252
    %3330 = vmatpush1.msra.mxu0 %v3251
    %3331 = vmatprep.subr.mxu0 %v3256
    %3332 = vmatpush1.msra.mxu0 %v3255
    %3333 = vmatprep.subr.mxu0 %v3260
    %3334 = vmatpush1.msra.mxu0 %v3259
    %3335 = vmatprep.subr.mxu0 %v3264
    %3336 = vmatpush1.msra.mxu0 %v3263
    %3337 = vmatprep.subr.mxu0 %v3268
    %3338 = vmatpush1.msra.mxu0 %v3267
    %3339 = vmatprep.subr.mxu0 0.0
    %3340 = vmatpush1.msra.mxu0 0.0
    %3341 = vmatprep.subr.mxu0 0.0
    %3342 = vmatpush1.msra.mxu0 0.0
    %3343 = vmatprep.subr.mxu0 0.0
    %3344 = vmatpush1.msra.mxu0 0.0
    %3345 = vmatprep.subr.mxu0 0.0
    %3346 = vmatpush1.msra.mxu0 0.0
    %3347 = vmatprep.subr.mxu0 0.0
    %3348 = vmatpush1.msra.mxu0 0.0
    %3349 = vmatprep.subr.mxu0 0.0
    %3350 = vmatpush1.msra.mxu0 0.0
    %3351 = vmatprep.subr.mxu0 0.0
    %3352 = vmatpush1.msra.mxu0 0.0
    %3353 = vmatprep.subr.mxu0 0.0
    %3354 = vmatpush1.msra.mxu0 0.0
    %3355 = vmatprep.subr.mxu0 0.0
    %3356 = vmatpush1.msra.mxu0 0.0
    %3357 = vmatprep.subr.mxu0 0.0
    %3358 = vmatpush1.msra.mxu0 0.0
    %3359 = vmatprep.subr.mxu0 0.0
    %3360 = vmatpush1.msra.mxu0 0.0
    %3361 = vmatprep.subr.mxu0 0.0
    %3362 = vmatpush1.msra.mxu0 0.0
    %3363 = vmatprep.subr.mxu0 0.0
    %3364 = vmatpush1.msra.mxu0 0.0
    %3365 = vmatprep.subr.mxu0 0.0
    %3366 = vmatpush1.msra.mxu0 0.0
    %3367 = vmatprep.subr.mxu0 0.0
    %3368 = vmatpush1.msra.mxu0 0.0
    %3369 = vmatprep.subr.mxu0 0.0
    %3370 = vmatpush1.msra.mxu0 0.0
    %3371 = vmatprep.mubr.f32.mxu0 0.0
    %3372 = vmatmul.mubr.f32.gmra.mrb[0].mxu0 0.0
    %v3373 = vpop.f32.mrb[0].mxu0
    %v3374 = vadd.f32 0.0, %v3373
    %v3375 = vpop.f32.mrb[0].mxu0
    %v3376 = vadd.f32 0.0, %v3375
    %3377 = vdwg.mxu0
    %3378 = vmatprep.subr.mxu0 %v3210
    %3379 = vmatpush1.msra.mxu0 %v3209
    %3380 = vmatprep.subr.mxu0 %v3214
    %3381 = vmatpush1.msra.mxu0 %v3213
    %3382 = vmatprep.subr.mxu0 %v3218
    %3383 = vmatpush1.msra.mxu0 %v3217
    %3384 = vmatprep.subr.mxu0 %v3222
    %3385 = vmatpush1.msra.mxu0 %v3221
    %3386 = vmatprep.subr.mxu0 %v3226
    %3387 = vmatpush1.msra.mxu0 %v3225
    %3388 = vmatprep.subr.mxu0 %v3230
    %3389 = vmatpush1.msra.mxu0 %v3229
    %3390 = vmatprep.subr.mxu0 %v3234
    %3391 = vmatpush1.msra.mxu0 %v3233
    %3392 = vmatprep.subr.mxu0 %v3238
    %3393 = vmatpush1.msra.mxu0 %v3237
    %3394 = vmatprep.subr.mxu0 %v3242
    %3395 = vmatpush1.msra.mxu0 %v3241
    %3396 = vmatprep.subr.mxu0 %v3246
    %3397 = vmatpush1.msra.mxu0 %v3245
    %3398 = vmatprep.subr.mxu0 %v3250
    %3399 = vmatpush1.msra.mxu0 %v3249
    %3400 = vmatprep.subr.mxu0 %v3254
    %3401 = vmatpush1.msra.mxu0 %v3253
    %3402 = vmatprep.subr.mxu0 %v3258
    %3403 = vmatpush1.msra.mxu0 %v3257
    %3404 = vmatprep.subr.mxu0 %v3262
    %3405 = vmatpush1.msra.mxu0 %v3261
    %3406 = vmatprep.subr.mxu0 %v3266
    %3407 = vmatpush1.msra.mxu0 %v3265
    %3408 = vmatprep.subr.mxu0 %v3270
    %3409 = vmatpush1.msra.mxu0 %v3269
    %3410 = vmatprep.subr.mxu0 0.0
    %3411 = vmatpush1.msra.mxu0 0.0
    %3412 = vmatprep.subr.mxu0 0.0
    %3413 = vmatpush1.msra.mxu0 0.0
    %3414 = vmatprep.subr.mxu0 0.0
    %3415 = vmatpush1.msra.mxu0 0.0
    %3416 = vmatprep.subr.mxu0 0.0
    %3417 = vmatpush1.msra.mxu0 0.0
    %3418 = vmatprep.subr.mxu0 0.0
    %3419 = vmatpush1.msra.mxu0 0.0
    %3420 = vmatprep.subr.mxu0 0.0
    %3421 = vmatpush1.msra.mxu0 0.0
    %3422 = vmatprep.subr.mxu0 0.0
    %3423 = vmatpush1.msra.mxu0 0.0
    %3424 = vmatprep.subr.mxu0 0.0
    %3425 = vmatpush1.msra.mxu0 0.0
    %3426 = vmatprep.subr.mxu0 0.0
    %3427 = vmatpush1.msra.mxu0 0.0
    %3428 = vmatprep.subr.mxu0 0.0
    %3429 = vmatpush1.msra.mxu0 0.0
    %3430 = vmatprep.subr.mxu0 0.0
    %3431 = vmatpush1.msra.mxu0 0.0
    %3432 = vmatprep.subr.mxu0 0.0
    %3433 = vmatpush1.msra.mxu0 0.0
    %3434 = vmatprep.subr.mxu0 0.0
    %3435 = vmatpush1.msra.mxu0 0.0
    %3436 = vmatprep.subr.mxu0 0.0
    %3437 = vmatpush1.msra.mxu0 0.0
    %3438 = vmatprep.subr.mxu0 0.0
    %3439 = vmatpush1.msra.mxu0 0.0
    %3440 = vmatprep.subr.mxu0 0.0
    %3441 = vmatpush1.msra.mxu0 0.0
    %3442 = vmatprep.mubr.f32.mxu0 0.0
    %3443 = vmatmul.mubr.f32.gmra.mrb[0].mxu0 0.0
    %v3444 = vpop.f32.mrb[0].mxu0
    %v3445 = vadd.f32 0.0, %v3444
    %v3446 = vpop.f32.mrb[0].mxu0
    %v3447 = vadd.f32 0.0, %v3446
    %3448 = vdwg.mxu0
    %v3449 = vadd.f32 %v3303, %v3374
    %v3450 = vadd.f32 %v3304, %v3376
    %v3451 = vadd.f32 %v3305, %v3445
    %v3452 = vadd.f32 %v3306, %v3447
    %v3453 = vxor.u32 %v3449, 2147483648
    %v3454 = vxor.u32 %v3450, 2147483648
    %v3455 = vxor.u32 %v3451, 2147483648
    %v3456 = vmul.f32 %v3453, 1.442695
    %v3457 = vpow.pop %v3456
    %v3458 = vmul.f32 %v3454, 1.442695
    %v3459 = vpow.pop %v3458
    %v3460 = vmul.f32 %v3455, 1.442695
    %v3461 = vpow.pop %v3460
    %v3462 = vadd.f32 %v3457, 1.0
    %v3463 = vadd.f32 %v3459, 1.0
    %v3464 = vadd.f32 %v3461, 1.0
    %v3465 = vrcp.pop %v3462
    %v3466 = vmul.f32 1.0, %v3465
    %v3467 = vrcp.pop %v3463
    %v3468 = vmul.f32 1.0, %v3467
    %v3469 = vrcp.pop %v3464
    %v3470 = vmul.f32 1.0, %v3469
    %v3471 = vtanh.pop %v3452
    %v3472 = vmul.f32 %v3468, 0.0
    %v3473 = vmul.f32 %v3466, %v3471
    %v3474 = vadd.f32 %v3472, %v3473
    %v3475 = vtanh.pop %v3474
    %v3476 = vmul.f32 %v3470, %v3475
    %3477 = vst [vmem:[#allocation5] sm:$0xff] %v3476
    %v3478 = vld [vmem:[#allocation4 + $0x20] sm:$0xff]
    %v3479 = vld [vmem:[#allocation4 + $0x28] sm:$0xff]
    %v3480 = vld [vmem:[#allocation4 + $0x30] sm:$0xff]
    %v3481 = vld [vmem:[#allocation4 + $0x38] sm:$0xff]
    %3482 = vmatprep.subr.mxu0 %v3208
    %3483 = vmatpush1.msra.mxu0 %v3207
    %3484 = vmatprep.subr.mxu0 %v3212
    %3485 = vmatpush1.msra.mxu0 %v3211
    %3486 = vmatprep.subr.mxu0 %v3216
    %3487 = vmatpush1.msra.mxu0 %v3215
    %3488 = vmatprep.subr.mxu0 %v3220
    %3489 = vmatpush1.msra.mxu0 %v3219
    %3490 = vmatprep.subr.mxu0 %v3224
    %3491 = vmatpush1.msra.mxu0 %v3223
    %3492 = vmatprep.subr.mxu0 %v3228
    %3493 = vmatpush1.msra.mxu0 %v3227
    %3494 = vmatprep.subr.mxu0 %v3232
    %3495 = vmatpush1.msra.mxu0 %v3231
    %3496 = vmatprep.subr.mxu0 %v3236
    %3497 = vmatpush1.msra.mxu0 %v3235
    %3498 = vmatprep.subr.mxu0 %v3240
    %3499 = vmatpush1.msra.mxu0 %v3239
    %3500 = vmatprep.subr.mxu0 %v3244
    %3501 = vmatpush1.msra.mxu0 %v3243
    %3502 = vmatprep.subr.mxu0 %v3248
    %3503 = vmatpush1.msra.mxu0 %v3247
    %3504 = vmatprep.subr.mxu0 %v3252
    %3505 = vmatpush1.msra.mxu0 %v3251
    %3506 = vmatprep.subr.mxu0 %v3256
    %3507 = vmatpush1.msra.mxu0 %v3255
    %3508 = vmatprep.subr.mxu0 %v3260
    %3509 = vmatpush1.msra.mxu0 %v3259
    %3510 = vmatprep.subr.mxu0 %v3264
    %3511 = vmatpush1.msra.mxu0 %v3263
    %3512 = vmatprep.subr.mxu0 %v3268
    %3513 = vmatpush1.msra.mxu0 %v3267
    %3514 = vmatprep.subr.mxu0 0.0
    %3515 = vmatpush1.msra.mxu0 0.0
    %3516 = vmatprep.subr.mxu0 0.0
    %3517 = vmatpush1.msra.mxu0 0.0
    %3518 = vmatprep.subr.mxu0 0.0
    %3519 = vmatpush1.msra.mxu0 0.0
    %3520 = vmatprep.subr.mxu0 0.0
    %3521 = vmatpush1.msra.mxu0 0.0
    %3522 = vmatprep.subr.mxu0 0.0
    %3523 = vmatpush1.msra.mxu0 0.0
    %3524 = vmatprep.subr.mxu0 0.0
    %3525 = vmatpush1.msra.mxu0 0.0
    %3526 = vmatprep.subr.mxu0 0.0
    %3527 = vmatpush1.msra.mxu0 0.0
    %3528 = vmatprep.subr.mxu0 0.0
    %3529 = vmatpush1.msra.mxu0 0.0
    %3530 = vmatprep.subr.mxu0 0.0
    %3531 = vmatpush1.msra.mxu0 0.0
    %3532 = vmatprep.subr.mxu0 0.0
    %3533 = vmatpush1.msra.mxu0 0.0
    %3534 = vmatprep.subr.mxu0 0.0
    %3535 = vmatpush1.msra.mxu0 0.0
    %3536 = vmatprep.subr.mxu0 0.0
    %3537 = vmatpush1.msra.mxu0 0.0
    %3538 = vmatprep.subr.mxu0 0.0
    %3539 = vmatpush1.msra.mxu0 0.0
    %3540 = vmatprep.subr.mxu0 0.0
    %3541 = vmatpush1.msra.mxu0 0.0
    %3542 = vmatprep.subr.mxu0 0.0
    %3543 = vmatpush1.msra.mxu0 0.0
    %3544 = vmatprep.subr.mxu0 0.0
    %3545 = vmatpush1.msra.mxu0 0.0
    %3546 = vmatprep.mubr.f32.mxu0 0.0
    %3547 = vmatmul.mubr.f32.gmra.mrb[0].mxu0 %v3476
    %v3548 = vpop.f32.mrb[0].mxu0
    %v3549 = vadd.f32 0.0, %v3548
    %v3550 = vpop.f32.mrb[0].mxu0
    %v3551 = vadd.f32 0.0, %v3550
    %3552 = vdwg.mxu0
    %3553 = vmatprep.subr.mxu0 %v3210
    %3554 = vmatpush1.msra.mxu0 %v3209
    %3555 = vmatprep.subr.mxu0 %v3214
    %3556 = vmatpush1.msra.mxu0 %v3213
    %3557 = vmatprep.subr.mxu0 %v3218
    %3558 = vmatpush1.msra.mxu0 %v3217
    %3559 = vmatprep.subr.mxu0 %v3222
    %3560 = vmatpush1.msra.mxu0 %v3221
    %3561 = vmatprep.subr.mxu0 %v3226
    %3562 = vmatpush1.msra.mxu0 %v3225
    %3563 = vmatprep.subr.mxu0 %v3230
    %3564 = vmatpush1.msra.mxu0 %v3229
    %3565 = vmatprep.subr.mxu0 %v3234
    %3566 = vmatpush1.msra.mxu0 %v3233
    %3567 = vmatprep.subr.mxu0 %v3238
    %3568 = vmatpush1.msra.mxu0 %v3237
    %3569 = vmatprep.subr.mxu0 %v3242
    %3570 = vmatpush1.msra.mxu0 %v3241
    %3571 = vmatprep.subr.mxu0 %v3246
    %3572 = vmatpush1.msra.mxu0 %v3245
    %3573 = vmatprep.subr.mxu0 %v3250
    %3574 = vmatpush1.msra.mxu0 %v3249
    %3575 = vmatprep.subr.mxu0 %v3254
    %3576 = vmatpush1.msra.mxu0 %v3253
    %3577 = vmatprep.subr.mxu0 %v3258
    %3578 = vmatpush1.msra.mxu0 %v3257
    %3579 = vmatprep.subr.mxu0 %v3262
    %3580 = vmatpush1.msra.mxu0 %v3261
    %3581 = vmatprep.subr.mxu0 %v3266
    %3582 = vmatpush1.msra.mxu0 %v3265
    %3583 = vmatprep.subr.mxu0 %v3270
    %3584 = vmatpush1.msra.mxu0 %v3269
    %3585 = vmatprep.subr.mxu0 0.0
    %3586 = vmatpush1.msra.mxu0 0.0
    %3587 = vmatprep.subr.mxu0 0.0
    %3588 = vmatpush1.msra.mxu0 0.0
    %3589 = vmatprep.subr.mxu0 0.0
    %3590 = vmatpush1.msra.mxu0 0.0
    %3591 = vmatprep.subr.mxu0 0.0
    %3592 = vmatpush1.msra.mxu0 0.0
    %3593 = vmatprep.subr.mxu0 0.0
    %3594 = vmatpush1.msra.mxu0 0.0
    %3595 = vmatprep.subr.mxu0 0.0
    %3596 = vmatpush1.msra.mxu0 0.0
    %3597 = vmatprep.subr.mxu0 0.0
    %3598 = vmatpush1.msra.mxu0 0.0
    %3599 = vmatprep.subr.mxu0 0.0
    %3600 = vmatpush1.msra.mxu0 0.0
    %3601 = vmatprep.subr.mxu0 0.0
    %3602 = vmatpush1.msra.mxu0 0.0
    %3603 = vmatprep.subr.mxu0 0.0
    %3604 = vmatpush1.msra.mxu0 0.0
    %3605 = vmatprep.subr.mxu0 0.0
    %3606 = vmatpush1.msra.mxu0 0.0
    %3607 = vmatprep.subr.mxu0 0.0
    %3608 = vmatpush1.msra.mxu0 0.0
    %3609 = vmatprep.subr.mxu0 0.0
    %3610 = vmatpush1.msra.mxu0 0.0
    %3611 = vmatprep.subr.mxu0 0.0
    %3612 = vmatpush1.msra.mxu0 0.0
    %3613 = vmatprep.subr.mxu0 0.0
    %3614 = vmatpush1.msra.mxu0 0.0
    %3615 = vmatprep.subr.mxu0 0.0
    %3616 = vmatpush1.msra.mxu0 0.0
    %3617 = vmatprep.mubr.f32.mxu0 0.0
    %3618 = vmatmul.mubr.f32.gmra.mrb[0].mxu0 %v3476
    %v3619 = vpop.f32.mrb[0].mxu0
    %v3620 = vadd.f32 0.0, %v3619
    %v3621 = vpop.f32.mrb[0].mxu0
    %v3622 = vadd.f32 0.0, %v3621
    %3623 = vdwg.mxu0
    %v3624 = vadd.f32 %v3478, %v3549
    %v3625 = vadd.f32 %v3479, %v3551
    %v3626 = vadd.f32 %v3480, %v3620
    %v3627 = vadd.f32 %v3481, %v3622
    %v3628 = vxor.u32 %v3624, 2147483648
    %v3629 = vxor.u32 %v3625, 2147483648
    %v3630 = vxor.u32 %v3626, 2147483648
    %v3631 = vmul.f32 %v3628, 1.442695
    %v3632 = vpow.pop %v3631
    %v3633 = vmul.f32 %v3629, 1.442695
    %v3634 = vpow.pop %v3633
    %v3635 = vmul.f32 %v3630, 1.442695
    %v3636 = vpow.pop %v3635
    %v3637 = vadd.f32 %v3632, 1.0
    %v3638 = vadd.f32 %v3634, 1.0
    %v3639 = vadd.f32 %v3636, 1.0
    %v3640 = vrcp.pop %v3637
    %v3641 = vmul.f32 1.0, %v3640
    %v3642 = vrcp.pop %v3638
    %v3643 = vmul.f32 1.0, %v3642
    %v3644 = vrcp.pop %v3639
    %v3645 = vmul.f32 1.0, %v3644
    %v3646 = vtanh.pop %v3627
    %v3647 = vmul.f32 %v3643, %v3474
    %v3648 = vmul.f32 %v3641, %v3646
    %v3649 = vadd.f32 %v3647, %v3648
    %v3650 = vtanh.pop %v3649
    %v3651 = vmul.f32 %v3645, %v3650
    %3652 = vst [vmem:[#allocation5 + $0x8] sm:$0xff] %v3651
    %v3653 = vld [vmem:[#allocation4 + $0x40] sm:$0xff]
    %v3654 = vld [vmem:[#allocation4 + $0x48] sm:$0xff]
    %v3655 = vld [vmem:[#allocation4 + $0x50] sm:$0xff]
    %v3656 = vld [vmem:[#allocation4 + $0x58] sm:$0xff]
    %3657 = vmatprep.subr.mxu0 %v3208
    %3658 = vmatpush1.msra.mxu0 %v3207
    %3659 = vmatprep.subr.mxu0 %v3212
    %3660 = vmatpush1.msra.mxu0 %v3211
    %3661 = vmatprep.subr.mxu0 %v3216
    %3662 = vmatpush1.msra.mxu0 %v3215
    %3663 = vmatprep.subr.mxu0 %v3220
    %3664 = vmatpush1.msra.mxu0 %v3219
    %3665 = vmatprep.subr.mxu0 %v3224
    %3666 = vmatpush1.msra.mxu0 %v3223
    %3667 = vmatprep.subr.mxu0 %v3228
    %3668 = vmatpush1.msra.mxu0 %v3227
    %3669 = vmatprep.subr.mxu0 %v3232
    %3670 = vmatpush1.msra.mxu0 %v3231
    %3671 = vmatprep.subr.mxu0 %v3236
    %3672 = vmatpush1.msra.mxu0 %v3235
    %3673 = vmatprep.subr.mxu0 %v3240
    %3674 = vmatpush1.msra.mxu0 %v3239
    %3675 = vmatprep.subr.mxu0 %v3244
    %3676 = vmatpush1.msra.mxu0 %v3243
    %3677 = vmatprep.subr.mxu0 %v3248
    %3678 = vmatpush1.msra.mxu0 %v3247
    %3679 = vmatprep.subr.mxu0 %v3252
    %3680 = vmatpush1.msra.mxu0 %v3251
    %3681 = vmatprep.subr.mxu0 %v3256
    %3682 = vmatpush1.msra.mxu0 %v3255
    %3683 = vmatprep.subr.mxu0 %v3260
    %3684 = vmatpush1.msra.mxu0 %v3259
    %3685 = vmatprep.subr.mxu0 %v3264
    %3686 = vmatpush1.msra.mxu0 %v3263
    %3687 = vmatprep.subr.mxu0 %v3268
    %3688 = vmatpush1.msra.mxu0 %v3267
    %3689 = vmatprep.subr.mxu0 0.0
    %3690 = vmatpush1.msra.mxu0 0.0
    %3691 = vmatprep.subr.mxu0 0.0
    %3692 = vmatpush1.msra.mxu0 0.0
    %3693 = vmatprep.subr.mxu0 0.0
    %3694 = vmatpush1.msra.mxu0 0.0
    %3695 = vmatprep.subr.mxu0 0.0
    %3696 = vmatpush1.msra.mxu0 0.0
    %3697 = vmatprep.subr.mxu0 0.0
    %3698 = vmatpush1.msra.mxu0 0.0
    %3699 = vmatprep.subr.mxu0 0.0
    %3700 = vmatpush1.msra.mxu0 0.0
    %3701 = vmatprep.subr.mxu0 0.0
    %3702 = vmatpush1.msra.mxu0 0.0
    %3703 = vmatprep.subr.mxu0 0.0
    %3704 = vmatpush1.msra.mxu0 0.0
    %3705 = vmatprep.subr.mxu0 0.0
    %3706 = vmatpush1.msra.mxu0 0.0
    %3707 = vmatprep.subr.mxu0 0.0
    %3708 = vmatpush1.msra.mxu0 0.0
    %3709 = vmatprep.subr.mxu0 0.0
    %3710 = vmatpush1.msra.mxu0 0.0
    %3711 = vmatprep.subr.mxu0 0.0
    %3712 = vmatpush1.msra.mxu0 0.0
    %3713 = vmatprep.subr.mxu0 0.0
    %3714 = vmatpush1.msra.mxu0 0.0
    %3715 = vmatprep.subr.mxu0 0.0
    %3716 = vmatpush1.msra.mxu0 0.0
    %3717 = vmatprep.subr.mxu0 0.0
    %3718 = vmatpush1.msra.mxu0 0.0
    %3719 = vmatprep.subr.mxu0 0.0
    %3720 = vmatpush1.msra.mxu0 0.0
    %3721 = vmatprep.mubr.f32.mxu0 0.0
    %3722 = vmatmul.mubr.f32.gmra.mrb[0].mxu0 %v3651
    %v3723 = vpop.f32.mrb[0].mxu0
    %v3724 = vadd.f32 0.0, %v3723
    %v3725 = vpop.f32.mrb[0].mxu0
    %v3726 = vadd.f32 0.0, %v3725
    %3727 = vdwg.mxu0
    %3728 = vmatprep.subr.mxu0 %v3210
    %3729 = vmatpush1.msra.mxu0 %v3209
    %3730 = vmatprep.subr.mxu0 %v3214
    %3731 = vmatpush1.msra.mxu0 %v3213
    %3732 = vmatprep.subr.mxu0 %v3218
    %3733 = vmatpush1.msra.mxu0 %v3217
    %3734 = vmatprep.subr.mxu0 %v3222
    %3735 = vmatpush1.msra.mxu0 %v3221
    %3736 = vmatprep.subr.mxu0 %v3226
    %3737 = vmatpush1.msra.mxu0 %v3225
    %3738 = vmatprep.subr.mxu0 %v3230
    %3739 = vmatpush1.msra.mxu0 %v3229
    %3740 = vmatprep.subr.mxu0 %v3234
    %3741 = vmatpush1.msra.mxu0 %v3233
    %3742 = vmatprep.subr.mxu0 %v3238
    %3743 = vmatpush1.msra.mxu0 %v3237
    %3744 = vmatprep.subr.mxu0 %v3242
    %3745 = vmatpush1.msra.mxu0 %v3241
    %3746 = vmatprep.subr.mxu0 %v3246
    %3747 = vmatpush1.msra.mxu0 %v3245
    %3748 = vmatprep.subr.mxu0 %v3250
    %3749 = vmatpush1.msra.mxu0 %v3249
    %3750 = vmatprep.subr.mxu0 %v3254
    %3751 = vmatpush1.msra.mxu0 %v3253
    %3752 = vmatprep.subr.mxu0 %v3258
    %3753 = vmatpush1.msra.mxu0 %v3257
    %3754 = vmatprep.subr.mxu0 %v3262
    %3755 = vmatpush1.msra.mxu0 %v3261
    %3756 = vmatprep.subr.mxu0 %v3266
    %3757 = vmatpush1.msra.mxu0 %v3265
    %3758 = vmatprep.subr.mxu0 %v3270
    %3759 = vmatpush1.msra.mxu0 %v3269
    %3760 = vmatprep.subr.mxu0 0.0
    %3761 = vmatpush1.msra.mxu0 0.0
    %3762 = vmatprep.subr.mxu0 0.0
    %3763 = vmatpush1.msra.mxu0 0.0
    %3764 = vmatprep.subr.mxu0 0.0
    %3765 = vmatpush1.msra.mxu0 0.0
    %3766 = vmatprep.subr.mxu0 0.0
    %3767 = vmatpush1.msra.mxu0 0.0
    %3768 = vmatprep.subr.mxu0 0.0
    %3769 = vmatpush1.msra.mxu0 0.0
    %3770 = vmatprep.subr.mxu0 0.0
    %3771 = vmatpush1.msra.mxu0 0.0
    %3772 = vmatprep.subr.mxu0 0.0
    %3773 = vmatpush1.msra.mxu0 0.0
    %3774 = vmatprep.subr.mxu0 0.0
    %3775 = vmatpush1.msra.mxu0 0.0
    %3776 = vmatprep.subr.mxu0 0.0
    %3777 = vmatpush1.msra.mxu0 0.0
    %3778 = vmatprep.subr.mxu0 0.0
    %3779 = vmatpush1.msra.mxu0 0.0
    %3780 = vmatprep.subr.mxu0 0.0
    %3781 = vmatpush1.msra.mxu0 0.0
    %3782 = vmatprep.subr.mxu0 0.0
    %3783 = vmatpush1.msra.mxu0 0.0
    %3784 = vmatprep.subr.mxu0 0.0
    %3785 = vmatpush1.msra.mxu0 0.0
    %3786 = vmatprep.subr.mxu0 0.0
    %3787 = vmatpush1.msra.mxu0 0.0
    %3788 = vmatprep.subr.mxu0 0.0
    %3789 = vmatpush1.msra.mxu0 0.0
    %3790 = vmatprep.subr.mxu0 0.0
    %3791 = vmatpush1.msra.mxu0 0.0
    %3792 = vmatprep.mubr.f32.mxu0 0.0
    %3793 = vmatmul.mubr.f32.gmra.mrb[0].mxu0 %v3651
    %v3794 = vpop.f32.mrb[0].mxu0
    %v3795 = vadd.f32 0.0, %v3794
    %v3796 = vpop.f32.mrb[0].mxu0
    %v3797 = vadd.f32 0.0, %v3796
    %3798 = vdwg.mxu0
    %v3799 = vadd.f32 %v3653, %v3724
    %v3800 = vadd.f32 %v3654, %v3726
    %v3801 = vadd.f32 %v3655, %v3795
    %v3802 = vadd.f32 %v3656, %v3797
    %v3803 = vxor.u32 %v3799, 2147483648
    %v3804 = vxor.u32 %v3800, 2147483648
    %v3805 = vxor.u32 %v3801, 2147483648
    %v3806 = vmul.f32 %v3803, 1.442695
    %v3807 = vpow.pop %v3806
    %v3808 = vmul.f32 %v3804, 1.442695
    %v3809 = vpow.pop %v3808
    %v3810 = vmul.f32 %v3805, 1.442695
    %v3811 = vpow.pop %v3810
    %v3812 = vadd.f32 %v3807, 1.0
    %v3813 = vadd.f32 %v3809, 1.0
    %v3814 = vadd.f32 %v3811, 1.0
    %v3815 = vrcp.pop %v3812
    %v3816 = vmul.f32 1.0, %v3815
    %v3817 = vrcp.pop %v3813
    %v3818 = vmul.f32 1.0, %v3817
    %v3819 = vrcp.pop %v3814
    %v3820 = vmul.f32 1.0, %v3819
    %v3821 = vtanh.pop %v3802
    %v3822 = vmul.f32 %v3818, %v3649
    %v3823 = vmul.f32 %v3816, %v3821
    %v3824 = vadd.f32 %v3822, %v3823
    %v3825 = vtanh.pop %v3824
    %v3826 = vmul.f32 %v3820, %v3825
    %3827 = vst [vmem:[#allocation5 + $0x10] sm:$0xff] %v3826
    %v3828 = vld [vmem:[#allocation4 + $0x60] sm:$0xff]
    %v3829 = vld [vmem:[#allocation4 + $0x68] sm:$0xff]
    %v3830 = vld [vmem:[#allocation4 + $0x70] sm:$0xff]
    %v3831 = vld [vmem:[#allocation4 + $0x78] sm:$0xff]
    %3832 = vmatprep.subr.mxu0 %v3208
    %3833 = vmatpush1.msra.mxu0 %v3207
    %3834 = vmatprep.subr.mxu0 %v3212
    %3835 = vmatpush1.msra.mxu0 %v3211
    %3836 = vmatprep.subr.mxu0 %v3216
    %3837 = vmatpush1.msra.mxu0 %v3215
    %3838 = vmatprep.subr.mxu0 %v3220
    %3839 = vmatpush1.msra.mxu0 %v3219
    %3840 = vmatprep.subr.mxu0 %v3224
    %3841 = vmatpush1.msra.mxu0 %v3223
    %3842 = vmatprep.subr.mxu0 %v3228
    %3843 = vmatpush1.msra.mxu0 %v3227
    %3844 = vmatprep.subr.mxu0 %v3232
    %3845 = vmatpush1.msra.mxu0 %v3231
    %3846 = vmatprep.subr.mxu0 %v3236
    %3847 = vmatpush1.msra.mxu0 %v3235
    %3848 = vmatprep.subr.mxu0 %v3240
    %3849 = vmatpush1.msra.mxu0 %v3239
    %3850 = vmatprep.subr.mxu0 %v3244
    %3851 = vmatpush1.msra.mxu0 %v3243
    %3852 = vmatprep.subr.mxu0 %v3248
    %3853 = vmatpush1.msra.mxu0 %v3247
    %3854 = vmatprep.subr.mxu0 %v3252
    %3855 = vmatpush1.msra.mxu0 %v3251
    %3856 = vmatprep.subr.mxu0 %v3256
    %3857 = vmatpush1.msra.mxu0 %v3255
    %3858 = vmatprep.subr.mxu0 %v3260
    %3859 = vmatpush1.msra.mxu0 %v3259
    %3860 = vmatprep.subr.mxu0 %v3264
    %3861 = vmatpush1.msra.mxu0 %v3263
    %3862 = vmatprep.subr.mxu0 %v3268
    %3863 = vmatpush1.msra.mxu0 %v3267
    %3864 = vmatprep.subr.mxu0 0.0
    %3865 = vmatpush1.msra.mxu0 0.0
    %3866 = vmatprep.subr.mxu0 0.0
    %3867 = vmatpush1.msra.mxu0 0.0
    %3868 = vmatprep.subr.mxu0 0.0
    %3869 = vmatpush1.msra.mxu0 0.0
    %3870 = vmatprep.subr.mxu0 0.0
    %3871 = vmatpush1.msra.mxu0 0.0
    %3872 = vmatprep.subr.mxu0 0.0
    %3873 = vmatpush1.msra.mxu0 0.0
    %3874 = vmatprep.subr.mxu0 0.0
    %3875 = vmatpush1.msra.mxu0 0.0
    %3876 = vmatprep.subr.mxu0 0.0
    %3877 = vmatpush1.msra.mxu0 0.0
    %3878 = vmatprep.subr.mxu0 0.0
    %3879 = vmatpush1.msra.mxu0 0.0
    %3880 = vmatprep.subr.mxu0 0.0
    %3881 = vmatpush1.msra.mxu0 0.0
    %3882 = vmatprep.subr.mxu0 0.0
    %3883 = vmatpush1.msra.mxu0 0.0
    %3884 = vmatprep.subr.mxu0 0.0
    %3885 = vmatpush1.msra.mxu0 0.0
    %3886 = vmatprep.subr.mxu0 0.0
    %3887 = vmatpush1.msra.mxu0 0.0
    %3888 = vmatprep.subr.mxu0 0.0
    %3889 = vmatpush1.msra.mxu0 0.0
    %3890 = vmatprep.subr.mxu0 0.0
    %3891 = vmatpush1.msra.mxu0 0.0
    %3892 = vmatprep.subr.mxu0 0.0
    %3893 = vmatpush1.msra.mxu0 0.0
    %3894 = vmatprep.subr.mxu0 0.0
    %3895 = vmatpush1.msra.mxu0 0.0
    %3896 = vmatprep.mubr.f32.mxu0 0.0
    %3897 = vmatmul.mubr.f32.gmra.mrb[0].mxu0 %v3826
    %v3898 = vpop.f32.mrb[0].mxu0
    %v3899 = vadd.f32 0.0, %v3898
    %v3900 = vpop.f32.mrb[0].mxu0
    %v3901 = vadd.f32 0.0, %v3900
    %3902 = vdwg.mxu0
    %3903 = vmatprep.subr.mxu0 %v3210
    %3904 = vmatpush1.msra.mxu0 %v3209
    %3905 = vmatprep.subr.mxu0 %v3214
    %3906 = vmatpush1.msra.mxu0 %v3213
    %3907 = vmatprep.subr.mxu0 %v3218
    %3908 = vmatpush1.msra.mxu0 %v3217
    %3909 = vmatprep.subr.mxu0 %v3222
    %3910 = vmatpush1.msra.mxu0 %v3221
    %3911 = vmatprep.subr.mxu0 %v3226
    %3912 = vmatpush1.msra.mxu0 %v3225
    %3913 = vmatprep.subr.mxu0 %v3230
    %3914 = vmatpush1.msra.mxu0 %v3229
    %3915 = vmatprep.subr.mxu0 %v3234
    %3916 = vmatpush1.msra.mxu0 %v3233
    %3917 = vmatprep.subr.mxu0 %v3238
    %3918 = vmatpush1.msra.mxu0 %v3237
    %3919 = vmatprep.subr.mxu0 %v3242
    %3920 = vmatpush1.msra.mxu0 %v3241
    %3921 = vmatprep.subr.mxu0 %v3246
    %3922 = vmatpush1.msra.mxu0 %v3245
    %3923 = vmatprep.subr.mxu0 %v3250
    %3924 = vmatpush1.msra.mxu0 %v3249
    %3925 = vmatprep.subr.mxu0 %v3254
    %3926 = vmatpush1.msra.mxu0 %v3253
    %3927 = vmatprep.subr.mxu0 %v3258
    %3928 = vmatpush1.msra.mxu0 %v3257
    %3929 = vmatprep.subr.mxu0 %v3262
    %3930 = vmatpush1.msra.mxu0 %v3261
    %3931 = vmatprep.subr.mxu0 %v3266
    %3932 = vmatpush1.msra.mxu0 %v3265
    %3933 = vmatprep.subr.mxu0 %v3270
    %3934 = vmatpush1.msra.mxu0 %v3269
    %3935 = vmatprep.subr.mxu0 0.0
    %3936 = vmatpush1.msra.mxu0 0.0
    %3937 = vmatprep.subr.mxu0 0.0
    %3938 = vmatpush1.msra.mxu0 0.0
    %3939 = vmatprep.subr.mxu0 0.0
    %3940 = vmatpush1.msra.mxu0 0.0
    %3941 = vmatprep.subr.mxu0 0.0
    %3942 = vmatpush1.msra.mxu0 0.0
    %3943 = vmatprep.subr.mxu0 0.0
    %3944 = vmatpush1.msra.mxu0 0.0
    %3945 = vmatprep.subr.mxu0 0.0
    %3946 = vmatpush1.msra.mxu0 0.0
    %3947 = vmatprep.subr.mxu0 0.0
    %3948 = vmatpush1.msra.mxu0 0.0
    %3949 = vmatprep.subr.mxu0 0.0
    %3950 = vmatpush1.msra.mxu0 0.0
    %3951 = vmatprep.subr.mxu0 0.0
    %3952 = vmatpush1.msra.mxu0 0.0
    %3953 = vmatprep.subr.mxu0 0.0
    %3954 = vmatpush1.msra.mxu0 0.0
    %3955 = vmatprep.subr.mxu0 0.0
    %3956 = vmatpush1.msra.mxu0 0.0
    %3957 = vmatprep.subr.mxu0 0.0
    %3958 = vmatpush1.msra.mxu0 0.0
    %3959 = vmatprep.subr.mxu0 0.0
    %3960 = vmatpush1.msra.mxu0 0.0
    %3961 = vmatprep.subr.mxu0 0.0
    %3962 = vmatpush1.msra.mxu0 0.0
    %3963 = vmatprep.subr.mxu0 0.0
    %3964 = vmatpush1.msra.mxu0 0.0
    %3965 = vmatprep.subr.mxu0 0.0
    %3966 = vmatpush1.msra.mxu0 0.0
    %3967 = vmatprep.mubr.f32.mxu0 0.0
    %3968 = vmatmul.mubr.f32.gmra.mrb[0].mxu0 %v3826
    %v3969 = vpop.f32.mrb[0].mxu0
    %v3970 = vadd.f32 0.0, %v3969
    %v3971 = vpop.f32.mrb[0].mxu0
    %v3972 = vadd.f32 0.0, %v3971
    %3973 = vdwg.mxu0
    %v3974 = vadd.f32 %v3828, %v3899
    %v3975 = vadd.f32 %v3829, %v3901
    %v3976 = vadd.f32 %v3830, %v3970
    %v3977 = vadd.f32 %v3831, %v3972
    %v3978 = vxor.u32 %v3974, 2147483648
    %v3979 = vxor.u32 %v3975, 2147483648
    %v3980 = vxor.u32 %v3976, 2147483648
    %v3981 = vmul.f32 %v3978, 1.442695
    %v3982 = vpow.pop %v3981
    %v3983 = vmul.f32 %v3979, 1.442695
    %v3984 = vpow.pop %v3983
    %v3985 = vmul.f32 %v3980, 1.442695
    %v3986 = vpow.pop %v3985
    %v3987 = vadd.f32 %v3982, 1.0
    %v3988 = vadd.f32 %v3984, 1.0
    %v3989 = vadd.f32 %v3986, 1.0
    %v3990 = vrcp.pop %v3987
    %v3991 = vmul.f32 1.0, %v3990
    %v3992 = vrcp.pop %v3988
    %v3993 = vmul.f32 1.0, %v3992
    %v3994 = vrcp.pop %v3989
    %v3995 = vmul.f32 1.0, %v3994
    %v3996 = vtanh.pop %v3977
    %v3997 = vmul.f32 %v3993, %v3824
    %v3998 = vmul.f32 %v3991, %v3996
    %v3999 = vadd.f32 %v3997, %v3998
    %v4000 = vtanh.pop %v3999
    %v4001 = vmul.f32 %v3995, %v4000
    %4002 = vst [vmem:[#allocation5 + $0x18] sm:$0xff] %v4001
    %v4003 = vld [vmem:[#allocation4 + $0x80] sm:$0xff]
    %v4004 = vld [vmem:[#allocation4 + $0x88] sm:$0xff]
    %v4005 = vld [vmem:[#allocation4 + $0x90] sm:$0xff]
    %v4006 = vld [vmem:[#allocation4 + $0x98] sm:$0xff]
    %4007 = vmatprep.subr.mxu0 %v3208
    %4008 = vmatpush1.msra.mxu0 %v3207
    %4009 = vmatprep.subr.mxu0 %v3212
    %4010 = vmatpush1.msra.mxu0 %v3211
    %4011 = vmatprep.subr.mxu0 %v3216
    %4012 = vmatpush1.msra.mxu0 %v3215
    %4013 = vmatprep.subr.mxu0 %v3220
    %4014 = vmatpush1.msra.mxu0 %v3219
    %4015 = vmatprep.subr.mxu0 %v3224
    %4016 = vmatpush1.msra.mxu0 %v3223
    %4017 = vmatprep.subr.mxu0 %v3228
    %4018 = vmatpush1.msra.mxu0 %v3227
    %4019 = vmatprep.subr.mxu0 %v3232
    %4020 = vmatpush1.msra.mxu0 %v3231
    %4021 = vmatprep.subr.mxu0 %v3236
    %4022 = vmatpush1.msra.mxu0 %v3235
    %4023 = vmatprep.subr.mxu0 %v3240
    %4024 = vmatpush1.msra.mxu0 %v3239
    %4025 = vmatprep.subr.mxu0 %v3244
    %4026 = vmatpush1.msra.mxu0 %v3243
    %4027 = vmatprep.subr.mxu0 %v3248
    %4028 = vmatpush1.msra.mxu0 %v3247
    %4029 = vmatprep.subr.mxu0 %v3252
    %4030 = vmatpush1.msra.mxu0 %v3251
    %4031 = vmatprep.subr.mxu0 %v3256
    %4032 = vmatpush1.msra.mxu0 %v3255
    %4033 = vmatprep.subr.mxu0 %v3260
    %4034 = vmatpush1.msra.mxu0 %v3259
    %4035 = vmatprep.subr.mxu0 %v3264
    %4036 = vmatpush1.msra.mxu0 %v3263
    %4037 = vmatprep.subr.mxu0 %v3268
    %4038 = vmatpush1.msra.mxu0 %v3267
    %4039 = vmatprep.subr.mxu0 0.0
    %4040 = vmatpush1.msra.mxu0 0.0
    %4041 = vmatprep.subr.mxu0 0.0
    %4042 = vmatpush1.msra.mxu0 0.0
    %4043 = vmatprep.subr.mxu0 0.0
    %4044 = vmatpush1.msra.mxu0 0.0
    %4045 = vmatprep.subr.mxu0 0.0
    %4046 = vmatpush1.msra.mxu0 0.0
    %4047 = vmatprep.subr.mxu0 0.0
    %4048 = vmatpush1.msra.mxu0 0.0
    %4049 = vmatprep.subr.mxu0 0.0
    %4050 = vmatpush1.msra.mxu0 0.0
    %4051 = vmatprep.subr.mxu0 0.0
    %4052 = vmatpush1.msra.mxu0 0.0
    %4053 = vmatprep.subr.mxu0 0.0
    %4054 = vmatpush1.msra.mxu0 0.0
    %4055 = vmatprep.subr.mxu0 0.0
    %4056 = vmatpush1.msra.mxu0 0.0
    %4057 = vmatprep.subr.mxu0 0.0
    %4058 = vmatpush1.msra.mxu0 0.0
    %4059 = vmatprep.subr.mxu0 0.0
    %4060 = vmatpush1.msra.mxu0 0.0
    %4061 = vmatprep.subr.mxu0 0.0
    %4062 = vmatpush1.msra.mxu0 0.0
    %4063 = vmatprep.subr.mxu0 0.0
    %4064 = vmatpush1.msra.mxu0 0.0
    %4065 = vmatprep.subr.mxu0 0.0
    %4066 = vmatpush1.msra.mxu0 0.0
    %4067 = vmatprep.subr.mxu0 0.0
    %4068 = vmatpush1.msra.mxu0 0.0
    %4069 = vmatprep.subr.mxu0 0.0
    %4070 = vmatpush1.msra.mxu0 0.0
    %4071 = vmatprep.mubr.f32.mxu0 0.0
    %4072 = vmatmul.mubr.f32.gmra.mrb[0].mxu0 %v4001
    %v4073 = vpop.f32.mrb[0].mxu0
    %v4074 = vadd.f32 0.0, %v4073
    %v4075 = vpop.f32.mrb[0].mxu0
    %v4076 = vadd.f32 0.0, %v4075
    %4077 = vdwg.mxu0
    %4078 = vmatprep.subr.mxu0 %v3210
    %4079 = vmatpush1.msra.mxu0 %v3209
    %4080 = vmatprep.subr.mxu0 %v3214
    %4081 = vmatpush1.msra.mxu0 %v3213
    %4082 = vmatprep.subr.mxu0 %v3218
    %4083 = vmatpush1.msra.mxu0 %v3217
    %4084 = vmatprep.subr.mxu0 %v3222
    %4085 = vmatpush1.msra.mxu0 %v3221
    %4086 = vmatprep.subr.mxu0 %v3226
    %4087 = vmatpush1.msra.mxu0 %v3225
    %4088 = vmatprep.subr.mxu0 %v3230
    %4089 = vmatpush1.msra.mxu0 %v3229
    %4090 = vmatprep.subr.mxu0 %v3234
    %4091 = vmatpush1.msra.mxu0 %v3233
    %4092 = vmatprep.subr.mxu0 %v3238
    %4093 = vmatpush1.msra.mxu0 %v3237
    %4094 = vmatprep.subr.mxu0 %v3242
    %4095 = vmatpush1.msra.mxu0 %v3241
    %4096 = vmatprep.subr.mxu0 %v3246
    %4097 = vmatpush1.msra.mxu0 %v3245
    %4098 = vmatprep.subr.mxu0 %v3250
    %4099 = vmatpush1.msra.mxu0 %v3249
    %4100 = vmatprep.subr.mxu0 %v3254
    %4101 = vmatpush1.msra.mxu0 %v3253
    %4102 = vmatprep.subr.mxu0 %v3258
    %4103 = vmatpush1.msra.mxu0 %v3257
    %4104 = vmatprep.subr.mxu0 %v3262
    %4105 = vmatpush1.msra.mxu0 %v3261
    %4106 = vmatprep.subr.mxu0 %v3266
    %4107 = vmatpush1.msra.mxu0 %v3265
    %4108 = vmatprep.subr.mxu0 %v3270
    %4109 = vmatpush1.msra.mxu0 %v3269
    %4110 = vmatprep.subr.mxu0 0.0
    %4111 = vmatpush1.msra.mxu0 0.0
    %4112 = vmatprep.subr.mxu0 0.0
    %4113 = vmatpush1.msra.mxu0 0.0
    %4114 = vmatprep.subr.mxu0 0.0
    %4115 = vmatpush1.msra.mxu0 0.0
    %4116 = vmatprep.subr.mxu0 0.0
    %4117 = vmatpush1.msra.mxu0 0.0
    %4118 = vmatprep.subr.mxu0 0.0
    %4119 = vmatpush1.msra.mxu0 0.0
    %4120 = vmatprep.subr.mxu0 0.0
    %4121 = vmatpush1.msra.mxu0 0.0
    %4122 = vmatprep.subr.mxu0 0.0
    %4123 = vmatpush1.msra.mxu0 0.0
    %4124 = vmatprep.subr.mxu0 0.0
    %4125 = vmatpush1.msra.mxu0 0.0
    %4126 = vmatprep.subr.mxu0 0.0
    %4127 = vmatpush1.msra.mxu0 0.0
    %4128 = vmatprep.subr.mxu0 0.0
    %4129 = vmatpush1.msra.mxu0 0.0
    %4130 = vmatprep.subr.mxu0 0.0
    %4131 = vmatpush1.msra.mxu0 0.0
    %4132 = vmatprep.subr.mxu0 0.0
    %4133 = vmatpush1.msra.mxu0 0.0
    %4134 = vmatprep.subr.mxu0 0.0
    %4135 = vmatpush1.msra.mxu0 0.0
    %4136 = vmatprep.subr.mxu0 0.0
    %4137 = vmatpush1.msra.mxu0 0.0
    %4138 = vmatprep.subr.mxu0 0.0
    %4139 = vmatpush1.msra.mxu0 0.0
    %4140 = vmatprep.subr.mxu0 0.0
    %4141 = vmatpush1.msra.mxu0 0.0
    %4142 = vmatprep.mubr.f32.mxu0 0.0
    %4143 = vmatmul.mubr.f32.gmra.mrb[0].mxu0 %v4001
    %v4144 = vpop.f32.mrb[0].mxu0
    %v4145 = vadd.f32 0.0, %v4144
    %v4146 = vpop.f32.mrb[0].mxu0
    %v4147 = vadd.f32 0.0, %v4146
    %4148 = vdwg.mxu0
    %v4149 = vadd.f32 %v4003, %v4074
    %v4150 = vadd.f32 %v4004, %v4076
    %v4151 = vadd.f32 %v4005, %v4145
    %v4152 = vadd.f32 %v4006, %v4147
    %v4153 = vxor.u32 %v4149, 2147483648
    %v4154 = vxor.u32 %v4150, 2147483648
    %v4155 = vxor.u32 %v4151, 2147483648
    %v4156 = vmul.f32 %v4153, 1.442695
    %v4157 = vpow.pop %v4156
    %v4158 = vmul.f32 %v4154, 1.442695
    %v4159 = vpow.pop %v4158
    %v4160 = vmul.f32 %v4155, 1.442695
    %v4161 = vpow.pop %v4160
    %v4162 = vadd.f32 %v4157, 1.0
    %v4163 = vadd.f32 %v4159, 1.0
    %v4164 = vadd.f32 %v4161, 1.0
    %v4165 = vrcp.pop %v4162
    %v4166 = vmul.f32 1.0, %v4165
    %v4167 = vrcp.pop %v4163
    %v4168 = vmul.f32 1.0, %v4167
    %v4169 = vrcp.pop %v4164
    %v4170 = vmul.f32 1.0, %v4169
    %v4171 = vtanh.pop %v4152
    %v4172 = vmul.f32 %v4168, %v3999
    %v4173 = vmul.f32 %v4166, %v4171
    %v4174 = vadd.f32 %v4172, %v4173
    %v4175 = vtanh.pop %v4174
    %v4176 = vmul.f32 %v4170, %v4175
    %4177 = vst [vmem:[#allocation5 + $0x20] sm:$0xff] %v4176
    %v4178 = vld [vmem:[#allocation4 + $0xa0] sm:$0xff]
    %v4179 = vld [vmem:[#allocation4 + $0xa8] sm:$0xff]
    %v4180 = vld [vmem:[#allocation4 + $0xb0] sm:$0xff]
    %v4181 = vld [vmem:[#allocation4 + $0xb8] sm:$0xff]
    %4182 = vmatprep.subr.mxu0 %v3208
    %4183 = vmatpush1.msra.mxu0 %v3207
    %4184 = vmatprep.subr.mxu0 %v3212
    %4185 = vmatpush1.msra.mxu0 %v3211
    %4186 = vmatprep.subr.mxu0 %v3216
    %4187 = vmatpush1.msra.mxu0 %v3215
    %4188 = vmatprep.subr.mxu0 %v3220
    %4189 = vmatpush1.msra.mxu0 %v3219
    %4190 = vmatprep.subr.mxu0 %v3224
    %4191 = vmatpush1.msra.mxu0 %v3223
    %4192 = vmatprep.subr.mxu0 %v3228
    %4193 = vmatpush1.msra.mxu0 %v3227
    %4194 = vmatprep.subr.mxu0 %v3232
    %4195 = vmatpush1.msra.mxu0 %v3231
    %4196 = vmatprep.subr.mxu0 %v3236
    %4197 = vmatpush1.msra.mxu0 %v3235
    %4198 = vmatprep.subr.mxu0 %v3240
    %4199 = vmatpush1.msra.mxu0 %v3239
    %4200 = vmatprep.subr.mxu0 %v3244
    %4201 = vmatpush1.msra.mxu0 %v3243
    %4202 = vmatprep.subr.mxu0 %v3248
    %4203 = vmatpush1.msra.mxu0 %v3247
    %4204 = vmatprep.subr.mxu0 %v3252
    %4205 = vmatpush1.msra.mxu0 %v3251
    %4206 = vmatprep.subr.mxu0 %v3256
    %4207 = vmatpush1.msra.mxu0 %v3255
    %4208 = vmatprep.subr.mxu0 %v3260
    %4209 = vmatpush1.msra.mxu0 %v3259
    %4210 = vmatprep.subr.mxu0 %v3264
    %4211 = vmatpush1.msra.mxu0 %v3263
    %4212 = vmatprep.subr.mxu0 %v3268
    %4213 = vmatpush1.msra.mxu0 %v3267
    %4214 = vmatprep.subr.mxu0 0.0
    %4215 = vmatpush1.msra.mxu0 0.0
    %4216 = vmatprep.subr.mxu0 0.0
    %4217 = vmatpush1.msra.mxu0 0.0
    %4218 = vmatprep.subr.mxu0 0.0
    %4219 = vmatpush1.msra.mxu0 0.0
    %4220 = vmatprep.subr.mxu0 0.0
    %4221 = vmatpush1.msra.mxu0 0.0
    %4222 = vmatprep.subr.mxu0 0.0
    %4223 = vmatpush1.msra.mxu0 0.0
    %4224 = vmatprep.subr.mxu0 0.0
    %4225 = vmatpush1.msra.mxu0 0.0
    %4226 = vmatprep.subr.mxu0 0.0
    %4227 = vmatpush1.msra.mxu0 0.0
    %4228 = vmatprep.subr.mxu0 0.0
    %4229 = vmatpush1.msra.mxu0 0.0
    %4230 = vmatprep.subr.mxu0 0.0
    %4231 = vmatpush1.msra.mxu0 0.0
    %4232 = vmatprep.subr.mxu0 0.0
    %4233 = vmatpush1.msra.mxu0 0.0
    %4234 = vmatprep.subr.mxu0 0.0
    %4235 = vmatpush1.msra.mxu0 0.0
    %4236 = vmatprep.subr.mxu0 0.0
    %4237 = vmatpush1.msra.mxu0 0.0
    %4238 = vmatprep.subr.mxu0 0.0
    %4239 = vmatpush1.msra.mxu0 0.0
    %4240 = vmatprep.subr.mxu0 0.0
    %4241 = vmatpush1.msra.mxu0 0.0
    %4242 = vmatprep.subr.mxu0 0.0
    %4243 = vmatpush1.msra.mxu0 0.0
    %4244 = vmatprep.subr.mxu0 0.0
    %4245 = vmatpush1.msra.mxu0 0.0
    %4246 = vmatprep.mubr.f32.mxu0 0.0
    %4247 = vmatmul.mubr.f32.gmra.mrb[0].mxu0 %v4176
    %v4248 = vpop.f32.mrb[0].mxu0
    %v4249 = vadd.f32 0.0, %v4248
    %v4250 = vpop.f32.mrb[0].mxu0
    %v4251 = vadd.f32 0.0, %v4250
    %4252 = vdwg.mxu0
    %4253 = vmatprep.subr.mxu0 %v3210
    %4254 = vmatpush1.msra.mxu0 %v3209
    %4255 = vmatprep.subr.mxu0 %v3214
    %4256 = vmatpush1.msra.mxu0 %v3213
    %4257 = vmatprep.subr.mxu0 %v3218
    %4258 = vmatpush1.msra.mxu0 %v3217
    %4259 = vmatprep.subr.mxu0 %v3222
    %4260 = vmatpush1.msra.mxu0 %v3221
    %4261 = vmatprep.subr.mxu0 %v3226
    %4262 = vmatpush1.msra.mxu0 %v3225
    %4263 = vmatprep.subr.mxu0 %v3230
    %4264 = vmatpush1.msra.mxu0 %v3229
    %4265 = vmatprep.subr.mxu0 %v3234
    %4266 = vmatpush1.msra.mxu0 %v3233
    %4267 = vmatprep.subr.mxu0 %v3238
    %4268 = vmatpush1.msra.mxu0 %v3237
    %4269 = vmatprep.subr.mxu0 %v3242
    %4270 = vmatpush1.msra.mxu0 %v3241
    %4271 = vmatprep.subr.mxu0 %v3246
    %4272 = vmatpush1.msra.mxu0 %v3245
    %4273 = vmatprep.subr.mxu0 %v3250
    %4274 = vmatpush1.msra.mxu0 %v3249
    %4275 = vmatprep.subr.mxu0 %v3254
    %4276 = vmatpush1.msra.mxu0 %v3253
    %4277 = vmatprep.subr.mxu0 %v3258
    %4278 = vmatpush1.msra.mxu0 %v3257
    %4279 = vmatprep.subr.mxu0 %v3262
    %4280 = vmatpush1.msra.mxu0 %v3261
    %4281 = vmatprep.subr.mxu0 %v3266
    %4282 = vmatpush1.msra.mxu0 %v3265
    %4283 = vmatprep.subr.mxu0 %v3270
    %4284 = vmatpush1.msra.mxu0 %v3269
    %4285 = vmatprep.subr.mxu0 0.0
    %4286 = vmatpush1.msra.mxu0 0.0
    %4287 = vmatprep.subr.mxu0 0.0
    %4288 = vmatpush1.msra.mxu0 0.0
    %4289 = vmatprep.subr.mxu0 0.0
    %4290 = vmatpush1.msra.mxu0 0.0
    %4291 = vmatprep.subr.mxu0 0.0
    %4292 = vmatpush1.msra.mxu0 0.0
    %4293 = vmatprep.subr.mxu0 0.0
    %4294 = vmatpush1.msra.mxu0 0.0
    %4295 = vmatprep.subr.mxu0 0.0
    %4296 = vmatpush1.msra.mxu0 0.0
    %4297 = vmatprep.subr.mxu0 0.0
    %4298 = vmatpush1.msra.mxu0 0.0
    %4299 = vmatprep.subr.mxu0 0.0
    %4300 = vmatpush1.msra.mxu0 0.0
    %4301 = vmatprep.subr.mxu0 0.0
    %4302 = vmatpush1.msra.mxu0 0.0
    %4303 = vmatprep.subr.mxu0 0.0
    %4304 = vmatpush1.msra.mxu0 0.0
    %4305 = vmatprep.subr.mxu0 0.0
    %4306 = vmatpush1.msra.mxu0 0.0
    %4307 = vmatprep.subr.mxu0 0.0
    %4308 = vmatpush1.msra.mxu0 0.0
    %4309 = vmatprep.subr.mxu0 0.0
    %4310 = vmatpush1.msra.mxu0 0.0
    %4311 = vmatprep.subr.mxu0 0.0
    %4312 = vmatpush1.msra.mxu0 0.0
    %4313 = vmatprep.subr.mxu0 0.0
    %4314 = vmatpush1.msra.mxu0 0.0
    %4315 = vmatprep.subr.mxu0 0.0
    %4316 = vmatpush1.msra.mxu0 0.0
    %4317 = vmatprep.mubr.f32.mxu0 0.0
    %4318 = vmatmul.mubr.f32.gmra.mrb[0].mxu0 %v4176
    %v4319 = vpop.f32.mrb[0].mxu0
    %v4320 = vadd.f32 0.0, %v4319
    %v4321 = vpop.f32.mrb[0].mxu0
    %v4322 = vadd.f32 0.0, %v4321
    %4323 = vdwg.mxu0
    %v4324 = vadd.f32 %v4178, %v4249
    %v4325 = vadd.f32 %v4179, %v4251
    %v4326 = vadd.f32 %v4180, %v4320
    %v4327 = vadd.f32 %v4181, %v4322
    %v4328 = vxor.u32 %v4324, 2147483648
    %v4329 = vxor.u32 %v4325, 2147483648
    %v4330 = vxor.u32 %v4326, 2147483648
    %v4331 = vmul.f32 %v4328, 1.442695
    %v4332 = vpow.pop %v4331
    %v4333 = vmul.f32 %v4329, 1.442695
    %v4334 = vpow.pop %v4333
    %v4335 = vmul.f32 %v4330, 1.442695
    %v4336 = vpow.pop %v4335
    %v4337 = vadd.f32 %v4332, 1.0
    %v4338 = vadd.f32 %v4334, 1.0
    %v4339 = vadd.f32 %v4336, 1.0
    %v4340 = vrcp.pop %v4337
    %v4341 = vmul.f32 1.0, %v4340
    %v4342 = vrcp.pop %v4338
    %v4343 = vmul.f32 1.0, %v4342
    %v4344 = vrcp.pop %v4339
    %v4345 = vmul.f32 1.0, %v4344
    %v4346 = vtanh.pop %v4327
    %v4347 = vmul.f32 %v4343, %v4174
    %v4348 = vmul.f32 %v4341, %v4346
    %v4349 = vadd.f32 %v4347, %v4348
    %v4350 = vtanh.pop %v4349
    %v4351 = vmul.f32 %v4345, %v4350
    %4352 = vst [vmem:[#allocation5 + $0x28] sm:$0xff] %v4351
    %v4353 = vld [vmem:[#allocation4 + $0xc0] sm:$0xff]
    %v4354 = vld [vmem:[#allocation4 + $0xc8] sm:$0xff]
    %v4355 = vld [vmem:[#allocation4 + $0xd0] sm:$0xff]
    %v4356 = vld [vmem:[#allocation4 + $0xd8] sm:$0xff]
    %4357 = vmatprep.subr.mxu0 %v3208
    %4358 = vmatpush1.msra.mxu0 %v3207
    %4359 = vmatprep.subr.mxu0 %v3212
    %4360 = vmatpush1.msra.mxu0 %v3211
    %4361 = vmatprep.subr.mxu0 %v3216
    %4362 = vmatpush1.msra.mxu0 %v3215
    %4363 = vmatprep.subr.mxu0 %v3220
    %4364 = vmatpush1.msra.mxu0 %v3219
    %4365 = vmatprep.subr.mxu0 %v3224
    %4366 = vmatpush1.msra.mxu0 %v3223
    %4367 = vmatprep.subr.mxu0 %v3228
    %4368 = vmatpush1.msra.mxu0 %v3227
    %4369 = vmatprep.subr.mxu0 %v3232
    %4370 = vmatpush1.msra.mxu0 %v3231
    %4371 = vmatprep.subr.mxu0 %v3236
    %4372 = vmatpush1.msra.mxu0 %v3235
    %4373 = vmatprep.subr.mxu0 %v3240
    %4374 = vmatpush1.msra.mxu0 %v3239
    %4375 = vmatprep.subr.mxu0 %v3244
    %4376 = vmatpush1.msra.mxu0 %v3243
    %4377 = vmatprep.subr.mxu0 %v3248
    %4378 = vmatpush1.msra.mxu0 %v3247
    %4379 = vmatprep.subr.mxu0 %v3252
    %4380 = vmatpush1.msra.mxu0 %v3251
    %4381 = vmatprep.subr.mxu0 %v3256
    %4382 = vmatpush1.msra.mxu0 %v3255
    %4383 = vmatprep.subr.mxu0 %v3260
    %4384 = vmatpush1.msra.mxu0 %v3259
    %4385 = vmatprep.subr.mxu0 %v3264
    %4386 = vmatpush1.msra.mxu0 %v3263
    %4387 = vmatprep.subr.mxu0 %v3268
    %4388 = vmatpush1.msra.mxu0 %v3267
    %4389 = vmatprep.subr.mxu0 0.0
    %4390 = vmatpush1.msra.mxu0 0.0
    %4391 = vmatprep.subr.mxu0 0.0
    %4392 = vmatpush1.msra.mxu0 0.0
    %4393 = vmatprep.subr.mxu0 0.0
    %4394 = vmatpush1.msra.mxu0 0.0
    %4395 = vmatprep.subr.mxu0 0.0
    %4396 = vmatpush1.msra.mxu0 0.0
    %4397 = vmatprep.subr.mxu0 0.0
    %4398 = vmatpush1.msra.mxu0 0.0
    %4399 = vmatprep.subr.mxu0 0.0
    %4400 = vmatpush1.msra.mxu0 0.0
    %4401 = vmatprep.subr.mxu0 0.0
    %4402 = vmatpush1.msra.mxu0 0.0
    %4403 = vmatprep.subr.mxu0 0.0
    %4404 = vmatpush1.msra.mxu0 0.0
    %4405 = vmatprep.subr.mxu0 0.0
    %4406 = vmatpush1.msra.mxu0 0.0
    %4407 = vmatprep.subr.mxu0 0.0
    %4408 = vmatpush1.msra.mxu0 0.0
    %4409 = vmatprep.subr.mxu0 0.0
    %4410 = vmatpush1.msra.mxu0 0.0
    %4411 = vmatprep.subr.mxu0 0.0
    %4412 = vmatpush1.msra.mxu0 0.0
    %4413 = vmatprep.subr.mxu0 0.0
    %4414 = vmatpush1.msra.mxu0 0.0
    %4415 = vmatprep.subr.mxu0 0.0
    %4416 = vmatpush1.msra.mxu0 0.0
    %4417 = vmatprep.subr.mxu0 0.0
    %4418 = vmatpush1.msra.mxu0 0.0
    %4419 = vmatprep.subr.mxu0 0.0
    %4420 = vmatpush1.msra.mxu0 0.0
    %4421 = vmatprep.mubr.f32.mxu0 0.0
    %4422 = vmatmul.mubr.f32.gmra.mrb[0].mxu0 %v4351
    %v4423 = vpop.f32.mrb[0].mxu0
    %v4424 = vadd.f32 0.0, %v4423
    %v4425 = vpop.f32.mrb[0].mxu0
    %v4426 = vadd.f32 0.0, %v4425
    %4427 = vdwg.mxu0
    %4428 = vmatprep.subr.mxu0 %v3210
    %4429 = vmatpush1.msra.mxu0 %v3209
    %4430 = vmatprep.subr.mxu0 %v3214
    %4431 = vmatpush1.msra.mxu0 %v3213
    %4432 = vmatprep.subr.mxu0 %v3218
    %4433 = vmatpush1.msra.mxu0 %v3217
    %4434 = vmatprep.subr.mxu0 %v3222
    %4435 = vmatpush1.msra.mxu0 %v3221
    %4436 = vmatprep.subr.mxu0 %v3226
    %4437 = vmatpush1.msra.mxu0 %v3225
    %4438 = vmatprep.subr.mxu0 %v3230
    %4439 = vmatpush1.msra.mxu0 %v3229
    %4440 = vmatprep.subr.mxu0 %v3234
    %4441 = vmatpush1.msra.mxu0 %v3233
    %4442 = vmatprep.subr.mxu0 %v3238
    %4443 = vmatpush1.msra.mxu0 %v3237
    %4444 = vmatprep.subr.mxu0 %v3242
    %4445 = vmatpush1.msra.mxu0 %v3241
    %4446 = vmatprep.subr.mxu0 %v3246
    %4447 = vmatpush1.msra.mxu0 %v3245
    %4448 = vmatprep.subr.mxu0 %v3250
    %4449 = vmatpush1.msra.mxu0 %v3249
    %4450 = vmatprep.subr.mxu0 %v3254
    %4451 = vmatpush1.msra.mxu0 %v3253
    %4452 = vmatprep.subr.mxu0 %v3258
    %4453 = vmatpush1.msra.mxu0 %v3257
    %4454 = vmatprep.subr.mxu0 %v3262
    %4455 = vmatpush1.msra.mxu0 %v3261
    %4456 = vmatprep.subr.mxu0 %v3266
    %4457 = vmatpush1.msra.mxu0 %v3265
    %4458 = vmatprep.subr.mxu0 %v3270
    %4459 = vmatpush1.msra.mxu0 %v3269
    %4460 = vmatprep.subr.mxu0 0.0
    %4461 = vmatpush1.msra.mxu0 0.0
    %4462 = vmatprep.subr.mxu0 0.0
    %4463 = vmatpush1.msra.mxu0 0.0
    %4464 = vmatprep.subr.mxu0 0.0
    %4465 = vmatpush1.msra.mxu0 0.0
    %4466 = vmatprep.subr.mxu0 0.0
    %4467 = vmatpush1.msra.mxu0 0.0
    %4468 = vmatprep.subr.mxu0 0.0
    %4469 = vmatpush1.msra.mxu0 0.0
    %4470 = vmatprep.subr.mxu0 0.0
    %4471 = vmatpush1.msra.mxu0 0.0
    %4472 = vmatprep.subr.mxu0 0.0
    %4473 = vmatpush1.msra.mxu0 0.0
    %4474 = vmatprep.subr.mxu0 0.0
    %4475 = vmatpush1.msra.mxu0 0.0
    %4476 = vmatprep.subr.mxu0 0.0
    %4477 = vmatpush1.msra.mxu0 0.0
    %4478 = vmatprep.subr.mxu0 0.0
    %4479 = vmatpush1.msra.mxu0 0.0
    %4480 = vmatprep.subr.mxu0 0.0
    %4481 = vmatpush1.msra.mxu0 0.0
    %4482 = vmatprep.subr.mxu0 0.0
    %4483 = vmatpush1.msra.mxu0 0.0
    %4484 = vmatprep.subr.mxu0 0.0
    %4485 = vmatpush1.msra.mxu0 0.0
    %4486 = vmatprep.subr.mxu0 0.0
    %4487 = vmatpush1.msra.mxu0 0.0
    %4488 = vmatprep.subr.mxu0 0.0
    %4489 = vmatpush1.msra.mxu0 0.0
    %4490 = vmatprep.subr.mxu0 0.0
    %4491 = vmatpush1.msra.mxu0 0.0
    %4492 = vmatprep.mubr.f32.mxu0 0.0
    %4493 = vmatmul.mubr.f32.gmra.mrb[0].mxu0 %v4351
    %v4494 = vpop.f32.mrb[0].mxu0
    %v4495 = vadd.f32 0.0, %v4494
    %v4496 = vpop.f32.mrb[0].mxu0
    %v4497 = vadd.f32 0.0, %v4496
    %4498 = vdwg.mxu0
    %v4499 = vadd.f32 %v4353, %v4424
    %v4500 = vadd.f32 %v4354, %v4426
    %v4501 = vadd.f32 %v4355, %v4495
    %v4502 = vadd.f32 %v4356, %v4497
    %v4503 = vxor.u32 %v4499, 2147483648
    %v4504 = vxor.u32 %v4500, 2147483648
    %v4505 = vxor.u32 %v4501, 2147483648
    %v4506 = vmul.f32 %v4503, 1.442695
    %v4507 = vpow.pop %v4506
    %v4508 = vmul.f32 %v4504, 1.442695
    %v4509 = vpow.pop %v4508
    %v4510 = vmul.f32 %v4505, 1.442695
    %v4511 = vpow.pop %v4510
    %v4512 = vadd.f32 %v4507, 1.0
    %v4513 = vadd.f32 %v4509, 1.0
    %v4514 = vadd.f32 %v4511, 1.0
    %v4515 = vrcp.pop %v4512
    %v4516 = vmul.f32 1.0, %v4515
    %v4517 = vrcp.pop %v4513
    %v4518 = vmul.f32 1.0, %v4517
    %v4519 = vrcp.pop %v4514
    %v4520 = vmul.f32 1.0, %v4519
    %v4521 = vtanh.pop %v4502
    %v4522 = vmul.f32 %v4518, %v4349
    %v4523 = vmul.f32 %v4516, %v4521
    %v4524 = vadd.f32 %v4522, %v4523
    %v4525 = vtanh.pop %v4524
    %v4526 = vmul.f32 %v4520, %v4525
    %4527 = vst [vmem:[#allocation5 + $0x30] sm:$0xff] %v4526
    %v4528 = vld [vmem:[#allocation4 + $0xe0] sm:$0xff]
    %v4529 = vld [vmem:[#allocation4 + $0xe8] sm:$0xff]
    %v4530 = vld [vmem:[#allocation4 + $0xf0] sm:$0xff]
    %v4531 = vld [vmem:[#allocation4 + $0xf8] sm:$0xff]
    %4532 = vmatprep.subr.mxu0 %v3208
    %4533 = vmatpush1.msra.mxu0 %v3207
    %4534 = vmatprep.subr.mxu0 %v3212
    %4535 = vmatpush1.msra.mxu0 %v3211
    %4536 = vmatprep.subr.mxu0 %v3216
    %4537 = vmatpush1.msra.mxu0 %v3215
    %4538 = vmatprep.subr.mxu0 %v3220
    %4539 = vmatpush1.msra.mxu0 %v3219
    %4540 = vmatprep.subr.mxu0 %v3224
    %4541 = vmatpush1.msra.mxu0 %v3223
    %4542 = vmatprep.subr.mxu0 %v3228
    %4543 = vmatpush1.msra.mxu0 %v3227
    %4544 = vmatprep.subr.mxu0 %v3232
    %4545 = vmatpush1.msra.mxu0 %v3231
    %4546 = vmatprep.subr.mxu0 %v3236
    %4547 = vmatpush1.msra.mxu0 %v3235
    %4548 = vmatprep.subr.mxu0 %v3240
    %4549 = vmatpush1.msra.mxu0 %v3239
    %4550 = vmatprep.subr.mxu0 %v3244
    %4551 = vmatpush1.msra.mxu0 %v3243
    %4552 = vmatprep.subr.mxu0 %v3248
    %4553 = vmatpush1.msra.mxu0 %v3247
    %4554 = vmatprep.subr.mxu0 %v3252
    %4555 = vmatpush1.msra.mxu0 %v3251
    %4556 = vmatprep.subr.mxu0 %v3256
    %4557 = vmatpush1.msra.mxu0 %v3255
    %4558 = vmatprep.subr.mxu0 %v3260
    %4559 = vmatpush1.msra.mxu0 %v3259
    %4560 = vmatprep.subr.mxu0 %v3264
    %4561 = vmatpush1.msra.mxu0 %v3263
    %4562 = vmatprep.subr.mxu0 %v3268
    %4563 = vmatpush1.msra.mxu0 %v3267
    %4564 = vmatprep.subr.mxu0 0.0
    %4565 = vmatpush1.msra.mxu0 0.0
    %4566 = vmatprep.subr.mxu0 0.0
    %4567 = vmatpush1.msra.mxu0 0.0
    %4568 = vmatprep.subr.mxu0 0.0
    %4569 = vmatpush1.msra.mxu0 0.0
    %4570 = vmatprep.subr.mxu0 0.0
    %4571 = vmatpush1.msra.mxu0 0.0
    %4572 = vmatprep.subr.mxu0 0.0
    %4573 = vmatpush1.msra.mxu0 0.0
    %4574 = vmatprep.subr.mxu0 0.0
    %4575 = vmatpush1.msra.mxu0 0.0
    %4576 = vmatprep.subr.mxu0 0.0
    %4577 = vmatpush1.msra.mxu0 0.0
    %4578 = vmatprep.subr.mxu0 0.0
    %4579 = vmatpush1.msra.mxu0 0.0
    %4580 = vmatprep.subr.mxu0 0.0
    %4581 = vmatpush1.msra.mxu0 0.0
    %4582 = vmatprep.subr.mxu0 0.0
    %4583 = vmatpush1.msra.mxu0 0.0
    %4584 = vmatprep.subr.mxu0 0.0
    %4585 = vmatpush1.msra.mxu0 0.0
    %4586 = vmatprep.subr.mxu0 0.0
    %4587 = vmatpush1.msra.mxu0 0.0
    %4588 = vmatprep.subr.mxu0 0.0
    %4589 = vmatpush1.msra.mxu0 0.0
    %4590 = vmatprep.subr.mxu0 0.0
    %4591 = vmatpush1.msra.mxu0 0.0
    %4592 = vmatprep.subr.mxu0 0.0
    %4593 = vmatpush1.msra.mxu0 0.0
    %4594 = vmatprep.subr.mxu0 0.0
    %4595 = vmatpush1.msra.mxu0 0.0
    %4596 = vmatprep.mubr.f32.mxu0 0.0
    %4597 = vmatmul.mubr.f32.gmra.mrb[0].mxu0 %v4526
    %v4598 = vpop.f32.mrb[0].mxu0
    %v4599 = vadd.f32 0.0, %v4598
    %v4600 = vpop.f32.mrb[0].mxu0
    %v4601 = vadd.f32 0.0, %v4600
    %4602 = vdwg.mxu0
    %4603 = vmatprep.subr.mxu0 %v3210
    %4604 = vmatpush1.msra.mxu0 %v3209
    %4605 = vmatprep.subr.mxu0 %v3214
    %4606 = vmatpush1.msra.mxu0 %v3213
    %4607 = vmatprep.subr.mxu0 %v3218
    %4608 = vmatpush1.msra.mxu0 %v3217
    %4609 = vmatprep.subr.mxu0 %v3222
    %4610 = vmatpush1.msra.mxu0 %v3221
    %4611 = vmatprep.subr.mxu0 %v3226
    %4612 = vmatpush1.msra.mxu0 %v3225
    %4613 = vmatprep.subr.mxu0 %v3230
    %4614 = vmatpush1.msra.mxu0 %v3229
    %4615 = vmatprep.subr.mxu0 %v3234
    %4616 = vmatpush1.msra.mxu0 %v3233
    %4617 = vmatprep.subr.mxu0 %v3238
    %4618 = vmatpush1.msra.mxu0 %v3237
    %4619 = vmatprep.subr.mxu0 %v3242
    %4620 = vmatpush1.msra.mxu0 %v3241
    %4621 = vmatprep.subr.mxu0 %v3246
    %4622 = vmatpush1.msra.mxu0 %v3245
    %4623 = vmatprep.subr.mxu0 %v3250
    %4624 = vmatpush1.msra.mxu0 %v3249
    %4625 = vmatprep.subr.mxu0 %v3254
    %4626 = vmatpush1.msra.mxu0 %v3253
    %4627 = vmatprep.subr.mxu0 %v3258
    %4628 = vmatpush1.msra.mxu0 %v3257
    %4629 = vmatprep.subr.mxu0 %v3262
    %4630 = vmatpush1.msra.mxu0 %v3261
    %4631 = vmatprep.subr.mxu0 %v3266
    %4632 = vmatpush1.msra.mxu0 %v3265
    %4633 = vmatprep.subr.mxu0 %v3270
    %4634 = vmatpush1.msra.mxu0 %v3269
    %4635 = vmatprep.subr.mxu0 0.0
    %4636 = vmatpush1.msra.mxu0 0.0
    %4637 = vmatprep.subr.mxu0 0.0
    %4638 = vmatpush1.msra.mxu0 0.0
    %4639 = vmatprep.subr.mxu0 0.0
    %4640 = vmatpush1.msra.mxu0 0.0
    %4641 = vmatprep.subr.mxu0 0.0
    %4642 = vmatpush1.msra.mxu0 0.0
    %4643 = vmatprep.subr.mxu0 0.0
    %4644 = vmatpush1.msra.mxu0 0.0
    %4645 = vmatprep.subr.mxu0 0.0
    %4646 = vmatpush1.msra.mxu0 0.0
    %4647 = vmatprep.subr.mxu0 0.0
    %4648 = vmatpush1.msra.mxu0 0.0
    %4649 = vmatprep.subr.mxu0 0.0
    %4650 = vmatpush1.msra.mxu0 0.0
    %4651 = vmatprep.subr.mxu0 0.0
    %4652 = vmatpush1.msra.mxu0 0.0
    %4653 = vmatprep.subr.mxu0 0.0
    %4654 = vmatpush1.msra.mxu0 0.0
    %4655 = vmatprep.subr.mxu0 0.0
    %4656 = vmatpush1.msra.mxu0 0.0
    %4657 = vmatprep.subr.mxu0 0.0
    %4658 = vmatpush1.msra.mxu0 0.0
    %4659 = vmatprep.subr.mxu0 0.0
    %4660 = vmatpush1.msra.mxu0 0.0
    %4661 = vmatprep.subr.mxu0 0.0
    %4662 = vmatpush1.msra.mxu0 0.0
    %4663 = vmatprep.subr.mxu0 0.0
    %4664 = vmatpush1.msra.mxu0 0.0
    %4665 = vmatprep.subr.mxu0 0.0
    %4666 = vmatpush1.msra.mxu0 0.0
    %4667 = vmatprep.mubr.f32.mxu0 0.0
    %4668 = vmatmul.mubr.f32.gmra.mrb[0].mxu0 %v4526
    %v4669 = vpop.f32.mrb[0].mxu0
    %v4670 = vadd.f32 0.0, %v4669
    %v4671 = vpop.f32.mrb[0].mxu0
    %v4672 = vadd.f32 0.0, %v4671
    %4673 = vdwg.mxu0
    %v4674 = vadd.f32 %v4528, %v4599
    %v4675 = vadd.f32 %v4529, %v4601
    %v4676 = vadd.f32 %v4530, %v4670
    %v4677 = vadd.f32 %v4531, %v4672
    %v4678 = vxor.u32 %v4674, 2147483648
    %v4679 = vxor.u32 %v4675, 2147483648
    %v4680 = vxor.u32 %v4676, 2147483648
    %v4681 = vmul.f32 %v4678, 1.442695
    %v4682 = vpow.pop %v4681
    %v4683 = vmul.f32 %v4679, 1.442695
    %v4684 = vpow.pop %v4683
    %v4685 = vmul.f32 %v4680, 1.442695
    %v4686 = vpow.pop %v4685
    %v4687 = vadd.f32 %v4682, 1.0
    %v4688 = vadd.f32 %v4684, 1.0
    %v4689 = vadd.f32 %v4686, 1.0
    %v4690 = vrcp.pop %v4687
    %v4691 = vmul.f32 1.0, %v4690
    %v4692 = vrcp.pop %v4688
    %v4693 = vmul.f32 1.0, %v4692
    %v4694 = vrcp.pop %v4689
    %v4695 = vmul.f32 1.0, %v4694
    %v4696 = vtanh.pop %v4677
    %v4697 = vmul.f32 %v4693, %v4524
    %v4698 = vmul.f32 %v4691, %v4696
    %v4699 = vadd.f32 %v4697, %v4698
    %v4700 = vtanh.pop %v4699
    %v4701 = vmul.f32 %v4695, %v4700
    %4702 = vst [vmem:[#allocation5 + $0x38] sm:$0xff] %v4701
    %v4703 = vld [vmem:[#allocation5] sm:$0xff]
    %v4704 = vld [vmem:[#allocation5 + $0x8] sm:$0xff]
    %v4705 = vld [vmem:[#allocation5 + $0x10] sm:$0xff]
    %v4706 = vld [vmem:[#allocation5 + $0x18] sm:$0xff]
    %v4707 = vld [vmem:[#allocation5 + $0x20] sm:$0xff]
    %v4708 = vld [vmem:[#allocation5 + $0x28] sm:$0xff]
    %v4709 = vld [vmem:[#allocation5 + $0x30] sm:$0xff]
    %v4710 = vld [vmem:[#allocation5 + $0x38] sm:$0xff]
    %v4711 = vld [vmem:[#allocation6 + $0x460] sm:$0xff]
    %v4712 = vld [vmem:[#allocation6 + $0x480] sm:$0xff]
    %v4713 = vld [vmem:[#allocation6 + $0x4a0] sm:$0xff]
    %v4714 = vld [vmem:[#allocation6 + $0x4c0] sm:$0xff]
    %v4715 = vld [vmem:[#allocation6 + $0x4e0] sm:$0xff]
    %v4716 = vld [vmem:[#allocation6 + $0x500] sm:$0xff]
    %v4717 = vld [vmem:[#allocation6 + $0x520] sm:$0xff]
    %v4718 = vld [vmem:[#allocation6 + $0x540] sm:$0xff]
    %v4719 = vld [vmem:[#allocation6 + $0x560] sm:$0xff]
    %v4720 = vld [vmem:[#allocation6 + $0x580] sm:$0xff]
    %v4721 = vld [vmem:[#allocation6 + $0x5a0] sm:$0xff]
    %v4722 = vld [vmem:[#allocation6 + $0x5c0] sm:$0xff]
    %v4723 = vld [vmem:[#allocation6 + $0x5e0] sm:$0xff]
    %v4724 = vld [vmem:[#allocation6 + $0x600] sm:$0xff]
    %v4725 = vld [vmem:[#allocation6 + $0x620] sm:$0xff]
    %v4726 = vld [vmem:[#allocation6 + $0x640] sm:$0xff]
    %4727 = vmatprep.subr.mxu0 0.0
    %4728 = vmatpush1.msra.mxu0 %v4711
    %4729 = vmatprep.subr.mxu0 0.0
    %4730 = vmatpush1.msra.mxu0 %v4712
    %4731 = vmatprep.subr.mxu0 0.0
    %4732 = vmatpush1.msra.mxu0 %v4713
    %4733 = vmatprep.subr.mxu0 0.0
    %4734 = vmatpush1.msra.mxu0 %v4714
    %4735 = vmatprep.subr.mxu0 0.0
    %4736 = vmatpush1.msra.mxu0 %v4715
    %4737 = vmatprep.subr.mxu0 0.0
    %4738 = vmatpush1.msra.mxu0 %v4716
    %4739 = vmatprep.subr.mxu0 0.0
    %4740 = vmatpush1.msra.mxu0 %v4717
    %4741 = vmatprep.subr.mxu0 0.0
    %4742 = vmatpush1.msra.mxu0 %v4718
    %4743 = vmatprep.subr.mxu0 0.0
    %4744 = vmatpush1.msra.mxu0 %v4719
    %4745 = vmatprep.subr.mxu0 0.0
    %4746 = vmatpush1.msra.mxu0 %v4720
    %4747 = vmatprep.subr.mxu0 0.0
    %4748 = vmatpush1.msra.mxu0 %v4721
    %4749 = vmatprep.subr.mxu0 0.0
    %4750 = vmatpush1.msra.mxu0 %v4722
    %4751 = vmatprep.subr.mxu0 0.0
    %4752 = vmatpush1.msra.mxu0 %v4723
    %4753 = vmatprep.subr.mxu0 0.0
    %4754 = vmatpush1.msra.mxu0 %v4724
    %4755 = vmatprep.subr.mxu0 0.0
    %4756 = vmatpush1.msra.mxu0 %v4725
    %4757 = vmatprep.subr.mxu0 0.0
    %4758 = vmatpush1.msra.mxu0 %v4726
    %4759 = vmatprep.subr.mxu0 0.0
    %4760 = vmatpush1.msra.mxu0 0.0
    %4761 = vmatprep.subr.mxu0 0.0
    %4762 = vmatpush1.msra.mxu0 0.0
    %4763 = vmatprep.subr.mxu0 0.0
    %4764 = vmatpush1.msra.mxu0 0.0
    %4765 = vmatprep.subr.mxu0 0.0
    %4766 = vmatpush1.msra.mxu0 0.0
    %4767 = vmatprep.subr.mxu0 0.0
    %4768 = vmatpush1.msra.mxu0 0.0
    %4769 = vmatprep.subr.mxu0 0.0
    %4770 = vmatpush1.msra.mxu0 0.0
    %4771 = vmatprep.subr.mxu0 0.0
    %4772 = vmatpush1.msra.mxu0 0.0
    %4773 = vmatprep.subr.mxu0 0.0
    %4774 = vmatpush1.msra.mxu0 0.0
    %4775 = vmatprep.subr.mxu0 0.0
    %4776 = vmatpush1.msra.mxu0 0.0
    %4777 = vmatprep.subr.mxu0 0.0
    %4778 = vmatpush1.msra.mxu0 0.0
    %4779 = vmatprep.subr.mxu0 0.0
    %4780 = vmatpush1.msra.mxu0 0.0
    %4781 = vmatprep.subr.mxu0 0.0
    %4782 = vmatpush1.msra.mxu0 0.0
    %4783 = vmatprep.subr.mxu0 0.0
    %4784 = vmatpush1.msra.mxu0 0.0
    %4785 = vmatprep.subr.mxu0 0.0
    %4786 = vmatpush1.msra.mxu0 0.0
    %4787 = vmatprep.subr.mxu0 0.0
    %4788 = vmatpush1.msra.mxu0 0.0
    %4789 = vmatprep.subr.mxu0 0.0
    %4790 = vmatpush1.msra.mxu0 0.0
    %4791 = vmatprep.mubr.f32.mxu0 0.0
    %4792 = vmatmul.mubr.f32.gmra.mrb[0].mxu0 %v4703
    %v4793 = vpop.f32.mrb[0].mxu0
    %v4794 = vadd.f32 0.0, %v4793
    %v4795 = vpop.f32.mrb[0].mxu0
    %4796 = vmatprep.mubr.f32.mxu0 0.0
    %4797 = vmatmul.mubr.f32.gmra.mrb[0].mxu0 %v4704
    %v4798 = vpop.f32.mrb[0].mxu0
    %v4799 = vadd.f32 0.0, %v4798
    %v4800 = vpop.f32.mrb[0].mxu0
    %4801 = vmatprep.mubr.f32.mxu0 0.0
    %4802 = vmatmul.mubr.f32.gmra.mrb[0].mxu0 %v4705
    %v4803 = vpop.f32.mrb[0].mxu0
    %v4804 = vadd.f32 0.0, %v4803
    %v4805 = vpop.f32.mrb[0].mxu0
    %4806 = vmatprep.mubr.f32.mxu0 0.0
    %4807 = vmatmul.mubr.f32.gmra.mrb[0].mxu0 %v4706
    %v4808 = vpop.f32.mrb[0].mxu0
    %v4809 = vadd.f32 0.0, %v4808
    %v4810 = vpop.f32.mrb[0].mxu0
    %4811 = vmatprep.mubr.f32.mxu0 0.0
    %4812 = vmatmul.mubr.f32.gmra.mrb[0].mxu0 %v4707
    %v4813 = vpop.f32.mrb[0].mxu0
    %v4814 = vadd.f32 0.0, %v4813
    %v4815 = vpop.f32.mrb[0].mxu0
    %4816 = vmatprep.mubr.f32.mxu0 0.0
    %4817 = vmatmul.mubr.f32.gmra.mrb[0].mxu0 %v4708
    %v4818 = vpop.f32.mrb[0].mxu0
    %v4819 = vadd.f32 0.0, %v4818
    %v4820 = vpop.f32.mrb[0].mxu0
    %4821 = vmatprep.mubr.f32.mxu0 0.0
    %4822 = vmatmul.mubr.f32.gmra.mrb[0].mxu0 %v4709
    %v4823 = vpop.f32.mrb[0].mxu0
    %v4824 = vadd.f32 0.0, %v4823
    %v4825 = vpop.f32.mrb[0].mxu0
    %4826 = vmatprep.mubr.f32.mxu0 0.0
    %4827 = vmatmul.mubr.f32.gmra.mrb[0].mxu0 %v4710
    %v4828 = vpop.f32.mrb[0].mxu0
    %v4829 = vadd.f32 0.0, %v4828
    %v4830 = vpop.f32.mrb[0].mxu0
    %4831 = vdwg.mxu0
    %v4832 = vmax.f32 %v4794, 0.0
    %v4833 = vmax.f32 %v4799, 0.0
    %v4834 = vmax.f32 %v4804, 0.0
    %v4835 = vmax.f32 %v4809, 0.0
    %v4836 = vmax.f32 %v4814, 0.0
    %v4837 = vmax.f32 %v4819, 0.0
    %v4838 = vmax.f32 %v4824, 0.0
    %v4839 = vmax.f32 %v4829, 0.0
    %v4840 = vld [vmem:[#allocation6 + $0x660] sm:$0xff]
    %v4841 = vld [vmem:[#allocation6 + $0x680] sm:$0xff]
    %v4842 = vld [vmem:[#allocation6 + $0x6a0] sm:$0xff]
    %v4843 = vld [vmem:[#allocation6 + $0x6c0] sm:$0xff]
    %v4844 = vld [vmem:[#allocation6 + $0x6e0] sm:$0xff]
    %v4845 = vld [vmem:[#allocation6 + $0x700] sm:$0xff]
    %v4846 = vld [vmem:[#allocation6 + $0x720] sm:$0xff]
    %v4847 = vld [vmem:[#allocation6 + $0x740] sm:$0xff]
    %v4848 = vld [vmem:[#allocation6 + $0x760] sm:$0xff]
    %v4849 = vld [vmem:[#allocation6 + $0x780] sm:$0xff]
    %v4850 = vld [vmem:[#allocation6 + $0x7a0] sm:$0xff]
    %v4851 = vld [vmem:[#allocation6 + $0x7c0] sm:$0xff]
    %v4852 = vld [vmem:[#allocation6 + $0x7e0] sm:$0xff]
    %v4853 = vld [vmem:[#allocation6 + $0x800] sm:$0xff]
    %v4854 = vld [vmem:[#allocation6 + $0x820] sm:$0xff]
    %v4855 = vld [vmem:[#allocation6 + $0x840] sm:$0xff]
    %4856 = vmatprep.subr.mxu0 0.0
    %4857 = vmatpush1.msra.mxu0 %v4840
    %4858 = vmatprep.subr.mxu0 0.0
    %4859 = vmatpush1.msra.mxu0 %v4841
    %4860 = vmatprep.subr.mxu0 0.0
    %4861 = vmatpush1.msra.mxu0 %v4842
    %4862 = vmatprep.subr.mxu0 0.0
    %4863 = vmatpush1.msra.mxu0 %v4843
    %4864 = vmatprep.subr.mxu0 0.0
    %4865 = vmatpush1.msra.mxu0 %v4844
    %4866 = vmatprep.subr.mxu0 0.0
    %4867 = vmatpush1.msra.mxu0 %v4845
    %4868 = vmatprep.subr.mxu0 0.0
    %4869 = vmatpush1.msra.mxu0 %v4846
    %4870 = vmatprep.subr.mxu0 0.0
    %4871 = vmatpush1.msra.mxu0 %v4847
    %4872 = vmatprep.subr.mxu0 0.0
    %4873 = vmatpush1.msra.mxu0 %v4848
    %4874 = vmatprep.subr.mxu0 0.0
    %4875 = vmatpush1.msra.mxu0 %v4849
    %4876 = vmatprep.subr.mxu0 0.0
    %4877 = vmatpush1.msra.mxu0 %v4850
    %4878 = vmatprep.subr.mxu0 0.0
    %4879 = vmatpush1.msra.mxu0 %v4851
    %4880 = vmatprep.subr.mxu0 0.0
    %4881 = vmatpush1.msra.mxu0 %v4852
    %4882 = vmatprep.subr.mxu0 0.0
    %4883 = vmatpush1.msra.mxu0 %v4853
    %4884 = vmatprep.subr.mxu0 0.0
    %4885 = vmatpush1.msra.mxu0 %v4854
    %4886 = vmatprep.subr.mxu0 0.0
    %4887 = vmatpush1.msra.mxu0 %v4855
    %4888 = vmatprep.subr.mxu0 0.0
    %4889 = vmatpush1.msra.mxu0 0.0
    %4890 = vmatprep.subr.mxu0 0.0
    %4891 = vmatpush1.msra.mxu0 0.0
    %4892 = vmatprep.subr.mxu0 0.0
    %4893 = vmatpush1.msra.mxu0 0.0
    %4894 = vmatprep.subr.mxu0 0.0
    %4895 = vmatpush1.msra.mxu0 0.0
    %4896 = vmatprep.subr.mxu0 0.0
    %4897 = vmatpush1.msra.mxu0 0.0
    %4898 = vmatprep.subr.mxu0 0.0
    %4899 = vmatpush1.msra.mxu0 0.0
    %4900 = vmatprep.subr.mxu0 0.0
    %4901 = vmatpush1.msra.mxu0 0.0
    %4902 = vmatprep.subr.mxu0 0.0
    %4903 = vmatpush1.msra.mxu0 0.0
    %4904 = vmatprep.subr.mxu0 0.0
    %4905 = vmatpush1.msra.mxu0 0.0
    %4906 = vmatprep.subr.mxu0 0.0
    %4907 = vmatpush1.msra.mxu0 0.0
    %4908 = vmatprep.subr.mxu0 0.0
    %4909 = vmatpush1.msra.mxu0 0.0
    %4910 = vmatprep.subr.mxu0 0.0
    %4911 = vmatpush1.msra.mxu0 0.0
    %4912 = vmatprep.subr.mxu0 0.0
    %4913 = vmatpush1.msra.mxu0 0.0
    %4914 = vmatprep.subr.mxu0 0.0
    %4915 = vmatpush1.msra.mxu0 0.0
    %4916 = vmatprep.subr.mxu0 0.0
    %4917 = vmatpush1.msra.mxu0 0.0
    %4918 = vmatprep.subr.mxu0 0.0
    %4919 = vmatpush1.msra.mxu0 0.0
    %4920 = vmatprep.mubr.f32.mxu0 0.0
    %4921 = vmatmul.mubr.f32.gmra.mrb[0].mxu0 %v4832
    %v4922 = vpop.f32.mrb[0].mxu0
    %v4923 = vadd.f32 0.0, %v4922
    %v4924 = vpop.f32.mrb[0].mxu0
    %4925 = vmatprep.mubr.f32.mxu0 0.0
    %4926 = vmatmul.mubr.f32.gmra.mrb[0].mxu0 %v4833
    %v4927 = vpop.f32.mrb[0].mxu0
    %v4928 = vadd.f32 0.0, %v4927
    %v4929 = vpop.f32.mrb[0].mxu0
    %4930 = vmatprep.mubr.f32.mxu0 0.0
    %4931 = vmatmul.mubr.f32.gmra.mrb[0].mxu0 %v4834
    %v4932 = vpop.f32.mrb[0].mxu0
    %v4933 = vadd.f32 0.0, %v4932
    %v4934 = vpop.f32.mrb[0].mxu0
    %4935 = vmatprep.mubr.f32.mxu0 0.0
    %4936 = vmatmul.mubr.f32.gmra.mrb[0].mxu0 %v4835
    %v4937 = vpop.f32.mrb[0].mxu0
    %v4938 = vadd.f32 0.0, %v4937
    %v4939 = vpop.f32.mrb[0].mxu0
    %4940 = vmatprep.mubr.f32.mxu0 0.0
    %4941 = vmatmul.mubr.f32.gmra.mrb[0].mxu0 %v4836
    %v4942 = vpop.f32.mrb[0].mxu0
    %v4943 = vadd.f32 0.0, %v4942
    %v4944 = vpop.f32.mrb[0].mxu0
    %4945 = vmatprep.mubr.f32.mxu0 0.0
    %4946 = vmatmul.mubr.f32.gmra.mrb[0].mxu0 %v4837
    %v4947 = vpop.f32.mrb[0].mxu0
    %v4948 = vadd.f32 0.0, %v4947
    %v4949 = vpop.f32.mrb[0].mxu0
    %4950 = vmatprep.mubr.f32.mxu0 0.0
    %4951 = vmatmul.mubr.f32.gmra.mrb[0].mxu0 %v4838
    %v4952 = vpop.f32.mrb[0].mxu0
    %v4953 = vadd.f32 0.0, %v4952
    %v4954 = vpop.f32.mrb[0].mxu0
    %4955 = vmatprep.mubr.f32.mxu0 0.0
    %4956 = vmatmul.mubr.f32.gmra.mrb[0].mxu0 %v4839
    %v4957 = vpop.f32.mrb[0].mxu0
    %v4958 = vadd.f32 0.0, %v4957
    %v4959 = vpop.f32.mrb[0].mxu0
    %4960 = vdwg.mxu0
    %v4961 = vmax.f32 %v4923, 0.0
    %v4962 = vmax.f32 %v4928, 0.0
    %v4963 = vmax.f32 %v4933, 0.0
    %v4964 = vmax.f32 %v4938, 0.0
    %v4965 = vmax.f32 %v4943, 0.0
    %v4966 = vmax.f32 %v4948, 0.0
    %v4967 = vmax.f32 %v4953, 0.0
    %v4968 = vmax.f32 %v4958, 0.0
    %v4969 = vld [vmem:[#allocation6 + $0x860] sm:$0xff]
    %v4970 = vld [vmem:[#allocation6 + $0x880] sm:$0xff]
    %v4971 = vld [vmem:[#allocation6 + $0x8a0] sm:$0xff]
    %v4972 = vld [vmem:[#allocation6 + $0x8c0] sm:$0xff]
    %v4973 = vld [vmem:[#allocation6 + $0x8e0] sm:$0xff]
    %v4974 = vld [vmem:[#allocation6 + $0x900] sm:$0xff]
    %v4975 = vld [vmem:[#allocation6 + $0x920] sm:$0xff]
    %v4976 = vld [vmem:[#allocation6 + $0x940] sm:$0xff]
    %v4977 = vld [vmem:[#allocation6 + $0x960] ss:$0 sm:$0xff]
    %v4979 = vsel %vm202, %v4961, 0
    %v4982 = vsel %vm202, %v4962, 0
    %v4985 = vsel %vm202, %v4963, 0
    %v4988 = vsel %vm202, %v4964, 0
    %v4991 = vsel %vm202, %v4965, 0
    %v4994 = vsel %vm202, %v4966, 0
    %v4997 = vsel %vm202, %v4967, 0
    %v5000 = vsel %vm202, %v4968, 0
    %5002 = vmatprep.subr.mxu0 0.0
    %5003 = vmatpush1.msra.mxu0 %v4969
    %5004 = vmatprep.subr.mxu0 0.0
    %5005 = vmatpush1.msra.mxu0 %v4970
    %5006 = vmatprep.subr.mxu0 0.0
    %5007 = vmatpush1.msra.mxu0 %v4971
    %5008 = vmatprep.subr.mxu0 0.0
    %5009 = vmatpush1.msra.mxu0 %v4972
    %5010 = vmatprep.subr.mxu0 0.0
    %5011 = vmatpush1.msra.mxu0 %v4973
    %5012 = vmatprep.subr.mxu0 0.0
    %5013 = vmatpush1.msra.mxu0 %v4974
    %5014 = vmatprep.subr.mxu0 0.0
    %5015 = vmatpush1.msra.mxu0 %v4975
    %5016 = vmatprep.subr.mxu0 0.0
    %5017 = vmatpush1.msra.mxu0 %v4976
    %5018 = vmatprep.subr.mxu0 0.0
    %5019 = vmatpush1.msra.mxu0 0.0
    %5020 = vmatprep.subr.mxu0 0.0
    %5021 = vmatpush1.msra.mxu0 0.0
    %5022 = vmatprep.subr.mxu0 0.0
    %5023 = vmatpush1.msra.mxu0 0.0
    %5024 = vmatprep.subr.mxu0 0.0
    %5025 = vmatpush1.msra.mxu0 0.0
    %5026 = vmatprep.subr.mxu0 0.0
    %5027 = vmatpush1.msra.mxu0 0.0
    %5028 = vmatprep.subr.mxu0 0.0
    %5029 = vmatpush1.msra.mxu0 0.0
    %5030 = vmatprep.subr.mxu0 0.0
    %5031 = vmatpush1.msra.mxu0 0.0
    %5032 = vmatprep.subr.mxu0 0.0
    %5033 = vmatpush1.msra.mxu0 0.0
    %5034 = vmatprep.subr.mxu0 0.0
    %5035 = vmatpush1.msra.mxu0 0.0
    %5036 = vmatprep.subr.mxu0 0.0
    %5037 = vmatpush1.msra.mxu0 0.0
    %5038 = vmatprep.subr.mxu0 0.0
    %5039 = vmatpush1.msra.mxu0 0.0
    %5040 = vmatprep.subr.mxu0 0.0
    %5041 = vmatpush1.msra.mxu0 0.0
    %5042 = vmatprep.subr.mxu0 0.0
    %5043 = vmatpush1.msra.mxu0 0.0
    %5044 = vmatprep.subr.mxu0 0.0
    %5045 = vmatpush1.msra.mxu0 0.0
    %5046 = vmatprep.subr.mxu0 0.0
    %5047 = vmatpush1.msra.mxu0 0.0
    %5048 = vmatprep.subr.mxu0 0.0
    %5049 = vmatpush1.msra.mxu0 0.0
    %5050 = vmatprep.subr.mxu0 0.0
    %5051 = vmatpush1.msra.mxu0 0.0
    %5052 = vmatprep.subr.mxu0 0.0
    %5053 = vmatpush1.msra.mxu0 0.0
    %5054 = vmatprep.subr.mxu0 0.0
    %5055 = vmatpush1.msra.mxu0 0.0
    %5056 = vmatprep.subr.mxu0 0.0
    %5057 = vmatpush1.msra.mxu0 0.0
    %5058 = vmatprep.subr.mxu0 0.0
    %5059 = vmatpush1.msra.mxu0 0.0
    %5060 = vmatprep.subr.mxu0 0.0
    %5061 = vmatpush1.msra.mxu0 0.0
    %5062 = vmatprep.subr.mxu0 0.0
    %5063 = vmatpush1.msra.mxu0 0.0
    %5064 = vmatprep.subr.mxu0 0.0
    %5065 = vmatpush1.msra.mxu0 0.0
    %5066 = vmatprep.mubr.f32.mxu0 0.0
    %5067 = vmatmul.mubr.f32.gmra.mrb[0].mxu0 %v4979
    %v5068 = vpop.f32.mrb[0].mxu0
    %v5069 = vadd.f32 %v4977, %v5068
    %v5070 = vpop.f32.mrb[0].mxu0
    %5071 = vmatprep.mubr.f32.mxu0 0.0
    %5072 = vmatmul.mubr.f32.gmra.mrb[0].mxu0 %v4982
    %v5073 = vpop.f32.mrb[0].mxu0
    %v5074 = vadd.f32 %v4977, %v5073
    %v5075 = vpop.f32.mrb[0].mxu0
    %5076 = vmatprep.mubr.f32.mxu0 0.0
    %5077 = vmatmul.mubr.f32.gmra.mrb[0].mxu0 %v4985
    %v5078 = vpop.f32.mrb[0].mxu0
    %v5079 = vadd.f32 %v4977, %v5078
    %v5080 = vpop.f32.mrb[0].mxu0
    %5081 = vmatprep.mubr.f32.mxu0 0.0
    %5082 = vmatmul.mubr.f32.gmra.mrb[0].mxu0 %v4988
    %v5083 = vpop.f32.mrb[0].mxu0
    %v5084 = vadd.f32 %v4977, %v5083
    %v5085 = vpop.f32.mrb[0].mxu0
    %5086 = vmatprep.mubr.f32.mxu0 0.0
    %5087 = vmatmul.mubr.f32.gmra.mrb[0].mxu0 %v4991
    %v5088 = vpop.f32.mrb[0].mxu0
    %v5089 = vadd.f32 %v4977, %v5088
    %v5090 = vpop.f32.mrb[0].mxu0
    %5091 = vmatprep.mubr.f32.mxu0 0.0
    %5092 = vmatmul.mubr.f32.gmra.mrb[0].mxu0 %v4994
    %v5093 = vpop.f32.mrb[0].mxu0
    %v5094 = vadd.f32 %v4977, %v5093
    %v5095 = vpop.f32.mrb[0].mxu0
    %5096 = vmatprep.mubr.f32.mxu0 0.0
    %5097 = vmatmul.mubr.f32.gmra.mrb[0].mxu0 %v4997
    %v5098 = vpop.f32.mrb[0].mxu0
    %v5099 = vadd.f32 %v4977, %v5098
    %v5100 = vpop.f32.mrb[0].mxu0
    %5101 = vmatprep.mubr.f32.mxu0 0.0
    %5102 = vmatmul.mubr.f32.gmra.mrb[0].mxu0 %v5000
    %v5103 = vpop.f32.mrb[0].mxu0
    %v5104 = vadd.f32 %v4977, %v5103
    %v5105 = vpop.f32.mrb[0].mxu0
    %5106 = vdwg.mxu0
    %v5107 = vmax.f32 %v5069, 0.0
    %v5108 = vmax.f32 %v5074, 0.0
    %v5109 = vmax.f32 %v5079, 0.0
    %v5110 = vmax.f32 %v5084, 0.0
    %v5111 = vmax.f32 %v5089, 0.0
    %v5112 = vmax.f32 %v5094, 0.0
    %v5113 = vmax.f32 %v5099, 0.0
    %v5114 = vmax.f32 %v5104, 0.0
    %v5115 = vld [vmem:[#allocation6 + $0x980] sm:$0xff]
    %v5116 = vld [vmem:[#allocation6 + $0x9a0] sm:$0xff]
    %v5117 = vld [vmem:[#allocation6 + $0x9c0] sm:$0xff]
    %v5118 = vld [vmem:[#allocation6 + $0x9e0] sm:$0xff]
    %v5119 = vld [vmem:[#allocation6 + $0xa00] ss:$0 sm:$0xff]
    %vm5120 = vcmask 261120
    %v5122 = vsel %vm5120, %v5107, 0
    %v5125 = vsel %vm5120, %v5108, 0
    %v5128 = vsel %vm5120, %v5109, 0
    %v5131 = vsel %vm5120, %v5110, 0
    %v5134 = vsel %vm5120, %v5111, 0
    %v5137 = vsel %vm5120, %v5112, 0
    %v5140 = vsel %vm5120, %v5113, 0
    %v5143 = vsel %vm5120, %v5114, 0
    %5145 = vmatprep.subr.mxu0 0.0
    %5146 = vmatpush1.msra.mxu0 %v5115
    %5147 = vmatprep.subr.mxu0 0.0
    %5148 = vmatpush1.msra.mxu0 %v5116
    %5149 = vmatprep.subr.mxu0 0.0
    %5150 = vmatpush1.msra.mxu0 %v5117
    %5151 = vmatprep.subr.mxu0 0.0
    %5152 = vmatpush1.msra.mxu0 %v5118
    %5153 = vmatprep.subr.mxu0 0.0
    %5154 = vmatpush1.msra.mxu0 0.0
    %5155 = vmatprep.subr.mxu0 0.0
    %5156 = vmatpush1.msra.mxu0 0.0
    %5157 = vmatprep.subr.mxu0 0.0
    %5158 = vmatpush1.msra.mxu0 0.0
    %5159 = vmatprep.subr.mxu0 0.0
    %5160 = vmatpush1.msra.mxu0 0.0
    %5161 = vmatprep.subr.mxu0 0.0
    %5162 = vmatpush1.msra.mxu0 0.0
    %5163 = vmatprep.subr.mxu0 0.0
    %5164 = vmatpush1.msra.mxu0 0.0
    %5165 = vmatprep.subr.mxu0 0.0
    %5166 = vmatpush1.msra.mxu0 0.0
    %5167 = vmatprep.subr.mxu0 0.0
    %5168 = vmatpush1.msra.mxu0 0.0
    %5169 = vmatprep.subr.mxu0 0.0
    %5170 = vmatpush1.msra.mxu0 0.0
    %5171 = vmatprep.subr.mxu0 0.0
    %5172 = vmatpush1.msra.mxu0 0.0
    %5173 = vmatprep.subr.mxu0 0.0
    %5174 = vmatpush1.msra.mxu0 0.0
    %5175 = vmatprep.subr.mxu0 0.0
    %5176 = vmatpush1.msra.mxu0 0.0
    %5177 = vmatprep.subr.mxu0 0.0
    %5178 = vmatpush1.msra.mxu0 0.0
    %5179 = vmatprep.subr.mxu0 0.0
    %5180 = vmatpush1.msra.mxu0 0.0
    %5181 = vmatprep.subr.mxu0 0.0
    %5182 = vmatpush1.msra.mxu0 0.0
    %5183 = vmatprep.subr.mxu0 0.0
    %5184 = vmatpush1.msra.mxu0 0.0
    %5185 = vmatprep.subr.mxu0 0.0
    %5186 = vmatpush1.msra.mxu0 0.0
    %5187 = vmatprep.subr.mxu0 0.0
    %5188 = vmatpush1.msra.mxu0 0.0
    %5189 = vmatprep.subr.mxu0 0.0
    %5190 = vmatpush1.msra.mxu0 0.0
    %5191 = vmatprep.subr.mxu0 0.0
    %5192 = vmatpush1.msra.mxu0 0.0
    %5193 = vmatprep.subr.mxu0 0.0
    %5194 = vmatpush1.msra.mxu0 0.0
    %5195 = vmatprep.subr.mxu0 0.0
    %5196 = vmatpush1.msra.mxu0 0.0
    %5197 = vmatprep.subr.mxu0 0.0
    %5198 = vmatpush1.msra.mxu0 0.0
    %5199 = vmatprep.subr.mxu0 0.0
    %5200 = vmatpush1.msra.mxu0 0.0
    %5201 = vmatprep.subr.mxu0 0.0
    %5202 = vmatpush1.msra.mxu0 0.0
    %5203 = vmatprep.subr.mxu0 0.0
    %5204 = vmatpush1.msra.mxu0 0.0
    %5205 = vmatprep.subr.mxu0 0.0
    %5206 = vmatpush1.msra.mxu0 0.0
    %5207 = vmatprep.subr.mxu0 0.0
    %5208 = vmatpush1.msra.mxu0 0.0
    %5209 = vmatprep.mubr.f32.mxu0 0.0
    %5210 = vmatmul.mubr.f32.gmra.mrb[0].mxu0 %v5122
    %v5211 = vpop.f32.mrb[0].mxu0
    %v5212 = vadd.f32 %v5119, %v5211
    %v5213 = vpop.f32.mrb[0].mxu0
    %5214 = vmatprep.mubr.f32.mxu0 0.0
    %5215 = vmatmul.mubr.f32.gmra.mrb[0].mxu0 %v5125
    %v5216 = vpop.f32.mrb[0].mxu0
    %v5217 = vadd.f32 %v5119, %v5216
    %v5218 = vpop.f32.mrb[0].mxu0
    %5219 = vmatprep.mubr.f32.mxu0 0.0
    %5220 = vmatmul.mubr.f32.gmra.mrb[0].mxu0 %v5128
    %v5221 = vpop.f32.mrb[0].mxu0
    %v5222 = vadd.f32 %v5119, %v5221
    %v5223 = vpop.f32.mrb[0].mxu0
    %5224 = vmatprep.mubr.f32.mxu0 0.0
    %5225 = vmatmul.mubr.f32.gmra.mrb[0].mxu0 %v5131
    %v5226 = vpop.f32.mrb[0].mxu0
    %v5227 = vadd.f32 %v5119, %v5226
    %v5228 = vpop.f32.mrb[0].mxu0
    %5229 = vmatprep.mubr.f32.mxu0 0.0
    %5230 = vmatmul.mubr.f32.gmra.mrb[0].mxu0 %v5134
    %v5231 = vpop.f32.mrb[0].mxu0
    %v5232 = vadd.f32 %v5119, %v5231
    %v5233 = vpop.f32.mrb[0].mxu0
    %5234 = vmatprep.mubr.f32.mxu0 0.0
    %5235 = vmatmul.mubr.f32.gmra.mrb[0].mxu0 %v5137
    %v5236 = vpop.f32.mrb[0].mxu0
    %v5237 = vadd.f32 %v5119, %v5236
    %v5238 = vpop.f32.mrb[0].mxu0
    %5239 = vmatprep.mubr.f32.mxu0 0.0
    %5240 = vmatmul.mubr.f32.gmra.mrb[0].mxu0 %v5140
    %v5241 = vpop.f32.mrb[0].mxu0
    %v5242 = vadd.f32 %v5119, %v5241
    %v5243 = vpop.f32.mrb[0].mxu0
    %5244 = vmatprep.mubr.f32.mxu0 0.0
    %5245 = vmatmul.mubr.f32.gmra.mrb[0].mxu0 %v5143
    %v5246 = vpop.f32.mrb[0].mxu0
    %v5247 = vadd.f32 %v5119, %v5246
    %v5248 = vpop.f32.mrb[0].mxu0
    %5249 = vdwg.mxu0
    %vm5250 = vcmask 31744
    %5251 = vst.msk [vmem:[%s2] sm:$0xff] %vm5250, %v5212
    %5252 = vst.msk [vmem:[%s2 + $0x8] sm:$0xff] %vm5250, %v5217
    %5253 = vst.msk [vmem:[%s2 + $0x10] sm:$0xff] %vm5250, %v5222
    %5254 = vst.msk [vmem:[%s2 + $0x18] sm:$0xff] %vm5250, %v5227
    %5255 = vst.msk [vmem:[%s2 + $0x20] sm:$0xff] %vm5250, %v5232
    %5256 = vst.msk [vmem:[%s2 + $0x28] sm:$0xff] %vm5250, %v5237
    %5257 = vst.msk [vmem:[%s2 + $0x30] sm:$0xff] %vm5250, %v5242
    %5258 = vst.msk [vmem:[%s2 + $0x38] sm:$0xff] %vm5250, %v5247
    // Predicated region
    $region14: #{tpu_custom_call.1} parent=1 // pred_check
      _
    $region15: #{tpu_custom_call.1} parent=1 // pred_check_branch
      %5260 = sbr.rel (0) target = $region17
    $region16: #{tpu_custom_call.1} parent=1 // pred_region
      _
    $region17: #{tpu_custom_call.1} parent=1 // pred_fallthru
      _
    // Predicated region
    $region18: #{tpu_custom_call.1} parent=1 // pred_check
      _
    $region19: #{tpu_custom_call.1} parent=1 // pred_check_branch
      %5262 = sbr.rel (0) target = $region21
    $region20: #{tpu_custom_call.1} parent=1 // pred_region
      _
    $region21: #{tpu_custom_call.1} parent=1 // pred_fallthru
      _
    %5263 = vsyncpa [#allocation7], 1

</llo_original>
